<compile_context>
chip_gen: v5e
topology: v5e:2x2
jax: 0.10.0
libtpu: 0.0.40
codegen_flags: <defaults>
</compile_context>

<pallas_src>
import numpy as np
import jax
import jax.numpy as jnp
from jax.experimental import pallas as pl
from jax.experimental.pallas import tpu as pltpu

# ---- model dimensions (ContinuousRNNConverter: total hidden = C_IN + H_RNN) ----
C_IN = 4          # input_channels
H_RNN = 16        # hidden_channels of the wrapped RNN cell
H_TOTAL = C_IN + H_RNN
OUT_CH = 3        # output_channels
B = 2             # batch
T = 8             # number of observation times
N_STAGE = 4       # 3/8-rule RK4 stages per interval


def _tree_sum(vals):
    """Balanced-tree reduction: dependency depth ~log2(K) instead of a length-K add chain."""
    vals = list(vals)
    while len(vals) > 1:
        nxt = [vals[i] + vals[i + 1] for i in range(0, len(vals) - 1, 2)]
        if len(vals) & 1:
            nxt.append(vals[-1])
        vals = nxt
    return vals[0]


def _vpu_matmul(x, w):
    """Tiny (B,K)@(K,N) matmul: K independent broadcast products, then a tree-sum.

    At M=B=2 the MXU push / result-FIFO pop latency dominates on v5e/v6e, so the VPU
    path is used; products issue in parallel across VALU slots, the reduction is log-depth.
    """
    prods = [x[:, k:k + 1] * w[k:k + 1, :] for k in range(w.shape[0])]
    return _tree_sum(prods)


def _cde_kernel(pre_ref,          # ((T-1)*N_STAGE*2, B, H_RNN): per stage [2s]=zx_stage@Wx+bh,
                                  #                              [2s+1]=dt*dX0 (broadcast over H)
                yx_ref,           # (B, T, OUT_CH): precomputed zx_t @ Wlx + bl
                wh_ref,           # (H_RNN, H_RNN): RNN cell hidden weight
                wlh_ref,          # (H_RNN, OUT_CH): zh part of the final linear
                y_ref,            # (B, T, OUT_CH): output
                zh_sc):           # (B, T, H_RNN) VMEM scratch: zh trajectory
    wh = wh_ref[...]
    wlh = wlh_ref[...]
    third = np.float32(1.0 / 3.0)

    # z0 = zeros(batch, hidden_total)  -> zh part is zeros (zx handled in the wrapper)
    zh = jnp.zeros((B, H_RNN), jnp.float32)
    zh_sc[:, 0:1, :] = zh[:, None, :]

    # fully-unrolled static time loop; only the zh recurrence (28 dependent RK stages)
    # lives on the serial chain.
    for t in range(T - 1):
        base = t * 2 * N_STAGE

        def stage(s, zh_s):
            xp = pre_ref[base + 2 * s]         # state-independent, off-chain load
            dx = pre_ref[base + 2 * s + 1]     # dt * dX/dt[..., 0], pre-broadcast over H
            h = jnp.clip(zh_s, -1.0, 1.0)
            return jnp.tanh(_vpu_matmul(h, wh) + xp) * dx

        # torchdiffeq 'rk4' == rk4_alt_step_func (3/8 rule); dt already folded into `dx`,
        # so every stage-combine coefficient is a compile-time constant.
        k1 = stage(0, zh)
        k2 = stage(1, zh + k1 * third)
        k3 = stage(2, zh + (k2 - k1 * third))
        k4 = stage(3, zh + (k1 - k2 + k3))
        zh = zh + (k1 + 3.0 * (k2 + k3) + k4) * np.float32(0.125)
        zh_sc[:, t + 1:t + 2, :] = zh[:, None, :]

    # ---- batched read-out, fully off the serial chain: one contraction, one sigmoid,
    # ---- one full-slab output store.
    zh_all = zh_sc[...]                                              # (B, T, H_RNN)
    prods = [zh_all[:, :, h:h + 1] * wlh[h:h + 1, :] for h in range(H_RNN)]
    y_ref[...] = jax.nn.sigmoid(yx_ref[...] + _tree_sum(prods))


@jax.jit
def neural_cde_forward(times, coeffs, final_index, params):
    """stream=True forward of NeuralCDE(ContinuousRNNConverter(...)). final_index is ignored
    (exactly as in the PyTorch module when stream=True)."""
    del final_index
    _, b, two_c, three_d = coeffs                 # each (B, T-1, C_IN); `a` unused by derivative
    wx, wh, bh, wl, bl = params
    wlx, wlh = wl[:C_IN], wl[C_IN:]
    hi = jax.lax.Precision.HIGHEST
    f32 = jnp.float32
    third = np.float32(1.0 / 3.0)

    b = b.astype(f32)
    two_c = two_c.astype(f32)
    three_d = three_d.astype(f32)

    # ---------- state-independent precompute (vectorized, off the serial chain) ----------
    dts = (times[1:] - times[:-1]).astype(f32)                        # (T-1,)
    dt3 = dts[:, None, None]                                          # (T-1,1,1)
    dt4 = dts[:, None, None, None]                                    # (T-1,1,1,1)

    # dX/dt at the four 3/8-rule stage offsets {0, dt/3, 2dt/3, dt} of every interval
    frac = dts[:, None] * jnp.array([0.0, 1.0 / 3.0, 2.0 / 3.0, 1.0], f32)   # (T-1,4)
    frac = frac[:, :, None, None]                                            # (T-1,4,1,1)
    bb = jnp.transpose(b, (1, 0, 2))[:, None]                                # (T-1,1,B,C_IN)
    cc = jnp.transpose(two_c, (1, 0, 2))[:, None]
    dd = jnp.transpose(three_d, (1, 0, 2))[:, None]
    dX = bb + (cc + dd * frac) * frac                                        # (T-1,4,B,C_IN)
    k1x, k2x, k3x, k4x = dX[:, 0], dX[:, 1], dX[:, 2], dX[:, 3]              # (T-1,B,C_IN)

    # zx trajectory: dzx/dt = dX/dt is state-independent, so the RK update is a cumsum
    incr = (k1x + 3.0 * (k2x + k3x) + k4x) * (dt3 * 0.125)                   # (T-1,B,C_IN)
    zx_traj = jnp.concatenate([jnp.zeros((1, B, C_IN), f32),
                               jnp.cumsum(incr, axis=0)], axis=0)            # (T,B,C_IN)
    zx0 = zx_traj[:-1]                                                       # interval-start zx

    # zx fed into each RK stage, projected through the RNN-cell input weight (+ bias)
    zx_stages = jnp.stack([zx0,
                           zx0 + dt3 * (k1x * third),
                           zx0 + dt3 * (k2x - k1x * third),
                           zx0 + dt3 * (k1x - k2x + k3x)], axis=1)           # (T-1,4,B,C_IN)
    xproj = jnp.einsum('tsbc,ch->tsbh', zx_stages, wx, precision=hi) + bh    # (T-1,4,B,H_RNN)

    # dt-scaled dX0 (the factor multiplying model_out), pre-broadcast over H_RNN so the
    # kernel's post-tanh multiply needs no lane broadcast.
    dx0 = jnp.broadcast_to(dt4 * dX[:, :, :, 0:1], (T - 1, N_STAGE, B, H_RNN))

    # pack both per-stage operands into ONE slab -> one prologue DMA
    pre = jnp.stack([xproj, dx0], axis=2).reshape((T - 1) * N_STAGE * 2, B, H_RNN)

    # zx part of the read-out (stream=True: sigmoid(Linear(z_t)) at every observation time)
    zx_obs = jnp.transpose(zx_traj, (1, 0, 2))                               # (B,T,C_IN)
    yx = jnp.einsum('btc,co->bto', zx_obs, wlx, precision=hi) + bl           # (B,T,OUT_CH)

    full3 = lambda i: (0, 0, 0)
    full2 = lambda i: (0, 0)

    grid_spec = pltpu.PrefetchScalarGridSpec(
        num_scalar_prefetch=0,
        grid=(1,),                                # single grid step: whole recurrence in-kernel
        in_specs=[pl.BlockSpec(((T - 1) * N_STAGE * 2, B, H_RNN), full3),
                  pl.BlockSpec((B, T, OUT_CH), full3),
                  pl.BlockSpec((H_RNN, H_RNN), full2),
                  pl.BlockSpec((H_RNN, OUT_CH), full2)],
        out_specs=pl.BlockSpec((B, T, OUT_CH), full3),
        scratch_shapes=[pltpu.VMEM((B, T, H_RNN), jnp.float32)],
    )

    y = pl.pallas_call(
        _cde_kernel,
        out_shape=jax.ShapeDtypeStruct((B, T, OUT_CH), jnp.float32),
        grid_spec=grid_spec,
        compiler_params=pltpu.CompilerParams(dimension_semantics=("arbitrary",)),
    )(pre, yx, wh.astype(f32), wlh.astype(f32))

    # already in the PyTorch stream=True layout: (batch, time, output_channels)
    return y


def reference_forward(times, coeffs, params):
    """Pure-JAX reference of the same math (correctness sanity check)."""
    _, b, c, d = coeffs
    wx, wh, bh, wl, bl = params
    hi = jax.lax.Precision.HIGHEST
    z = jnp.zeros((B, H_TOTAL), jnp.float32)
    outs = [z]
    for i in range(1, T):
        dt = times[i] - times[i - 1]
        bb, cc, dd = b[:, i - 1], c[:, i - 1], d[:, i - 1]

        def dX(frac):
            return bb + (cc + dd * frac) * frac

        def f(frac, z):
            x = z[:, :C_IN]
            h = jnp.clip(z[:, C_IN:], -1.0, 1.0)
            mo = jnp.tanh(jnp.dot(x, wx, precision=hi) + jnp.dot(h, wh, precision=hi) + bh)
            dXv = dX(frac)
            return jnp.concatenate([dXv, mo * dXv[:, 0:1]], axis=-1)

        third = 1.0 / 3.0
        k1 = f(0.0, z)
        k2 = f(dt * third, z + dt * k1 * third)
        k3 = f(2.0 * dt * third, z + dt * (k2 - k1 * third))
        k4 = f(dt, z + dt * (k1 - k2 + k3))
        z = z + (k1 + 3.0 * (k2 + k3) + k4) * dt * 0.125
        outs.append(z)
    zt = jnp.stack(outs, axis=1)                  # (B, T, H_TOTAL)
    return jax.nn.sigmoid(jnp.dot(zt, wl, precision=hi) + bl)


if __name__ == "__main__":
    key = jax.random.PRNGKey(0)
    k = jax.random.split(key, 10)

    # uniform observation times (dt = 0.25) so that the 'rk4' solver grid == times
    times = jnp.arange(T, dtype=jnp.float32) * 0.25

    # synthetic natural-cubic-spline coefficients (what natural_cubic_spline_coeffs would return)
    a       = 0.5 * jax.random.normal(k[0], (B, T - 1, C_IN), jnp.float32)
    b       = 0.5 * jax.random.normal(k[1], (B, T - 1, C_IN), jnp.float32)
    two_c   = 0.5 * jax.random.normal(k[2], (B, T - 1, C_IN), jnp.float32)
    three_d = 0.5 * jax.random.normal(k[3], (B, T - 1, C_IN), jnp.float32)
    coeffs = (a, b, two_c, three_d)

    final_index = jnp.full((B,), T - 1, dtype=jnp.int32)   # ignored (stream=True)

    # deterministic parameter init (synthetic; shapes from the module's __init__)
    wx = 0.2 * jax.random.normal(k[4], (C_IN, H_RNN), jnp.float32)      # RNN cell input weight
    wh = 0.2 * jax.random.normal(k[5], (H_RNN, H_RNN), jnp.float32)     # RNN cell hidden weight
    bh = 0.1 * jax.random.normal(k[6], (H_RNN,), jnp.float32)           # RNN cell bias
    wl = 0.2 * jax.random.normal(k[7], (H_TOTAL, OUT_CH), jnp.float32)  # self.linear weight (in, out)
    bl = 0.1 * jax.random.normal(k[8], (OUT_CH,), jnp.float32)          # self.linear bias
    params = (wx, wh, bh, wl, bl)

    y = neural_cde_forward(times, coeffs, final_index, params)
    y = jax.block_until_ready(y)

    y_ref = reference_forward(times, coeffs, params)
    np.testing.assert_allclose(np.asarray(y), np.asarray(y_ref), rtol=1e-3, atol=1e-3)
    assert y.shape == (B, T, OUT_CH)

    print("KERNEL_OK")
</pallas_src>

<mosaic_0001>
module attributes {stable_mosaic.version = 11 : i64} {
  func.func @_cde_kernel(%arg0: i32, %arg1: memref<56x2x16xf32, #tpu.memory_space<vmem>>, %arg2: memref<2x8x3xf32, #tpu.memory_space<vmem>>, %arg3: memref<16x16xf32, #tpu.memory_space<vmem>>, %arg4: memref<16x3xf32, #tpu.memory_space<vmem>>, %arg5: memref<2x8x3xf32, #tpu.memory_space<vmem>>, %arg6: memref<2x8x16xf32, #tpu.memory_space<vmem>>) attributes {dimension_semantics = [#tpu.dimension_semantics<arbitrary>], iteration_bounds = array<i64: 1>, scalar_prefetch = 0 : i64, scratch_operands = 1 : i64, tpu.core_type = #tpu.core_type<tc>, window_params = [{pipeline_mode = #tpu.pipeline_mode<synchronous>, transform_indices = @transform_0, window_bounds = array<i64: 56, 2, 16>}, {pipeline_mode = #tpu.pipeline_mode<synchronous>, transform_indices = @transform_1, window_bounds = array<i64: 2, 8, 3>}, {pipeline_mode = #tpu.pipeline_mode<synchronous>, transform_indices = @transform_2, window_bounds = array<i64: 16, 16>}, {pipeline_mode = #tpu.pipeline_mode<synchronous>, transform_indices = @transform_3, window_bounds = array<i64: 16, 3>}, {pipeline_mode = #tpu.pipeline_mode<synchronous>, transform_indices = @transform_4, window_bounds = array<i64: 2, 8, 3>}]} {
    %c0 = arith.constant 0 : index
    %c0_0 = arith.constant 0 : index
    %0 = vector.load %arg3[%c0, %c0_0] : memref<16x16xf32, #tpu.memory_space<vmem>>, vector<16x16xf32>
    %c0_1 = arith.constant 0 : index
    %c0_2 = arith.constant 0 : index
    %1 = vector.load %arg4[%c0_1, %c0_2] : memref<16x3xf32, #tpu.memory_space<vmem>>, vector<16x3xf32>
    %cst = arith.constant 0.000000e+00 : f32
    %2 = vector.broadcast %cst : f32 to vector<2x16xf32>
    %3 = vector.shape_cast %2 : vector<2x16xf32> to vector<2x1x16xf32>
    %c0_3 = arith.constant 0 : index
    %c0_4 = arith.constant 0 : index
    %c0_5 = arith.constant 0 : index
    %4 = vector.load %arg6[%c0_3, %c0_4, %c0_5] : memref<2x8x16xf32, #tpu.memory_space<vmem>>, vector<2x1x16xf32>
    tpu.vector_store %arg6[%c0_3, %c0_4, %c0_5], %3 {strides = array<i32>} : memref<2x8x16xf32, #tpu.memory_space<vmem>>, vector<2x1x16xf32>,
    %c0_6 = arith.constant 0 : index
    %c0_7 = arith.constant 0 : index
    %c0_8 = arith.constant 0 : index
    %5 = vector.load %arg1[%c0_6, %c0_7, %c0_8] : memref<56x2x16xf32, #tpu.memory_space<vmem>>, vector<1x2x16xf32>
    %6 = vector.shape_cast %5 : vector<1x2x16xf32> to vector<2x16xf32>
    %c1 = arith.constant 1 : index
    %c0_9 = arith.constant 0 : index
    %c0_10 = arith.constant 0 : index
    %7 = vector.load %arg1[%c1, %c0_9, %c0_10] : memref<56x2x16xf32, #tpu.memory_space<vmem>>, vector<1x2x16xf32>
    %8 = vector.shape_cast %7 : vector<1x2x16xf32> to vector<2x16xf32>
    %cst_11 = arith.constant -1.000000e+00 : f32
    %cst_12 = arith.constant 1.000000e+00 : f32
    %9 = vector.broadcast %cst_11 : f32 to vector<2x16xf32>
    %10 = arith.maximumf %9, %2 : vector<2x16xf32>
    %11 = vector.broadcast %cst_12 : f32 to vector<2x16xf32>
    %12 = arith.minimumf %11, %10 : vector<2x16xf32>
    %13 = vector.extract_strided_slice %12 {offsets = [0, 0], sizes = [2, 1], strides = [1, 1]} : vector<2x16xf32> to vector<2x1xf32>
    %14 = vector.extract_strided_slice %0 {offsets = [0, 0], sizes = [1, 16], strides = [1, 1]} : vector<16x16xf32> to vector<1x16xf32>
    %15 = vector.broadcast %13 : vector<2x1xf32> to vector<2x16xf32>
    %16 = vector.broadcast %14 : vector<1x16xf32> to vector<2x16xf32>
    %17 = arith.mulf %15, %16 : vector<2x16xf32>
    %18 = vector.extract_strided_slice %12 {offsets = [0, 1], sizes = [2, 1], strides = [1, 1]} : vector<2x16xf32> to vector<2x1xf32>
    %19 = vector.extract_strided_slice %0 {offsets = [1, 0], sizes = [1, 16], strides = [1, 1]} : vector<16x16xf32> to vector<1x16xf32>
    %20 = vector.broadcast %18 : vector<2x1xf32> to vector<2x16xf32>
    %21 = vector.broadcast %19 : vector<1x16xf32> to vector<2x16xf32>
    %22 = arith.mulf %20, %21 : vector<2x16xf32>
    %23 = vector.extract_strided_slice %12 {offsets = [0, 2], sizes = [2, 1], strides = [1, 1]} : vector<2x16xf32> to vector<2x1xf32>
    %24 = vector.extract_strided_slice %0 {offsets = [2, 0], sizes = [1, 16], strides = [1, 1]} : vector<16x16xf32> to vector<1x16xf32>
    %25 = vector.broadcast %23 : vector<2x1xf32> to vector<2x16xf32>
    %26 = vector.broadcast %24 : vector<1x16xf32> to vector<2x16xf32>
    %27 = arith.mulf %25, %26 : vector<2x16xf32>
    %28 = vector.extract_strided_slice %12 {offsets = [0, 3], sizes = [2, 1], strides = [1, 1]} : vector<2x16xf32> to vector<2x1xf32>
    %29 = vector.extract_strided_slice %0 {offsets = [3, 0], sizes = [1, 16], strides = [1, 1]} : vector<16x16xf32> to vector<1x16xf32>
    %30 = vector.broadcast %28 : vector<2x1xf32> to vector<2x16xf32>
    %31 = vector.broadcast %29 : vector<1x16xf32> to vector<2x16xf32>
    %32 = arith.mulf %30, %31 : vector<2x16xf32>
    %33 = vector.extract_strided_slice %12 {offsets = [0, 4], sizes = [2, 1], strides = [1, 1]} : vector<2x16xf32> to vector<2x1xf32>
    %34 = vector.extract_strided_slice %0 {offsets = [4, 0], sizes = [1, 16], strides = [1, 1]} : vector<16x16xf32> to vector<1x16xf32>
    %35 = vector.broadcast %33 : vector<2x1xf32> to vector<2x16xf32>
    %36 = vector.broadcast %34 : vector<1x16xf32> to vector<2x16xf32>
    %37 = arith.mulf %35, %36 : vector<2x16xf32>
    %38 = vector.extract_strided_slice %12 {offsets = [0, 5], sizes = [2, 1], strides = [1, 1]} : vector<2x16xf32> to vector<2x1xf32>
    %39 = vector.extract_strided_slice %0 {offsets = [5, 0], sizes = [1, 16], strides = [1, 1]} : vector<16x16xf32> to vector<1x16xf32>
    %40 = vector.broadcast %38 : vector<2x1xf32> to vector<2x16xf32>
    %41 = vector.broadcast %39 : vector<1x16xf32> to vector<2x16xf32>
    %42 = arith.mulf %40, %41 : vector<2x16xf32>
    %43 = vector.extract_strided_slice %12 {offsets = [0, 6], sizes = [2, 1], strides = [1, 1]} : vector<2x16xf32> to vector<2x1xf32>
    %44 = vector.extract_strided_slice %0 {offsets = [6, 0], sizes = [1, 16], strides = [1, 1]} : vector<16x16xf32> to vector<1x16xf32>
    %45 = vector.broadcast %43 : vector<2x1xf32> to vector<2x16xf32>
    %46 = vector.broadcast %44 : vector<1x16xf32> to vector<2x16xf32>
    %47 = arith.mulf %45, %46 : vector<2x16xf32>
    %48 = vector.extract_strided_slice %12 {offsets = [0, 7], sizes = [2, 1], strides = [1, 1]} : vector<2x16xf32> to vector<2x1xf32>
    %49 = vector.extract_strided_slice %0 {offsets = [7, 0], sizes = [1, 16], strides = [1, 1]} : vector<16x16xf32> to vector<1x16xf32>
    %50 = vector.broadcast %48 : vector<2x1xf32> to vector<2x16xf32>
    %51 = vector.broadcast %49 : vector<1x16xf32> to vector<2x16xf32>
    %52 = arith.mulf %50, %51 : vector<2x16xf32>
    %53 = vector.extract_strided_slice %12 {offsets = [0, 8], sizes = [2, 1], strides = [1, 1]} : vector<2x16xf32> to vector<2x1xf32>
    %54 = vector.extract_strided_slice %0 {offsets = [8, 0], sizes = [1, 16], strides = [1, 1]} : vector<16x16xf32> to vector<1x16xf32>
    %55 = vector.broadcast %53 : vector<2x1xf32> to vector<2x16xf32>
    %56 = vector.broadcast %54 : vector<1x16xf32> to vector<2x16xf32>
    %57 = arith.mulf %55, %56 : vector<2x16xf32>
    %58 = vector.extract_strided_slice %12 {offsets = [0, 9], sizes = [2, 1], strides = [1, 1]} : vector<2x16xf32> to vector<2x1xf32>
    %59 = vector.extract_strided_slice %0 {offsets = [9, 0], sizes = [1, 16], strides = [1, 1]} : vector<16x16xf32> to vector<1x16xf32>
    %60 = vector.broadcast %58 : vector<2x1xf32> to vector<2x16xf32>
    %61 = vector.broadcast %59 : vector<1x16xf32> to vector<2x16xf32>
    %62 = arith.mulf %60, %61 : vector<2x16xf32>
    %63 = vector.extract_strided_slice %12 {offsets = [0, 10], sizes = [2, 1], strides = [1, 1]} : vector<2x16xf32> to vector<2x1xf32>
    %64 = vector.extract_strided_slice %0 {offsets = [10, 0], sizes = [1, 16], strides = [1, 1]} : vector<16x16xf32> to vector<1x16xf32>
    %65 = vector.broadcast %63 : vector<2x1xf32> to vector<2x16xf32>
    %66 = vector.broadcast %64 : vector<1x16xf32> to vector<2x16xf32>
    %67 = arith.mulf %65, %66 : vector<2x16xf32>
    %68 = vector.extract_strided_slice %12 {offsets = [0, 11], sizes = [2, 1], strides = [1, 1]} : vector<2x16xf32> to vector<2x1xf32>
    %69 = vector.extract_strided_slice %0 {offsets = [11, 0], sizes = [1, 16], strides = [1, 1]} : vector<16x16xf32> to vector<1x16xf32>
    %70 = vector.broadcast %68 : vector<2x1xf32> to vector<2x16xf32>
    %71 = vector.broadcast %69 : vector<1x16xf32> to vector<2x16xf32>
    %72 = arith.mulf %70, %71 : vector<2x16xf32>
    %73 = vector.extract_strided_slice %12 {offsets = [0, 12], sizes = [2, 1], strides = [1, 1]} : vector<2x16xf32> to vector<2x1xf32>
    %74 = vector.extract_strided_slice %0 {offsets = [12, 0], sizes = [1, 16], strides = [1, 1]} : vector<16x16xf32> to vector<1x16xf32>
    %75 = vector.broadcast %73 : vector<2x1xf32> to vector<2x16xf32>
    %76 = vector.broadcast %74 : vector<1x16xf32> to vector<2x16xf32>
    %77 = arith.mulf %75, %76 : vector<2x16xf32>
    %78 = vector.extract_strided_slice %12 {offsets = [0, 13], sizes = [2, 1], strides = [1, 1]} : vector<2x16xf32> to vector<2x1xf32>
    %79 = vector.extract_strided_slice %0 {offsets = [13, 0], sizes = [1, 16], strides = [1, 1]} : vector<16x16xf32> to vector<1x16xf32>
    %80 = vector.broadcast %78 : vector<2x1xf32> to vector<2x16xf32>
    %81 = vector.broadcast %79 : vector<1x16xf32> to vector<2x16xf32>
    %82 = arith.mulf %80, %81 : vector<2x16xf32>
    %83 = vector.extract_strided_slice %12 {offsets = [0, 14], sizes = [2, 1], strides = [1, 1]} : vector<2x16xf32> to vector<2x1xf32>
    %84 = vector.extract_strided_slice %0 {offsets = [14, 0], sizes = [1, 16], strides = [1, 1]} : vector<16x16xf32> to vector<1x16xf32>
    %85 = vector.broadcast %83 : vector<2x1xf32> to vector<2x16xf32>
    %86 = vector.broadcast %84 : vector<1x16xf32> to vector<2x16xf32>
    %87 = arith.mulf %85, %86 : vector<2x16xf32>
    %88 = vector.extract_strided_slice %12 {offsets = [0, 15], sizes = [2, 1], strides = [1, 1]} : vector<2x16xf32> to vector<2x1xf32>
    %89 = vector.extract_strided_slice %0 {offsets = [15, 0], sizes = [1, 16], strides = [1, 1]} : vector<16x16xf32> to vector<1x16xf32>
    %90 = vector.broadcast %88 : vector<2x1xf32> to vector<2x16xf32>
    %91 = vector.broadcast %89 : vector<1x16xf32> to vector<2x16xf32>
    %92 = arith.mulf %90, %91 : vector<2x16xf32>
    %93 = arith.addf %17, %22 : vector<2x16xf32>
    %94 = arith.addf %27, %32 : vector<2x16xf32>
    %95 = arith.addf %37, %42 : vector<2x16xf32>
    %96 = arith.addf %47, %52 : vector<2x16xf32>
    %97 = arith.addf %57, %62 : vector<2x16xf32>
    %98 = arith.addf %67, %72 : vector<2x16xf32>
    %99 = arith.addf %77, %82 : vector<2x16xf32>
    %100 = arith.addf %87, %92 : vector<2x16xf32>
    %101 = arith.addf %93, %94 : vector<2x16xf32>
    %102 = arith.addf %95, %96 : vector<2x16xf32>
    %103 = arith.addf %97, %98 : vector<2x16xf32>
    %104 = arith.addf %99, %100 : vector<2x16xf32>
    %105 = arith.addf %101, %102 : vector<2x16xf32>
    %106 = arith.addf %103, %104 : vector<2x16xf32>
    %107 = arith.addf %105, %106 : vector<2x16xf32>
    %108 = arith.addf %107, %6 : vector<2x16xf32>
    %109 = math.tanh %108 : vector<2x16xf32>
    %110 = arith.mulf %109, %8 : vector<2x16xf32>
    %cst_13 = arith.constant 0.333333343 : f32
    %111 = vector.broadcast %cst_13 : f32 to vector<2x16xf32>
    %112 = arith.mulf %110, %111 : vector<2x16xf32>
    %113 = arith.addf %2, %112 : vector<2x16xf32>
    %c2 = arith.constant 2 : index
    %c0_14 = arith.constant 0 : index
    %c0_15 = arith.constant 0 : index
    %114 = vector.load %arg1[%c2, %c0_14, %c0_15] : memref<56x2x16xf32, #tpu.memory_space<vmem>>, vector<1x2x16xf32>
    %115 = vector.shape_cast %114 : vector<1x2x16xf32> to vector<2x16xf32>
    %c3 = arith.constant 3 : index
    %c0_16 = arith.constant 0 : index
    %c0_17 = arith.constant 0 : index
    %116 = vector.load %arg1[%c3, %c0_16, %c0_17] : memref<56x2x16xf32, #tpu.memory_space<vmem>>, vector<1x2x16xf32>
    %117 = vector.shape_cast %116 : vector<1x2x16xf32> to vector<2x16xf32>
    %cst_18 = arith.constant -1.000000e+00 : f32
    %cst_19 = arith.constant 1.000000e+00 : f32
    %118 = vector.broadcast %cst_18 : f32 to vector<2x16xf32>
    %119 = arith.maximumf %118, %113 : vector<2x16xf32>
    %120 = vector.broadcast %cst_19 : f32 to vector<2x16xf32>
    %121 = arith.minimumf %120, %119 : vector<2x16xf32>
    %122 = vector.extract_strided_slice %121 {offsets = [0, 0], sizes = [2, 1], strides = [1, 1]} : vector<2x16xf32> to vector<2x1xf32>
    %123 = vector.extract_strided_slice %0 {offsets = [0, 0], sizes = [1, 16], strides = [1, 1]} : vector<16x16xf32> to vector<1x16xf32>
    %124 = vector.broadcast %122 : vector<2x1xf32> to vector<2x16xf32>
    %125 = vector.broadcast %123 : vector<1x16xf32> to vector<2x16xf32>
    %126 = arith.mulf %124, %125 : vector<2x16xf32>
    %127 = vector.extract_strided_slice %121 {offsets = [0, 1], sizes = [2, 1], strides = [1, 1]} : vector<2x16xf32> to vector<2x1xf32>
    %128 = vector.extract_strided_slice %0 {offsets = [1, 0], sizes = [1, 16], strides = [1, 1]} : vector<16x16xf32> to vector<1x16xf32>
    %129 = vector.broadcast %127 : vector<2x1xf32> to vector<2x16xf32>
    %130 = vector.broadcast %128 : vector<1x16xf32> to vector<2x16xf32>
    %131 = arith.mulf %129, %130 : vector<2x16xf32>
    %132 = vector.extract_strided_slice %121 {offsets = [0, 2], sizes = [2, 1], strides = [1, 1]} : vector<2x16xf32> to vector<2x1xf32>
    %133 = vector.extract_strided_slice %0 {offsets = [2, 0], sizes = [1, 16], strides = [1, 1]} : vector<16x16xf32> to vector<1x16xf32>
    %134 = vector.broadcast %132 : vector<2x1xf32> to vector<2x16xf32>
    %135 = vector.broadcast %133 : vector<1x16xf32> to vector<2x16xf32>
    %136 = arith.mulf %134, %135 : vector<2x16xf32>
    %137 = vector.extract_strided_slice %121 {offsets = [0, 3], sizes = [2, 1], strides = [1, 1]} : vector<2x16xf32> to vector<2x1xf32>
    %138 = vector.extract_strided_slice %0 {offsets = [3, 0], sizes = [1, 16], strides = [1, 1]} : vector<16x16xf32> to vector<1x16xf32>
    %139 = vector.broadcast %137 : vector<2x1xf32> to vector<2x16xf32>
    %140 = vector.broadcast %138 : vector<1x16xf32> to vector<2x16xf32>
    %141 = arith.mulf %139, %140 : vector<2x16xf32>
    %142 = vector.extract_strided_slice %121 {offsets = [0, 4], sizes = [2, 1], strides = [1, 1]} : vector<2x16xf32> to vector<2x1xf32>
    %143 = vector.extract_strided_slice %0 {offsets = [4, 0], sizes = [1, 16], strides = [1, 1]} : vector<16x16xf32> to vector<1x16xf32>
    %144 = vector.broadcast %142 : vector<2x1xf32> to vector<2x16xf32>
    %145 = vector.broadcast %143 : vector<1x16xf32> to vector<2x16xf32>
    %146 = arith.mulf %144, %145 : vector<2x16xf32>
    %147 = vector.extract_strided_slice %121 {offsets = [0, 5], sizes = [2, 1], strides = [1, 1]} : vector<2x16xf32> to vector<2x1xf32>
    %148 = vector.extract_strided_slice %0 {offsets = [5, 0], sizes = [1, 16], strides = [1, 1]} : vector<16x16xf32> to vector<1x16xf32>
    %149 = vector.broadcast %147 : vector<2x1xf32> to vector<2x16xf32>
    %150 = vector.broadcast %148 : vector<1x16xf32> to vector<2x16xf32>
    %151 = arith.mulf %149, %150 : vector<2x16xf32>
    %152 = vector.extract_strided_slice %121 {offsets = [0, 6], sizes = [2, 1], strides = [1, 1]} : vector<2x16xf32> to vector<2x1xf32>
    %153 = vector.extract_strided_slice %0 {offsets = [6, 0], sizes = [1, 16], strides = [1, 1]} : vector<16x16xf32> to vector<1x16xf32>
    %154 = vector.broadcast %152 : vector<2x1xf32> to vector<2x16xf32>
    %155 = vector.broadcast %153 : vector<1x16xf32> to vector<2x16xf32>
    %156 = arith.mulf %154, %155 : vector<2x16xf32>
    %157 = vector.extract_strided_slice %121 {offsets = [0, 7], sizes = [2, 1], strides = [1, 1]} : vector<2x16xf32> to vector<2x1xf32>
    %158 = vector.extract_strided_slice %0 {offsets = [7, 0], sizes = [1, 16], strides = [1, 1]} : vector<16x16xf32> to vector<1x16xf32>
    %159 = vector.broadcast %157 : vector<2x1xf32> to vector<2x16xf32>
    %160 = vector.broadcast %158 : vector<1x16xf32> to vector<2x16xf32>
    %161 = arith.mulf %159, %160 : vector<2x16xf32>
    %162 = vector.extract_strided_slice %121 {offsets = [0, 8], sizes = [2, 1], strides = [1, 1]} : vector<2x16xf32> to vector<2x1xf32>
    %163 = vector.extract_strided_slice %0 {offsets = [8, 0], sizes = [1, 16], strides = [1, 1]} : vector<16x16xf32> to vector<1x16xf32>
    %164 = vector.broadcast %162 : vector<2x1xf32> to vector<2x16xf32>
    %165 = vector.broadcast %163 : vector<1x16xf32> to vector<2x16xf32>
    %166 = arith.mulf %164, %165 : vector<2x16xf32>
    %167 = vector.extract_strided_slice %121 {offsets = [0, 9], sizes = [2, 1], strides = [1, 1]} : vector<2x16xf32> to vector<2x1xf32>
    %168 = vector.extract_strided_slice %0 {offsets = [9, 0], sizes = [1, 16], strides = [1, 1]} : vector<16x16xf32> to vector<1x16xf32>
    %169 = vector.broadcast %167 : vector<2x1xf32> to vector<2x16xf32>
    %170 = vector.broadcast %168 : vector<1x16xf32> to vector<2x16xf32>
    %171 = arith.mulf %169, %170 : vector<2x16xf32>
    %172 = vector.extract_strided_slice %121 {offsets = [0, 10], sizes = [2, 1], strides = [1, 1]} : vector<2x16xf32> to vector<2x1xf32>
    %173 = vector.extract_strided_slice %0 {offsets = [10, 0], sizes = [1, 16], strides = [1, 1]} : vector<16x16xf32> to vector<1x16xf32>
    %174 = vector.broadcast %172 : vector<2x1xf32> to vector<2x16xf32>
    %175 = vector.broadcast %173 : vector<1x16xf32> to vector<2x16xf32>
    %176 = arith.mulf %174, %175 : vector<2x16xf32>
    %177 = vector.extract_strided_slice %121 {offsets = [0, 11], sizes = [2, 1], strides = [1, 1]} : vector<2x16xf32> to vector<2x1xf32>
    %178 = vector.extract_strided_slice %0 {offsets = [11, 0], sizes = [1, 16], strides = [1, 1]} : vector<16x16xf32> to vector<1x16xf32>
    %179 = vector.broadcast %177 : vector<2x1xf32> to vector<2x16xf32>
    %180 = vector.broadcast %178 : vector<1x16xf32> to vector<2x16xf32>
    %181 = arith.mulf %179, %180 : vector<2x16xf32>
    %182 = vector.extract_strided_slice %121 {offsets = [0, 12], sizes = [2, 1], strides = [1, 1]} : vector<2x16xf32> to vector<2x1xf32>
    %183 = vector.extract_strided_slice %0 {offsets = [12, 0], sizes = [1, 16], strides = [1, 1]} : vector<16x16xf32> to vector<1x16xf32>
    %184 = vector.broadcast %182 : vector<2x1xf32> to vector<2x16xf32>
    %185 = vector.broadcast %183 : vector<1x16xf32> to vector<2x16xf32>
    %186 = arith.mulf %184, %185 : vector<2x16xf32>
    %187 = vector.extract_strided_slice %121 {offsets = [0, 13], sizes = [2, 1], strides = [1, 1]} : vector<2x16xf32> to vector<2x1xf32>
    %188 = vector.extract_strided_slice %0 {offsets = [13, 0], sizes = [1, 16], strides = [1, 1]} : vector<16x16xf32> to vector<1x16xf32>
    %189 = vector.broadcast %187 : vector<2x1xf32> to vector<2x16xf32>
    %190 = vector.broadcast %188 : vector<1x16xf32> to vector<2x16xf32>
    %191 = arith.mulf %189, %190 : vector<2x16xf32>
    %192 = vector.extract_strided_slice %121 {offsets = [0, 14], sizes = [2, 1], strides = [1, 1]} : vector<2x16xf32> to vector<2x1xf32>
    %193 = vector.extract_strided_slice %0 {offsets = [14, 0], sizes = [1, 16], strides = [1, 1]} : vector<16x16xf32> to vector<1x16xf32>
    %194 = vector.broadcast %192 : vector<2x1xf32> to vector<2x16xf32>
    %195 = vector.broadcast %193 : vector<1x16xf32> to vector<2x16xf32>
    %196 = arith.mulf %194, %195 : vector<2x16xf32>
    %197 = vector.extract_strided_slice %121 {offsets = [0, 15], sizes = [2, 1], strides = [1, 1]} : vector<2x16xf32> to vector<2x1xf32>
    %198 = vector.extract_strided_slice %0 {offsets = [15, 0], sizes = [1, 16], strides = [1, 1]} : vector<16x16xf32> to vector<1x16xf32>
    %199 = vector.broadcast %197 : vector<2x1xf32> to vector<2x16xf32>
    %200 = vector.broadcast %198 : vector<1x16xf32> to vector<2x16xf32>
    %201 = arith.mulf %199, %200 : vector<2x16xf32>
    %202 = arith.addf %126, %131 : vector<2x16xf32>
    %203 = arith.addf %136, %141 : vector<2x16xf32>
    %204 = arith.addf %146, %151 : vector<2x16xf32>
    %205 = arith.addf %156, %161 : vector<2x16xf32>
    %206 = arith.addf %166, %171 : vector<2x16xf32>
    %207 = arith.addf %176, %181 : vector<2x16xf32>
    %208 = arith.addf %186, %191 : vector<2x16xf32>
    %209 = arith.addf %196, %201 : vector<2x16xf32>
    %210 = arith.addf %202, %203 : vector<2x16xf32>
    %211 = arith.addf %204, %205 : vector<2x16xf32>
    %212 = arith.addf %206, %207 : vector<2x16xf32>
    %213 = arith.addf %208, %209 : vector<2x16xf32>
    %214 = arith.addf %210, %211 : vector<2x16xf32>
    %215 = arith.addf %212, %213 : vector<2x16xf32>
    %216 = arith.addf %214, %215 : vector<2x16xf32>
    %217 = arith.addf %216, %115 : vector<2x16xf32>
    %218 = math.tanh %217 : vector<2x16xf32>
    %219 = arith.mulf %218, %117 : vector<2x16xf32>
    %cst_20 = arith.constant 0.333333343 : f32
    %220 = vector.broadcast %cst_20 : f32 to vector<2x16xf32>
    %221 = arith.mulf %110, %220 : vector<2x16xf32>
    %222 = arith.subf %219, %221 : vector<2x16xf32>
    %223 = arith.addf %2, %222 : vector<2x16xf32>
    %c4 = arith.constant 4 : index
    %c0_21 = arith.constant 0 : index
    %c0_22 = arith.constant 0 : index
    %224 = vector.load %arg1[%c4, %c0_21, %c0_22] : memref<56x2x16xf32, #tpu.memory_space<vmem>>, vector<1x2x16xf32>
    %225 = vector.shape_cast %224 : vector<1x2x16xf32> to vector<2x16xf32>
    %c5 = arith.constant 5 : index
    %c0_23 = arith.constant 0 : index
    %c0_24 = arith.constant 0 : index
    %226 = vector.load %arg1[%c5, %c0_23, %c0_24] : memref<56x2x16xf32, #tpu.memory_space<vmem>>, vector<1x2x16xf32>
    %227 = vector.shape_cast %226 : vector<1x2x16xf32> to vector<2x16xf32>
    %cst_25 = arith.constant -1.000000e+00 : f32
    %cst_26 = arith.constant 1.000000e+00 : f32
    %228 = vector.broadcast %cst_25 : f32 to vector<2x16xf32>
    %229 = arith.maximumf %228, %223 : vector<2x16xf32>
    %230 = vector.broadcast %cst_26 : f32 to vector<2x16xf32>
    %231 = arith.minimumf %230, %229 : vector<2x16xf32>
    %232 = vector.extract_strided_slice %231 {offsets = [0, 0], sizes = [2, 1], strides = [1, 1]} : vector<2x16xf32> to vector<2x1xf32>
    %233 = vector.extract_strided_slice %0 {offsets = [0, 0], sizes = [1, 16], strides = [1, 1]} : vector<16x16xf32> to vector<1x16xf32>
    %234 = vector.broadcast %232 : vector<2x1xf32> to vector<2x16xf32>
    %235 = vector.broadcast %233 : vector<1x16xf32> to vector<2x16xf32>
    %236 = arith.mulf %234, %235 : vector<2x16xf32>
    %237 = vector.extract_strided_slice %231 {offsets = [0, 1], sizes = [2, 1], strides = [1, 1]} : vector<2x16xf32> to vector<2x1xf32>
    %238 = vector.extract_strided_slice %0 {offsets = [1, 0], sizes = [1, 16], strides = [1, 1]} : vector<16x16xf32> to vector<1x16xf32>
    %239 = vector.broadcast %237 : vector<2x1xf32> to vector<2x16xf32>
    %240 = vector.broadcast %238 : vector<1x16xf32> to vector<2x16xf32>
    %241 = arith.mulf %239, %240 : vector<2x16xf32>
    %242 = vector.extract_strided_slice %231 {offsets = [0, 2], sizes = [2, 1], strides = [1, 1]} : vector<2x16xf32> to vector<2x1xf32>
    %243 = vector.extract_strided_slice %0 {offsets = [2, 0], sizes = [1, 16], strides = [1, 1]} : vector<16x16xf32> to vector<1x16xf32>
    %244 = vector.broadcast %242 : vector<2x1xf32> to vector<2x16xf32>
    %245 = vector.broadcast %243 : vector<1x16xf32> to vector<2x16xf32>
    %246 = arith.mulf %244, %245 : vector<2x16xf32>
    %247 = vector.extract_strided_slice %231 {offsets = [0, 3], sizes = [2, 1], strides = [1, 1]} : vector<2x16xf32> to vector<2x1xf32>
    %248 = vector.extract_strided_slice %0 {offsets = [3, 0], sizes = [1, 16], strides = [1, 1]} : vector<16x16xf32> to vector<1x16xf32>
    %249 = vector.broadcast %247 : vector<2x1xf32> to vector<2x16xf32>
    %250 = vector.broadcast %248 : vector<1x16xf32> to vector<2x16xf32>
    %251 = arith.mulf %249, %250 : vector<2x16xf32>
    %252 = vector.extract_strided_slice %231 {offsets = [0, 4], sizes = [2, 1], strides = [1, 1]} : vector<2x16xf32> to vector<2x1xf32>
    %253 = vector.extract_strided_slice %0 {offsets = [4, 0], sizes = [1, 16], strides = [1, 1]} : vector<16x16xf32> to vector<1x16xf32>
    %254 = vector.broadcast %252 : vector<2x1xf32> to vector<2x16xf32>
    %255 = vector.broadcast %253 : vector<1x16xf32> to vector<2x16xf32>
    %256 = arith.mulf %254, %255 : vector<2x16xf32>
    %257 = vector.extract_strided_slice %231 {offsets = [0, 5], sizes = [2, 1], strides = [1, 1]} : vector<2x16xf32> to vector<2x1xf32>
    %258 = vector.extract_strided_slice %0 {offsets = [5, 0], sizes = [1, 16], strides = [1, 1]} : vector<16x16xf32> to vector<1x16xf32>
    %259 = vector.broadcast %257 : vector<2x1xf32> to vector<2x16xf32>
    %260 = vector.broadcast %258 : vector<1x16xf32> to vector<2x16xf32>
    %261 = arith.mulf %259, %260 : vector<2x16xf32>
    %262 = vector.extract_strided_slice %231 {offsets = [0, 6], sizes = [2, 1], strides = [1, 1]} : vector<2x16xf32> to vector<2x1xf32>
    %263 = vector.extract_strided_slice %0 {offsets = [6, 0], sizes = [1, 16], strides = [1, 1]} : vector<16x16xf32> to vector<1x16xf32>
    %264 = vector.broadcast %262 : vector<2x1xf32> to vector<2x16xf32>
    %265 = vector.broadcast %263 : vector<1x16xf32> to vector<2x16xf32>
    %266 = arith.mulf %264, %265 : vector<2x16xf32>
    %267 = vector.extract_strided_slice %231 {offsets = [0, 7], sizes = [2, 1], strides = [1, 1]} : vector<2x16xf32> to vector<2x1xf32>
    %268 = vector.extract_strided_slice %0 {offsets = [7, 0], sizes = [1, 16], strides = [1, 1]} : vector<16x16xf32> to vector<1x16xf32>
    %269 = vector.broadcast %267 : vector<2x1xf32> to vector<2x16xf32>
    %270 = vector.broadcast %268 : vector<1x16xf32> to vector<2x16xf32>
    %271 = arith.mulf %269, %270 : vector<2x16xf32>
    %272 = vector.extract_strided_slice %231 {offsets = [0, 8], sizes = [2, 1], strides = [1, 1]} : vector<2x16xf32> to vector<2x1xf32>
    %273 = vector.extract_strided_slice %0 {offsets = [8, 0], sizes = [1, 16], strides = [1, 1]} : vector<16x16xf32> to vector<1x16xf32>
    %274 = vector.broadcast %272 : vector<2x1xf32> to vector<2x16xf32>
    %275 = vector.broadcast %273 : vector<1x16xf32> to vector<2x16xf32>
    %276 = arith.mulf %274, %275 : vector<2x16xf32>
    %277 = vector.extract_strided_slice %231 {offsets = [0, 9], sizes = [2, 1], strides = [1, 1]} : vector<2x16xf32> to vector<2x1xf32>
    %278 = vector.extract_strided_slice %0 {offsets = [9, 0], sizes = [1, 16], strides = [1, 1]} : vector<16x16xf32> to vector<1x16xf32>
    %279 = vector.broadcast %277 : vector<2x1xf32> to vector<2x16xf32>
    %280 = vector.broadcast %278 : vector<1x16xf32> to vector<2x16xf32>
    %281 = arith.mulf %279, %280 : vector<2x16xf32>
    %282 = vector.extract_strided_slice %231 {offsets = [0, 10], sizes = [2, 1], strides = [1, 1]} : vector<2x16xf32> to vector<2x1xf32>
    %283 = vector.extract_strided_slice %0 {offsets = [10, 0], sizes = [1, 16], strides = [1, 1]} : vector<16x16xf32> to vector<1x16xf32>
    %284 = vector.broadcast %282 : vector<2x1xf32> to vector<2x16xf32>
    %285 = vector.broadcast %283 : vector<1x16xf32> to vector<2x16xf32>
    %286 = arith.mulf %284, %285 : vector<2x16xf32>
    %287 = vector.extract_strided_slice %231 {offsets = [0, 11], sizes = [2, 1], strides = [1, 1]} : vector<2x16xf32> to vector<2x1xf32>
    %288 = vector.extract_strided_slice %0 {offsets = [11, 0], sizes = [1, 16], strides = [1, 1]} : vector<16x16xf32> to vector<1x16xf32>
    %289 = vector.broadcast %287 : vector<2x1xf32> to vector<2x16xf32>
    %290 = vector.broadcast %288 : vector<1x16xf32> to vector<2x16xf32>
    %291 = arith.mulf %289, %290 : vector<2x16xf32>
    %292 = vector.extract_strided_slice %231 {offsets = [0, 12], sizes = [2, 1], strides = [1, 1]} : vector<2x16xf32> to vector<2x1xf32>
    %293 = vector.extract_strided_slice %0 {offsets = [12, 0], sizes = [1, 16], strides = [1, 1]} : vector<16x16xf32> to vector<1x16xf32>
    %294 = vector.broadcast %292 : vector<2x1xf32> to vector<2x16xf32>
    %295 = vector.broadcast %293 : vector<1x16xf32> to vector<2x16xf32>
    %296 = arith.mulf %294, %295 : vector<2x16xf32>
    %297 = vector.extract_strided_slice %231 {offsets = [0, 13], sizes = [2, 1], strides = [1, 1]} : vector<2x16xf32> to vector<2x1xf32>
    %298 = vector.extract_strided_slice %0 {offsets = [13, 0], sizes = [1, 16], strides = [1, 1]} : vector<16x16xf32> to vector<1x16xf32>
    %299 = vector.broadcast %297 : vector<2x1xf32> to vector<2x16xf32>
    %300 = vector.broadcast %298 : vector<1x16xf32> to vector<2x16xf32>
    %301 = arith.mulf %299, %300 : vector<2x16xf32>
    %302 = vector.extract_strided_slice %231 {offsets = [0, 14], sizes = [2, 1], strides = [1, 1]} : vector<2x16xf32> to vector<2x1xf32>
    %303 = vector.extract_strided_slice %0 {offsets = [14, 0], sizes = [1, 16], strides = [1, 1]} : vector<16x16xf32> to vector<1x16xf32>
    %304 = vector.broadcast %302 : vector<2x1xf32> to vector<2x16xf32>
    %305 = vector.broadcast %303 : vector<1x16xf32> to vector<2x16xf32>
    %306 = arith.mulf %304, %305 : vector<2x16xf32>
    %307 = vector.extract_strided_slice %231 {offsets = [0, 15], sizes = [2, 1], strides = [1, 1]} : vector<2x16xf32> to vector<2x1xf32>
    %308 = vector.extract_strided_slice %0 {offsets = [15, 0], sizes = [1, 16], strides = [1, 1]} : vector<16x16xf32> to vector<1x16xf32>
    %309 = vector.broadcast %307 : vector<2x1xf32> to vector<2x16xf32>
    %310 = vector.broadcast %308 : vector<1x16xf32> to vector<2x16xf32>
    %311 = arith.mulf %309, %310 : vector<2x16xf32>
    %312 = arith.addf %236, %241 : vector<2x16xf32>
    %313 = arith.addf %246, %251 : vector<2x16xf32>
    %314 = arith.addf %256, %261 : vector<2x16xf32>
    %315 = arith.addf %266, %271 : vector<2x16xf32>
    %316 = arith.addf %276, %281 : vector<2x16xf32>
    %317 = arith.addf %286, %291 : vector<2x16xf32>
    %318 = arith.addf %296, %301 : vector<2x16xf32>
    %319 = arith.addf %306, %311 : vector<2x16xf32>
    %320 = arith.addf %312, %313 : vector<2x16xf32>
    %321 = arith.addf %314, %315 : vector<2x16xf32>
    %322 = arith.addf %316, %317 : vector<2x16xf32>
    %323 = arith.addf %318, %319 : vector<2x16xf32>
    %324 = arith.addf %320, %321 : vector<2x16xf32>
    %325 = arith.addf %322, %323 : vector<2x16xf32>
    %326 = arith.addf %324, %325 : vector<2x16xf32>
    %327 = arith.addf %326, %225 : vector<2x16xf32>
    %328 = math.tanh %327 : vector<2x16xf32>
    %329 = arith.mulf %328, %227 : vector<2x16xf32>
    %330 = arith.subf %110, %219 : vector<2x16xf32>
    %331 = arith.addf %330, %329 : vector<2x16xf32>
    %332 = arith.addf %2, %331 : vector<2x16xf32>
    %c6 = arith.constant 6 : index
    %c0_27 = arith.constant 0 : index
    %c0_28 = arith.constant 0 : index
    %333 = vector.load %arg1[%c6, %c0_27, %c0_28] : memref<56x2x16xf32, #tpu.memory_space<vmem>>, vector<1x2x16xf32>
    %334 = vector.shape_cast %333 : vector<1x2x16xf32> to vector<2x16xf32>
    %c7 = arith.constant 7 : index
    %c0_29 = arith.constant 0 : index
    %c0_30 = arith.constant 0 : index
    %335 = vector.load %arg1[%c7, %c0_29, %c0_30] : memref<56x2x16xf32, #tpu.memory_space<vmem>>, vector<1x2x16xf32>
    %336 = vector.shape_cast %335 : vector<1x2x16xf32> to vector<2x16xf32>
    %cst_31 = arith.constant -1.000000e+00 : f32
    %cst_32 = arith.constant 1.000000e+00 : f32
    %337 = vector.broadcast %cst_31 : f32 to vector<2x16xf32>
    %338 = arith.maximumf %337, %332 : vector<2x16xf32>
    %339 = vector.broadcast %cst_32 : f32 to vector<2x16xf32>
    %340 = arith.minimumf %339, %338 : vector<2x16xf32>
    %341 = vector.extract_strided_slice %340 {offsets = [0, 0], sizes = [2, 1], strides = [1, 1]} : vector<2x16xf32> to vector<2x1xf32>
    %342 = vector.extract_strided_slice %0 {offsets = [0, 0], sizes = [1, 16], strides = [1, 1]} : vector<16x16xf32> to vector<1x16xf32>
    %343 = vector.broadcast %341 : vector<2x1xf32> to vector<2x16xf32>
    %344 = vector.broadcast %342 : vector<1x16xf32> to vector<2x16xf32>
    %345 = arith.mulf %343, %344 : vector<2x16xf32>
    %346 = vector.extract_strided_slice %340 {offsets = [0, 1], sizes = [2, 1], strides = [1, 1]} : vector<2x16xf32> to vector<2x1xf32>
    %347 = vector.extract_strided_slice %0 {offsets = [1, 0], sizes = [1, 16], strides = [1, 1]} : vector<16x16xf32> to vector<1x16xf32>
    %348 = vector.broadcast %346 : vector<2x1xf32> to vector<2x16xf32>
    %349 = vector.broadcast %347 : vector<1x16xf32> to vector<2x16xf32>
    %350 = arith.mulf %348, %349 : vector<2x16xf32>
    %351 = vector.extract_strided_slice %340 {offsets = [0, 2], sizes = [2, 1], strides = [1, 1]} : vector<2x16xf32> to vector<2x1xf32>
    %352 = vector.extract_strided_slice %0 {offsets = [2, 0], sizes = [1, 16], strides = [1, 1]} : vector<16x16xf32> to vector<1x16xf32>
    %353 = vector.broadcast %351 : vector<2x1xf32> to vector<2x16xf32>
    %354 = vector.broadcast %352 : vector<1x16xf32> to vector<2x16xf32>
    %355 = arith.mulf %353, %354 : vector<2x16xf32>
    %356 = vector.extract_strided_slice %340 {offsets = [0, 3], sizes = [2, 1], strides = [1, 1]} : vector<2x16xf32> to vector<2x1xf32>
    %357 = vector.extract_strided_slice %0 {offsets = [3, 0], sizes = [1, 16], strides = [1, 1]} : vector<16x16xf32> to vector<1x16xf32>
    %358 = vector.broadcast %356 : vector<2x1xf32> to vector<2x16xf32>
    %359 = vector.broadcast %357 : vector<1x16xf32> to vector<2x16xf32>
    %360 = arith.mulf %358, %359 : vector<2x16xf32>
    %361 = vector.extract_strided_slice %340 {offsets = [0, 4], sizes = [2, 1], strides = [1, 1]} : vector<2x16xf32> to vector<2x1xf32>
    %362 = vector.extract_strided_slice %0 {offsets = [4, 0], sizes = [1, 16], strides = [1, 1]} : vector<16x16xf32> to vector<1x16xf32>
    %363 = vector.broadcast %361 : vector<2x1xf32> to vector<2x16xf32>
    %364 = vector.broadcast %362 : vector<1x16xf32> to vector<2x16xf32>
    %365 = arith.mulf %363, %364 : vector<2x16xf32>
    %366 = vector.extract_strided_slice %340 {offsets = [0, 5], sizes = [2, 1], strides = [1, 1]} : vector<2x16xf32> to vector<2x1xf32>
    %367 = vector.extract_strided_slice %0 {offsets = [5, 0], sizes = [1, 16], strides = [1, 1]} : vector<16x16xf32> to vector<1x16xf32>
    %368 = vector.broadcast %366 : vector<2x1xf32> to vector<2x16xf32>
    %369 = vector.broadcast %367 : vector<1x16xf32> to vector<2x16xf32>
    %370 = arith.mulf %368, %369 : vector<2x16xf32>
    %371 = vector.extract_strided_slice %340 {offsets = [0, 6], sizes = [2, 1], strides = [1, 1]} : vector<2x16xf32> to vector<2x1xf32>
    %372 = vector.extract_strided_slice %0 {offsets = [6, 0], sizes = [1, 16], strides = [1, 1]} : vector<16x16xf32> to vector<1x16xf32>
    %373 = vector.broadcast %371 : vector<2x1xf32> to vector<2x16xf32>
    %374 = vector.broadcast %372 : vector<1x16xf32> to vector<2x16xf32>
    %375 = arith.mulf %373, %374 : vector<2x16xf32>
    %376 = vector.extract_strided_slice %340 {offsets = [0, 7], sizes = [2, 1], strides = [1, 1]} : vector<2x16xf32> to vector<2x1xf32>
    %377 = vector.extract_strided_slice %0 {offsets = [7, 0], sizes = [1, 16], strides = [1, 1]} : vector<16x16xf32> to vector<1x16xf32>
    %378 = vector.broadcast %376 : vector<2x1xf32> to vector<2x16xf32>
    %379 = vector.broadcast %377 : vector<1x16xf32> to vector<2x16xf32>
    %380 = arith.mulf %378, %379 : vector<2x16xf32>
    %381 = vector.extract_strided_slice %340 {offsets = [0, 8], sizes = [2, 1], strides = [1, 1]} : vector<2x16xf32> to vector<2x1xf32>
    %382 = vector.extract_strided_slice %0 {offsets = [8, 0], sizes = [1, 16], strides = [1, 1]} : vector<16x16xf32> to vector<1x16xf32>
    %383 = vector.broadcast %381 : vector<2x1xf32> to vector<2x16xf32>
    %384 = vector.broadcast %382 : vector<1x16xf32> to vector<2x16xf32>
    %385 = arith.mulf %383, %384 : vector<2x16xf32>
    %386 = vector.extract_strided_slice %340 {offsets = [0, 9], sizes = [2, 1], strides = [1, 1]} : vector<2x16xf32> to vector<2x1xf32>
    %387 = vector.extract_strided_slice %0 {offsets = [9, 0], sizes = [1, 16], strides = [1, 1]} : vector<16x16xf32> to vector<1x16xf32>
    %388 = vector.broadcast %386 : vector<2x1xf32> to vector<2x16xf32>
    %389 = vector.broadcast %387 : vector<1x16xf32> to vector<2x16xf32>
    %390 = arith.mulf %388, %389 : vector<2x16xf32>
    %391 = vector.extract_strided_slice %340 {offsets = [0, 10], sizes = [2, 1], strides = [1, 1]} : vector<2x16xf32> to vector<2x1xf32>
    %392 = vector.extract_strided_slice %0 {offsets = [10, 0], sizes = [1, 16], strides = [1, 1]} : vector<16x16xf32> to vector<1x16xf32>
    %393 = vector.broadcast %391 : vector<2x1xf32> to vector<2x16xf32>
    %394 = vector.broadcast %392 : vector<1x16xf32> to vector<2x16xf32>
    %395 = arith.mulf %393, %394 : vector<2x16xf32>
    %396 = vector.extract_strided_slice %340 {offsets = [0, 11], sizes = [2, 1], strides = [1, 1]} : vector<2x16xf32> to vector<2x1xf32>
    %397 = vector.extract_strided_slice %0 {offsets = [11, 0], sizes = [1, 16], strides = [1, 1]} : vector<16x16xf32> to vector<1x16xf32>
    %398 = vector.broadcast %396 : vector<2x1xf32> to vector<2x16xf32>
    %399 = vector.broadcast %397 : vector<1x16xf32> to vector<2x16xf32>
    %400 = arith.mulf %398, %399 : vector<2x16xf32>
    %401 = vector.extract_strided_slice %340 {offsets = [0, 12], sizes = [2, 1], strides = [1, 1]} : vector<2x16xf32> to vector<2x1xf32>
    %402 = vector.extract_strided_slice %0 {offsets = [12, 0], sizes = [1, 16], strides = [1, 1]} : vector<16x16xf32> to vector<1x16xf32>
    %403 = vector.broadcast %401 : vector<2x1xf32> to vector<2x16xf32>
    %404 = vector.broadcast %402 : vector<1x16xf32> to vector<2x16xf32>
    %405 = arith.mulf %403, %404 : vector<2x16xf32>
    %406 = vector.extract_strided_slice %340 {offsets = [0, 13], sizes = [2, 1], strides = [1, 1]} : vector<2x16xf32> to vector<2x1xf32>
    %407 = vector.extract_strided_slice %0 {offsets = [13, 0], sizes = [1, 16], strides = [1, 1]} : vector<16x16xf32> to vector<1x16xf32>
    %408 = vector.broadcast %406 : vector<2x1xf32> to vector<2x16xf32>
    %409 = vector.broadcast %407 : vector<1x16xf32> to vector<2x16xf32>
    %410 = arith.mulf %408, %409 : vector<2x16xf32>
    %411 = vector.extract_strided_slice %340 {offsets = [0, 14], sizes = [2, 1], strides = [1, 1]} : vector<2x16xf32> to vector<2x1xf32>
    %412 = vector.extract_strided_slice %0 {offsets = [14, 0], sizes = [1, 16], strides = [1, 1]} : vector<16x16xf32> to vector<1x16xf32>
    %413 = vector.broadcast %411 : vector<2x1xf32> to vector<2x16xf32>
    %414 = vector.broadcast %412 : vector<1x16xf32> to vector<2x16xf32>
    %415 = arith.mulf %413, %414 : vector<2x16xf32>
    %416 = vector.extract_strided_slice %340 {offsets = [0, 15], sizes = [2, 1], strides = [1, 1]} : vector<2x16xf32> to vector<2x1xf32>
    %417 = vector.extract_strided_slice %0 {offsets = [15, 0], sizes = [1, 16], strides = [1, 1]} : vector<16x16xf32> to vector<1x16xf32>
    %418 = vector.broadcast %416 : vector<2x1xf32> to vector<2x16xf32>
    %419 = vector.broadcast %417 : vector<1x16xf32> to vector<2x16xf32>
    %420 = arith.mulf %418, %419 : vector<2x16xf32>
    %421 = arith.addf %345, %350 : vector<2x16xf32>
    %422 = arith.addf %355, %360 : vector<2x16xf32>
    %423 = arith.addf %365, %370 : vector<2x16xf32>
    %424 = arith.addf %375, %380 : vector<2x16xf32>
    %425 = arith.addf %385, %390 : vector<2x16xf32>
    %426 = arith.addf %395, %400 : vector<2x16xf32>
    %427 = arith.addf %405, %410 : vector<2x16xf32>
    %428 = arith.addf %415, %420 : vector<2x16xf32>
    %429 = arith.addf %421, %422 : vector<2x16xf32>
    %430 = arith.addf %423, %424 : vector<2x16xf32>
    %431 = arith.addf %425, %426 : vector<2x16xf32>
    %432 = arith.addf %427, %428 : vector<2x16xf32>
    %433 = arith.addf %429, %430 : vector<2x16xf32>
    %434 = arith.addf %431, %432 : vector<2x16xf32>
    %435 = arith.addf %433, %434 : vector<2x16xf32>
    %436 = arith.addf %435, %334 : vector<2x16xf32>
    %437 = math.tanh %436 : vector<2x16xf32>
    %438 = arith.mulf %437, %336 : vector<2x16xf32>
    %439 = arith.addf %219, %329 : vector<2x16xf32>
    %cst_33 = arith.constant 3.000000e+00 : f32
    %440 = vector.broadcast %cst_33 : f32 to vector<2x16xf32>
    %441 = arith.mulf %440, %439 : vector<2x16xf32>
    %442 = arith.addf %110, %441 : vector<2x16xf32>
    %443 = arith.addf %442, %438 : vector<2x16xf32>
    %cst_34 = arith.constant 1.250000e-01 : f32
    %444 = vector.broadcast %cst_34 : f32 to vector<2x16xf32>
    %445 = arith.mulf %443, %444 : vector<2x16xf32>
    %446 = arith.addf %2, %445 : vector<2x16xf32>
    %447 = vector.shape_cast %446 : vector<2x16xf32> to vector<2x1x16xf32>
    %c0_35 = arith.constant 0 : index
    %c1_36 = arith.constant 1 : index
    %c0_37 = arith.constant 0 : index
    %448 = vector.load %arg6[%c0_35, %c1_36, %c0_37] : memref<2x8x16xf32, #tpu.memory_space<vmem>>, vector<2x1x16xf32>
    tpu.vector_store %arg6[%c0_35, %c1_36, %c0_37], %447 {strides = array<i32>} : memref<2x8x16xf32, #tpu.memory_space<vmem>>, vector<2x1x16xf32>,
    %c8 = arith.constant 8 : index
    %c0_38 = arith.constant 0 : index
    %c0_39 = arith.constant 0 : index
    %449 = vector.load %arg1[%c8, %c0_38, %c0_39] : memref<56x2x16xf32, #tpu.memory_space<vmem>>, vector<1x2x16xf32>
    %450 = vector.shape_cast %449 : vector<1x2x16xf32> to vector<2x16xf32>
    %c9 = arith.constant 9 : index
    %c0_40 = arith.constant 0 : index
    %c0_41 = arith.constant 0 : index
    %451 = vector.load %arg1[%c9, %c0_40, %c0_41] : memref<56x2x16xf32, #tpu.memory_space<vmem>>, vector<1x2x16xf32>
    %452 = vector.shape_cast %451 : vector<1x2x16xf32> to vector<2x16xf32>
    %cst_42 = arith.constant -1.000000e+00 : f32
    %cst_43 = arith.constant 1.000000e+00 : f32
    %453 = vector.broadcast %cst_42 : f32 to vector<2x16xf32>
    %454 = arith.maximumf %453, %446 : vector<2x16xf32>
    %455 = vector.broadcast %cst_43 : f32 to vector<2x16xf32>
    %456 = arith.minimumf %455, %454 : vector<2x16xf32>
    %457 = vector.extract_strided_slice %456 {offsets = [0, 0], sizes = [2, 1], strides = [1, 1]} : vector<2x16xf32> to vector<2x1xf32>
    %458 = vector.extract_strided_slice %0 {offsets = [0, 0], sizes = [1, 16], strides = [1, 1]} : vector<16x16xf32> to vector<1x16xf32>
    %459 = vector.broadcast %457 : vector<2x1xf32> to vector<2x16xf32>
    %460 = vector.broadcast %458 : vector<1x16xf32> to vector<2x16xf32>
    %461 = arith.mulf %459, %460 : vector<2x16xf32>
    %462 = vector.extract_strided_slice %456 {offsets = [0, 1], sizes = [2, 1], strides = [1, 1]} : vector<2x16xf32> to vector<2x1xf32>
    %463 = vector.extract_strided_slice %0 {offsets = [1, 0], sizes = [1, 16], strides = [1, 1]} : vector<16x16xf32> to vector<1x16xf32>
    %464 = vector.broadcast %462 : vector<2x1xf32> to vector<2x16xf32>
    %465 = vector.broadcast %463 : vector<1x16xf32> to vector<2x16xf32>
    %466 = arith.mulf %464, %465 : vector<2x16xf32>
    %467 = vector.extract_strided_slice %456 {offsets = [0, 2], sizes = [2, 1], strides = [1, 1]} : vector<2x16xf32> to vector<2x1xf32>
    %468 = vector.extract_strided_slice %0 {offsets = [2, 0], sizes = [1, 16], strides = [1, 1]} : vector<16x16xf32> to vector<1x16xf32>
    %469 = vector.broadcast %467 : vector<2x1xf32> to vector<2x16xf32>
    %470 = vector.broadcast %468 : vector<1x16xf32> to vector<2x16xf32>
    %471 = arith.mulf %469, %470 : vector<2x16xf32>
    %472 = vector.extract_strided_slice %456 {offsets = [0, 3], sizes = [2, 1], strides = [1, 1]} : vector<2x16xf32> to vector<2x1xf32>
    %473 = vector.extract_strided_slice %0 {offsets = [3, 0], sizes = [1, 16], strides = [1, 1]} : vector<16x16xf32> to vector<1x16xf32>
    %474 = vector.broadcast %472 : vector<2x1xf32> to vector<2x16xf32>
    %475 = vector.broadcast %473 : vector<1x16xf32> to vector<2x16xf32>
    %476 = arith.mulf %474, %475 : vector<2x16xf32>
    %477 = vector.extract_strided_slice %456 {offsets = [0, 4], sizes = [2, 1], strides = [1, 1]} : vector<2x16xf32> to vector<2x1xf32>
    %478 = vector.extract_strided_slice %0 {offsets = [4, 0], sizes = [1, 16], strides = [1, 1]} : vector<16x16xf32> to vector<1x16xf32>
    %479 = vector.broadcast %477 : vector<2x1xf32> to vector<2x16xf32>
    %480 = vector.broadcast %478 : vector<1x16xf32> to vector<2x16xf32>
    %481 = arith.mulf %479, %480 : vector<2x16xf32>
    %482 = vector.extract_strided_slice %456 {offsets = [0, 5], sizes = [2, 1], strides = [1, 1]} : vector<2x16xf32> to vector<2x1xf32>
    %483 = vector.extract_strided_slice %0 {offsets = [5, 0], sizes = [1, 16], strides = [1, 1]} : vector<16x16xf32> to vector<1x16xf32>
    %484 = vector.broadcast %482 : vector<2x1xf32> to vector<2x16xf32>
    %485 = vector.broadcast %483 : vector<1x16xf32> to vector<2x16xf32>
    %486 = arith.mulf %484, %485 : vector<2x16xf32>
    %487 = vector.extract_strided_slice %456 {offsets = [0, 6], sizes = [2, 1], strides = [1, 1]} : vector<2x16xf32> to vector<2x1xf32>
    %488 = vector.extract_strided_slice %0 {offsets = [6, 0], sizes = [1, 16], strides = [1, 1]} : vector<16x16xf32> to vector<1x16xf32>
    %489 = vector.broadcast %487 : vector<2x1xf32> to vector<2x16xf32>
    %490 = vector.broadcast %488 : vector<1x16xf32> to vector<2x16xf32>
    %491 = arith.mulf %489, %490 : vector<2x16xf32>
    %492 = vector.extract_strided_slice %456 {offsets = [0, 7], sizes = [2, 1], strides = [1, 1]} : vector<2x16xf32> to vector<2x1xf32>
    %493 = vector.extract_strided_slice %0 {offsets = [7, 0], sizes = [1, 16], strides = [1, 1]} : vector<16x16xf32> to vector<1x16xf32>
    %494 = vector.broadcast %492 : vector<2x1xf32> to vector<2x16xf32>
    %495 = vector.broadcast %493 : vector<1x16xf32> to vector<2x16xf32>
    %496 = arith.mulf %494, %495 : vector<2x16xf32>
    %497 = vector.extract_strided_slice %456 {offsets = [0, 8], sizes = [2, 1], strides = [1, 1]} : vector<2x16xf32> to vector<2x1xf32>
    %498 = vector.extract_strided_slice %0 {offsets = [8, 0], sizes = [1, 16], strides = [1, 1]} : vector<16x16xf32> to vector<1x16xf32>
    %499 = vector.broadcast %497 : vector<2x1xf32> to vector<2x16xf32>
    %500 = vector.broadcast %498 : vector<1x16xf32> to vector<2x16xf32>
    %501 = arith.mulf %499, %500 : vector<2x16xf32>
    %502 = vector.extract_strided_slice %456 {offsets = [0, 9], sizes = [2, 1], strides = [1, 1]} : vector<2x16xf32> to vector<2x1xf32>
    %503 = vector.extract_strided_slice %0 {offsets = [9, 0], sizes = [1, 16], strides = [1, 1]} : vector<16x16xf32> to vector<1x16xf32>
    %504 = vector.broadcast %502 : vector<2x1xf32> to vector<2x16xf32>
    %505 = vector.broadcast %503 : vector<1x16xf32> to vector<2x16xf32>
    %506 = arith.mulf %504, %505 : vector<2x16xf32>
    %507 = vector.extract_strided_slice %456 {offsets = [0, 10], sizes = [2, 1], strides = [1, 1]} : vector<2x16xf32> to vector<2x1xf32>
    %508 = vector.extract_strided_slice %0 {offsets = [10, 0], sizes = [1, 16], strides = [1, 1]} : vector<16x16xf32> to vector<1x16xf32>
    %509 = vector.broadcast %507 : vector<2x1xf32> to vector<2x16xf32>
    %510 = vector.broadcast %508 : vector<1x16xf32> to vector<2x16xf32>
    %511 = arith.mulf %509, %510 : vector<2x16xf32>
    %512 = vector.extract_strided_slice %456 {offsets = [0, 11], sizes = [2, 1], strides = [1, 1]} : vector<2x16xf32> to vector<2x1xf32>
    %513 = vector.extract_strided_slice %0 {offsets = [11, 0], sizes = [1, 16], strides = [1, 1]} : vector<16x16xf32> to vector<1x16xf32>
    %514 = vector.broadcast %512 : vector<2x1xf32> to vector<2x16xf32>
    %515 = vector.broadcast %513 : vector<1x16xf32> to vector<2x16xf32>
    %516 = arith.mulf %514, %515 : vector<2x16xf32>
    %517 = vector.extract_strided_slice %456 {offsets = [0, 12], sizes = [2, 1], strides = [1, 1]} : vector<2x16xf32> to vector<2x1xf32>
    %518 = vector.extract_strided_slice %0 {offsets = [12, 0], sizes = [1, 16], strides = [1, 1]} : vector<16x16xf32> to vector<1x16xf32>
    %519 = vector.broadcast %517 : vector<2x1xf32> to vector<2x16xf32>
    %520 = vector.broadcast %518 : vector<1x16xf32> to vector<2x16xf32>
    %521 = arith.mulf %519, %520 : vector<2x16xf32>
    %522 = vector.extract_strided_slice %456 {offsets = [0, 13], sizes = [2, 1], strides = [1, 1]} : vector<2x16xf32> to vector<2x1xf32>
    %523 = vector.extract_strided_slice %0 {offsets = [13, 0], sizes = [1, 16], strides = [1, 1]} : vector<16x16xf32> to vector<1x16xf32>
    %524 = vector.broadcast %522 : vector<2x1xf32> to vector<2x16xf32>
    %525 = vector.broadcast %523 : vector<1x16xf32> to vector<2x16xf32>
    %526 = arith.mulf %524, %525 : vector<2x16xf32>
    %527 = vector.extract_strided_slice %456 {offsets = [0, 14], sizes = [2, 1], strides = [1, 1]} : vector<2x16xf32> to vector<2x1xf32>
    %528 = vector.extract_strided_slice %0 {offsets = [14, 0], sizes = [1, 16], strides = [1, 1]} : vector<16x16xf32> to vector<1x16xf32>
    %529 = vector.broadcast %527 : vector<2x1xf32> to vector<2x16xf32>
    %530 = vector.broadcast %528 : vector<1x16xf32> to vector<2x16xf32>
    %531 = arith.mulf %529, %530 : vector<2x16xf32>
    %532 = vector.extract_strided_slice %456 {offsets = [0, 15], sizes = [2, 1], strides = [1, 1]} : vector<2x16xf32> to vector<2x1xf32>
    %533 = vector.extract_strided_slice %0 {offsets = [15, 0], sizes = [1, 16], strides = [1, 1]} : vector<16x16xf32> to vector<1x16xf32>
    %534 = vector.broadcast %532 : vector<2x1xf32> to vector<2x16xf32>
    %535 = vector.broadcast %533 : vector<1x16xf32> to vector<2x16xf32>
    %536 = arith.mulf %534, %535 : vector<2x16xf32>
    %537 = arith.addf %461, %466 : vector<2x16xf32>
    %538 = arith.addf %471, %476 : vector<2x16xf32>
    %539 = arith.addf %481, %486 : vector<2x16xf32>
    %540 = arith.addf %491, %496 : vector<2x16xf32>
    %541 = arith.addf %501, %506 : vector<2x16xf32>
    %542 = arith.addf %511, %516 : vector<2x16xf32>
    %543 = arith.addf %521, %526 : vector<2x16xf32>
    %544 = arith.addf %531, %536 : vector<2x16xf32>
    %545 = arith.addf %537, %538 : vector<2x16xf32>
    %546 = arith.addf %539, %540 : vector<2x16xf32>
    %547 = arith.addf %541, %542 : vector<2x16xf32>
    %548 = arith.addf %543, %544 : vector<2x16xf32>
    %549 = arith.addf %545, %546 : vector<2x16xf32>
    %550 = arith.addf %547, %548 : vector<2x16xf32>
    %551 = arith.addf %549, %550 : vector<2x16xf32>
    %552 = arith.addf %551, %450 : vector<2x16xf32>
    %553 = math.tanh %552 : vector<2x16xf32>
    %554 = arith.mulf %553, %452 : vector<2x16xf32>
    %cst_44 = arith.constant 0.333333343 : f32
    %555 = vector.broadcast %cst_44 : f32 to vector<2x16xf32>
    %556 = arith.mulf %554, %555 : vector<2x16xf32>
    %557 = arith.addf %446, %556 : vector<2x16xf32>
    %c10 = arith.constant 10 : index
    %c0_45 = arith.constant 0 : index
    %c0_46 = arith.constant 0 : index
    %558 = vector.load %arg1[%c10, %c0_45, %c0_46] : memref<56x2x16xf32, #tpu.memory_space<vmem>>, vector<1x2x16xf32>
    %559 = vector.shape_cast %558 : vector<1x2x16xf32> to vector<2x16xf32>
    %c11 = arith.constant 11 : index
    %c0_47 = arith.constant 0 : index
    %c0_48 = arith.constant 0 : index
    %560 = vector.load %arg1[%c11, %c0_47, %c0_48] : memref<56x2x16xf32, #tpu.memory_space<vmem>>, vector<1x2x16xf32>
    %561 = vector.shape_cast %560 : vector<1x2x16xf32> to vector<2x16xf32>
    %cst_49 = arith.constant -1.000000e+00 : f32
    %cst_50 = arith.constant 1.000000e+00 : f32
    %562 = vector.broadcast %cst_49 : f32 to vector<2x16xf32>
    %563 = arith.maximumf %562, %557 : vector<2x16xf32>
    %564 = vector.broadcast %cst_50 : f32 to vector<2x16xf32>
    %565 = arith.minimumf %564, %563 : vector<2x16xf32>
    %566 = vector.extract_strided_slice %565 {offsets = [0, 0], sizes = [2, 1], strides = [1, 1]} : vector<2x16xf32> to vector<2x1xf32>
    %567 = vector.extract_strided_slice %0 {offsets = [0, 0], sizes = [1, 16], strides = [1, 1]} : vector<16x16xf32> to vector<1x16xf32>
    %568 = vector.broadcast %566 : vector<2x1xf32> to vector<2x16xf32>
    %569 = vector.broadcast %567 : vector<1x16xf32> to vector<2x16xf32>
    %570 = arith.mulf %568, %569 : vector<2x16xf32>
    %571 = vector.extract_strided_slice %565 {offsets = [0, 1], sizes = [2, 1], strides = [1, 1]} : vector<2x16xf32> to vector<2x1xf32>
    %572 = vector.extract_strided_slice %0 {offsets = [1, 0], sizes = [1, 16], strides = [1, 1]} : vector<16x16xf32> to vector<1x16xf32>
    %573 = vector.broadcast %571 : vector<2x1xf32> to vector<2x16xf32>
    %574 = vector.broadcast %572 : vector<1x16xf32> to vector<2x16xf32>
    %575 = arith.mulf %573, %574 : vector<2x16xf32>
    %576 = vector.extract_strided_slice %565 {offsets = [0, 2], sizes = [2, 1], strides = [1, 1]} : vector<2x16xf32> to vector<2x1xf32>
    %577 = vector.extract_strided_slice %0 {offsets = [2, 0], sizes = [1, 16], strides = [1, 1]} : vector<16x16xf32> to vector<1x16xf32>
    %578 = vector.broadcast %576 : vector<2x1xf32> to vector<2x16xf32>
    %579 = vector.broadcast %577 : vector<1x16xf32> to vector<2x16xf32>
    %580 = arith.mulf %578, %579 : vector<2x16xf32>
    %581 = vector.extract_strided_slice %565 {offsets = [0, 3], sizes = [2, 1], strides = [1, 1]} : vector<2x16xf32> to vector<2x1xf32>
    %582 = vector.extract_strided_slice %0 {offsets = [3, 0], sizes = [1, 16], strides = [1, 1]} : vector<16x16xf32> to vector<1x16xf32>
    %583 = vector.broadcast %581 : vector<2x1xf32> to vector<2x16xf32>
    %584 = vector.broadcast %582 : vector<1x16xf32> to vector<2x16xf32>
    %585 = arith.mulf %583, %584 : vector<2x16xf32>
    %586 = vector.extract_strided_slice %565 {offsets = [0, 4], sizes = [2, 1], strides = [1, 1]} : vector<2x16xf32> to vector<2x1xf32>
    %587 = vector.extract_strided_slice %0 {offsets = [4, 0], sizes = [1, 16], strides = [1, 1]} : vector<16x16xf32> to vector<1x16xf32>
    %588 = vector.broadcast %586 : vector<2x1xf32> to vector<2x16xf32>
    %589 = vector.broadcast %587 : vector<1x16xf32> to vector<2x16xf32>
    %590 = arith.mulf %588, %589 : vector<2x16xf32>
    %591 = vector.extract_strided_slice %565 {offsets = [0, 5], sizes = [2, 1], strides = [1, 1]} : vector<2x16xf32> to vector<2x1xf32>
    %592 = vector.extract_strided_slice %0 {offsets = [5, 0], sizes = [1, 16], strides = [1, 1]} : vector<16x16xf32> to vector<1x16xf32>
    %593 = vector.broadcast %591 : vector<2x1xf32> to vector<2x16xf32>
    %594 = vector.broadcast %592 : vector<1x16xf32> to vector<2x16xf32>
    %595 = arith.mulf %593, %594 : vector<2x16xf32>
    %596 = vector.extract_strided_slice %565 {offsets = [0, 6], sizes = [2, 1], strides = [1, 1]} : vector<2x16xf32> to vector<2x1xf32>
    %597 = vector.extract_strided_slice %0 {offsets = [6, 0], sizes = [1, 16], strides = [1, 1]} : vector<16x16xf32> to vector<1x16xf32>
    %598 = vector.broadcast %596 : vector<2x1xf32> to vector<2x16xf32>
    %599 = vector.broadcast %597 : vector<1x16xf32> to vector<2x16xf32>
    %600 = arith.mulf %598, %599 : vector<2x16xf32>
    %601 = vector.extract_strided_slice %565 {offsets = [0, 7], sizes = [2, 1], strides = [1, 1]} : vector<2x16xf32> to vector<2x1xf32>
    %602 = vector.extract_strided_slice %0 {offsets = [7, 0], sizes = [1, 16], strides = [1, 1]} : vector<16x16xf32> to vector<1x16xf32>
    %603 = vector.broadcast %601 : vector<2x1xf32> to vector<2x16xf32>
    %604 = vector.broadcast %602 : vector<1x16xf32> to vector<2x16xf32>
    %605 = arith.mulf %603, %604 : vector<2x16xf32>
    %606 = vector.extract_strided_slice %565 {offsets = [0, 8], sizes = [2, 1], strides = [1, 1]} : vector<2x16xf32> to vector<2x1xf32>
    %607 = vector.extract_strided_slice %0 {offsets = [8, 0], sizes = [1, 16], strides = [1, 1]} : vector<16x16xf32> to vector<1x16xf32>
    %608 = vector.broadcast %606 : vector<2x1xf32> to vector<2x16xf32>
    %609 = vector.broadcast %607 : vector<1x16xf32> to vector<2x16xf32>
    %610 = arith.mulf %608, %609 : vector<2x16xf32>
    %611 = vector.extract_strided_slice %565 {offsets = [0, 9], sizes = [2, 1], strides = [1, 1]} : vector<2x16xf32> to vector<2x1xf32>
    %612 = vector.extract_strided_slice %0 {offsets = [9, 0], sizes = [1, 16], strides = [1, 1]} : vector<16x16xf32> to vector<1x16xf32>
    %613 = vector.broadcast %611 : vector<2x1xf32> to vector<2x16xf32>
    %614 = vector.broadcast %612 : vector<1x16xf32> to vector<2x16xf32>
    %615 = arith.mulf %613, %614 : vector<2x16xf32>
    %616 = vector.extract_strided_slice %565 {offsets = [0, 10], sizes = [2, 1], strides = [1, 1]} : vector<2x16xf32> to vector<2x1xf32>
    %617 = vector.extract_strided_slice %0 {offsets = [10, 0], sizes = [1, 16], strides = [1, 1]} : vector<16x16xf32> to vector<1x16xf32>
    %618 = vector.broadcast %616 : vector<2x1xf32> to vector<2x16xf32>
    %619 = vector.broadcast %617 : vector<1x16xf32> to vector<2x16xf32>
    %620 = arith.mulf %618, %619 : vector<2x16xf32>
    %621 = vector.extract_strided_slice %565 {offsets = [0, 11], sizes = [2, 1], strides = [1, 1]} : vector<2x16xf32> to vector<2x1xf32>
    %622 = vector.extract_strided_slice %0 {offsets = [11, 0], sizes = [1, 16], strides = [1, 1]} : vector<16x16xf32> to vector<1x16xf32>
    %623 = vector.broadcast %621 : vector<2x1xf32> to vector<2x16xf32>
    %624 = vector.broadcast %622 : vector<1x16xf32> to vector<2x16xf32>
    %625 = arith.mulf %623, %624 : vector<2x16xf32>
    %626 = vector.extract_strided_slice %565 {offsets = [0, 12], sizes = [2, 1], strides = [1, 1]} : vector<2x16xf32> to vector<2x1xf32>
    %627 = vector.extract_strided_slice %0 {offsets = [12, 0], sizes = [1, 16], strides = [1, 1]} : vector<16x16xf32> to vector<1x16xf32>
    %628 = vector.broadcast %626 : vector<2x1xf32> to vector<2x16xf32>
    %629 = vector.broadcast %627 : vector<1x16xf32> to vector<2x16xf32>
    %630 = arith.mulf %628, %629 : vector<2x16xf32>
    %631 = vector.extract_strided_slice %565 {offsets = [0, 13], sizes = [2, 1], strides = [1, 1]} : vector<2x16xf32> to vector<2x1xf32>
    %632 = vector.extract_strided_slice %0 {offsets = [13, 0], sizes = [1, 16], strides = [1, 1]} : vector<16x16xf32> to vector<1x16xf32>
    %633 = vector.broadcast %631 : vector<2x1xf32> to vector<2x16xf32>
    %634 = vector.broadcast %632 : vector<1x16xf32> to vector<2x16xf32>
    %635 = arith.mulf %633, %634 : vector<2x16xf32>
    %636 = vector.extract_strided_slice %565 {offsets = [0, 14], sizes = [2, 1], strides = [1, 1]} : vector<2x16xf32> to vector<2x1xf32>
    %637 = vector.extract_strided_slice %0 {offsets = [14, 0], sizes = [1, 16], strides = [1, 1]} : vector<16x16xf32> to vector<1x16xf32>
    %638 = vector.broadcast %636 : vector<2x1xf32> to vector<2x16xf32>
    %639 = vector.broadcast %637 : vector<1x16xf32> to vector<2x16xf32>
    %640 = arith.mulf %638, %639 : vector<2x16xf32>
    %641 = vector.extract_strided_slice %565 {offsets = [0, 15], sizes = [2, 1], strides = [1, 1]} : vector<2x16xf32> to vector<2x1xf32>
    %642 = vector.extract_strided_slice %0 {offsets = [15, 0], sizes = [1, 16], strides = [1, 1]} : vector<16x16xf32> to vector<1x16xf32>
    %643 = vector.broadcast %641 : vector<2x1xf32> to vector<2x16xf32>
    %644 = vector.broadcast %642 : vector<1x16xf32> to vector<2x16xf32>
    %645 = arith.mulf %643, %644 : vector<2x16xf32>
    %646 = arith.addf %570, %575 : vector<2x16xf32>
    %647 = arith.addf %580, %585 : vector<2x16xf32>
    %648 = arith.addf %590, %595 : vector<2x16xf32>
    %649 = arith.addf %600, %605 : vector<2x16xf32>
    %650 = arith.addf %610, %615 : vector<2x16xf32>
    %651 = arith.addf %620, %625 : vector<2x16xf32>
    %652 = arith.addf %630, %635 : vector<2x16xf32>
    %653 = arith.addf %640, %645 : vector<2x16xf32>
    %654 = arith.addf %646, %647 : vector<2x16xf32>
    %655 = arith.addf %648, %649 : vector<2x16xf32>
    %656 = arith.addf %650, %651 : vector<2x16xf32>
    %657 = arith.addf %652, %653 : vector<2x16xf32>
    %658 = arith.addf %654, %655 : vector<2x16xf32>
    %659 = arith.addf %656, %657 : vector<2x16xf32>
    %660 = arith.addf %658, %659 : vector<2x16xf32>
    %661 = arith.addf %660, %559 : vector<2x16xf32>
    %662 = math.tanh %661 : vector<2x16xf32>
    %663 = arith.mulf %662, %561 : vector<2x16xf32>
    %cst_51 = arith.constant 0.333333343 : f32
    %664 = vector.broadcast %cst_51 : f32 to vector<2x16xf32>
    %665 = arith.mulf %554, %664 : vector<2x16xf32>
    %666 = arith.subf %663, %665 : vector<2x16xf32>
    %667 = arith.addf %446, %666 : vector<2x16xf32>
    %c12 = arith.constant 12 : index
    %c0_52 = arith.constant 0 : index
    %c0_53 = arith.constant 0 : index
    %668 = vector.load %arg1[%c12, %c0_52, %c0_53] : memref<56x2x16xf32, #tpu.memory_space<vmem>>, vector<1x2x16xf32>
    %669 = vector.shape_cast %668 : vector<1x2x16xf32> to vector<2x16xf32>
    %c13 = arith.constant 13 : index
    %c0_54 = arith.constant 0 : index
    %c0_55 = arith.constant 0 : index
    %670 = vector.load %arg1[%c13, %c0_54, %c0_55] : memref<56x2x16xf32, #tpu.memory_space<vmem>>, vector<1x2x16xf32>
    %671 = vector.shape_cast %670 : vector<1x2x16xf32> to vector<2x16xf32>
    %cst_56 = arith.constant -1.000000e+00 : f32
    %cst_57 = arith.constant 1.000000e+00 : f32
    %672 = vector.broadcast %cst_56 : f32 to vector<2x16xf32>
    %673 = arith.maximumf %672, %667 : vector<2x16xf32>
    %674 = vector.broadcast %cst_57 : f32 to vector<2x16xf32>
    %675 = arith.minimumf %674, %673 : vector<2x16xf32>
    %676 = vector.extract_strided_slice %675 {offsets = [0, 0], sizes = [2, 1], strides = [1, 1]} : vector<2x16xf32> to vector<2x1xf32>
    %677 = vector.extract_strided_slice %0 {offsets = [0, 0], sizes = [1, 16], strides = [1, 1]} : vector<16x16xf32> to vector<1x16xf32>
    %678 = vector.broadcast %676 : vector<2x1xf32> to vector<2x16xf32>
    %679 = vector.broadcast %677 : vector<1x16xf32> to vector<2x16xf32>
    %680 = arith.mulf %678, %679 : vector<2x16xf32>
    %681 = vector.extract_strided_slice %675 {offsets = [0, 1], sizes = [2, 1], strides = [1, 1]} : vector<2x16xf32> to vector<2x1xf32>
    %682 = vector.extract_strided_slice %0 {offsets = [1, 0], sizes = [1, 16], strides = [1, 1]} : vector<16x16xf32> to vector<1x16xf32>
    %683 = vector.broadcast %681 : vector<2x1xf32> to vector<2x16xf32>
    %684 = vector.broadcast %682 : vector<1x16xf32> to vector<2x16xf32>
    %685 = arith.mulf %683, %684 : vector<2x16xf32>
    %686 = vector.extract_strided_slice %675 {offsets = [0, 2], sizes = [2, 1], strides = [1, 1]} : vector<2x16xf32> to vector<2x1xf32>
    %687 = vector.extract_strided_slice %0 {offsets = [2, 0], sizes = [1, 16], strides = [1, 1]} : vector<16x16xf32> to vector<1x16xf32>
    %688 = vector.broadcast %686 : vector<2x1xf32> to vector<2x16xf32>
    %689 = vector.broadcast %687 : vector<1x16xf32> to vector<2x16xf32>
    %690 = arith.mulf %688, %689 : vector<2x16xf32>
    %691 = vector.extract_strided_slice %675 {offsets = [0, 3], sizes = [2, 1], strides = [1, 1]} : vector<2x16xf32> to vector<2x1xf32>
    %692 = vector.extract_strided_slice %0 {offsets = [3, 0], sizes = [1, 16], strides = [1, 1]} : vector<16x16xf32> to vector<1x16xf32>
    %693 = vector.broadcast %691 : vector<2x1xf32> to vector<2x16xf32>
    %694 = vector.broadcast %692 : vector<1x16xf32> to vector<2x16xf32>
    %695 = arith.mulf %693, %694 : vector<2x16xf32>
    %696 = vector.extract_strided_slice %675 {offsets = [0, 4], sizes = [2, 1], strides = [1, 1]} : vector<2x16xf32> to vector<2x1xf32>
    %697 = vector.extract_strided_slice %0 {offsets = [4, 0], sizes = [1, 16], strides = [1, 1]} : vector<16x16xf32> to vector<1x16xf32>
    %698 = vector.broadcast %696 : vector<2x1xf32> to vector<2x16xf32>
    %699 = vector.broadcast %697 : vector<1x16xf32> to vector<2x16xf32>
    %700 = arith.mulf %698, %699 : vector<2x16xf32>
    %701 = vector.extract_strided_slice %675 {offsets = [0, 5], sizes = [2, 1], strides = [1, 1]} : vector<2x16xf32> to vector<2x1xf32>
    %702 = vector.extract_strided_slice %0 {offsets = [5, 0], sizes = [1, 16], strides = [1, 1]} : vector<16x16xf32> to vector<1x16xf32>
    %703 = vector.broadcast %701 : vector<2x1xf32> to vector<2x16xf32>
    %704 = vector.broadcast %702 : vector<1x16xf32> to vector<2x16xf32>
    %705 = arith.mulf %703, %704 : vector<2x16xf32>
    %706 = vector.extract_strided_slice %675 {offsets = [0, 6], sizes = [2, 1], strides = [1, 1]} : vector<2x16xf32> to vector<2x1xf32>
    %707 = vector.extract_strided_slice %0 {offsets = [6, 0], sizes = [1, 16], strides = [1, 1]} : vector<16x16xf32> to vector<1x16xf32>
    %708 = vector.broadcast %706 : vector<2x1xf32> to vector<2x16xf32>
    %709 = vector.broadcast %707 : vector<1x16xf32> to vector<2x16xf32>
    %710 = arith.mulf %708, %709 : vector<2x16xf32>
    %711 = vector.extract_strided_slice %675 {offsets = [0, 7], sizes = [2, 1], strides = [1, 1]} : vector<2x16xf32> to vector<2x1xf32>
    %712 = vector.extract_strided_slice %0 {offsets = [7, 0], sizes = [1, 16], strides = [1, 1]} : vector<16x16xf32> to vector<1x16xf32>
    %713 = vector.broadcast %711 : vector<2x1xf32> to vector<2x16xf32>
    %714 = vector.broadcast %712 : vector<1x16xf32> to vector<2x16xf32>
    %715 = arith.mulf %713, %714 : vector<2x16xf32>
    %716 = vector.extract_strided_slice %675 {offsets = [0, 8], sizes = [2, 1], strides = [1, 1]} : vector<2x16xf32> to vector<2x1xf32>
    %717 = vector.extract_strided_slice %0 {offsets = [8, 0], sizes = [1, 16], strides = [1, 1]} : vector<16x16xf32> to vector<1x16xf32>
    %718 = vector.broadcast %716 : vector<2x1xf32> to vector<2x16xf32>
    %719 = vector.broadcast %717 : vector<1x16xf32> to vector<2x16xf32>
    %720 = arith.mulf %718, %719 : vector<2x16xf32>
    %721 = vector.extract_strided_slice %675 {offsets = [0, 9], sizes = [2, 1], strides = [1, 1]} : vector<2x16xf32> to vector<2x1xf32>
    %722 = vector.extract_strided_slice %0 {offsets = [9, 0], sizes = [1, 16], strides = [1, 1]} : vector<16x16xf32> to vector<1x16xf32>
    %723 = vector.broadcast %721 : vector<2x1xf32> to vector<2x16xf32>
    %724 = vector.broadcast %722 : vector<1x16xf32> to vector<2x16xf32>
    %725 = arith.mulf %723, %724 : vector<2x16xf32>
    %726 = vector.extract_strided_slice %675 {offsets = [0, 10], sizes = [2, 1], strides = [1, 1]} : vector<2x16xf32> to vector<2x1xf32>
    %727 = vector.extract_strided_slice %0 {offsets = [10, 0], sizes = [1, 16], strides = [1, 1]} : vector<16x16xf32> to vector<1x16xf32>
    %728 = vector.broadcast %726 : vector<2x1xf32> to vector<2x16xf32>
    %729 = vector.broadcast %727 : vector<1x16xf32> to vector<2x16xf32>
    %730 = arith.mulf %728, %729 : vector<2x16xf32>
    %731 = vector.extract_strided_slice %675 {offsets = [0, 11], sizes = [2, 1], strides = [1, 1]} : vector<2x16xf32> to vector<2x1xf32>
    %732 = vector.extract_strided_slice %0 {offsets = [11, 0], sizes = [1, 16], strides = [1, 1]} : vector<16x16xf32> to vector<1x16xf32>
    %733 = vector.broadcast %731 : vector<2x1xf32> to vector<2x16xf32>
    %734 = vector.broadcast %732 : vector<1x16xf32> to vector<2x16xf32>
    %735 = arith.mulf %733, %734 : vector<2x16xf32>
    %736 = vector.extract_strided_slice %675 {offsets = [0, 12], sizes = [2, 1], strides = [1, 1]} : vector<2x16xf32> to vector<2x1xf32>
    %737 = vector.extract_strided_slice %0 {offsets = [12, 0], sizes = [1, 16], strides = [1, 1]} : vector<16x16xf32> to vector<1x16xf32>
    %738 = vector.broadcast %736 : vector<2x1xf32> to vector<2x16xf32>
    %739 = vector.broadcast %737 : vector<1x16xf32> to vector<2x16xf32>
    %740 = arith.mulf %738, %739 : vector<2x16xf32>
    %741 = vector.extract_strided_slice %675 {offsets = [0, 13], sizes = [2, 1], strides = [1, 1]} : vector<2x16xf32> to vector<2x1xf32>
    %742 = vector.extract_strided_slice %0 {offsets = [13, 0], sizes = [1, 16], strides = [1, 1]} : vector<16x16xf32> to vector<1x16xf32>
    %743 = vector.broadcast %741 : vector<2x1xf32> to vector<2x16xf32>
    %744 = vector.broadcast %742 : vector<1x16xf32> to vector<2x16xf32>
    %745 = arith.mulf %743, %744 : vector<2x16xf32>
    %746 = vector.extract_strided_slice %675 {offsets = [0, 14], sizes = [2, 1], strides = [1, 1]} : vector<2x16xf32> to vector<2x1xf32>
    %747 = vector.extract_strided_slice %0 {offsets = [14, 0], sizes = [1, 16], strides = [1, 1]} : vector<16x16xf32> to vector<1x16xf32>
    %748 = vector.broadcast %746 : vector<2x1xf32> to vector<2x16xf32>
    %749 = vector.broadcast %747 : vector<1x16xf32> to vector<2x16xf32>
    %750 = arith.mulf %748, %749 : vector<2x16xf32>
    %751 = vector.extract_strided_slice %675 {offsets = [0, 15], sizes = [2, 1], strides = [1, 1]} : vector<2x16xf32> to vector<2x1xf32>
    %752 = vector.extract_strided_slice %0 {offsets = [15, 0], sizes = [1, 16], strides = [1, 1]} : vector<16x16xf32> to vector<1x16xf32>
    %753 = vector.broadcast %751 : vector<2x1xf32> to vector<2x16xf32>
    %754 = vector.broadcast %752 : vector<1x16xf32> to vector<2x16xf32>
    %755 = arith.mulf %753, %754 : vector<2x16xf32>
    %756 = arith.addf %680, %685 : vector<2x16xf32>
    %757 = arith.addf %690, %695 : vector<2x16xf32>
    %758 = arith.addf %700, %705 : vector<2x16xf32>
    %759 = arith.addf %710, %715 : vector<2x16xf32>
    %760 = arith.addf %720, %725 : vector<2x16xf32>
    %761 = arith.addf %730, %735 : vector<2x16xf32>
    %762 = arith.addf %740, %745 : vector<2x16xf32>
    %763 = arith.addf %750, %755 : vector<2x16xf32>
    %764 = arith.addf %756, %757 : vector<2x16xf32>
    %765 = arith.addf %758, %759 : vector<2x16xf32>
    %766 = arith.addf %760, %761 : vector<2x16xf32>
    %767 = arith.addf %762, %763 : vector<2x16xf32>
    %768 = arith.addf %764, %765 : vector<2x16xf32>
    %769 = arith.addf %766, %767 : vector<2x16xf32>
    %770 = arith.addf %768, %769 : vector<2x16xf32>
    %771 = arith.addf %770, %669 : vector<2x16xf32>
    %772 = math.tanh %771 : vector<2x16xf32>
    %773 = arith.mulf %772, %671 : vector<2x16xf32>
    %774 = arith.subf %554, %663 : vector<2x16xf32>
    %775 = arith.addf %774, %773 : vector<2x16xf32>
    %776 = arith.addf %446, %775 : vector<2x16xf32>
    %c14 = arith.constant 14 : index
    %c0_58 = arith.constant 0 : index
    %c0_59 = arith.constant 0 : index
    %777 = vector.load %arg1[%c14, %c0_58, %c0_59] : memref<56x2x16xf32, #tpu.memory_space<vmem>>, vector<1x2x16xf32>
    %778 = vector.shape_cast %777 : vector<1x2x16xf32> to vector<2x16xf32>
    %c15 = arith.constant 15 : index
    %c0_60 = arith.constant 0 : index
    %c0_61 = arith.constant 0 : index
    %779 = vector.load %arg1[%c15, %c0_60, %c0_61] : memref<56x2x16xf32, #tpu.memory_space<vmem>>, vector<1x2x16xf32>
    %780 = vector.shape_cast %779 : vector<1x2x16xf32> to vector<2x16xf32>
    %cst_62 = arith.constant -1.000000e+00 : f32
    %cst_63 = arith.constant 1.000000e+00 : f32
    %781 = vector.broadcast %cst_62 : f32 to vector<2x16xf32>
    %782 = arith.maximumf %781, %776 : vector<2x16xf32>
    %783 = vector.broadcast %cst_63 : f32 to vector<2x16xf32>
    %784 = arith.minimumf %783, %782 : vector<2x16xf32>
    %785 = vector.extract_strided_slice %784 {offsets = [0, 0], sizes = [2, 1], strides = [1, 1]} : vector<2x16xf32> to vector<2x1xf32>
    %786 = vector.extract_strided_slice %0 {offsets = [0, 0], sizes = [1, 16], strides = [1, 1]} : vector<16x16xf32> to vector<1x16xf32>
    %787 = vector.broadcast %785 : vector<2x1xf32> to vector<2x16xf32>
    %788 = vector.broadcast %786 : vector<1x16xf32> to vector<2x16xf32>
    %789 = arith.mulf %787, %788 : vector<2x16xf32>
    %790 = vector.extract_strided_slice %784 {offsets = [0, 1], sizes = [2, 1], strides = [1, 1]} : vector<2x16xf32> to vector<2x1xf32>
    %791 = vector.extract_strided_slice %0 {offsets = [1, 0], sizes = [1, 16], strides = [1, 1]} : vector<16x16xf32> to vector<1x16xf32>
    %792 = vector.broadcast %790 : vector<2x1xf32> to vector<2x16xf32>
    %793 = vector.broadcast %791 : vector<1x16xf32> to vector<2x16xf32>
    %794 = arith.mulf %792, %793 : vector<2x16xf32>
    %795 = vector.extract_strided_slice %784 {offsets = [0, 2], sizes = [2, 1], strides = [1, 1]} : vector<2x16xf32> to vector<2x1xf32>
    %796 = vector.extract_strided_slice %0 {offsets = [2, 0], sizes = [1, 16], strides = [1, 1]} : vector<16x16xf32> to vector<1x16xf32>
    %797 = vector.broadcast %795 : vector<2x1xf32> to vector<2x16xf32>
    %798 = vector.broadcast %796 : vector<1x16xf32> to vector<2x16xf32>
    %799 = arith.mulf %797, %798 : vector<2x16xf32>
    %800 = vector.extract_strided_slice %784 {offsets = [0, 3], sizes = [2, 1], strides = [1, 1]} : vector<2x16xf32> to vector<2x1xf32>
    %801 = vector.extract_strided_slice %0 {offsets = [3, 0], sizes = [1, 16], strides = [1, 1]} : vector<16x16xf32> to vector<1x16xf32>
    %802 = vector.broadcast %800 : vector<2x1xf32> to vector<2x16xf32>
    %803 = vector.broadcast %801 : vector<1x16xf32> to vector<2x16xf32>
    %804 = arith.mulf %802, %803 : vector<2x16xf32>
    %805 = vector.extract_strided_slice %784 {offsets = [0, 4], sizes = [2, 1], strides = [1, 1]} : vector<2x16xf32> to vector<2x1xf32>
    %806 = vector.extract_strided_slice %0 {offsets = [4, 0], sizes = [1, 16], strides = [1, 1]} : vector<16x16xf32> to vector<1x16xf32>
    %807 = vector.broadcast %805 : vector<2x1xf32> to vector<2x16xf32>
    %808 = vector.broadcast %806 : vector<1x16xf32> to vector<2x16xf32>
    %809 = arith.mulf %807, %808 : vector<2x16xf32>
    %810 = vector.extract_strided_slice %784 {offsets = [0, 5], sizes = [2, 1], strides = [1, 1]} : vector<2x16xf32> to vector<2x1xf32>
    %811 = vector.extract_strided_slice %0 {offsets = [5, 0], sizes = [1, 16], strides = [1, 1]} : vector<16x16xf32> to vector<1x16xf32>
    %812 = vector.broadcast %810 : vector<2x1xf32> to vector<2x16xf32>
    %813 = vector.broadcast %811 : vector<1x16xf32> to vector<2x16xf32>
    %814 = arith.mulf %812, %813 : vector<2x16xf32>
    %815 = vector.extract_strided_slice %784 {offsets = [0, 6], sizes = [2, 1], strides = [1, 1]} : vector<2x16xf32> to vector<2x1xf32>
    %816 = vector.extract_strided_slice %0 {offsets = [6, 0], sizes = [1, 16], strides = [1, 1]} : vector<16x16xf32> to vector<1x16xf32>
    %817 = vector.broadcast %815 : vector<2x1xf32> to vector<2x16xf32>
    %818 = vector.broadcast %816 : vector<1x16xf32> to vector<2x16xf32>
    %819 = arith.mulf %817, %818 : vector<2x16xf32>
    %820 = vector.extract_strided_slice %784 {offsets = [0, 7], sizes = [2, 1], strides = [1, 1]} : vector<2x16xf32> to vector<2x1xf32>
    %821 = vector.extract_strided_slice %0 {offsets = [7, 0], sizes = [1, 16], strides = [1, 1]} : vector<16x16xf32> to vector<1x16xf32>
    %822 = vector.broadcast %820 : vector<2x1xf32> to vector<2x16xf32>
    %823 = vector.broadcast %821 : vector<1x16xf32> to vector<2x16xf32>
    %824 = arith.mulf %822, %823 : vector<2x16xf32>
    %825 = vector.extract_strided_slice %784 {offsets = [0, 8], sizes = [2, 1], strides = [1, 1]} : vector<2x16xf32> to vector<2x1xf32>
    %826 = vector.extract_strided_slice %0 {offsets = [8, 0], sizes = [1, 16], strides = [1, 1]} : vector<16x16xf32> to vector<1x16xf32>
    %827 = vector.broadcast %825 : vector<2x1xf32> to vector<2x16xf32>
    %828 = vector.broadcast %826 : vector<1x16xf32> to vector<2x16xf32>
    %829 = arith.mulf %827, %828 : vector<2x16xf32>
    %830 = vector.extract_strided_slice %784 {offsets = [0, 9], sizes = [2, 1], strides = [1, 1]} : vector<2x16xf32> to vector<2x1xf32>
    %831 = vector.extract_strided_slice %0 {offsets = [9, 0], sizes = [1, 16], strides = [1, 1]} : vector<16x16xf32> to vector<1x16xf32>
    %832 = vector.broadcast %830 : vector<2x1xf32> to vector<2x16xf32>
    %833 = vector.broadcast %831 : vector<1x16xf32> to vector<2x16xf32>
    %834 = arith.mulf %832, %833 : vector<2x16xf32>
    %835 = vector.extract_strided_slice %784 {offsets = [0, 10], sizes = [2, 1], strides = [1, 1]} : vector<2x16xf32> to vector<2x1xf32>
    %836 = vector.extract_strided_slice %0 {offsets = [10, 0], sizes = [1, 16], strides = [1, 1]} : vector<16x16xf32> to vector<1x16xf32>
    %837 = vector.broadcast %835 : vector<2x1xf32> to vector<2x16xf32>
    %838 = vector.broadcast %836 : vector<1x16xf32> to vector<2x16xf32>
    %839 = arith.mulf %837, %838 : vector<2x16xf32>
    %840 = vector.extract_strided_slice %784 {offsets = [0, 11], sizes = [2, 1], strides = [1, 1]} : vector<2x16xf32> to vector<2x1xf32>
    %841 = vector.extract_strided_slice %0 {offsets = [11, 0], sizes = [1, 16], strides = [1, 1]} : vector<16x16xf32> to vector<1x16xf32>
    %842 = vector.broadcast %840 : vector<2x1xf32> to vector<2x16xf32>
    %843 = vector.broadcast %841 : vector<1x16xf32> to vector<2x16xf32>
    %844 = arith.mulf %842, %843 : vector<2x16xf32>
    %845 = vector.extract_strided_slice %784 {offsets = [0, 12], sizes = [2, 1], strides = [1, 1]} : vector<2x16xf32> to vector<2x1xf32>
    %846 = vector.extract_strided_slice %0 {offsets = [12, 0], sizes = [1, 16], strides = [1, 1]} : vector<16x16xf32> to vector<1x16xf32>
    %847 = vector.broadcast %845 : vector<2x1xf32> to vector<2x16xf32>
    %848 = vector.broadcast %846 : vector<1x16xf32> to vector<2x16xf32>
    %849 = arith.mulf %847, %848 : vector<2x16xf32>
    %850 = vector.extract_strided_slice %784 {offsets = [0, 13], sizes = [2, 1], strides = [1, 1]} : vector<2x16xf32> to vector<2x1xf32>
    %851 = vector.extract_strided_slice %0 {offsets = [13, 0], sizes = [1, 16], strides = [1, 1]} : vector<16x16xf32> to vector<1x16xf32>
    %852 = vector.broadcast %850 : vector<2x1xf32> to vector<2x16xf32>
    %853 = vector.broadcast %851 : vector<1x16xf32> to vector<2x16xf32>
    %854 = arith.mulf %852, %853 : vector<2x16xf32>
    %855 = vector.extract_strided_slice %784 {offsets = [0, 14], sizes = [2, 1], strides = [1, 1]} : vector<2x16xf32> to vector<2x1xf32>
    %856 = vector.extract_strided_slice %0 {offsets = [14, 0], sizes = [1, 16], strides = [1, 1]} : vector<16x16xf32> to vector<1x16xf32>
    %857 = vector.broadcast %855 : vector<2x1xf32> to vector<2x16xf32>
    %858 = vector.broadcast %856 : vector<1x16xf32> to vector<2x16xf32>
    %859 = arith.mulf %857, %858 : vector<2x16xf32>
    %860 = vector.extract_strided_slice %784 {offsets = [0, 15], sizes = [2, 1], strides = [1, 1]} : vector<2x16xf32> to vector<2x1xf32>
    %861 = vector.extract_strided_slice %0 {offsets = [15, 0], sizes = [1, 16], strides = [1, 1]} : vector<16x16xf32> to vector<1x16xf32>
    %862 = vector.broadcast %860 : vector<2x1xf32> to vector<2x16xf32>
    %863 = vector.broadcast %861 : vector<1x16xf32> to vector<2x16xf32>
    %864 = arith.mulf %862, %863 : vector<2x16xf32>
    %865 = arith.addf %789, %794 : vector<2x16xf32>
    %866 = arith.addf %799, %804 : vector<2x16xf32>
    %867 = arith.addf %809, %814 : vector<2x16xf32>
    %868 = arith.addf %819, %824 : vector<2x16xf32>
    %869 = arith.addf %829, %834 : vector<2x16xf32>
    %870 = arith.addf %839, %844 : vector<2x16xf32>
    %871 = arith.addf %849, %854 : vector<2x16xf32>
    %872 = arith.addf %859, %864 : vector<2x16xf32>
    %873 = arith.addf %865, %866 : vector<2x16xf32>
    %874 = arith.addf %867, %868 : vector<2x16xf32>
    %875 = arith.addf %869, %870 : vector<2x16xf32>
    %876 = arith.addf %871, %872 : vector<2x16xf32>
    %877 = arith.addf %873, %874 : vector<2x16xf32>
    %878 = arith.addf %875, %876 : vector<2x16xf32>
    %879 = arith.addf %877, %878 : vector<2x16xf32>
    %880 = arith.addf %879, %778 : vector<2x16xf32>
    %881 = math.tanh %880 : vector<2x16xf32>
    %882 = arith.mulf %881, %780 : vector<2x16xf32>
    %883 = arith.addf %663, %773 : vector<2x16xf32>
    %cst_64 = arith.constant 3.000000e+00 : f32
    %884 = vector.broadcast %cst_64 : f32 to vector<2x16xf32>
    %885 = arith.mulf %884, %883 : vector<2x16xf32>
    %886 = arith.addf %554, %885 : vector<2x16xf32>
    %887 = arith.addf %886, %882 : vector<2x16xf32>
    %cst_65 = arith.constant 1.250000e-01 : f32
    %888 = vector.broadcast %cst_65 : f32 to vector<2x16xf32>
    %889 = arith.mulf %887, %888 : vector<2x16xf32>
    %890 = arith.addf %446, %889 : vector<2x16xf32>
    %891 = vector.shape_cast %890 : vector<2x16xf32> to vector<2x1x16xf32>
    %c0_66 = arith.constant 0 : index
    %c2_67 = arith.constant 2 : index
    %c0_68 = arith.constant 0 : index
    %892 = vector.load %arg6[%c0_66, %c2_67, %c0_68] : memref<2x8x16xf32, #tpu.memory_space<vmem>>, vector<2x1x16xf32>
    tpu.vector_store %arg6[%c0_66, %c2_67, %c0_68], %891 {strides = array<i32>} : memref<2x8x16xf32, #tpu.memory_space<vmem>>, vector<2x1x16xf32>,
    %c16 = arith.constant 16 : index
    %c0_69 = arith.constant 0 : index
    %c0_70 = arith.constant 0 : index
    %893 = vector.load %arg1[%c16, %c0_69, %c0_70] : memref<56x2x16xf32, #tpu.memory_space<vmem>>, vector<1x2x16xf32>
    %894 = vector.shape_cast %893 : vector<1x2x16xf32> to vector<2x16xf32>
    %c17 = arith.constant 17 : index
    %c0_71 = arith.constant 0 : index
    %c0_72 = arith.constant 0 : index
    %895 = vector.load %arg1[%c17, %c0_71, %c0_72] : memref<56x2x16xf32, #tpu.memory_space<vmem>>, vector<1x2x16xf32>
    %896 = vector.shape_cast %895 : vector<1x2x16xf32> to vector<2x16xf32>
    %cst_73 = arith.constant -1.000000e+00 : f32
    %cst_74 = arith.constant 1.000000e+00 : f32
    %897 = vector.broadcast %cst_73 : f32 to vector<2x16xf32>
    %898 = arith.maximumf %897, %890 : vector<2x16xf32>
    %899 = vector.broadcast %cst_74 : f32 to vector<2x16xf32>
    %900 = arith.minimumf %899, %898 : vector<2x16xf32>
    %901 = vector.extract_strided_slice %900 {offsets = [0, 0], sizes = [2, 1], strides = [1, 1]} : vector<2x16xf32> to vector<2x1xf32>
    %902 = vector.extract_strided_slice %0 {offsets = [0, 0], sizes = [1, 16], strides = [1, 1]} : vector<16x16xf32> to vector<1x16xf32>
    %903 = vector.broadcast %901 : vector<2x1xf32> to vector<2x16xf32>
    %904 = vector.broadcast %902 : vector<1x16xf32> to vector<2x16xf32>
    %905 = arith.mulf %903, %904 : vector<2x16xf32>
    %906 = vector.extract_strided_slice %900 {offsets = [0, 1], sizes = [2, 1], strides = [1, 1]} : vector<2x16xf32> to vector<2x1xf32>
    %907 = vector.extract_strided_slice %0 {offsets = [1, 0], sizes = [1, 16], strides = [1, 1]} : vector<16x16xf32> to vector<1x16xf32>
    %908 = vector.broadcast %906 : vector<2x1xf32> to vector<2x16xf32>
    %909 = vector.broadcast %907 : vector<1x16xf32> to vector<2x16xf32>
    %910 = arith.mulf %908, %909 : vector<2x16xf32>
    %911 = vector.extract_strided_slice %900 {offsets = [0, 2], sizes = [2, 1], strides = [1, 1]} : vector<2x16xf32> to vector<2x1xf32>
    %912 = vector.extract_strided_slice %0 {offsets = [2, 0], sizes = [1, 16], strides = [1, 1]} : vector<16x16xf32> to vector<1x16xf32>
    %913 = vector.broadcast %911 : vector<2x1xf32> to vector<2x16xf32>
    %914 = vector.broadcast %912 : vector<1x16xf32> to vector<2x16xf32>
    %915 = arith.mulf %913, %914 : vector<2x16xf32>
    %916 = vector.extract_strided_slice %900 {offsets = [0, 3], sizes = [2, 1], strides = [1, 1]} : vector<2x16xf32> to vector<2x1xf32>
    %917 = vector.extract_strided_slice %0 {offsets = [3, 0], sizes = [1, 16], strides = [1, 1]} : vector<16x16xf32> to vector<1x16xf32>
    %918 = vector.broadcast %916 : vector<2x1xf32> to vector<2x16xf32>
    %919 = vector.broadcast %917 : vector<1x16xf32> to vector<2x16xf32>
    %920 = arith.mulf %918, %919 : vector<2x16xf32>
    %921 = vector.extract_strided_slice %900 {offsets = [0, 4], sizes = [2, 1], strides = [1, 1]} : vector<2x16xf32> to vector<2x1xf32>
    %922 = vector.extract_strided_slice %0 {offsets = [4, 0], sizes = [1, 16], strides = [1, 1]} : vector<16x16xf32> to vector<1x16xf32>
    %923 = vector.broadcast %921 : vector<2x1xf32> to vector<2x16xf32>
    %924 = vector.broadcast %922 : vector<1x16xf32> to vector<2x16xf32>
    %925 = arith.mulf %923, %924 : vector<2x16xf32>
    %926 = vector.extract_strided_slice %900 {offsets = [0, 5], sizes = [2, 1], strides = [1, 1]} : vector<2x16xf32> to vector<2x1xf32>
    %927 = vector.extract_strided_slice %0 {offsets = [5, 0], sizes = [1, 16], strides = [1, 1]} : vector<16x16xf32> to vector<1x16xf32>
    %928 = vector.broadcast %926 : vector<2x1xf32> to vector<2x16xf32>
    %929 = vector.broadcast %927 : vector<1x16xf32> to vector<2x16xf32>
    %930 = arith.mulf %928, %929 : vector<2x16xf32>
    %931 = vector.extract_strided_slice %900 {offsets = [0, 6], sizes = [2, 1], strides = [1, 1]} : vector<2x16xf32> to vector<2x1xf32>
    %932 = vector.extract_strided_slice %0 {offsets = [6, 0], sizes = [1, 16], strides = [1, 1]} : vector<16x16xf32> to vector<1x16xf32>
    %933 = vector.broadcast %931 : vector<2x1xf32> to vector<2x16xf32>
    %934 = vector.broadcast %932 : vector<1x16xf32> to vector<2x16xf32>
    %935 = arith.mulf %933, %934 : vector<2x16xf32>
    %936 = vector.extract_strided_slice %900 {offsets = [0, 7], sizes = [2, 1], strides = [1, 1]} : vector<2x16xf32> to vector<2x1xf32>
    %937 = vector.extract_strided_slice %0 {offsets = [7, 0], sizes = [1, 16], strides = [1, 1]} : vector<16x16xf32> to vector<1x16xf32>
    %938 = vector.broadcast %936 : vector<2x1xf32> to vector<2x16xf32>
    %939 = vector.broadcast %937 : vector<1x16xf32> to vector<2x16xf32>
    %940 = arith.mulf %938, %939 : vector<2x16xf32>
    %941 = vector.extract_strided_slice %900 {offsets = [0, 8], sizes = [2, 1], strides = [1, 1]} : vector<2x16xf32> to vector<2x1xf32>
    %942 = vector.extract_strided_slice %0 {offsets = [8, 0], sizes = [1, 16], strides = [1, 1]} : vector<16x16xf32> to vector<1x16xf32>
    %943 = vector.broadcast %941 : vector<2x1xf32> to vector<2x16xf32>
    %944 = vector.broadcast %942 : vector<1x16xf32> to vector<2x16xf32>
    %945 = arith.mulf %943, %944 : vector<2x16xf32>
    %946 = vector.extract_strided_slice %900 {offsets = [0, 9], sizes = [2, 1], strides = [1, 1]} : vector<2x16xf32> to vector<2x1xf32>
    %947 = vector.extract_strided_slice %0 {offsets = [9, 0], sizes = [1, 16], strides = [1, 1]} : vector<16x16xf32> to vector<1x16xf32>
    %948 = vector.broadcast %946 : vector<2x1xf32> to vector<2x16xf32>
    %949 = vector.broadcast %947 : vector<1x16xf32> to vector<2x16xf32>
    %950 = arith.mulf %948, %949 : vector<2x16xf32>
    %951 = vector.extract_strided_slice %900 {offsets = [0, 10], sizes = [2, 1], strides = [1, 1]} : vector<2x16xf32> to vector<2x1xf32>
    %952 = vector.extract_strided_slice %0 {offsets = [10, 0], sizes = [1, 16], strides = [1, 1]} : vector<16x16xf32> to vector<1x16xf32>
    %953 = vector.broadcast %951 : vector<2x1xf32> to vector<2x16xf32>
    %954 = vector.broadcast %952 : vector<1x16xf32> to vector<2x16xf32>
    %955 = arith.mulf %953, %954 : vector<2x16xf32>
    %956 = vector.extract_strided_slice %900 {offsets = [0, 11], sizes = [2, 1], strides = [1, 1]} : vector<2x16xf32> to vector<2x1xf32>
    %957 = vector.extract_strided_slice %0 {offsets = [11, 0], sizes = [1, 16], strides = [1, 1]} : vector<16x16xf32> to vector<1x16xf32>
    %958 = vector.broadcast %956 : vector<2x1xf32> to vector<2x16xf32>
    %959 = vector.broadcast %957 : vector<1x16xf32> to vector<2x16xf32>
    %960 = arith.mulf %958, %959 : vector<2x16xf32>
    %961 = vector.extract_strided_slice %900 {offsets = [0, 12], sizes = [2, 1], strides = [1, 1]} : vector<2x16xf32> to vector<2x1xf32>
    %962 = vector.extract_strided_slice %0 {offsets = [12, 0], sizes = [1, 16], strides = [1, 1]} : vector<16x16xf32> to vector<1x16xf32>
    %963 = vector.broadcast %961 : vector<2x1xf32> to vector<2x16xf32>
    %964 = vector.broadcast %962 : vector<1x16xf32> to vector<2x16xf32>
    %965 = arith.mulf %963, %964 : vector<2x16xf32>
    %966 = vector.extract_strided_slice %900 {offsets = [0, 13], sizes = [2, 1], strides = [1, 1]} : vector<2x16xf32> to vector<2x1xf32>
    %967 = vector.extract_strided_slice %0 {offsets = [13, 0], sizes = [1, 16], strides = [1, 1]} : vector<16x16xf32> to vector<1x16xf32>
    %968 = vector.broadcast %966 : vector<2x1xf32> to vector<2x16xf32>
    %969 = vector.broadcast %967 : vector<1x16xf32> to vector<2x16xf32>
    %970 = arith.mulf %968, %969 : vector<2x16xf32>
    %971 = vector.extract_strided_slice %900 {offsets = [0, 14], sizes = [2, 1], strides = [1, 1]} : vector<2x16xf32> to vector<2x1xf32>
    %972 = vector.extract_strided_slice %0 {offsets = [14, 0], sizes = [1, 16], strides = [1, 1]} : vector<16x16xf32> to vector<1x16xf32>
    %973 = vector.broadcast %971 : vector<2x1xf32> to vector<2x16xf32>
    %974 = vector.broadcast %972 : vector<1x16xf32> to vector<2x16xf32>
    %975 = arith.mulf %973, %974 : vector<2x16xf32>
    %976 = vector.extract_strided_slice %900 {offsets = [0, 15], sizes = [2, 1], strides = [1, 1]} : vector<2x16xf32> to vector<2x1xf32>
    %977 = vector.extract_strided_slice %0 {offsets = [15, 0], sizes = [1, 16], strides = [1, 1]} : vector<16x16xf32> to vector<1x16xf32>
    %978 = vector.broadcast %976 : vector<2x1xf32> to vector<2x16xf32>
    %979 = vector.broadcast %977 : vector<1x16xf32> to vector<2x16xf32>
    %980 = arith.mulf %978, %979 : vector<2x16xf32>
    %981 = arith.addf %905, %910 : vector<2x16xf32>
    %982 = arith.addf %915, %920 : vector<2x16xf32>
    %983 = arith.addf %925, %930 : vector<2x16xf32>
    %984 = arith.addf %935, %940 : vector<2x16xf32>
    %985 = arith.addf %945, %950 : vector<2x16xf32>
    %986 = arith.addf %955, %960 : vector<2x16xf32>
    %987 = arith.addf %965, %970 : vector<2x16xf32>
    %988 = arith.addf %975, %980 : vector<2x16xf32>
    %989 = arith.addf %981, %982 : vector<2x16xf32>
    %990 = arith.addf %983, %984 : vector<2x16xf32>
    %991 = arith.addf %985, %986 : vector<2x16xf32>
    %992 = arith.addf %987, %988 : vector<2x16xf32>
    %993 = arith.addf %989, %990 : vector<2x16xf32>
    %994 = arith.addf %991, %992 : vector<2x16xf32>
    %995 = arith.addf %993, %994 : vector<2x16xf32>
    %996 = arith.addf %995, %894 : vector<2x16xf32>
    %997 = math.tanh %996 : vector<2x16xf32>
    %998 = arith.mulf %997, %896 : vector<2x16xf32>
    %cst_75 = arith.constant 0.333333343 : f32
    %999 = vector.broadcast %cst_75 : f32 to vector<2x16xf32>
    %1000 = arith.mulf %998, %999 : vector<2x16xf32>
    %1001 = arith.addf %890, %1000 : vector<2x16xf32>
    %c18 = arith.constant 18 : index
    %c0_76 = arith.constant 0 : index
    %c0_77 = arith.constant 0 : index
    %1002 = vector.load %arg1[%c18, %c0_76, %c0_77] : memref<56x2x16xf32, #tpu.memory_space<vmem>>, vector<1x2x16xf32>
    %1003 = vector.shape_cast %1002 : vector<1x2x16xf32> to vector<2x16xf32>
    %c19 = arith.constant 19 : index
    %c0_78 = arith.constant 0 : index
    %c0_79 = arith.constant 0 : index
    %1004 = vector.load %arg1[%c19, %c0_78, %c0_79] : memref<56x2x16xf32, #tpu.memory_space<vmem>>, vector<1x2x16xf32>
    %1005 = vector.shape_cast %1004 : vector<1x2x16xf32> to vector<2x16xf32>
    %cst_80 = arith.constant -1.000000e+00 : f32
    %cst_81 = arith.constant 1.000000e+00 : f32
    %1006 = vector.broadcast %cst_80 : f32 to vector<2x16xf32>
    %1007 = arith.maximumf %1006, %1001 : vector<2x16xf32>
    %1008 = vector.broadcast %cst_81 : f32 to vector<2x16xf32>
    %1009 = arith.minimumf %1008, %1007 : vector<2x16xf32>
    %1010 = vector.extract_strided_slice %1009 {offsets = [0, 0], sizes = [2, 1], strides = [1, 1]} : vector<2x16xf32> to vector<2x1xf32>
    %1011 = vector.extract_strided_slice %0 {offsets = [0, 0], sizes = [1, 16], strides = [1, 1]} : vector<16x16xf32> to vector<1x16xf32>
    %1012 = vector.broadcast %1010 : vector<2x1xf32> to vector<2x16xf32>
    %1013 = vector.broadcast %1011 : vector<1x16xf32> to vector<2x16xf32>
    %1014 = arith.mulf %1012, %1013 : vector<2x16xf32>
    %1015 = vector.extract_strided_slice %1009 {offsets = [0, 1], sizes = [2, 1], strides = [1, 1]} : vector<2x16xf32> to vector<2x1xf32>
    %1016 = vector.extract_strided_slice %0 {offsets = [1, 0], sizes = [1, 16], strides = [1, 1]} : vector<16x16xf32> to vector<1x16xf32>
    %1017 = vector.broadcast %1015 : vector<2x1xf32> to vector<2x16xf32>
    %1018 = vector.broadcast %1016 : vector<1x16xf32> to vector<2x16xf32>
    %1019 = arith.mulf %1017, %1018 : vector<2x16xf32>
    %1020 = vector.extract_strided_slice %1009 {offsets = [0, 2], sizes = [2, 1], strides = [1, 1]} : vector<2x16xf32> to vector<2x1xf32>
    %1021 = vector.extract_strided_slice %0 {offsets = [2, 0], sizes = [1, 16], strides = [1, 1]} : vector<16x16xf32> to vector<1x16xf32>
    %1022 = vector.broadcast %1020 : vector<2x1xf32> to vector<2x16xf32>
    %1023 = vector.broadcast %1021 : vector<1x16xf32> to vector<2x16xf32>
    %1024 = arith.mulf %1022, %1023 : vector<2x16xf32>
    %1025 = vector.extract_strided_slice %1009 {offsets = [0, 3], sizes = [2, 1], strides = [1, 1]} : vector<2x16xf32> to vector<2x1xf32>
    %1026 = vector.extract_strided_slice %0 {offsets = [3, 0], sizes = [1, 16], strides = [1, 1]} : vector<16x16xf32> to vector<1x16xf32>
    %1027 = vector.broadcast %1025 : vector<2x1xf32> to vector<2x16xf32>
    %1028 = vector.broadcast %1026 : vector<1x16xf32> to vector<2x16xf32>
    %1029 = arith.mulf %1027, %1028 : vector<2x16xf32>
    %1030 = vector.extract_strided_slice %1009 {offsets = [0, 4], sizes = [2, 1], strides = [1, 1]} : vector<2x16xf32> to vector<2x1xf32>
    %1031 = vector.extract_strided_slice %0 {offsets = [4, 0], sizes = [1, 16], strides = [1, 1]} : vector<16x16xf32> to vector<1x16xf32>
    %1032 = vector.broadcast %1030 : vector<2x1xf32> to vector<2x16xf32>
    %1033 = vector.broadcast %1031 : vector<1x16xf32> to vector<2x16xf32>
    %1034 = arith.mulf %1032, %1033 : vector<2x16xf32>
    %1035 = vector.extract_strided_slice %1009 {offsets = [0, 5], sizes = [2, 1], strides = [1, 1]} : vector<2x16xf32> to vector<2x1xf32>
    %1036 = vector.extract_strided_slice %0 {offsets = [5, 0], sizes = [1, 16], strides = [1, 1]} : vector<16x16xf32> to vector<1x16xf32>
    %1037 = vector.broadcast %1035 : vector<2x1xf32> to vector<2x16xf32>
    %1038 = vector.broadcast %1036 : vector<1x16xf32> to vector<2x16xf32>
    %1039 = arith.mulf %1037, %1038 : vector<2x16xf32>
    %1040 = vector.extract_strided_slice %1009 {offsets = [0, 6], sizes = [2, 1], strides = [1, 1]} : vector<2x16xf32> to vector<2x1xf32>
    %1041 = vector.extract_strided_slice %0 {offsets = [6, 0], sizes = [1, 16], strides = [1, 1]} : vector<16x16xf32> to vector<1x16xf32>
    %1042 = vector.broadcast %1040 : vector<2x1xf32> to vector<2x16xf32>
    %1043 = vector.broadcast %1041 : vector<1x16xf32> to vector<2x16xf32>
    %1044 = arith.mulf %1042, %1043 : vector<2x16xf32>
    %1045 = vector.extract_strided_slice %1009 {offsets = [0, 7], sizes = [2, 1], strides = [1, 1]} : vector<2x16xf32> to vector<2x1xf32>
    %1046 = vector.extract_strided_slice %0 {offsets = [7, 0], sizes = [1, 16], strides = [1, 1]} : vector<16x16xf32> to vector<1x16xf32>
    %1047 = vector.broadcast %1045 : vector<2x1xf32> to vector<2x16xf32>
    %1048 = vector.broadcast %1046 : vector<1x16xf32> to vector<2x16xf32>
    %1049 = arith.mulf %1047, %1048 : vector<2x16xf32>
    %1050 = vector.extract_strided_slice %1009 {offsets = [0, 8], sizes = [2, 1], strides = [1, 1]} : vector<2x16xf32> to vector<2x1xf32>
    %1051 = vector.extract_strided_slice %0 {offsets = [8, 0], sizes = [1, 16], strides = [1, 1]} : vector<16x16xf32> to vector<1x16xf32>
    %1052 = vector.broadcast %1050 : vector<2x1xf32> to vector<2x16xf32>
    %1053 = vector.broadcast %1051 : vector<1x16xf32> to vector<2x16xf32>
    %1054 = arith.mulf %1052, %1053 : vector<2x16xf32>
    %1055 = vector.extract_strided_slice %1009 {offsets = [0, 9], sizes = [2, 1], strides = [1, 1]} : vector<2x16xf32> to vector<2x1xf32>
    %1056 = vector.extract_strided_slice %0 {offsets = [9, 0], sizes = [1, 16], strides = [1, 1]} : vector<16x16xf32> to vector<1x16xf32>
    %1057 = vector.broadcast %1055 : vector<2x1xf32> to vector<2x16xf32>
    %1058 = vector.broadcast %1056 : vector<1x16xf32> to vector<2x16xf32>
    %1059 = arith.mulf %1057, %1058 : vector<2x16xf32>
    %1060 = vector.extract_strided_slice %1009 {offsets = [0, 10], sizes = [2, 1], strides = [1, 1]} : vector<2x16xf32> to vector<2x1xf32>
    %1061 = vector.extract_strided_slice %0 {offsets = [10, 0], sizes = [1, 16], strides = [1, 1]} : vector<16x16xf32> to vector<1x16xf32>
    %1062 = vector.broadcast %1060 : vector<2x1xf32> to vector<2x16xf32>
    %1063 = vector.broadcast %1061 : vector<1x16xf32> to vector<2x16xf32>
    %1064 = arith.mulf %1062, %1063 : vector<2x16xf32>
    %1065 = vector.extract_strided_slice %1009 {offsets = [0, 11], sizes = [2, 1], strides = [1, 1]} : vector<2x16xf32> to vector<2x1xf32>
    %1066 = vector.extract_strided_slice %0 {offsets = [11, 0], sizes = [1, 16], strides = [1, 1]} : vector<16x16xf32> to vector<1x16xf32>
    %1067 = vector.broadcast %1065 : vector<2x1xf32> to vector<2x16xf32>
    %1068 = vector.broadcast %1066 : vector<1x16xf32> to vector<2x16xf32>
    %1069 = arith.mulf %1067, %1068 : vector<2x16xf32>
    %1070 = vector.extract_strided_slice %1009 {offsets = [0, 12], sizes = [2, 1], strides = [1, 1]} : vector<2x16xf32> to vector<2x1xf32>
    %1071 = vector.extract_strided_slice %0 {offsets = [12, 0], sizes = [1, 16], strides = [1, 1]} : vector<16x16xf32> to vector<1x16xf32>
    %1072 = vector.broadcast %1070 : vector<2x1xf32> to vector<2x16xf32>
    %1073 = vector.broadcast %1071 : vector<1x16xf32> to vector<2x16xf32>
    %1074 = arith.mulf %1072, %1073 : vector<2x16xf32>
    %1075 = vector.extract_strided_slice %1009 {offsets = [0, 13], sizes = [2, 1], strides = [1, 1]} : vector<2x16xf32> to vector<2x1xf32>
    %1076 = vector.extract_strided_slice %0 {offsets = [13, 0], sizes = [1, 16], strides = [1, 1]} : vector<16x16xf32> to vector<1x16xf32>
    %1077 = vector.broadcast %1075 : vector<2x1xf32> to vector<2x16xf32>
    %1078 = vector.broadcast %1076 : vector<1x16xf32> to vector<2x16xf32>
    %1079 = arith.mulf %1077, %1078 : vector<2x16xf32>
    %1080 = vector.extract_strided_slice %1009 {offsets = [0, 14], sizes = [2, 1], strides = [1, 1]} : vector<2x16xf32> to vector<2x1xf32>
    %1081 = vector.extract_strided_slice %0 {offsets = [14, 0], sizes = [1, 16], strides = [1, 1]} : vector<16x16xf32> to vector<1x16xf32>
    %1082 = vector.broadcast %1080 : vector<2x1xf32> to vector<2x16xf32>
    %1083 = vector.broadcast %1081 : vector<1x16xf32> to vector<2x16xf32>
    %1084 = arith.mulf %1082, %1083 : vector<2x16xf32>
    %1085 = vector.extract_strided_slice %1009 {offsets = [0, 15], sizes = [2, 1], strides = [1, 1]} : vector<2x16xf32> to vector<2x1xf32>
    %1086 = vector.extract_strided_slice %0 {offsets = [15, 0], sizes = [1, 16], strides = [1, 1]} : vector<16x16xf32> to vector<1x16xf32>
    %1087 = vector.broadcast %1085 : vector<2x1xf32> to vector<2x16xf32>
    %1088 = vector.broadcast %1086 : vector<1x16xf32> to vector<2x16xf32>
    %1089 = arith.mulf %1087, %1088 : vector<2x16xf32>
    %1090 = arith.addf %1014, %1019 : vector<2x16xf32>
    %1091 = arith.addf %1024, %1029 : vector<2x16xf32>
    %1092 = arith.addf %1034, %1039 : vector<2x16xf32>
    %1093 = arith.addf %1044, %1049 : vector<2x16xf32>
    %1094 = arith.addf %1054, %1059 : vector<2x16xf32>
    %1095 = arith.addf %1064, %1069 : vector<2x16xf32>
    %1096 = arith.addf %1074, %1079 : vector<2x16xf32>
    %1097 = arith.addf %1084, %1089 : vector<2x16xf32>
    %1098 = arith.addf %1090, %1091 : vector<2x16xf32>
    %1099 = arith.addf %1092, %1093 : vector<2x16xf32>
    %1100 = arith.addf %1094, %1095 : vector<2x16xf32>
    %1101 = arith.addf %1096, %1097 : vector<2x16xf32>
    %1102 = arith.addf %1098, %1099 : vector<2x16xf32>
    %1103 = arith.addf %1100, %1101 : vector<2x16xf32>
    %1104 = arith.addf %1102, %1103 : vector<2x16xf32>
    %1105 = arith.addf %1104, %1003 : vector<2x16xf32>
    %1106 = math.tanh %1105 : vector<2x16xf32>
    %1107 = arith.mulf %1106, %1005 : vector<2x16xf32>
    %cst_82 = arith.constant 0.333333343 : f32
    %1108 = vector.broadcast %cst_82 : f32 to vector<2x16xf32>
    %1109 = arith.mulf %998, %1108 : vector<2x16xf32>
    %1110 = arith.subf %1107, %1109 : vector<2x16xf32>
    %1111 = arith.addf %890, %1110 : vector<2x16xf32>
    %c20 = arith.constant 20 : index
    %c0_83 = arith.constant 0 : index
    %c0_84 = arith.constant 0 : index
    %1112 = vector.load %arg1[%c20, %c0_83, %c0_84] : memref<56x2x16xf32, #tpu.memory_space<vmem>>, vector<1x2x16xf32>
    %1113 = vector.shape_cast %1112 : vector<1x2x16xf32> to vector<2x16xf32>
    %c21 = arith.constant 21 : index
    %c0_85 = arith.constant 0 : index
    %c0_86 = arith.constant 0 : index
    %1114 = vector.load %arg1[%c21, %c0_85, %c0_86] : memref<56x2x16xf32, #tpu.memory_space<vmem>>, vector<1x2x16xf32>
    %1115 = vector.shape_cast %1114 : vector<1x2x16xf32> to vector<2x16xf32>
    %cst_87 = arith.constant -1.000000e+00 : f32
    %cst_88 = arith.constant 1.000000e+00 : f32
    %1116 = vector.broadcast %cst_87 : f32 to vector<2x16xf32>
    %1117 = arith.maximumf %1116, %1111 : vector<2x16xf32>
    %1118 = vector.broadcast %cst_88 : f32 to vector<2x16xf32>
    %1119 = arith.minimumf %1118, %1117 : vector<2x16xf32>
    %1120 = vector.extract_strided_slice %1119 {offsets = [0, 0], sizes = [2, 1], strides = [1, 1]} : vector<2x16xf32> to vector<2x1xf32>
    %1121 = vector.extract_strided_slice %0 {offsets = [0, 0], sizes = [1, 16], strides = [1, 1]} : vector<16x16xf32> to vector<1x16xf32>
    %1122 = vector.broadcast %1120 : vector<2x1xf32> to vector<2x16xf32>
    %1123 = vector.broadcast %1121 : vector<1x16xf32> to vector<2x16xf32>
    %1124 = arith.mulf %1122, %1123 : vector<2x16xf32>
    %1125 = vector.extract_strided_slice %1119 {offsets = [0, 1], sizes = [2, 1], strides = [1, 1]} : vector<2x16xf32> to vector<2x1xf32>
    %1126 = vector.extract_strided_slice %0 {offsets = [1, 0], sizes = [1, 16], strides = [1, 1]} : vector<16x16xf32> to vector<1x16xf32>
    %1127 = vector.broadcast %1125 : vector<2x1xf32> to vector<2x16xf32>
    %1128 = vector.broadcast %1126 : vector<1x16xf32> to vector<2x16xf32>
    %1129 = arith.mulf %1127, %1128 : vector<2x16xf32>
    %1130 = vector.extract_strided_slice %1119 {offsets = [0, 2], sizes = [2, 1], strides = [1, 1]} : vector<2x16xf32> to vector<2x1xf32>
    %1131 = vector.extract_strided_slice %0 {offsets = [2, 0], sizes = [1, 16], strides = [1, 1]} : vector<16x16xf32> to vector<1x16xf32>
    %1132 = vector.broadcast %1130 : vector<2x1xf32> to vector<2x16xf32>
    %1133 = vector.broadcast %1131 : vector<1x16xf32> to vector<2x16xf32>
    %1134 = arith.mulf %1132, %1133 : vector<2x16xf32>
    %1135 = vector.extract_strided_slice %1119 {offsets = [0, 3], sizes = [2, 1], strides = [1, 1]} : vector<2x16xf32> to vector<2x1xf32>
    %1136 = vector.extract_strided_slice %0 {offsets = [3, 0], sizes = [1, 16], strides = [1, 1]} : vector<16x16xf32> to vector<1x16xf32>
    %1137 = vector.broadcast %1135 : vector<2x1xf32> to vector<2x16xf32>
    %1138 = vector.broadcast %1136 : vector<1x16xf32> to vector<2x16xf32>
    %1139 = arith.mulf %1137, %1138 : vector<2x16xf32>
    %1140 = vector.extract_strided_slice %1119 {offsets = [0, 4], sizes = [2, 1], strides = [1, 1]} : vector<2x16xf32> to vector<2x1xf32>
    %1141 = vector.extract_strided_slice %0 {offsets = [4, 0], sizes = [1, 16], strides = [1, 1]} : vector<16x16xf32> to vector<1x16xf32>
    %1142 = vector.broadcast %1140 : vector<2x1xf32> to vector<2x16xf32>
    %1143 = vector.broadcast %1141 : vector<1x16xf32> to vector<2x16xf32>
    %1144 = arith.mulf %1142, %1143 : vector<2x16xf32>
    %1145 = vector.extract_strided_slice %1119 {offsets = [0, 5], sizes = [2, 1], strides = [1, 1]} : vector<2x16xf32> to vector<2x1xf32>
    %1146 = vector.extract_strided_slice %0 {offsets = [5, 0], sizes = [1, 16], strides = [1, 1]} : vector<16x16xf32> to vector<1x16xf32>
    %1147 = vector.broadcast %1145 : vector<2x1xf32> to vector<2x16xf32>
    %1148 = vector.broadcast %1146 : vector<1x16xf32> to vector<2x16xf32>
    %1149 = arith.mulf %1147, %1148 : vector<2x16xf32>
    %1150 = vector.extract_strided_slice %1119 {offsets = [0, 6], sizes = [2, 1], strides = [1, 1]} : vector<2x16xf32> to vector<2x1xf32>
    %1151 = vector.extract_strided_slice %0 {offsets = [6, 0], sizes = [1, 16], strides = [1, 1]} : vector<16x16xf32> to vector<1x16xf32>
    %1152 = vector.broadcast %1150 : vector<2x1xf32> to vector<2x16xf32>
    %1153 = vector.broadcast %1151 : vector<1x16xf32> to vector<2x16xf32>
    %1154 = arith.mulf %1152, %1153 : vector<2x16xf32>
    %1155 = vector.extract_strided_slice %1119 {offsets = [0, 7], sizes = [2, 1], strides = [1, 1]} : vector<2x16xf32> to vector<2x1xf32>
    %1156 = vector.extract_strided_slice %0 {offsets = [7, 0], sizes = [1, 16], strides = [1, 1]} : vector<16x16xf32> to vector<1x16xf32>
    %1157 = vector.broadcast %1155 : vector<2x1xf32> to vector<2x16xf32>
    %1158 = vector.broadcast %1156 : vector<1x16xf32> to vector<2x16xf32>
    %1159 = arith.mulf %1157, %1158 : vector<2x16xf32>
    %1160 = vector.extract_strided_slice %1119 {offsets = [0, 8], sizes = [2, 1], strides = [1, 1]} : vector<2x16xf32> to vector<2x1xf32>
    %1161 = vector.extract_strided_slice %0 {offsets = [8, 0], sizes = [1, 16], strides = [1, 1]} : vector<16x16xf32> to vector<1x16xf32>
    %1162 = vector.broadcast %1160 : vector<2x1xf32> to vector<2x16xf32>
    %1163 = vector.broadcast %1161 : vector<1x16xf32> to vector<2x16xf32>
    %1164 = arith.mulf %1162, %1163 : vector<2x16xf32>
    %1165 = vector.extract_strided_slice %1119 {offsets = [0, 9], sizes = [2, 1], strides = [1, 1]} : vector<2x16xf32> to vector<2x1xf32>
    %1166 = vector.extract_strided_slice %0 {offsets = [9, 0], sizes = [1, 16], strides = [1, 1]} : vector<16x16xf32> to vector<1x16xf32>
    %1167 = vector.broadcast %1165 : vector<2x1xf32> to vector<2x16xf32>
    %1168 = vector.broadcast %1166 : vector<1x16xf32> to vector<2x16xf32>
    %1169 = arith.mulf %1167, %1168 : vector<2x16xf32>
    %1170 = vector.extract_strided_slice %1119 {offsets = [0, 10], sizes = [2, 1], strides = [1, 1]} : vector<2x16xf32> to vector<2x1xf32>
    %1171 = vector.extract_strided_slice %0 {offsets = [10, 0], sizes = [1, 16], strides = [1, 1]} : vector<16x16xf32> to vector<1x16xf32>
    %1172 = vector.broadcast %1170 : vector<2x1xf32> to vector<2x16xf32>
    %1173 = vector.broadcast %1171 : vector<1x16xf32> to vector<2x16xf32>
    %1174 = arith.mulf %1172, %1173 : vector<2x16xf32>
    %1175 = vector.extract_strided_slice %1119 {offsets = [0, 11], sizes = [2, 1], strides = [1, 1]} : vector<2x16xf32> to vector<2x1xf32>
    %1176 = vector.extract_strided_slice %0 {offsets = [11, 0], sizes = [1, 16], strides = [1, 1]} : vector<16x16xf32> to vector<1x16xf32>
    %1177 = vector.broadcast %1175 : vector<2x1xf32> to vector<2x16xf32>
    %1178 = vector.broadcast %1176 : vector<1x16xf32> to vector<2x16xf32>
    %1179 = arith.mulf %1177, %1178 : vector<2x16xf32>
    %1180 = vector.extract_strided_slice %1119 {offsets = [0, 12], sizes = [2, 1], strides = [1, 1]} : vector<2x16xf32> to vector<2x1xf32>
    %1181 = vector.extract_strided_slice %0 {offsets = [12, 0], sizes = [1, 16], strides = [1, 1]} : vector<16x16xf32> to vector<1x16xf32>
    %1182 = vector.broadcast %1180 : vector<2x1xf32> to vector<2x16xf32>
    %1183 = vector.broadcast %1181 : vector<1x16xf32> to vector<2x16xf32>
    %1184 = arith.mulf %1182, %1183 : vector<2x16xf32>
    %1185 = vector.extract_strided_slice %1119 {offsets = [0, 13], sizes = [2, 1], strides = [1, 1]} : vector<2x16xf32> to vector<2x1xf32>
    %1186 = vector.extract_strided_slice %0 {offsets = [13, 0], sizes = [1, 16], strides = [1, 1]} : vector<16x16xf32> to vector<1x16xf32>
    %1187 = vector.broadcast %1185 : vector<2x1xf32> to vector<2x16xf32>
    %1188 = vector.broadcast %1186 : vector<1x16xf32> to vector<2x16xf32>
    %1189 = arith.mulf %1187, %1188 : vector<2x16xf32>
    %1190 = vector.extract_strided_slice %1119 {offsets = [0, 14], sizes = [2, 1], strides = [1, 1]} : vector<2x16xf32> to vector<2x1xf32>
    %1191 = vector.extract_strided_slice %0 {offsets = [14, 0], sizes = [1, 16], strides = [1, 1]} : vector<16x16xf32> to vector<1x16xf32>
    %1192 = vector.broadcast %1190 : vector<2x1xf32> to vector<2x16xf32>
    %1193 = vector.broadcast %1191 : vector<1x16xf32> to vector<2x16xf32>
    %1194 = arith.mulf %1192, %1193 : vector<2x16xf32>
    %1195 = vector.extract_strided_slice %1119 {offsets = [0, 15], sizes = [2, 1], strides = [1, 1]} : vector<2x16xf32> to vector<2x1xf32>
    %1196 = vector.extract_strided_slice %0 {offsets = [15, 0], sizes = [1, 16], strides = [1, 1]} : vector<16x16xf32> to vector<1x16xf32>
    %1197 = vector.broadcast %1195 : vector<2x1xf32> to vector<2x16xf32>
    %1198 = vector.broadcast %1196 : vector<1x16xf32> to vector<2x16xf32>
    %1199 = arith.mulf %1197, %1198 : vector<2x16xf32>
    %1200 = arith.addf %1124, %1129 : vector<2x16xf32>
    %1201 = arith.addf %1134, %1139 : vector<2x16xf32>
    %1202 = arith.addf %1144, %1149 : vector<2x16xf32>
    %1203 = arith.addf %1154, %1159 : vector<2x16xf32>
    %1204 = arith.addf %1164, %1169 : vector<2x16xf32>
    %1205 = arith.addf %1174, %1179 : vector<2x16xf32>
    %1206 = arith.addf %1184, %1189 : vector<2x16xf32>
    %1207 = arith.addf %1194, %1199 : vector<2x16xf32>
    %1208 = arith.addf %1200, %1201 : vector<2x16xf32>
    %1209 = arith.addf %1202, %1203 : vector<2x16xf32>
    %1210 = arith.addf %1204, %1205 : vector<2x16xf32>
    %1211 = arith.addf %1206, %1207 : vector<2x16xf32>
    %1212 = arith.addf %1208, %1209 : vector<2x16xf32>
    %1213 = arith.addf %1210, %1211 : vector<2x16xf32>
    %1214 = arith.addf %1212, %1213 : vector<2x16xf32>
    %1215 = arith.addf %1214, %1113 : vector<2x16xf32>
    %1216 = math.tanh %1215 : vector<2x16xf32>
    %1217 = arith.mulf %1216, %1115 : vector<2x16xf32>
    %1218 = arith.subf %998, %1107 : vector<2x16xf32>
    %1219 = arith.addf %1218, %1217 : vector<2x16xf32>
    %1220 = arith.addf %890, %1219 : vector<2x16xf32>
    %c22 = arith.constant 22 : index
    %c0_89 = arith.constant 0 : index
    %c0_90 = arith.constant 0 : index
    %1221 = vector.load %arg1[%c22, %c0_89, %c0_90] : memref<56x2x16xf32, #tpu.memory_space<vmem>>, vector<1x2x16xf32>
    %1222 = vector.shape_cast %1221 : vector<1x2x16xf32> to vector<2x16xf32>
    %c23 = arith.constant 23 : index
    %c0_91 = arith.constant 0 : index
    %c0_92 = arith.constant 0 : index
    %1223 = vector.load %arg1[%c23, %c0_91, %c0_92] : memref<56x2x16xf32, #tpu.memory_space<vmem>>, vector<1x2x16xf32>
    %1224 = vector.shape_cast %1223 : vector<1x2x16xf32> to vector<2x16xf32>
    %cst_93 = arith.constant -1.000000e+00 : f32
    %cst_94 = arith.constant 1.000000e+00 : f32
    %1225 = vector.broadcast %cst_93 : f32 to vector<2x16xf32>
    %1226 = arith.maximumf %1225, %1220 : vector<2x16xf32>
    %1227 = vector.broadcast %cst_94 : f32 to vector<2x16xf32>
    %1228 = arith.minimumf %1227, %1226 : vector<2x16xf32>
    %1229 = vector.extract_strided_slice %1228 {offsets = [0, 0], sizes = [2, 1], strides = [1, 1]} : vector<2x16xf32> to vector<2x1xf32>
    %1230 = vector.extract_strided_slice %0 {offsets = [0, 0], sizes = [1, 16], strides = [1, 1]} : vector<16x16xf32> to vector<1x16xf32>
    %1231 = vector.broadcast %1229 : vector<2x1xf32> to vector<2x16xf32>
    %1232 = vector.broadcast %1230 : vector<1x16xf32> to vector<2x16xf32>
    %1233 = arith.mulf %1231, %1232 : vector<2x16xf32>
    %1234 = vector.extract_strided_slice %1228 {offsets = [0, 1], sizes = [2, 1], strides = [1, 1]} : vector<2x16xf32> to vector<2x1xf32>
    %1235 = vector.extract_strided_slice %0 {offsets = [1, 0], sizes = [1, 16], strides = [1, 1]} : vector<16x16xf32> to vector<1x16xf32>
    %1236 = vector.broadcast %1234 : vector<2x1xf32> to vector<2x16xf32>
    %1237 = vector.broadcast %1235 : vector<1x16xf32> to vector<2x16xf32>
    %1238 = arith.mulf %1236, %1237 : vector<2x16xf32>
    %1239 = vector.extract_strided_slice %1228 {offsets = [0, 2], sizes = [2, 1], strides = [1, 1]} : vector<2x16xf32> to vector<2x1xf32>
    %1240 = vector.extract_strided_slice %0 {offsets = [2, 0], sizes = [1, 16], strides = [1, 1]} : vector<16x16xf32> to vector<1x16xf32>
    %1241 = vector.broadcast %1239 : vector<2x1xf32> to vector<2x16xf32>
    %1242 = vector.broadcast %1240 : vector<1x16xf32> to vector<2x16xf32>
    %1243 = arith.mulf %1241, %1242 : vector<2x16xf32>
    %1244 = vector.extract_strided_slice %1228 {offsets = [0, 3], sizes = [2, 1], strides = [1, 1]} : vector<2x16xf32> to vector<2x1xf32>
    %1245 = vector.extract_strided_slice %0 {offsets = [3, 0], sizes = [1, 16], strides = [1, 1]} : vector<16x16xf32> to vector<1x16xf32>
    %1246 = vector.broadcast %1244 : vector<2x1xf32> to vector<2x16xf32>
    %1247 = vector.broadcast %1245 : vector<1x16xf32> to vector<2x16xf32>
    %1248 = arith.mulf %1246, %1247 : vector<2x16xf32>
    %1249 = vector.extract_strided_slice %1228 {offsets = [0, 4], sizes = [2, 1], strides = [1, 1]} : vector<2x16xf32> to vector<2x1xf32>
    %1250 = vector.extract_strided_slice %0 {offsets = [4, 0], sizes = [1, 16], strides = [1, 1]} : vector<16x16xf32> to vector<1x16xf32>
    %1251 = vector.broadcast %1249 : vector<2x1xf32> to vector<2x16xf32>
    %1252 = vector.broadcast %1250 : vector<1x16xf32> to vector<2x16xf32>
    %1253 = arith.mulf %1251, %1252 : vector<2x16xf32>
    %1254 = vector.extract_strided_slice %1228 {offsets = [0, 5], sizes = [2, 1], strides = [1, 1]} : vector<2x16xf32> to vector<2x1xf32>
    %1255 = vector.extract_strided_slice %0 {offsets = [5, 0], sizes = [1, 16], strides = [1, 1]} : vector<16x16xf32> to vector<1x16xf32>
    %1256 = vector.broadcast %1254 : vector<2x1xf32> to vector<2x16xf32>
    %1257 = vector.broadcast %1255 : vector<1x16xf32> to vector<2x16xf32>
    %1258 = arith.mulf %1256, %1257 : vector<2x16xf32>
    %1259 = vector.extract_strided_slice %1228 {offsets = [0, 6], sizes = [2, 1], strides = [1, 1]} : vector<2x16xf32> to vector<2x1xf32>
    %1260 = vector.extract_strided_slice %0 {offsets = [6, 0], sizes = [1, 16], strides = [1, 1]} : vector<16x16xf32> to vector<1x16xf32>
    %1261 = vector.broadcast %1259 : vector<2x1xf32> to vector<2x16xf32>
    %1262 = vector.broadcast %1260 : vector<1x16xf32> to vector<2x16xf32>
    %1263 = arith.mulf %1261, %1262 : vector<2x16xf32>
    %1264 = vector.extract_strided_slice %1228 {offsets = [0, 7], sizes = [2, 1], strides = [1, 1]} : vector<2x16xf32> to vector<2x1xf32>
    %1265 = vector.extract_strided_slice %0 {offsets = [7, 0], sizes = [1, 16], strides = [1, 1]} : vector<16x16xf32> to vector<1x16xf32>
    %1266 = vector.broadcast %1264 : vector<2x1xf32> to vector<2x16xf32>
    %1267 = vector.broadcast %1265 : vector<1x16xf32> to vector<2x16xf32>
    %1268 = arith.mulf %1266, %1267 : vector<2x16xf32>
    %1269 = vector.extract_strided_slice %1228 {offsets = [0, 8], sizes = [2, 1], strides = [1, 1]} : vector<2x16xf32> to vector<2x1xf32>
    %1270 = vector.extract_strided_slice %0 {offsets = [8, 0], sizes = [1, 16], strides = [1, 1]} : vector<16x16xf32> to vector<1x16xf32>
    %1271 = vector.broadcast %1269 : vector<2x1xf32> to vector<2x16xf32>
    %1272 = vector.broadcast %1270 : vector<1x16xf32> to vector<2x16xf32>
    %1273 = arith.mulf %1271, %1272 : vector<2x16xf32>
    %1274 = vector.extract_strided_slice %1228 {offsets = [0, 9], sizes = [2, 1], strides = [1, 1]} : vector<2x16xf32> to vector<2x1xf32>
    %1275 = vector.extract_strided_slice %0 {offsets = [9, 0], sizes = [1, 16], strides = [1, 1]} : vector<16x16xf32> to vector<1x16xf32>
    %1276 = vector.broadcast %1274 : vector<2x1xf32> to vector<2x16xf32>
    %1277 = vector.broadcast %1275 : vector<1x16xf32> to vector<2x16xf32>
    %1278 = arith.mulf %1276, %1277 : vector<2x16xf32>
    %1279 = vector.extract_strided_slice %1228 {offsets = [0, 10], sizes = [2, 1], strides = [1, 1]} : vector<2x16xf32> to vector<2x1xf32>
    %1280 = vector.extract_strided_slice %0 {offsets = [10, 0], sizes = [1, 16], strides = [1, 1]} : vector<16x16xf32> to vector<1x16xf32>
    %1281 = vector.broadcast %1279 : vector<2x1xf32> to vector<2x16xf32>
    %1282 = vector.broadcast %1280 : vector<1x16xf32> to vector<2x16xf32>
    %1283 = arith.mulf %1281, %1282 : vector<2x16xf32>
    %1284 = vector.extract_strided_slice %1228 {offsets = [0, 11], sizes = [2, 1], strides = [1, 1]} : vector<2x16xf32> to vector<2x1xf32>
    %1285 = vector.extract_strided_slice %0 {offsets = [11, 0], sizes = [1, 16], strides = [1, 1]} : vector<16x16xf32> to vector<1x16xf32>
    %1286 = vector.broadcast %1284 : vector<2x1xf32> to vector<2x16xf32>
    %1287 = vector.broadcast %1285 : vector<1x16xf32> to vector<2x16xf32>
    %1288 = arith.mulf %1286, %1287 : vector<2x16xf32>
    %1289 = vector.extract_strided_slice %1228 {offsets = [0, 12], sizes = [2, 1], strides = [1, 1]} : vector<2x16xf32> to vector<2x1xf32>
    %1290 = vector.extract_strided_slice %0 {offsets = [12, 0], sizes = [1, 16], strides = [1, 1]} : vector<16x16xf32> to vector<1x16xf32>
    %1291 = vector.broadcast %1289 : vector<2x1xf32> to vector<2x16xf32>
    %1292 = vector.broadcast %1290 : vector<1x16xf32> to vector<2x16xf32>
    %1293 = arith.mulf %1291, %1292 : vector<2x16xf32>
    %1294 = vector.extract_strided_slice %1228 {offsets = [0, 13], sizes = [2, 1], strides = [1, 1]} : vector<2x16xf32> to vector<2x1xf32>
    %1295 = vector.extract_strided_slice %0 {offsets = [13, 0], sizes = [1, 16], strides = [1, 1]} : vector<16x16xf32> to vector<1x16xf32>
    %1296 = vector.broadcast %1294 : vector<2x1xf32> to vector<2x16xf32>
    %1297 = vector.broadcast %1295 : vector<1x16xf32> to vector<2x16xf32>
    %1298 = arith.mulf %1296, %1297 : vector<2x16xf32>
    %1299 = vector.extract_strided_slice %1228 {offsets = [0, 14], sizes = [2, 1], strides = [1, 1]} : vector<2x16xf32> to vector<2x1xf32>
    %1300 = vector.extract_strided_slice %0 {offsets = [14, 0], sizes = [1, 16], strides = [1, 1]} : vector<16x16xf32> to vector<1x16xf32>
    %1301 = vector.broadcast %1299 : vector<2x1xf32> to vector<2x16xf32>
    %1302 = vector.broadcast %1300 : vector<1x16xf32> to vector<2x16xf32>
    %1303 = arith.mulf %1301, %1302 : vector<2x16xf32>
    %1304 = vector.extract_strided_slice %1228 {offsets = [0, 15], sizes = [2, 1], strides = [1, 1]} : vector<2x16xf32> to vector<2x1xf32>
    %1305 = vector.extract_strided_slice %0 {offsets = [15, 0], sizes = [1, 16], strides = [1, 1]} : vector<16x16xf32> to vector<1x16xf32>
    %1306 = vector.broadcast %1304 : vector<2x1xf32> to vector<2x16xf32>
    %1307 = vector.broadcast %1305 : vector<1x16xf32> to vector<2x16xf32>
    %1308 = arith.mulf %1306, %1307 : vector<2x16xf32>
    %1309 = arith.addf %1233, %1238 : vector<2x16xf32>
    %1310 = arith.addf %1243, %1248 : vector<2x16xf32>
    %1311 = arith.addf %1253, %1258 : vector<2x16xf32>
    %1312 = arith.addf %1263, %1268 : vector<2x16xf32>
    %1313 = arith.addf %1273, %1278 : vector<2x16xf32>
    %1314 = arith.addf %1283, %1288 : vector<2x16xf32>
    %1315 = arith.addf %1293, %1298 : vector<2x16xf32>
    %1316 = arith.addf %1303, %1308 : vector<2x16xf32>
    %1317 = arith.addf %1309, %1310 : vector<2x16xf32>
    %1318 = arith.addf %1311, %1312 : vector<2x16xf32>
    %1319 = arith.addf %1313, %1314 : vector<2x16xf32>
    %1320 = arith.addf %1315, %1316 : vector<2x16xf32>
    %1321 = arith.addf %1317, %1318 : vector<2x16xf32>
    %1322 = arith.addf %1319, %1320 : vector<2x16xf32>
    %1323 = arith.addf %1321, %1322 : vector<2x16xf32>
    %1324 = arith.addf %1323, %1222 : vector<2x16xf32>
    %1325 = math.tanh %1324 : vector<2x16xf32>
    %1326 = arith.mulf %1325, %1224 : vector<2x16xf32>
    %1327 = arith.addf %1107, %1217 : vector<2x16xf32>
    %cst_95 = arith.constant 3.000000e+00 : f32
    %1328 = vector.broadcast %cst_95 : f32 to vector<2x16xf32>
    %1329 = arith.mulf %1328, %1327 : vector<2x16xf32>
    %1330 = arith.addf %998, %1329 : vector<2x16xf32>
    %1331 = arith.addf %1330, %1326 : vector<2x16xf32>
    %cst_96 = arith.constant 1.250000e-01 : f32
    %1332 = vector.broadcast %cst_96 : f32 to vector<2x16xf32>
    %1333 = arith.mulf %1331, %1332 : vector<2x16xf32>
    %1334 = arith.addf %890, %1333 : vector<2x16xf32>
    %1335 = vector.shape_cast %1334 : vector<2x16xf32> to vector<2x1x16xf32>
    %c0_97 = arith.constant 0 : index
    %c3_98 = arith.constant 3 : index
    %c0_99 = arith.constant 0 : index
    %1336 = vector.load %arg6[%c0_97, %c3_98, %c0_99] : memref<2x8x16xf32, #tpu.memory_space<vmem>>, vector<2x1x16xf32>
    tpu.vector_store %arg6[%c0_97, %c3_98, %c0_99], %1335 {strides = array<i32>} : memref<2x8x16xf32, #tpu.memory_space<vmem>>, vector<2x1x16xf32>,
    %c24 = arith.constant 24 : index
    %c0_100 = arith.constant 0 : index
    %c0_101 = arith.constant 0 : index
    %1337 = vector.load %arg1[%c24, %c0_100, %c0_101] : memref<56x2x16xf32, #tpu.memory_space<vmem>>, vector<1x2x16xf32>
    %1338 = vector.shape_cast %1337 : vector<1x2x16xf32> to vector<2x16xf32>
    %c25 = arith.constant 25 : index
    %c0_102 = arith.constant 0 : index
    %c0_103 = arith.constant 0 : index
    %1339 = vector.load %arg1[%c25, %c0_102, %c0_103] : memref<56x2x16xf32, #tpu.memory_space<vmem>>, vector<1x2x16xf32>
    %1340 = vector.shape_cast %1339 : vector<1x2x16xf32> to vector<2x16xf32>
    %cst_104 = arith.constant -1.000000e+00 : f32
    %cst_105 = arith.constant 1.000000e+00 : f32
    %1341 = vector.broadcast %cst_104 : f32 to vector<2x16xf32>
    %1342 = arith.maximumf %1341, %1334 : vector<2x16xf32>
    %1343 = vector.broadcast %cst_105 : f32 to vector<2x16xf32>
    %1344 = arith.minimumf %1343, %1342 : vector<2x16xf32>
    %1345 = vector.extract_strided_slice %1344 {offsets = [0, 0], sizes = [2, 1], strides = [1, 1]} : vector<2x16xf32> to vector<2x1xf32>
    %1346 = vector.extract_strided_slice %0 {offsets = [0, 0], sizes = [1, 16], strides = [1, 1]} : vector<16x16xf32> to vector<1x16xf32>
    %1347 = vector.broadcast %1345 : vector<2x1xf32> to vector<2x16xf32>
    %1348 = vector.broadcast %1346 : vector<1x16xf32> to vector<2x16xf32>
    %1349 = arith.mulf %1347, %1348 : vector<2x16xf32>
    %1350 = vector.extract_strided_slice %1344 {offsets = [0, 1], sizes = [2, 1], strides = [1, 1]} : vector<2x16xf32> to vector<2x1xf32>
    %1351 = vector.extract_strided_slice %0 {offsets = [1, 0], sizes = [1, 16], strides = [1, 1]} : vector<16x16xf32> to vector<1x16xf32>
    %1352 = vector.broadcast %1350 : vector<2x1xf32> to vector<2x16xf32>
    %1353 = vector.broadcast %1351 : vector<1x16xf32> to vector<2x16xf32>
    %1354 = arith.mulf %1352, %1353 : vector<2x16xf32>
    %1355 = vector.extract_strided_slice %1344 {offsets = [0, 2], sizes = [2, 1], strides = [1, 1]} : vector<2x16xf32> to vector<2x1xf32>
    %1356 = vector.extract_strided_slice %0 {offsets = [2, 0], sizes = [1, 16], strides = [1, 1]} : vector<16x16xf32> to vector<1x16xf32>
    %1357 = vector.broadcast %1355 : vector<2x1xf32> to vector<2x16xf32>
    %1358 = vector.broadcast %1356 : vector<1x16xf32> to vector<2x16xf32>
    %1359 = arith.mulf %1357, %1358 : vector<2x16xf32>
    %1360 = vector.extract_strided_slice %1344 {offsets = [0, 3], sizes = [2, 1], strides = [1, 1]} : vector<2x16xf32> to vector<2x1xf32>
    %1361 = vector.extract_strided_slice %0 {offsets = [3, 0], sizes = [1, 16], strides = [1, 1]} : vector<16x16xf32> to vector<1x16xf32>
    %1362 = vector.broadcast %1360 : vector<2x1xf32> to vector<2x16xf32>
    %1363 = vector.broadcast %1361 : vector<1x16xf32> to vector<2x16xf32>
    %1364 = arith.mulf %1362, %1363 : vector<2x16xf32>
    %1365 = vector.extract_strided_slice %1344 {offsets = [0, 4], sizes = [2, 1], strides = [1, 1]} : vector<2x16xf32> to vector<2x1xf32>
    %1366 = vector.extract_strided_slice %0 {offsets = [4, 0], sizes = [1, 16], strides = [1, 1]} : vector<16x16xf32> to vector<1x16xf32>
    %1367 = vector.broadcast %1365 : vector<2x1xf32> to vector<2x16xf32>
    %1368 = vector.broadcast %1366 : vector<1x16xf32> to vector<2x16xf32>
    %1369 = arith.mulf %1367, %1368 : vector<2x16xf32>
    %1370 = vector.extract_strided_slice %1344 {offsets = [0, 5], sizes = [2, 1], strides = [1, 1]} : vector<2x16xf32> to vector<2x1xf32>
    %1371 = vector.extract_strided_slice %0 {offsets = [5, 0], sizes = [1, 16], strides = [1, 1]} : vector<16x16xf32> to vector<1x16xf32>
    %1372 = vector.broadcast %1370 : vector<2x1xf32> to vector<2x16xf32>
    %1373 = vector.broadcast %1371 : vector<1x16xf32> to vector<2x16xf32>
    %1374 = arith.mulf %1372, %1373 : vector<2x16xf32>
    %1375 = vector.extract_strided_slice %1344 {offsets = [0, 6], sizes = [2, 1], strides = [1, 1]} : vector<2x16xf32> to vector<2x1xf32>
    %1376 = vector.extract_strided_slice %0 {offsets = [6, 0], sizes = [1, 16], strides = [1, 1]} : vector<16x16xf32> to vector<1x16xf32>
    %1377 = vector.broadcast %1375 : vector<2x1xf32> to vector<2x16xf32>
    %1378 = vector.broadcast %1376 : vector<1x16xf32> to vector<2x16xf32>
    %1379 = arith.mulf %1377, %1378 : vector<2x16xf32>
    %1380 = vector.extract_strided_slice %1344 {offsets = [0, 7], sizes = [2, 1], strides = [1, 1]} : vector<2x16xf32> to vector<2x1xf32>
    %1381 = vector.extract_strided_slice %0 {offsets = [7, 0], sizes = [1, 16], strides = [1, 1]} : vector<16x16xf32> to vector<1x16xf32>
    %1382 = vector.broadcast %1380 : vector<2x1xf32> to vector<2x16xf32>
    %1383 = vector.broadcast %1381 : vector<1x16xf32> to vector<2x16xf32>
    %1384 = arith.mulf %1382, %1383 : vector<2x16xf32>
    %1385 = vector.extract_strided_slice %1344 {offsets = [0, 8], sizes = [2, 1], strides = [1, 1]} : vector<2x16xf32> to vector<2x1xf32>
    %1386 = vector.extract_strided_slice %0 {offsets = [8, 0], sizes = [1, 16], strides = [1, 1]} : vector<16x16xf32> to vector<1x16xf32>
    %1387 = vector.broadcast %1385 : vector<2x1xf32> to vector<2x16xf32>
    %1388 = vector.broadcast %1386 : vector<1x16xf32> to vector<2x16xf32>
    %1389 = arith.mulf %1387, %1388 : vector<2x16xf32>
    %1390 = vector.extract_strided_slice %1344 {offsets = [0, 9], sizes = [2, 1], strides = [1, 1]} : vector<2x16xf32> to vector<2x1xf32>
    %1391 = vector.extract_strided_slice %0 {offsets = [9, 0], sizes = [1, 16], strides = [1, 1]} : vector<16x16xf32> to vector<1x16xf32>
    %1392 = vector.broadcast %1390 : vector<2x1xf32> to vector<2x16xf32>
    %1393 = vector.broadcast %1391 : vector<1x16xf32> to vector<2x16xf32>
    %1394 = arith.mulf %1392, %1393 : vector<2x16xf32>
    %1395 = vector.extract_strided_slice %1344 {offsets = [0, 10], sizes = [2, 1], strides = [1, 1]} : vector<2x16xf32> to vector<2x1xf32>
    %1396 = vector.extract_strided_slice %0 {offsets = [10, 0], sizes = [1, 16], strides = [1, 1]} : vector<16x16xf32> to vector<1x16xf32>
    %1397 = vector.broadcast %1395 : vector<2x1xf32> to vector<2x16xf32>
    %1398 = vector.broadcast %1396 : vector<1x16xf32> to vector<2x16xf32>
    %1399 = arith.mulf %1397, %1398 : vector<2x16xf32>
    %1400 = vector.extract_strided_slice %1344 {offsets = [0, 11], sizes = [2, 1], strides = [1, 1]} : vector<2x16xf32> to vector<2x1xf32>
    %1401 = vector.extract_strided_slice %0 {offsets = [11, 0], sizes = [1, 16], strides = [1, 1]} : vector<16x16xf32> to vector<1x16xf32>
    %1402 = vector.broadcast %1400 : vector<2x1xf32> to vector<2x16xf32>
    %1403 = vector.broadcast %1401 : vector<1x16xf32> to vector<2x16xf32>
    %1404 = arith.mulf %1402, %1403 : vector<2x16xf32>
    %1405 = vector.extract_strided_slice %1344 {offsets = [0, 12], sizes = [2, 1], strides = [1, 1]} : vector<2x16xf32> to vector<2x1xf32>
    %1406 = vector.extract_strided_slice %0 {offsets = [12, 0], sizes = [1, 16], strides = [1, 1]} : vector<16x16xf32> to vector<1x16xf32>
    %1407 = vector.broadcast %1405 : vector<2x1xf32> to vector<2x16xf32>
    %1408 = vector.broadcast %1406 : vector<1x16xf32> to vector<2x16xf32>
    %1409 = arith.mulf %1407, %1408 : vector<2x16xf32>
    %1410 = vector.extract_strided_slice %1344 {offsets = [0, 13], sizes = [2, 1], strides = [1, 1]} : vector<2x16xf32> to vector<2x1xf32>
    %1411 = vector.extract_strided_slice %0 {offsets = [13, 0], sizes = [1, 16], strides = [1, 1]} : vector<16x16xf32> to vector<1x16xf32>
    %1412 = vector.broadcast %1410 : vector<2x1xf32> to vector<2x16xf32>
    %1413 = vector.broadcast %1411 : vector<1x16xf32> to vector<2x16xf32>
    %1414 = arith.mulf %1412, %1413 : vector<2x16xf32>
    %1415 = vector.extract_strided_slice %1344 {offsets = [0, 14], sizes = [2, 1], strides = [1, 1]} : vector<2x16xf32> to vector<2x1xf32>
    %1416 = vector.extract_strided_slice %0 {offsets = [14, 0], sizes = [1, 16], strides = [1, 1]} : vector<16x16xf32> to vector<1x16xf32>
    %1417 = vector.broadcast %1415 : vector<2x1xf32> to vector<2x16xf32>
    %1418 = vector.broadcast %1416 : vector<1x16xf32> to vector<2x16xf32>
    %1419 = arith.mulf %1417, %1418 : vector<2x16xf32>
    %1420 = vector.extract_strided_slice %1344 {offsets = [0, 15], sizes = [2, 1], strides = [1, 1]} : vector<2x16xf32> to vector<2x1xf32>
    %1421 = vector.extract_strided_slice %0 {offsets = [15, 0], sizes = [1, 16], strides = [1, 1]} : vector<16x16xf32> to vector<1x16xf32>
    %1422 = vector.broadcast %1420 : vector<2x1xf32> to vector<2x16xf32>
    %1423 = vector.broadcast %1421 : vector<1x16xf32> to vector<2x16xf32>
    %1424 = arith.mulf %1422, %1423 : vector<2x16xf32>
    %1425 = arith.addf %1349, %1354 : vector<2x16xf32>
    %1426 = arith.addf %1359, %1364 : vector<2x16xf32>
    %1427 = arith.addf %1369, %1374 : vector<2x16xf32>
    %1428 = arith.addf %1379, %1384 : vector<2x16xf32>
    %1429 = arith.addf %1389, %1394 : vector<2x16xf32>
    %1430 = arith.addf %1399, %1404 : vector<2x16xf32>
    %1431 = arith.addf %1409, %1414 : vector<2x16xf32>
    %1432 = arith.addf %1419, %1424 : vector<2x16xf32>
    %1433 = arith.addf %1425, %1426 : vector<2x16xf32>
    %1434 = arith.addf %1427, %1428 : vector<2x16xf32>
    %1435 = arith.addf %1429, %1430 : vector<2x16xf32>
    %1436 = arith.addf %1431, %1432 : vector<2x16xf32>
    %1437 = arith.addf %1433, %1434 : vector<2x16xf32>
    %1438 = arith.addf %1435, %1436 : vector<2x16xf32>
    %1439 = arith.addf %1437, %1438 : vector<2x16xf32>
    %1440 = arith.addf %1439, %1338 : vector<2x16xf32>
    %1441 = math.tanh %1440 : vector<2x16xf32>
    %1442 = arith.mulf %1441, %1340 : vector<2x16xf32>
    %cst_106 = arith.constant 0.333333343 : f32
    %1443 = vector.broadcast %cst_106 : f32 to vector<2x16xf32>
    %1444 = arith.mulf %1442, %1443 : vector<2x16xf32>
    %1445 = arith.addf %1334, %1444 : vector<2x16xf32>
    %c26 = arith.constant 26 : index
    %c0_107 = arith.constant 0 : index
    %c0_108 = arith.constant 0 : index
    %1446 = vector.load %arg1[%c26, %c0_107, %c0_108] : memref<56x2x16xf32, #tpu.memory_space<vmem>>, vector<1x2x16xf32>
    %1447 = vector.shape_cast %1446 : vector<1x2x16xf32> to vector<2x16xf32>
    %c27 = arith.constant 27 : index
    %c0_109 = arith.constant 0 : index
    %c0_110 = arith.constant 0 : index
    %1448 = vector.load %arg1[%c27, %c0_109, %c0_110] : memref<56x2x16xf32, #tpu.memory_space<vmem>>, vector<1x2x16xf32>
    %1449 = vector.shape_cast %1448 : vector<1x2x16xf32> to vector<2x16xf32>
    %cst_111 = arith.constant -1.000000e+00 : f32
    %cst_112 = arith.constant 1.000000e+00 : f32
    %1450 = vector.broadcast %cst_111 : f32 to vector<2x16xf32>
    %1451 = arith.maximumf %1450, %1445 : vector<2x16xf32>
    %1452 = vector.broadcast %cst_112 : f32 to vector<2x16xf32>
    %1453 = arith.minimumf %1452, %1451 : vector<2x16xf32>
    %1454 = vector.extract_strided_slice %1453 {offsets = [0, 0], sizes = [2, 1], strides = [1, 1]} : vector<2x16xf32> to vector<2x1xf32>
    %1455 = vector.extract_strided_slice %0 {offsets = [0, 0], sizes = [1, 16], strides = [1, 1]} : vector<16x16xf32> to vector<1x16xf32>
    %1456 = vector.broadcast %1454 : vector<2x1xf32> to vector<2x16xf32>
    %1457 = vector.broadcast %1455 : vector<1x16xf32> to vector<2x16xf32>
    %1458 = arith.mulf %1456, %1457 : vector<2x16xf32>
    %1459 = vector.extract_strided_slice %1453 {offsets = [0, 1], sizes = [2, 1], strides = [1, 1]} : vector<2x16xf32> to vector<2x1xf32>
    %1460 = vector.extract_strided_slice %0 {offsets = [1, 0], sizes = [1, 16], strides = [1, 1]} : vector<16x16xf32> to vector<1x16xf32>
    %1461 = vector.broadcast %1459 : vector<2x1xf32> to vector<2x16xf32>
    %1462 = vector.broadcast %1460 : vector<1x16xf32> to vector<2x16xf32>
    %1463 = arith.mulf %1461, %1462 : vector<2x16xf32>
    %1464 = vector.extract_strided_slice %1453 {offsets = [0, 2], sizes = [2, 1], strides = [1, 1]} : vector<2x16xf32> to vector<2x1xf32>
    %1465 = vector.extract_strided_slice %0 {offsets = [2, 0], sizes = [1, 16], strides = [1, 1]} : vector<16x16xf32> to vector<1x16xf32>
    %1466 = vector.broadcast %1464 : vector<2x1xf32> to vector<2x16xf32>
    %1467 = vector.broadcast %1465 : vector<1x16xf32> to vector<2x16xf32>
    %1468 = arith.mulf %1466, %1467 : vector<2x16xf32>
    %1469 = vector.extract_strided_slice %1453 {offsets = [0, 3], sizes = [2, 1], strides = [1, 1]} : vector<2x16xf32> to vector<2x1xf32>
    %1470 = vector.extract_strided_slice %0 {offsets = [3, 0], sizes = [1, 16], strides = [1, 1]} : vector<16x16xf32> to vector<1x16xf32>
    %1471 = vector.broadcast %1469 : vector<2x1xf32> to vector<2x16xf32>
    %1472 = vector.broadcast %1470 : vector<1x16xf32> to vector<2x16xf32>
    %1473 = arith.mulf %1471, %1472 : vector<2x16xf32>
    %1474 = vector.extract_strided_slice %1453 {offsets = [0, 4], sizes = [2, 1], strides = [1, 1]} : vector<2x16xf32> to vector<2x1xf32>
    %1475 = vector.extract_strided_slice %0 {offsets = [4, 0], sizes = [1, 16], strides = [1, 1]} : vector<16x16xf32> to vector<1x16xf32>
    %1476 = vector.broadcast %1474 : vector<2x1xf32> to vector<2x16xf32>
    %1477 = vector.broadcast %1475 : vector<1x16xf32> to vector<2x16xf32>
    %1478 = arith.mulf %1476, %1477 : vector<2x16xf32>
    %1479 = vector.extract_strided_slice %1453 {offsets = [0, 5], sizes = [2, 1], strides = [1, 1]} : vector<2x16xf32> to vector<2x1xf32>
    %1480 = vector.extract_strided_slice %0 {offsets = [5, 0], sizes = [1, 16], strides = [1, 1]} : vector<16x16xf32> to vector<1x16xf32>
    %1481 = vector.broadcast %1479 : vector<2x1xf32> to vector<2x16xf32>
    %1482 = vector.broadcast %1480 : vector<1x16xf32> to vector<2x16xf32>
    %1483 = arith.mulf %1481, %1482 : vector<2x16xf32>
    %1484 = vector.extract_strided_slice %1453 {offsets = [0, 6], sizes = [2, 1], strides = [1, 1]} : vector<2x16xf32> to vector<2x1xf32>
    %1485 = vector.extract_strided_slice %0 {offsets = [6, 0], sizes = [1, 16], strides = [1, 1]} : vector<16x16xf32> to vector<1x16xf32>
    %1486 = vector.broadcast %1484 : vector<2x1xf32> to vector<2x16xf32>
    %1487 = vector.broadcast %1485 : vector<1x16xf32> to vector<2x16xf32>
    %1488 = arith.mulf %1486, %1487 : vector<2x16xf32>
    %1489 = vector.extract_strided_slice %1453 {offsets = [0, 7], sizes = [2, 1], strides = [1, 1]} : vector<2x16xf32> to vector<2x1xf32>
    %1490 = vector.extract_strided_slice %0 {offsets = [7, 0], sizes = [1, 16], strides = [1, 1]} : vector<16x16xf32> to vector<1x16xf32>
    %1491 = vector.broadcast %1489 : vector<2x1xf32> to vector<2x16xf32>
    %1492 = vector.broadcast %1490 : vector<1x16xf32> to vector<2x16xf32>
    %1493 = arith.mulf %1491, %1492 : vector<2x16xf32>
    %1494 = vector.extract_strided_slice %1453 {offsets = [0, 8], sizes = [2, 1], strides = [1, 1]} : vector<2x16xf32> to vector<2x1xf32>
    %1495 = vector.extract_strided_slice %0 {offsets = [8, 0], sizes = [1, 16], strides = [1, 1]} : vector<16x16xf32> to vector<1x16xf32>
    %1496 = vector.broadcast %1494 : vector<2x1xf32> to vector<2x16xf32>
    %1497 = vector.broadcast %1495 : vector<1x16xf32> to vector<2x16xf32>
    %1498 = arith.mulf %1496, %1497 : vector<2x16xf32>
    %1499 = vector.extract_strided_slice %1453 {offsets = [0, 9], sizes = [2, 1], strides = [1, 1]} : vector<2x16xf32> to vector<2x1xf32>
    %1500 = vector.extract_strided_slice %0 {offsets = [9, 0], sizes = [1, 16], strides = [1, 1]} : vector<16x16xf32> to vector<1x16xf32>
    %1501 = vector.broadcast %1499 : vector<2x1xf32> to vector<2x16xf32>
    %1502 = vector.broadcast %1500 : vector<1x16xf32> to vector<2x16xf32>
    %1503 = arith.mulf %1501, %1502 : vector<2x16xf32>
    %1504 = vector.extract_strided_slice %1453 {offsets = [0, 10], sizes = [2, 1], strides = [1, 1]} : vector<2x16xf32> to vector<2x1xf32>
    %1505 = vector.extract_strided_slice %0 {offsets = [10, 0], sizes = [1, 16], strides = [1, 1]} : vector<16x16xf32> to vector<1x16xf32>
    %1506 = vector.broadcast %1504 : vector<2x1xf32> to vector<2x16xf32>
    %1507 = vector.broadcast %1505 : vector<1x16xf32> to vector<2x16xf32>
    %1508 = arith.mulf %1506, %1507 : vector<2x16xf32>
    %1509 = vector.extract_strided_slice %1453 {offsets = [0, 11], sizes = [2, 1], strides = [1, 1]} : vector<2x16xf32> to vector<2x1xf32>
    %1510 = vector.extract_strided_slice %0 {offsets = [11, 0], sizes = [1, 16], strides = [1, 1]} : vector<16x16xf32> to vector<1x16xf32>
    %1511 = vector.broadcast %1509 : vector<2x1xf32> to vector<2x16xf32>
    %1512 = vector.broadcast %1510 : vector<1x16xf32> to vector<2x16xf32>
    %1513 = arith.mulf %1511, %1512 : vector<2x16xf32>
    %1514 = vector.extract_strided_slice %1453 {offsets = [0, 12], sizes = [2, 1], strides = [1, 1]} : vector<2x16xf32> to vector<2x1xf32>
    %1515 = vector.extract_strided_slice %0 {offsets = [12, 0], sizes = [1, 16], strides = [1, 1]} : vector<16x16xf32> to vector<1x16xf32>
    %1516 = vector.broadcast %1514 : vector<2x1xf32> to vector<2x16xf32>
    %1517 = vector.broadcast %1515 : vector<1x16xf32> to vector<2x16xf32>
    %1518 = arith.mulf %1516, %1517 : vector<2x16xf32>
    %1519 = vector.extract_strided_slice %1453 {offsets = [0, 13], sizes = [2, 1], strides = [1, 1]} : vector<2x16xf32> to vector<2x1xf32>
    %1520 = vector.extract_strided_slice %0 {offsets = [13, 0], sizes = [1, 16], strides = [1, 1]} : vector<16x16xf32> to vector<1x16xf32>
    %1521 = vector.broadcast %1519 : vector<2x1xf32> to vector<2x16xf32>
    %1522 = vector.broadcast %1520 : vector<1x16xf32> to vector<2x16xf32>
    %1523 = arith.mulf %1521, %1522 : vector<2x16xf32>
    %1524 = vector.extract_strided_slice %1453 {offsets = [0, 14], sizes = [2, 1], strides = [1, 1]} : vector<2x16xf32> to vector<2x1xf32>
    %1525 = vector.extract_strided_slice %0 {offsets = [14, 0], sizes = [1, 16], strides = [1, 1]} : vector<16x16xf32> to vector<1x16xf32>
    %1526 = vector.broadcast %1524 : vector<2x1xf32> to vector<2x16xf32>
    %1527 = vector.broadcast %1525 : vector<1x16xf32> to vector<2x16xf32>
    %1528 = arith.mulf %1526, %1527 : vector<2x16xf32>
    %1529 = vector.extract_strided_slice %1453 {offsets = [0, 15], sizes = [2, 1], strides = [1, 1]} : vector<2x16xf32> to vector<2x1xf32>
    %1530 = vector.extract_strided_slice %0 {offsets = [15, 0], sizes = [1, 16], strides = [1, 1]} : vector<16x16xf32> to vector<1x16xf32>
    %1531 = vector.broadcast %1529 : vector<2x1xf32> to vector<2x16xf32>
    %1532 = vector.broadcast %1530 : vector<1x16xf32> to vector<2x16xf32>
    %1533 = arith.mulf %1531, %1532 : vector<2x16xf32>
    %1534 = arith.addf %1458, %1463 : vector<2x16xf32>
    %1535 = arith.addf %1468, %1473 : vector<2x16xf32>
    %1536 = arith.addf %1478, %1483 : vector<2x16xf32>
    %1537 = arith.addf %1488, %1493 : vector<2x16xf32>
    %1538 = arith.addf %1498, %1503 : vector<2x16xf32>
    %1539 = arith.addf %1508, %1513 : vector<2x16xf32>
    %1540 = arith.addf %1518, %1523 : vector<2x16xf32>
    %1541 = arith.addf %1528, %1533 : vector<2x16xf32>
    %1542 = arith.addf %1534, %1535 : vector<2x16xf32>
    %1543 = arith.addf %1536, %1537 : vector<2x16xf32>
    %1544 = arith.addf %1538, %1539 : vector<2x16xf32>
    %1545 = arith.addf %1540, %1541 : vector<2x16xf32>
    %1546 = arith.addf %1542, %1543 : vector<2x16xf32>
    %1547 = arith.addf %1544, %1545 : vector<2x16xf32>
    %1548 = arith.addf %1546, %1547 : vector<2x16xf32>
    %1549 = arith.addf %1548, %1447 : vector<2x16xf32>
    %1550 = math.tanh %1549 : vector<2x16xf32>
    %1551 = arith.mulf %1550, %1449 : vector<2x16xf32>
    %cst_113 = arith.constant 0.333333343 : f32
    %1552 = vector.broadcast %cst_113 : f32 to vector<2x16xf32>
    %1553 = arith.mulf %1442, %1552 : vector<2x16xf32>
    %1554 = arith.subf %1551, %1553 : vector<2x16xf32>
    %1555 = arith.addf %1334, %1554 : vector<2x16xf32>
    %c28 = arith.constant 28 : index
    %c0_114 = arith.constant 0 : index
    %c0_115 = arith.constant 0 : index
    %1556 = vector.load %arg1[%c28, %c0_114, %c0_115] : memref<56x2x16xf32, #tpu.memory_space<vmem>>, vector<1x2x16xf32>
    %1557 = vector.shape_cast %1556 : vector<1x2x16xf32> to vector<2x16xf32>
    %c29 = arith.constant 29 : index
    %c0_116 = arith.constant 0 : index
    %c0_117 = arith.constant 0 : index
    %1558 = vector.load %arg1[%c29, %c0_116, %c0_117] : memref<56x2x16xf32, #tpu.memory_space<vmem>>, vector<1x2x16xf32>
    %1559 = vector.shape_cast %1558 : vector<1x2x16xf32> to vector<2x16xf32>
    %cst_118 = arith.constant -1.000000e+00 : f32
    %cst_119 = arith.constant 1.000000e+00 : f32
    %1560 = vector.broadcast %cst_118 : f32 to vector<2x16xf32>
    %1561 = arith.maximumf %1560, %1555 : vector<2x16xf32>
    %1562 = vector.broadcast %cst_119 : f32 to vector<2x16xf32>
    %1563 = arith.minimumf %1562, %1561 : vector<2x16xf32>
    %1564 = vector.extract_strided_slice %1563 {offsets = [0, 0], sizes = [2, 1], strides = [1, 1]} : vector<2x16xf32> to vector<2x1xf32>
    %1565 = vector.extract_strided_slice %0 {offsets = [0, 0], sizes = [1, 16], strides = [1, 1]} : vector<16x16xf32> to vector<1x16xf32>
    %1566 = vector.broadcast %1564 : vector<2x1xf32> to vector<2x16xf32>
    %1567 = vector.broadcast %1565 : vector<1x16xf32> to vector<2x16xf32>
    %1568 = arith.mulf %1566, %1567 : vector<2x16xf32>
    %1569 = vector.extract_strided_slice %1563 {offsets = [0, 1], sizes = [2, 1], strides = [1, 1]} : vector<2x16xf32> to vector<2x1xf32>
    %1570 = vector.extract_strided_slice %0 {offsets = [1, 0], sizes = [1, 16], strides = [1, 1]} : vector<16x16xf32> to vector<1x16xf32>
    %1571 = vector.broadcast %1569 : vector<2x1xf32> to vector<2x16xf32>
    %1572 = vector.broadcast %1570 : vector<1x16xf32> to vector<2x16xf32>
    %1573 = arith.mulf %1571, %1572 : vector<2x16xf32>
    %1574 = vector.extract_strided_slice %1563 {offsets = [0, 2], sizes = [2, 1], strides = [1, 1]} : vector<2x16xf32> to vector<2x1xf32>
    %1575 = vector.extract_strided_slice %0 {offsets = [2, 0], sizes = [1, 16], strides = [1, 1]} : vector<16x16xf32> to vector<1x16xf32>
    %1576 = vector.broadcast %1574 : vector<2x1xf32> to vector<2x16xf32>
    %1577 = vector.broadcast %1575 : vector<1x16xf32> to vector<2x16xf32>
    %1578 = arith.mulf %1576, %1577 : vector<2x16xf32>
    %1579 = vector.extract_strided_slice %1563 {offsets = [0, 3], sizes = [2, 1], strides = [1, 1]} : vector<2x16xf32> to vector<2x1xf32>
    %1580 = vector.extract_strided_slice %0 {offsets = [3, 0], sizes = [1, 16], strides = [1, 1]} : vector<16x16xf32> to vector<1x16xf32>
    %1581 = vector.broadcast %1579 : vector<2x1xf32> to vector<2x16xf32>
    %1582 = vector.broadcast %1580 : vector<1x16xf32> to vector<2x16xf32>
    %1583 = arith.mulf %1581, %1582 : vector<2x16xf32>
    %1584 = vector.extract_strided_slice %1563 {offsets = [0, 4], sizes = [2, 1], strides = [1, 1]} : vector<2x16xf32> to vector<2x1xf32>
    %1585 = vector.extract_strided_slice %0 {offsets = [4, 0], sizes = [1, 16], strides = [1, 1]} : vector<16x16xf32> to vector<1x16xf32>
    %1586 = vector.broadcast %1584 : vector<2x1xf32> to vector<2x16xf32>
    %1587 = vector.broadcast %1585 : vector<1x16xf32> to vector<2x16xf32>
    %1588 = arith.mulf %1586, %1587 : vector<2x16xf32>
    %1589 = vector.extract_strided_slice %1563 {offsets = [0, 5], sizes = [2, 1], strides = [1, 1]} : vector<2x16xf32> to vector<2x1xf32>
    %1590 = vector.extract_strided_slice %0 {offsets = [5, 0], sizes = [1, 16], strides = [1, 1]} : vector<16x16xf32> to vector<1x16xf32>
    %1591 = vector.broadcast %1589 : vector<2x1xf32> to vector<2x16xf32>
    %1592 = vector.broadcast %1590 : vector<1x16xf32> to vector<2x16xf32>
    %1593 = arith.mulf %1591, %1592 : vector<2x16xf32>
    %1594 = vector.extract_strided_slice %1563 {offsets = [0, 6], sizes = [2, 1], strides = [1, 1]} : vector<2x16xf32> to vector<2x1xf32>
    %1595 = vector.extract_strided_slice %0 {offsets = [6, 0], sizes = [1, 16], strides = [1, 1]} : vector<16x16xf32> to vector<1x16xf32>
    %1596 = vector.broadcast %1594 : vector<2x1xf32> to vector<2x16xf32>
    %1597 = vector.broadcast %1595 : vector<1x16xf32> to vector<2x16xf32>
    %1598 = arith.mulf %1596, %1597 : vector<2x16xf32>
    %1599 = vector.extract_strided_slice %1563 {offsets = [0, 7], sizes = [2, 1], strides = [1, 1]} : vector<2x16xf32> to vector<2x1xf32>
    %1600 = vector.extract_strided_slice %0 {offsets = [7, 0], sizes = [1, 16], strides = [1, 1]} : vector<16x16xf32> to vector<1x16xf32>
    %1601 = vector.broadcast %1599 : vector<2x1xf32> to vector<2x16xf32>
    %1602 = vector.broadcast %1600 : vector<1x16xf32> to vector<2x16xf32>
    %1603 = arith.mulf %1601, %1602 : vector<2x16xf32>
    %1604 = vector.extract_strided_slice %1563 {offsets = [0, 8], sizes = [2, 1], strides = [1, 1]} : vector<2x16xf32> to vector<2x1xf32>
    %1605 = vector.extract_strided_slice %0 {offsets = [8, 0], sizes = [1, 16], strides = [1, 1]} : vector<16x16xf32> to vector<1x16xf32>
    %1606 = vector.broadcast %1604 : vector<2x1xf32> to vector<2x16xf32>
    %1607 = vector.broadcast %1605 : vector<1x16xf32> to vector<2x16xf32>
    %1608 = arith.mulf %1606, %1607 : vector<2x16xf32>
    %1609 = vector.extract_strided_slice %1563 {offsets = [0, 9], sizes = [2, 1], strides = [1, 1]} : vector<2x16xf32> to vector<2x1xf32>
    %1610 = vector.extract_strided_slice %0 {offsets = [9, 0], sizes = [1, 16], strides = [1, 1]} : vector<16x16xf32> to vector<1x16xf32>
    %1611 = vector.broadcast %1609 : vector<2x1xf32> to vector<2x16xf32>
    %1612 = vector.broadcast %1610 : vector<1x16xf32> to vector<2x16xf32>
    %1613 = arith.mulf %1611, %1612 : vector<2x16xf32>
    %1614 = vector.extract_strided_slice %1563 {offsets = [0, 10], sizes = [2, 1], strides = [1, 1]} : vector<2x16xf32> to vector<2x1xf32>
    %1615 = vector.extract_strided_slice %0 {offsets = [10, 0], sizes = [1, 16], strides = [1, 1]} : vector<16x16xf32> to vector<1x16xf32>
    %1616 = vector.broadcast %1614 : vector<2x1xf32> to vector<2x16xf32>
    %1617 = vector.broadcast %1615 : vector<1x16xf32> to vector<2x16xf32>
    %1618 = arith.mulf %1616, %1617 : vector<2x16xf32>
    %1619 = vector.extract_strided_slice %1563 {offsets = [0, 11], sizes = [2, 1], strides = [1, 1]} : vector<2x16xf32> to vector<2x1xf32>
    %1620 = vector.extract_strided_slice %0 {offsets = [11, 0], sizes = [1, 16], strides = [1, 1]} : vector<16x16xf32> to vector<1x16xf32>
    %1621 = vector.broadcast %1619 : vector<2x1xf32> to vector<2x16xf32>
    %1622 = vector.broadcast %1620 : vector<1x16xf32> to vector<2x16xf32>
    %1623 = arith.mulf %1621, %1622 : vector<2x16xf32>
    %1624 = vector.extract_strided_slice %1563 {offsets = [0, 12], sizes = [2, 1], strides = [1, 1]} : vector<2x16xf32> to vector<2x1xf32>
    %1625 = vector.extract_strided_slice %0 {offsets = [12, 0], sizes = [1, 16], strides = [1, 1]} : vector<16x16xf32> to vector<1x16xf32>
    %1626 = vector.broadcast %1624 : vector<2x1xf32> to vector<2x16xf32>
    %1627 = vector.broadcast %1625 : vector<1x16xf32> to vector<2x16xf32>
    %1628 = arith.mulf %1626, %1627 : vector<2x16xf32>
    %1629 = vector.extract_strided_slice %1563 {offsets = [0, 13], sizes = [2, 1], strides = [1, 1]} : vector<2x16xf32> to vector<2x1xf32>
    %1630 = vector.extract_strided_slice %0 {offsets = [13, 0], sizes = [1, 16], strides = [1, 1]} : vector<16x16xf32> to vector<1x16xf32>
    %1631 = vector.broadcast %1629 : vector<2x1xf32> to vector<2x16xf32>
    %1632 = vector.broadcast %1630 : vector<1x16xf32> to vector<2x16xf32>
    %1633 = arith.mulf %1631, %1632 : vector<2x16xf32>
    %1634 = vector.extract_strided_slice %1563 {offsets = [0, 14], sizes = [2, 1], strides = [1, 1]} : vector<2x16xf32> to vector<2x1xf32>
    %1635 = vector.extract_strided_slice %0 {offsets = [14, 0], sizes = [1, 16], strides = [1, 1]} : vector<16x16xf32> to vector<1x16xf32>
    %1636 = vector.broadcast %1634 : vector<2x1xf32> to vector<2x16xf32>
    %1637 = vector.broadcast %1635 : vector<1x16xf32> to vector<2x16xf32>
    %1638 = arith.mulf %1636, %1637 : vector<2x16xf32>
    %1639 = vector.extract_strided_slice %1563 {offsets = [0, 15], sizes = [2, 1], strides = [1, 1]} : vector<2x16xf32> to vector<2x1xf32>
    %1640 = vector.extract_strided_slice %0 {offsets = [15, 0], sizes = [1, 16], strides = [1, 1]} : vector<16x16xf32> to vector<1x16xf32>
    %1641 = vector.broadcast %1639 : vector<2x1xf32> to vector<2x16xf32>
    %1642 = vector.broadcast %1640 : vector<1x16xf32> to vector<2x16xf32>
    %1643 = arith.mulf %1641, %1642 : vector<2x16xf32>
    %1644 = arith.addf %1568, %1573 : vector<2x16xf32>
    %1645 = arith.addf %1578, %1583 : vector<2x16xf32>
    %1646 = arith.addf %1588, %1593 : vector<2x16xf32>
    %1647 = arith.addf %1598, %1603 : vector<2x16xf32>
    %1648 = arith.addf %1608, %1613 : vector<2x16xf32>
    %1649 = arith.addf %1618, %1623 : vector<2x16xf32>
    %1650 = arith.addf %1628, %1633 : vector<2x16xf32>
    %1651 = arith.addf %1638, %1643 : vector<2x16xf32>
    %1652 = arith.addf %1644, %1645 : vector<2x16xf32>
    %1653 = arith.addf %1646, %1647 : vector<2x16xf32>
    %1654 = arith.addf %1648, %1649 : vector<2x16xf32>
    %1655 = arith.addf %1650, %1651 : vector<2x16xf32>
    %1656 = arith.addf %1652, %1653 : vector<2x16xf32>
    %1657 = arith.addf %1654, %1655 : vector<2x16xf32>
    %1658 = arith.addf %1656, %1657 : vector<2x16xf32>
    %1659 = arith.addf %1658, %1557 : vector<2x16xf32>
    %1660 = math.tanh %1659 : vector<2x16xf32>
    %1661 = arith.mulf %1660, %1559 : vector<2x16xf32>
    %1662 = arith.subf %1442, %1551 : vector<2x16xf32>
    %1663 = arith.addf %1662, %1661 : vector<2x16xf32>
    %1664 = arith.addf %1334, %1663 : vector<2x16xf32>
    %c30 = arith.constant 30 : index
    %c0_120 = arith.constant 0 : index
    %c0_121 = arith.constant 0 : index
    %1665 = vector.load %arg1[%c30, %c0_120, %c0_121] : memref<56x2x16xf32, #tpu.memory_space<vmem>>, vector<1x2x16xf32>
    %1666 = vector.shape_cast %1665 : vector<1x2x16xf32> to vector<2x16xf32>
    %c31 = arith.constant 31 : index
    %c0_122 = arith.constant 0 : index
    %c0_123 = arith.constant 0 : index
    %1667 = vector.load %arg1[%c31, %c0_122, %c0_123] : memref<56x2x16xf32, #tpu.memory_space<vmem>>, vector<1x2x16xf32>
    %1668 = vector.shape_cast %1667 : vector<1x2x16xf32> to vector<2x16xf32>
    %cst_124 = arith.constant -1.000000e+00 : f32
    %cst_125 = arith.constant 1.000000e+00 : f32
    %1669 = vector.broadcast %cst_124 : f32 to vector<2x16xf32>
    %1670 = arith.maximumf %1669, %1664 : vector<2x16xf32>
    %1671 = vector.broadcast %cst_125 : f32 to vector<2x16xf32>
    %1672 = arith.minimumf %1671, %1670 : vector<2x16xf32>
    %1673 = vector.extract_strided_slice %1672 {offsets = [0, 0], sizes = [2, 1], strides = [1, 1]} : vector<2x16xf32> to vector<2x1xf32>
    %1674 = vector.extract_strided_slice %0 {offsets = [0, 0], sizes = [1, 16], strides = [1, 1]} : vector<16x16xf32> to vector<1x16xf32>
    %1675 = vector.broadcast %1673 : vector<2x1xf32> to vector<2x16xf32>
    %1676 = vector.broadcast %1674 : vector<1x16xf32> to vector<2x16xf32>
    %1677 = arith.mulf %1675, %1676 : vector<2x16xf32>
    %1678 = vector.extract_strided_slice %1672 {offsets = [0, 1], sizes = [2, 1], strides = [1, 1]} : vector<2x16xf32> to vector<2x1xf32>
    %1679 = vector.extract_strided_slice %0 {offsets = [1, 0], sizes = [1, 16], strides = [1, 1]} : vector<16x16xf32> to vector<1x16xf32>
    %1680 = vector.broadcast %1678 : vector<2x1xf32> to vector<2x16xf32>
    %1681 = vector.broadcast %1679 : vector<1x16xf32> to vector<2x16xf32>
    %1682 = arith.mulf %1680, %1681 : vector<2x16xf32>
    %1683 = vector.extract_strided_slice %1672 {offsets = [0, 2], sizes = [2, 1], strides = [1, 1]} : vector<2x16xf32> to vector<2x1xf32>
    %1684 = vector.extract_strided_slice %0 {offsets = [2, 0], sizes = [1, 16], strides = [1, 1]} : vector<16x16xf32> to vector<1x16xf32>
    %1685 = vector.broadcast %1683 : vector<2x1xf32> to vector<2x16xf32>
    %1686 = vector.broadcast %1684 : vector<1x16xf32> to vector<2x16xf32>
    %1687 = arith.mulf %1685, %1686 : vector<2x16xf32>
    %1688 = vector.extract_strided_slice %1672 {offsets = [0, 3], sizes = [2, 1], strides = [1, 1]} : vector<2x16xf32> to vector<2x1xf32>
    %1689 = vector.extract_strided_slice %0 {offsets = [3, 0], sizes = [1, 16], strides = [1, 1]} : vector<16x16xf32> to vector<1x16xf32>
    %1690 = vector.broadcast %1688 : vector<2x1xf32> to vector<2x16xf32>
    %1691 = vector.broadcast %1689 : vector<1x16xf32> to vector<2x16xf32>
    %1692 = arith.mulf %1690, %1691 : vector<2x16xf32>
    %1693 = vector.extract_strided_slice %1672 {offsets = [0, 4], sizes = [2, 1], strides = [1, 1]} : vector<2x16xf32> to vector<2x1xf32>
    %1694 = vector.extract_strided_slice %0 {offsets = [4, 0], sizes = [1, 16], strides = [1, 1]} : vector<16x16xf32> to vector<1x16xf32>
    %1695 = vector.broadcast %1693 : vector<2x1xf32> to vector<2x16xf32>
    %1696 = vector.broadcast %1694 : vector<1x16xf32> to vector<2x16xf32>
    %1697 = arith.mulf %1695, %1696 : vector<2x16xf32>
    %1698 = vector.extract_strided_slice %1672 {offsets = [0, 5], sizes = [2, 1], strides = [1, 1]} : vector<2x16xf32> to vector<2x1xf32>
    %1699 = vector.extract_strided_slice %0 {offsets = [5, 0], sizes = [1, 16], strides = [1, 1]} : vector<16x16xf32> to vector<1x16xf32>
    %1700 = vector.broadcast %1698 : vector<2x1xf32> to vector<2x16xf32>
    %1701 = vector.broadcast %1699 : vector<1x16xf32> to vector<2x16xf32>
    %1702 = arith.mulf %1700, %1701 : vector<2x16xf32>
    %1703 = vector.extract_strided_slice %1672 {offsets = [0, 6], sizes = [2, 1], strides = [1, 1]} : vector<2x16xf32> to vector<2x1xf32>
    %1704 = vector.extract_strided_slice %0 {offsets = [6, 0], sizes = [1, 16], strides = [1, 1]} : vector<16x16xf32> to vector<1x16xf32>
    %1705 = vector.broadcast %1703 : vector<2x1xf32> to vector<2x16xf32>
    %1706 = vector.broadcast %1704 : vector<1x16xf32> to vector<2x16xf32>
    %1707 = arith.mulf %1705, %1706 : vector<2x16xf32>
    %1708 = vector.extract_strided_slice %1672 {offsets = [0, 7], sizes = [2, 1], strides = [1, 1]} : vector<2x16xf32> to vector<2x1xf32>
    %1709 = vector.extract_strided_slice %0 {offsets = [7, 0], sizes = [1, 16], strides = [1, 1]} : vector<16x16xf32> to vector<1x16xf32>
    %1710 = vector.broadcast %1708 : vector<2x1xf32> to vector<2x16xf32>
    %1711 = vector.broadcast %1709 : vector<1x16xf32> to vector<2x16xf32>
    %1712 = arith.mulf %1710, %1711 : vector<2x16xf32>
    %1713 = vector.extract_strided_slice %1672 {offsets = [0, 8], sizes = [2, 1], strides = [1, 1]} : vector<2x16xf32> to vector<2x1xf32>
    %1714 = vector.extract_strided_slice %0 {offsets = [8, 0], sizes = [1, 16], strides = [1, 1]} : vector<16x16xf32> to vector<1x16xf32>
    %1715 = vector.broadcast %1713 : vector<2x1xf32> to vector<2x16xf32>
    %1716 = vector.broadcast %1714 : vector<1x16xf32> to vector<2x16xf32>
    %1717 = arith.mulf %1715, %1716 : vector<2x16xf32>
    %1718 = vector.extract_strided_slice %1672 {offsets = [0, 9], sizes = [2, 1], strides = [1, 1]} : vector<2x16xf32> to vector<2x1xf32>
    %1719 = vector.extract_strided_slice %0 {offsets = [9, 0], sizes = [1, 16], strides = [1, 1]} : vector<16x16xf32> to vector<1x16xf32>
    %1720 = vector.broadcast %1718 : vector<2x1xf32> to vector<2x16xf32>
    %1721 = vector.broadcast %1719 : vector<1x16xf32> to vector<2x16xf32>
    %1722 = arith.mulf %1720, %1721 : vector<2x16xf32>
    %1723 = vector.extract_strided_slice %1672 {offsets = [0, 10], sizes = [2, 1], strides = [1, 1]} : vector<2x16xf32> to vector<2x1xf32>
    %1724 = vector.extract_strided_slice %0 {offsets = [10, 0], sizes = [1, 16], strides = [1, 1]} : vector<16x16xf32> to vector<1x16xf32>
    %1725 = vector.broadcast %1723 : vector<2x1xf32> to vector<2x16xf32>
    %1726 = vector.broadcast %1724 : vector<1x16xf32> to vector<2x16xf32>
    %1727 = arith.mulf %1725, %1726 : vector<2x16xf32>
    %1728 = vector.extract_strided_slice %1672 {offsets = [0, 11], sizes = [2, 1], strides = [1, 1]} : vector<2x16xf32> to vector<2x1xf32>
    %1729 = vector.extract_strided_slice %0 {offsets = [11, 0], sizes = [1, 16], strides = [1, 1]} : vector<16x16xf32> to vector<1x16xf32>
    %1730 = vector.broadcast %1728 : vector<2x1xf32> to vector<2x16xf32>
    %1731 = vector.broadcast %1729 : vector<1x16xf32> to vector<2x16xf32>
    %1732 = arith.mulf %1730, %1731 : vector<2x16xf32>
    %1733 = vector.extract_strided_slice %1672 {offsets = [0, 12], sizes = [2, 1], strides = [1, 1]} : vector<2x16xf32> to vector<2x1xf32>
    %1734 = vector.extract_strided_slice %0 {offsets = [12, 0], sizes = [1, 16], strides = [1, 1]} : vector<16x16xf32> to vector<1x16xf32>
    %1735 = vector.broadcast %1733 : vector<2x1xf32> to vector<2x16xf32>
    %1736 = vector.broadcast %1734 : vector<1x16xf32> to vector<2x16xf32>
    %1737 = arith.mulf %1735, %1736 : vector<2x16xf32>
    %1738 = vector.extract_strided_slice %1672 {offsets = [0, 13], sizes = [2, 1], strides = [1, 1]} : vector<2x16xf32> to vector<2x1xf32>
    %1739 = vector.extract_strided_slice %0 {offsets = [13, 0], sizes = [1, 16], strides = [1, 1]} : vector<16x16xf32> to vector<1x16xf32>
    %1740 = vector.broadcast %1738 : vector<2x1xf32> to vector<2x16xf32>
    %1741 = vector.broadcast %1739 : vector<1x16xf32> to vector<2x16xf32>
    %1742 = arith.mulf %1740, %1741 : vector<2x16xf32>
    %1743 = vector.extract_strided_slice %1672 {offsets = [0, 14], sizes = [2, 1], strides = [1, 1]} : vector<2x16xf32> to vector<2x1xf32>
    %1744 = vector.extract_strided_slice %0 {offsets = [14, 0], sizes = [1, 16], strides = [1, 1]} : vector<16x16xf32> to vector<1x16xf32>
    %1745 = vector.broadcast %1743 : vector<2x1xf32> to vector<2x16xf32>
    %1746 = vector.broadcast %1744 : vector<1x16xf32> to vector<2x16xf32>
    %1747 = arith.mulf %1745, %1746 : vector<2x16xf32>
    %1748 = vector.extract_strided_slice %1672 {offsets = [0, 15], sizes = [2, 1], strides = [1, 1]} : vector<2x16xf32> to vector<2x1xf32>
    %1749 = vector.extract_strided_slice %0 {offsets = [15, 0], sizes = [1, 16], strides = [1, 1]} : vector<16x16xf32> to vector<1x16xf32>
    %1750 = vector.broadcast %1748 : vector<2x1xf32> to vector<2x16xf32>
    %1751 = vector.broadcast %1749 : vector<1x16xf32> to vector<2x16xf32>
    %1752 = arith.mulf %1750, %1751 : vector<2x16xf32>
    %1753 = arith.addf %1677, %1682 : vector<2x16xf32>
    %1754 = arith.addf %1687, %1692 : vector<2x16xf32>
    %1755 = arith.addf %1697, %1702 : vector<2x16xf32>
    %1756 = arith.addf %1707, %1712 : vector<2x16xf32>
    %1757 = arith.addf %1717, %1722 : vector<2x16xf32>
    %1758 = arith.addf %1727, %1732 : vector<2x16xf32>
    %1759 = arith.addf %1737, %1742 : vector<2x16xf32>
    %1760 = arith.addf %1747, %1752 : vector<2x16xf32>
    %1761 = arith.addf %1753, %1754 : vector<2x16xf32>
    %1762 = arith.addf %1755, %1756 : vector<2x16xf32>
    %1763 = arith.addf %1757, %1758 : vector<2x16xf32>
    %1764 = arith.addf %1759, %1760 : vector<2x16xf32>
    %1765 = arith.addf %1761, %1762 : vector<2x16xf32>
    %1766 = arith.addf %1763, %1764 : vector<2x16xf32>
    %1767 = arith.addf %1765, %1766 : vector<2x16xf32>
    %1768 = arith.addf %1767, %1666 : vector<2x16xf32>
    %1769 = math.tanh %1768 : vector<2x16xf32>
    %1770 = arith.mulf %1769, %1668 : vector<2x16xf32>
    %1771 = arith.addf %1551, %1661 : vector<2x16xf32>
    %cst_126 = arith.constant 3.000000e+00 : f32
    %1772 = vector.broadcast %cst_126 : f32 to vector<2x16xf32>
    %1773 = arith.mulf %1772, %1771 : vector<2x16xf32>
    %1774 = arith.addf %1442, %1773 : vector<2x16xf32>
    %1775 = arith.addf %1774, %1770 : vector<2x16xf32>
    %cst_127 = arith.constant 1.250000e-01 : f32
    %1776 = vector.broadcast %cst_127 : f32 to vector<2x16xf32>
    %1777 = arith.mulf %1775, %1776 : vector<2x16xf32>
    %1778 = arith.addf %1334, %1777 : vector<2x16xf32>
    %1779 = vector.shape_cast %1778 : vector<2x16xf32> to vector<2x1x16xf32>
    %c0_128 = arith.constant 0 : index
    %c4_129 = arith.constant 4 : index
    %c0_130 = arith.constant 0 : index
    %1780 = vector.load %arg6[%c0_128, %c4_129, %c0_130] : memref<2x8x16xf32, #tpu.memory_space<vmem>>, vector<2x1x16xf32>
    tpu.vector_store %arg6[%c0_128, %c4_129, %c0_130], %1779 {strides = array<i32>} : memref<2x8x16xf32, #tpu.memory_space<vmem>>, vector<2x1x16xf32>,
    %c32 = arith.constant 32 : index
    %c0_131 = arith.constant 0 : index
    %c0_132 = arith.constant 0 : index
    %1781 = vector.load %arg1[%c32, %c0_131, %c0_132] : memref<56x2x16xf32, #tpu.memory_space<vmem>>, vector<1x2x16xf32>
    %1782 = vector.shape_cast %1781 : vector<1x2x16xf32> to vector<2x16xf32>
    %c33 = arith.constant 33 : index
    %c0_133 = arith.constant 0 : index
    %c0_134 = arith.constant 0 : index
    %1783 = vector.load %arg1[%c33, %c0_133, %c0_134] : memref<56x2x16xf32, #tpu.memory_space<vmem>>, vector<1x2x16xf32>
    %1784 = vector.shape_cast %1783 : vector<1x2x16xf32> to vector<2x16xf32>
    %cst_135 = arith.constant -1.000000e+00 : f32
    %cst_136 = arith.constant 1.000000e+00 : f32
    %1785 = vector.broadcast %cst_135 : f32 to vector<2x16xf32>
    %1786 = arith.maximumf %1785, %1778 : vector<2x16xf32>
    %1787 = vector.broadcast %cst_136 : f32 to vector<2x16xf32>
    %1788 = arith.minimumf %1787, %1786 : vector<2x16xf32>
    %1789 = vector.extract_strided_slice %1788 {offsets = [0, 0], sizes = [2, 1], strides = [1, 1]} : vector<2x16xf32> to vector<2x1xf32>
    %1790 = vector.extract_strided_slice %0 {offsets = [0, 0], sizes = [1, 16], strides = [1, 1]} : vector<16x16xf32> to vector<1x16xf32>
    %1791 = vector.broadcast %1789 : vector<2x1xf32> to vector<2x16xf32>
    %1792 = vector.broadcast %1790 : vector<1x16xf32> to vector<2x16xf32>
    %1793 = arith.mulf %1791, %1792 : vector<2x16xf32>
    %1794 = vector.extract_strided_slice %1788 {offsets = [0, 1], sizes = [2, 1], strides = [1, 1]} : vector<2x16xf32> to vector<2x1xf32>
    %1795 = vector.extract_strided_slice %0 {offsets = [1, 0], sizes = [1, 16], strides = [1, 1]} : vector<16x16xf32> to vector<1x16xf32>
    %1796 = vector.broadcast %1794 : vector<2x1xf32> to vector<2x16xf32>
    %1797 = vector.broadcast %1795 : vector<1x16xf32> to vector<2x16xf32>
    %1798 = arith.mulf %1796, %1797 : vector<2x16xf32>
    %1799 = vector.extract_strided_slice %1788 {offsets = [0, 2], sizes = [2, 1], strides = [1, 1]} : vector<2x16xf32> to vector<2x1xf32>
    %1800 = vector.extract_strided_slice %0 {offsets = [2, 0], sizes = [1, 16], strides = [1, 1]} : vector<16x16xf32> to vector<1x16xf32>
    %1801 = vector.broadcast %1799 : vector<2x1xf32> to vector<2x16xf32>
    %1802 = vector.broadcast %1800 : vector<1x16xf32> to vector<2x16xf32>
    %1803 = arith.mulf %1801, %1802 : vector<2x16xf32>
    %1804 = vector.extract_strided_slice %1788 {offsets = [0, 3], sizes = [2, 1], strides = [1, 1]} : vector<2x16xf32> to vector<2x1xf32>
    %1805 = vector.extract_strided_slice %0 {offsets = [3, 0], sizes = [1, 16], strides = [1, 1]} : vector<16x16xf32> to vector<1x16xf32>
    %1806 = vector.broadcast %1804 : vector<2x1xf32> to vector<2x16xf32>
    %1807 = vector.broadcast %1805 : vector<1x16xf32> to vector<2x16xf32>
    %1808 = arith.mulf %1806, %1807 : vector<2x16xf32>
    %1809 = vector.extract_strided_slice %1788 {offsets = [0, 4], sizes = [2, 1], strides = [1, 1]} : vector<2x16xf32> to vector<2x1xf32>
    %1810 = vector.extract_strided_slice %0 {offsets = [4, 0], sizes = [1, 16], strides = [1, 1]} : vector<16x16xf32> to vector<1x16xf32>
    %1811 = vector.broadcast %1809 : vector<2x1xf32> to vector<2x16xf32>
    %1812 = vector.broadcast %1810 : vector<1x16xf32> to vector<2x16xf32>
    %1813 = arith.mulf %1811, %1812 : vector<2x16xf32>
    %1814 = vector.extract_strided_slice %1788 {offsets = [0, 5], sizes = [2, 1], strides = [1, 1]} : vector<2x16xf32> to vector<2x1xf32>
    %1815 = vector.extract_strided_slice %0 {offsets = [5, 0], sizes = [1, 16], strides = [1, 1]} : vector<16x16xf32> to vector<1x16xf32>
    %1816 = vector.broadcast %1814 : vector<2x1xf32> to vector<2x16xf32>
    %1817 = vector.broadcast %1815 : vector<1x16xf32> to vector<2x16xf32>
    %1818 = arith.mulf %1816, %1817 : vector<2x16xf32>
    %1819 = vector.extract_strided_slice %1788 {offsets = [0, 6], sizes = [2, 1], strides = [1, 1]} : vector<2x16xf32> to vector<2x1xf32>
    %1820 = vector.extract_strided_slice %0 {offsets = [6, 0], sizes = [1, 16], strides = [1, 1]} : vector<16x16xf32> to vector<1x16xf32>
    %1821 = vector.broadcast %1819 : vector<2x1xf32> to vector<2x16xf32>
    %1822 = vector.broadcast %1820 : vector<1x16xf32> to vector<2x16xf32>
    %1823 = arith.mulf %1821, %1822 : vector<2x16xf32>
    %1824 = vector.extract_strided_slice %1788 {offsets = [0, 7], sizes = [2, 1], strides = [1, 1]} : vector<2x16xf32> to vector<2x1xf32>
    %1825 = vector.extract_strided_slice %0 {offsets = [7, 0], sizes = [1, 16], strides = [1, 1]} : vector<16x16xf32> to vector<1x16xf32>
    %1826 = vector.broadcast %1824 : vector<2x1xf32> to vector<2x16xf32>
    %1827 = vector.broadcast %1825 : vector<1x16xf32> to vector<2x16xf32>
    %1828 = arith.mulf %1826, %1827 : vector<2x16xf32>
    %1829 = vector.extract_strided_slice %1788 {offsets = [0, 8], sizes = [2, 1], strides = [1, 1]} : vector<2x16xf32> to vector<2x1xf32>
    %1830 = vector.extract_strided_slice %0 {offsets = [8, 0], sizes = [1, 16], strides = [1, 1]} : vector<16x16xf32> to vector<1x16xf32>
    %1831 = vector.broadcast %1829 : vector<2x1xf32> to vector<2x16xf32>
    %1832 = vector.broadcast %1830 : vector<1x16xf32> to vector<2x16xf32>
    %1833 = arith.mulf %1831, %1832 : vector<2x16xf32>
    %1834 = vector.extract_strided_slice %1788 {offsets = [0, 9], sizes = [2, 1], strides = [1, 1]} : vector<2x16xf32> to vector<2x1xf32>
    %1835 = vector.extract_strided_slice %0 {offsets = [9, 0], sizes = [1, 16], strides = [1, 1]} : vector<16x16xf32> to vector<1x16xf32>
    %1836 = vector.broadcast %1834 : vector<2x1xf32> to vector<2x16xf32>
    %1837 = vector.broadcast %1835 : vector<1x16xf32> to vector<2x16xf32>
    %1838 = arith.mulf %1836, %1837 : vector<2x16xf32>
    %1839 = vector.extract_strided_slice %1788 {offsets = [0, 10], sizes = [2, 1], strides = [1, 1]} : vector<2x16xf32> to vector<2x1xf32>
    %1840 = vector.extract_strided_slice %0 {offsets = [10, 0], sizes = [1, 16], strides = [1, 1]} : vector<16x16xf32> to vector<1x16xf32>
    %1841 = vector.broadcast %1839 : vector<2x1xf32> to vector<2x16xf32>
    %1842 = vector.broadcast %1840 : vector<1x16xf32> to vector<2x16xf32>
    %1843 = arith.mulf %1841, %1842 : vector<2x16xf32>
    %1844 = vector.extract_strided_slice %1788 {offsets = [0, 11], sizes = [2, 1], strides = [1, 1]} : vector<2x16xf32> to vector<2x1xf32>
    %1845 = vector.extract_strided_slice %0 {offsets = [11, 0], sizes = [1, 16], strides = [1, 1]} : vector<16x16xf32> to vector<1x16xf32>
    %1846 = vector.broadcast %1844 : vector<2x1xf32> to vector<2x16xf32>
    %1847 = vector.broadcast %1845 : vector<1x16xf32> to vector<2x16xf32>
    %1848 = arith.mulf %1846, %1847 : vector<2x16xf32>
    %1849 = vector.extract_strided_slice %1788 {offsets = [0, 12], sizes = [2, 1], strides = [1, 1]} : vector<2x16xf32> to vector<2x1xf32>
    %1850 = vector.extract_strided_slice %0 {offsets = [12, 0], sizes = [1, 16], strides = [1, 1]} : vector<16x16xf32> to vector<1x16xf32>
    %1851 = vector.broadcast %1849 : vector<2x1xf32> to vector<2x16xf32>
    %1852 = vector.broadcast %1850 : vector<1x16xf32> to vector<2x16xf32>
    %1853 = arith.mulf %1851, %1852 : vector<2x16xf32>
    %1854 = vector.extract_strided_slice %1788 {offsets = [0, 13], sizes = [2, 1], strides = [1, 1]} : vector<2x16xf32> to vector<2x1xf32>
    %1855 = vector.extract_strided_slice %0 {offsets = [13, 0], sizes = [1, 16], strides = [1, 1]} : vector<16x16xf32> to vector<1x16xf32>
    %1856 = vector.broadcast %1854 : vector<2x1xf32> to vector<2x16xf32>
    %1857 = vector.broadcast %1855 : vector<1x16xf32> to vector<2x16xf32>
    %1858 = arith.mulf %1856, %1857 : vector<2x16xf32>
    %1859 = vector.extract_strided_slice %1788 {offsets = [0, 14], sizes = [2, 1], strides = [1, 1]} : vector<2x16xf32> to vector<2x1xf32>
    %1860 = vector.extract_strided_slice %0 {offsets = [14, 0], sizes = [1, 16], strides = [1, 1]} : vector<16x16xf32> to vector<1x16xf32>
    %1861 = vector.broadcast %1859 : vector<2x1xf32> to vector<2x16xf32>
    %1862 = vector.broadcast %1860 : vector<1x16xf32> to vector<2x16xf32>
    %1863 = arith.mulf %1861, %1862 : vector<2x16xf32>
    %1864 = vector.extract_strided_slice %1788 {offsets = [0, 15], sizes = [2, 1], strides = [1, 1]} : vector<2x16xf32> to vector<2x1xf32>
    %1865 = vector.extract_strided_slice %0 {offsets = [15, 0], sizes = [1, 16], strides = [1, 1]} : vector<16x16xf32> to vector<1x16xf32>
    %1866 = vector.broadcast %1864 : vector<2x1xf32> to vector<2x16xf32>
    %1867 = vector.broadcast %1865 : vector<1x16xf32> to vector<2x16xf32>
    %1868 = arith.mulf %1866, %1867 : vector<2x16xf32>
    %1869 = arith.addf %1793, %1798 : vector<2x16xf32>
    %1870 = arith.addf %1803, %1808 : vector<2x16xf32>
    %1871 = arith.addf %1813, %1818 : vector<2x16xf32>
    %1872 = arith.addf %1823, %1828 : vector<2x16xf32>
    %1873 = arith.addf %1833, %1838 : vector<2x16xf32>
    %1874 = arith.addf %1843, %1848 : vector<2x16xf32>
    %1875 = arith.addf %1853, %1858 : vector<2x16xf32>
    %1876 = arith.addf %1863, %1868 : vector<2x16xf32>
    %1877 = arith.addf %1869, %1870 : vector<2x16xf32>
    %1878 = arith.addf %1871, %1872 : vector<2x16xf32>
    %1879 = arith.addf %1873, %1874 : vector<2x16xf32>
    %1880 = arith.addf %1875, %1876 : vector<2x16xf32>
    %1881 = arith.addf %1877, %1878 : vector<2x16xf32>
    %1882 = arith.addf %1879, %1880 : vector<2x16xf32>
    %1883 = arith.addf %1881, %1882 : vector<2x16xf32>
    %1884 = arith.addf %1883, %1782 : vector<2x16xf32>
    %1885 = math.tanh %1884 : vector<2x16xf32>
    %1886 = arith.mulf %1885, %1784 : vector<2x16xf32>
    %cst_137 = arith.constant 0.333333343 : f32
    %1887 = vector.broadcast %cst_137 : f32 to vector<2x16xf32>
    %1888 = arith.mulf %1886, %1887 : vector<2x16xf32>
    %1889 = arith.addf %1778, %1888 : vector<2x16xf32>
    %c34 = arith.constant 34 : index
    %c0_138 = arith.constant 0 : index
    %c0_139 = arith.constant 0 : index
    %1890 = vector.load %arg1[%c34, %c0_138, %c0_139] : memref<56x2x16xf32, #tpu.memory_space<vmem>>, vector<1x2x16xf32>
    %1891 = vector.shape_cast %1890 : vector<1x2x16xf32> to vector<2x16xf32>
    %c35 = arith.constant 35 : index
    %c0_140 = arith.constant 0 : index
    %c0_141 = arith.constant 0 : index
    %1892 = vector.load %arg1[%c35, %c0_140, %c0_141] : memref<56x2x16xf32, #tpu.memory_space<vmem>>, vector<1x2x16xf32>
    %1893 = vector.shape_cast %1892 : vector<1x2x16xf32> to vector<2x16xf32>
    %cst_142 = arith.constant -1.000000e+00 : f32
    %cst_143 = arith.constant 1.000000e+00 : f32
    %1894 = vector.broadcast %cst_142 : f32 to vector<2x16xf32>
    %1895 = arith.maximumf %1894, %1889 : vector<2x16xf32>
    %1896 = vector.broadcast %cst_143 : f32 to vector<2x16xf32>
    %1897 = arith.minimumf %1896, %1895 : vector<2x16xf32>
    %1898 = vector.extract_strided_slice %1897 {offsets = [0, 0], sizes = [2, 1], strides = [1, 1]} : vector<2x16xf32> to vector<2x1xf32>
    %1899 = vector.extract_strided_slice %0 {offsets = [0, 0], sizes = [1, 16], strides = [1, 1]} : vector<16x16xf32> to vector<1x16xf32>
    %1900 = vector.broadcast %1898 : vector<2x1xf32> to vector<2x16xf32>
    %1901 = vector.broadcast %1899 : vector<1x16xf32> to vector<2x16xf32>
    %1902 = arith.mulf %1900, %1901 : vector<2x16xf32>
    %1903 = vector.extract_strided_slice %1897 {offsets = [0, 1], sizes = [2, 1], strides = [1, 1]} : vector<2x16xf32> to vector<2x1xf32>
    %1904 = vector.extract_strided_slice %0 {offsets = [1, 0], sizes = [1, 16], strides = [1, 1]} : vector<16x16xf32> to vector<1x16xf32>
    %1905 = vector.broadcast %1903 : vector<2x1xf32> to vector<2x16xf32>
    %1906 = vector.broadcast %1904 : vector<1x16xf32> to vector<2x16xf32>
    %1907 = arith.mulf %1905, %1906 : vector<2x16xf32>
    %1908 = vector.extract_strided_slice %1897 {offsets = [0, 2], sizes = [2, 1], strides = [1, 1]} : vector<2x16xf32> to vector<2x1xf32>
    %1909 = vector.extract_strided_slice %0 {offsets = [2, 0], sizes = [1, 16], strides = [1, 1]} : vector<16x16xf32> to vector<1x16xf32>
    %1910 = vector.broadcast %1908 : vector<2x1xf32> to vector<2x16xf32>
    %1911 = vector.broadcast %1909 : vector<1x16xf32> to vector<2x16xf32>
    %1912 = arith.mulf %1910, %1911 : vector<2x16xf32>
    %1913 = vector.extract_strided_slice %1897 {offsets = [0, 3], sizes = [2, 1], strides = [1, 1]} : vector<2x16xf32> to vector<2x1xf32>
    %1914 = vector.extract_strided_slice %0 {offsets = [3, 0], sizes = [1, 16], strides = [1, 1]} : vector<16x16xf32> to vector<1x16xf32>
    %1915 = vector.broadcast %1913 : vector<2x1xf32> to vector<2x16xf32>
    %1916 = vector.broadcast %1914 : vector<1x16xf32> to vector<2x16xf32>
    %1917 = arith.mulf %1915, %1916 : vector<2x16xf32>
    %1918 = vector.extract_strided_slice %1897 {offsets = [0, 4], sizes = [2, 1], strides = [1, 1]} : vector<2x16xf32> to vector<2x1xf32>
    %1919 = vector.extract_strided_slice %0 {offsets = [4, 0], sizes = [1, 16], strides = [1, 1]} : vector<16x16xf32> to vector<1x16xf32>
    %1920 = vector.broadcast %1918 : vector<2x1xf32> to vector<2x16xf32>
    %1921 = vector.broadcast %1919 : vector<1x16xf32> to vector<2x16xf32>
    %1922 = arith.mulf %1920, %1921 : vector<2x16xf32>
    %1923 = vector.extract_strided_slice %1897 {offsets = [0, 5], sizes = [2, 1], strides = [1, 1]} : vector<2x16xf32> to vector<2x1xf32>
    %1924 = vector.extract_strided_slice %0 {offsets = [5, 0], sizes = [1, 16], strides = [1, 1]} : vector<16x16xf32> to vector<1x16xf32>
    %1925 = vector.broadcast %1923 : vector<2x1xf32> to vector<2x16xf32>
    %1926 = vector.broadcast %1924 : vector<1x16xf32> to vector<2x16xf32>
    %1927 = arith.mulf %1925, %1926 : vector<2x16xf32>
    %1928 = vector.extract_strided_slice %1897 {offsets = [0, 6], sizes = [2, 1], strides = [1, 1]} : vector<2x16xf32> to vector<2x1xf32>
    %1929 = vector.extract_strided_slice %0 {offsets = [6, 0], sizes = [1, 16], strides = [1, 1]} : vector<16x16xf32> to vector<1x16xf32>
    %1930 = vector.broadcast %1928 : vector<2x1xf32> to vector<2x16xf32>
    %1931 = vector.broadcast %1929 : vector<1x16xf32> to vector<2x16xf32>
    %1932 = arith.mulf %1930, %1931 : vector<2x16xf32>
    %1933 = vector.extract_strided_slice %1897 {offsets = [0, 7], sizes = [2, 1], strides = [1, 1]} : vector<2x16xf32> to vector<2x1xf32>
    %1934 = vector.extract_strided_slice %0 {offsets = [7, 0], sizes = [1, 16], strides = [1, 1]} : vector<16x16xf32> to vector<1x16xf32>
    %1935 = vector.broadcast %1933 : vector<2x1xf32> to vector<2x16xf32>
    %1936 = vector.broadcast %1934 : vector<1x16xf32> to vector<2x16xf32>
    %1937 = arith.mulf %1935, %1936 : vector<2x16xf32>
    %1938 = vector.extract_strided_slice %1897 {offsets = [0, 8], sizes = [2, 1], strides = [1, 1]} : vector<2x16xf32> to vector<2x1xf32>
    %1939 = vector.extract_strided_slice %0 {offsets = [8, 0], sizes = [1, 16], strides = [1, 1]} : vector<16x16xf32> to vector<1x16xf32>
    %1940 = vector.broadcast %1938 : vector<2x1xf32> to vector<2x16xf32>
    %1941 = vector.broadcast %1939 : vector<1x16xf32> to vector<2x16xf32>
    %1942 = arith.mulf %1940, %1941 : vector<2x16xf32>
    %1943 = vector.extract_strided_slice %1897 {offsets = [0, 9], sizes = [2, 1], strides = [1, 1]} : vector<2x16xf32> to vector<2x1xf32>
    %1944 = vector.extract_strided_slice %0 {offsets = [9, 0], sizes = [1, 16], strides = [1, 1]} : vector<16x16xf32> to vector<1x16xf32>
    %1945 = vector.broadcast %1943 : vector<2x1xf32> to vector<2x16xf32>
    %1946 = vector.broadcast %1944 : vector<1x16xf32> to vector<2x16xf32>
    %1947 = arith.mulf %1945, %1946 : vector<2x16xf32>
    %1948 = vector.extract_strided_slice %1897 {offsets = [0, 10], sizes = [2, 1], strides = [1, 1]} : vector<2x16xf32> to vector<2x1xf32>
    %1949 = vector.extract_strided_slice %0 {offsets = [10, 0], sizes = [1, 16], strides = [1, 1]} : vector<16x16xf32> to vector<1x16xf32>
    %1950 = vector.broadcast %1948 : vector<2x1xf32> to vector<2x16xf32>
    %1951 = vector.broadcast %1949 : vector<1x16xf32> to vector<2x16xf32>
    %1952 = arith.mulf %1950, %1951 : vector<2x16xf32>
    %1953 = vector.extract_strided_slice %1897 {offsets = [0, 11], sizes = [2, 1], strides = [1, 1]} : vector<2x16xf32> to vector<2x1xf32>
    %1954 = vector.extract_strided_slice %0 {offsets = [11, 0], sizes = [1, 16], strides = [1, 1]} : vector<16x16xf32> to vector<1x16xf32>
    %1955 = vector.broadcast %1953 : vector<2x1xf32> to vector<2x16xf32>
    %1956 = vector.broadcast %1954 : vector<1x16xf32> to vector<2x16xf32>
    %1957 = arith.mulf %1955, %1956 : vector<2x16xf32>
    %1958 = vector.extract_strided_slice %1897 {offsets = [0, 12], sizes = [2, 1], strides = [1, 1]} : vector<2x16xf32> to vector<2x1xf32>
    %1959 = vector.extract_strided_slice %0 {offsets = [12, 0], sizes = [1, 16], strides = [1, 1]} : vector<16x16xf32> to vector<1x16xf32>
    %1960 = vector.broadcast %1958 : vector<2x1xf32> to vector<2x16xf32>
    %1961 = vector.broadcast %1959 : vector<1x16xf32> to vector<2x16xf32>
    %1962 = arith.mulf %1960, %1961 : vector<2x16xf32>
    %1963 = vector.extract_strided_slice %1897 {offsets = [0, 13], sizes = [2, 1], strides = [1, 1]} : vector<2x16xf32> to vector<2x1xf32>
    %1964 = vector.extract_strided_slice %0 {offsets = [13, 0], sizes = [1, 16], strides = [1, 1]} : vector<16x16xf32> to vector<1x16xf32>
    %1965 = vector.broadcast %1963 : vector<2x1xf32> to vector<2x16xf32>
    %1966 = vector.broadcast %1964 : vector<1x16xf32> to vector<2x16xf32>
    %1967 = arith.mulf %1965, %1966 : vector<2x16xf32>
    %1968 = vector.extract_strided_slice %1897 {offsets = [0, 14], sizes = [2, 1], strides = [1, 1]} : vector<2x16xf32> to vector<2x1xf32>
    %1969 = vector.extract_strided_slice %0 {offsets = [14, 0], sizes = [1, 16], strides = [1, 1]} : vector<16x16xf32> to vector<1x16xf32>
    %1970 = vector.broadcast %1968 : vector<2x1xf32> to vector<2x16xf32>
    %1971 = vector.broadcast %1969 : vector<1x16xf32> to vector<2x16xf32>
    %1972 = arith.mulf %1970, %1971 : vector<2x16xf32>
    %1973 = vector.extract_strided_slice %1897 {offsets = [0, 15], sizes = [2, 1], strides = [1, 1]} : vector<2x16xf32> to vector<2x1xf32>
    %1974 = vector.extract_strided_slice %0 {offsets = [15, 0], sizes = [1, 16], strides = [1, 1]} : vector<16x16xf32> to vector<1x16xf32>
    %1975 = vector.broadcast %1973 : vector<2x1xf32> to vector<2x16xf32>
    %1976 = vector.broadcast %1974 : vector<1x16xf32> to vector<2x16xf32>
    %1977 = arith.mulf %1975, %1976 : vector<2x16xf32>
    %1978 = arith.addf %1902, %1907 : vector<2x16xf32>
    %1979 = arith.addf %1912, %1917 : vector<2x16xf32>
    %1980 = arith.addf %1922, %1927 : vector<2x16xf32>
    %1981 = arith.addf %1932, %1937 : vector<2x16xf32>
    %1982 = arith.addf %1942, %1947 : vector<2x16xf32>
    %1983 = arith.addf %1952, %1957 : vector<2x16xf32>
    %1984 = arith.addf %1962, %1967 : vector<2x16xf32>
    %1985 = arith.addf %1972, %1977 : vector<2x16xf32>
    %1986 = arith.addf %1978, %1979 : vector<2x16xf32>
    %1987 = arith.addf %1980, %1981 : vector<2x16xf32>
    %1988 = arith.addf %1982, %1983 : vector<2x16xf32>
    %1989 = arith.addf %1984, %1985 : vector<2x16xf32>
    %1990 = arith.addf %1986, %1987 : vector<2x16xf32>
    %1991 = arith.addf %1988, %1989 : vector<2x16xf32>
    %1992 = arith.addf %1990, %1991 : vector<2x16xf32>
    %1993 = arith.addf %1992, %1891 : vector<2x16xf32>
    %1994 = math.tanh %1993 : vector<2x16xf32>
    %1995 = arith.mulf %1994, %1893 : vector<2x16xf32>
    %cst_144 = arith.constant 0.333333343 : f32
    %1996 = vector.broadcast %cst_144 : f32 to vector<2x16xf32>
    %1997 = arith.mulf %1886, %1996 : vector<2x16xf32>
    %1998 = arith.subf %1995, %1997 : vector<2x16xf32>
    %1999 = arith.addf %1778, %1998 : vector<2x16xf32>
    %c36 = arith.constant 36 : index
    %c0_145 = arith.constant 0 : index
    %c0_146 = arith.constant 0 : index
    %2000 = vector.load %arg1[%c36, %c0_145, %c0_146] : memref<56x2x16xf32, #tpu.memory_space<vmem>>, vector<1x2x16xf32>
    %2001 = vector.shape_cast %2000 : vector<1x2x16xf32> to vector<2x16xf32>
    %c37 = arith.constant 37 : index
    %c0_147 = arith.constant 0 : index
    %c0_148 = arith.constant 0 : index
    %2002 = vector.load %arg1[%c37, %c0_147, %c0_148] : memref<56x2x16xf32, #tpu.memory_space<vmem>>, vector<1x2x16xf32>
    %2003 = vector.shape_cast %2002 : vector<1x2x16xf32> to vector<2x16xf32>
    %cst_149 = arith.constant -1.000000e+00 : f32
    %cst_150 = arith.constant 1.000000e+00 : f32
    %2004 = vector.broadcast %cst_149 : f32 to vector<2x16xf32>
    %2005 = arith.maximumf %2004, %1999 : vector<2x16xf32>
    %2006 = vector.broadcast %cst_150 : f32 to vector<2x16xf32>
    %2007 = arith.minimumf %2006, %2005 : vector<2x16xf32>
    %2008 = vector.extract_strided_slice %2007 {offsets = [0, 0], sizes = [2, 1], strides = [1, 1]} : vector<2x16xf32> to vector<2x1xf32>
    %2009 = vector.extract_strided_slice %0 {offsets = [0, 0], sizes = [1, 16], strides = [1, 1]} : vector<16x16xf32> to vector<1x16xf32>
    %2010 = vector.broadcast %2008 : vector<2x1xf32> to vector<2x16xf32>
    %2011 = vector.broadcast %2009 : vector<1x16xf32> to vector<2x16xf32>
    %2012 = arith.mulf %2010, %2011 : vector<2x16xf32>
    %2013 = vector.extract_strided_slice %2007 {offsets = [0, 1], sizes = [2, 1], strides = [1, 1]} : vector<2x16xf32> to vector<2x1xf32>
    %2014 = vector.extract_strided_slice %0 {offsets = [1, 0], sizes = [1, 16], strides = [1, 1]} : vector<16x16xf32> to vector<1x16xf32>
    %2015 = vector.broadcast %2013 : vector<2x1xf32> to vector<2x16xf32>
    %2016 = vector.broadcast %2014 : vector<1x16xf32> to vector<2x16xf32>
    %2017 = arith.mulf %2015, %2016 : vector<2x16xf32>
    %2018 = vector.extract_strided_slice %2007 {offsets = [0, 2], sizes = [2, 1], strides = [1, 1]} : vector<2x16xf32> to vector<2x1xf32>
    %2019 = vector.extract_strided_slice %0 {offsets = [2, 0], sizes = [1, 16], strides = [1, 1]} : vector<16x16xf32> to vector<1x16xf32>
    %2020 = vector.broadcast %2018 : vector<2x1xf32> to vector<2x16xf32>
    %2021 = vector.broadcast %2019 : vector<1x16xf32> to vector<2x16xf32>
    %2022 = arith.mulf %2020, %2021 : vector<2x16xf32>
    %2023 = vector.extract_strided_slice %2007 {offsets = [0, 3], sizes = [2, 1], strides = [1, 1]} : vector<2x16xf32> to vector<2x1xf32>
    %2024 = vector.extract_strided_slice %0 {offsets = [3, 0], sizes = [1, 16], strides = [1, 1]} : vector<16x16xf32> to vector<1x16xf32>
    %2025 = vector.broadcast %2023 : vector<2x1xf32> to vector<2x16xf32>
    %2026 = vector.broadcast %2024 : vector<1x16xf32> to vector<2x16xf32>
    %2027 = arith.mulf %2025, %2026 : vector<2x16xf32>
    %2028 = vector.extract_strided_slice %2007 {offsets = [0, 4], sizes = [2, 1], strides = [1, 1]} : vector<2x16xf32> to vector<2x1xf32>
    %2029 = vector.extract_strided_slice %0 {offsets = [4, 0], sizes = [1, 16], strides = [1, 1]} : vector<16x16xf32> to vector<1x16xf32>
    %2030 = vector.broadcast %2028 : vector<2x1xf32> to vector<2x16xf32>
    %2031 = vector.broadcast %2029 : vector<1x16xf32> to vector<2x16xf32>
    %2032 = arith.mulf %2030, %2031 : vector<2x16xf32>
    %2033 = vector.extract_strided_slice %2007 {offsets = [0, 5], sizes = [2, 1], strides = [1, 1]} : vector<2x16xf32> to vector<2x1xf32>
    %2034 = vector.extract_strided_slice %0 {offsets = [5, 0], sizes = [1, 16], strides = [1, 1]} : vector<16x16xf32> to vector<1x16xf32>
    %2035 = vector.broadcast %2033 : vector<2x1xf32> to vector<2x16xf32>
    %2036 = vector.broadcast %2034 : vector<1x16xf32> to vector<2x16xf32>
    %2037 = arith.mulf %2035, %2036 : vector<2x16xf32>
    %2038 = vector.extract_strided_slice %2007 {offsets = [0, 6], sizes = [2, 1], strides = [1, 1]} : vector<2x16xf32> to vector<2x1xf32>
    %2039 = vector.extract_strided_slice %0 {offsets = [6, 0], sizes = [1, 16], strides = [1, 1]} : vector<16x16xf32> to vector<1x16xf32>
    %2040 = vector.broadcast %2038 : vector<2x1xf32> to vector<2x16xf32>
    %2041 = vector.broadcast %2039 : vector<1x16xf32> to vector<2x16xf32>
    %2042 = arith.mulf %2040, %2041 : vector<2x16xf32>
    %2043 = vector.extract_strided_slice %2007 {offsets = [0, 7], sizes = [2, 1], strides = [1, 1]} : vector<2x16xf32> to vector<2x1xf32>
    %2044 = vector.extract_strided_slice %0 {offsets = [7, 0], sizes = [1, 16], strides = [1, 1]} : vector<16x16xf32> to vector<1x16xf32>
    %2045 = vector.broadcast %2043 : vector<2x1xf32> to vector<2x16xf32>
    %2046 = vector.broadcast %2044 : vector<1x16xf32> to vector<2x16xf32>
    %2047 = arith.mulf %2045, %2046 : vector<2x16xf32>
    %2048 = vector.extract_strided_slice %2007 {offsets = [0, 8], sizes = [2, 1], strides = [1, 1]} : vector<2x16xf32> to vector<2x1xf32>
    %2049 = vector.extract_strided_slice %0 {offsets = [8, 0], sizes = [1, 16], strides = [1, 1]} : vector<16x16xf32> to vector<1x16xf32>
    %2050 = vector.broadcast %2048 : vector<2x1xf32> to vector<2x16xf32>
    %2051 = vector.broadcast %2049 : vector<1x16xf32> to vector<2x16xf32>
    %2052 = arith.mulf %2050, %2051 : vector<2x16xf32>
    %2053 = vector.extract_strided_slice %2007 {offsets = [0, 9], sizes = [2, 1], strides = [1, 1]} : vector<2x16xf32> to vector<2x1xf32>
    %2054 = vector.extract_strided_slice %0 {offsets = [9, 0], sizes = [1, 16], strides = [1, 1]} : vector<16x16xf32> to vector<1x16xf32>
    %2055 = vector.broadcast %2053 : vector<2x1xf32> to vector<2x16xf32>
    %2056 = vector.broadcast %2054 : vector<1x16xf32> to vector<2x16xf32>
    %2057 = arith.mulf %2055, %2056 : vector<2x16xf32>
    %2058 = vector.extract_strided_slice %2007 {offsets = [0, 10], sizes = [2, 1], strides = [1, 1]} : vector<2x16xf32> to vector<2x1xf32>
    %2059 = vector.extract_strided_slice %0 {offsets = [10, 0], sizes = [1, 16], strides = [1, 1]} : vector<16x16xf32> to vector<1x16xf32>
    %2060 = vector.broadcast %2058 : vector<2x1xf32> to vector<2x16xf32>
    %2061 = vector.broadcast %2059 : vector<1x16xf32> to vector<2x16xf32>
    %2062 = arith.mulf %2060, %2061 : vector<2x16xf32>
    %2063 = vector.extract_strided_slice %2007 {offsets = [0, 11], sizes = [2, 1], strides = [1, 1]} : vector<2x16xf32> to vector<2x1xf32>
    %2064 = vector.extract_strided_slice %0 {offsets = [11, 0], sizes = [1, 16], strides = [1, 1]} : vector<16x16xf32> to vector<1x16xf32>
    %2065 = vector.broadcast %2063 : vector<2x1xf32> to vector<2x16xf32>
    %2066 = vector.broadcast %2064 : vector<1x16xf32> to vector<2x16xf32>
    %2067 = arith.mulf %2065, %2066 : vector<2x16xf32>
    %2068 = vector.extract_strided_slice %2007 {offsets = [0, 12], sizes = [2, 1], strides = [1, 1]} : vector<2x16xf32> to vector<2x1xf32>
    %2069 = vector.extract_strided_slice %0 {offsets = [12, 0], sizes = [1, 16], strides = [1, 1]} : vector<16x16xf32> to vector<1x16xf32>
    %2070 = vector.broadcast %2068 : vector<2x1xf32> to vector<2x16xf32>
    %2071 = vector.broadcast %2069 : vector<1x16xf32> to vector<2x16xf32>
    %2072 = arith.mulf %2070, %2071 : vector<2x16xf32>
    %2073 = vector.extract_strided_slice %2007 {offsets = [0, 13], sizes = [2, 1], strides = [1, 1]} : vector<2x16xf32> to vector<2x1xf32>
    %2074 = vector.extract_strided_slice %0 {offsets = [13, 0], sizes = [1, 16], strides = [1, 1]} : vector<16x16xf32> to vector<1x16xf32>
    %2075 = vector.broadcast %2073 : vector<2x1xf32> to vector<2x16xf32>
    %2076 = vector.broadcast %2074 : vector<1x16xf32> to vector<2x16xf32>
    %2077 = arith.mulf %2075, %2076 : vector<2x16xf32>
    %2078 = vector.extract_strided_slice %2007 {offsets = [0, 14], sizes = [2, 1], strides = [1, 1]} : vector<2x16xf32> to vector<2x1xf32>
    %2079 = vector.extract_strided_slice %0 {offsets = [14, 0], sizes = [1, 16], strides = [1, 1]} : vector<16x16xf32> to vector<1x16xf32>
    %2080 = vector.broadcast %2078 : vector<2x1xf32> to vector<2x16xf32>
    %2081 = vector.broadcast %2079 : vector<1x16xf32> to vector<2x16xf32>
    %2082 = arith.mulf %2080, %2081 : vector<2x16xf32>
    %2083 = vector.extract_strided_slice %2007 {offsets = [0, 15], sizes = [2, 1], strides = [1, 1]} : vector<2x16xf32> to vector<2x1xf32>
    %2084 = vector.extract_strided_slice %0 {offsets = [15, 0], sizes = [1, 16], strides = [1, 1]} : vector<16x16xf32> to vector<1x16xf32>
    %2085 = vector.broadcast %2083 : vector<2x1xf32> to vector<2x16xf32>
    %2086 = vector.broadcast %2084 : vector<1x16xf32> to vector<2x16xf32>
    %2087 = arith.mulf %2085, %2086 : vector<2x16xf32>
    %2088 = arith.addf %2012, %2017 : vector<2x16xf32>
    %2089 = arith.addf %2022, %2027 : vector<2x16xf32>
    %2090 = arith.addf %2032, %2037 : vector<2x16xf32>
    %2091 = arith.addf %2042, %2047 : vector<2x16xf32>
    %2092 = arith.addf %2052, %2057 : vector<2x16xf32>
    %2093 = arith.addf %2062, %2067 : vector<2x16xf32>
    %2094 = arith.addf %2072, %2077 : vector<2x16xf32>
    %2095 = arith.addf %2082, %2087 : vector<2x16xf32>
    %2096 = arith.addf %2088, %2089 : vector<2x16xf32>
    %2097 = arith.addf %2090, %2091 : vector<2x16xf32>
    %2098 = arith.addf %2092, %2093 : vector<2x16xf32>
    %2099 = arith.addf %2094, %2095 : vector<2x16xf32>
    %2100 = arith.addf %2096, %2097 : vector<2x16xf32>
    %2101 = arith.addf %2098, %2099 : vector<2x16xf32>
    %2102 = arith.addf %2100, %2101 : vector<2x16xf32>
    %2103 = arith.addf %2102, %2001 : vector<2x16xf32>
    %2104 = math.tanh %2103 : vector<2x16xf32>
    %2105 = arith.mulf %2104, %2003 : vector<2x16xf32>
    %2106 = arith.subf %1886, %1995 : vector<2x16xf32>
    %2107 = arith.addf %2106, %2105 : vector<2x16xf32>
    %2108 = arith.addf %1778, %2107 : vector<2x16xf32>
    %c38 = arith.constant 38 : index
    %c0_151 = arith.constant 0 : index
    %c0_152 = arith.constant 0 : index
    %2109 = vector.load %arg1[%c38, %c0_151, %c0_152] : memref<56x2x16xf32, #tpu.memory_space<vmem>>, vector<1x2x16xf32>
    %2110 = vector.shape_cast %2109 : vector<1x2x16xf32> to vector<2x16xf32>
    %c39 = arith.constant 39 : index
    %c0_153 = arith.constant 0 : index
    %c0_154 = arith.constant 0 : index
    %2111 = vector.load %arg1[%c39, %c0_153, %c0_154] : memref<56x2x16xf32, #tpu.memory_space<vmem>>, vector<1x2x16xf32>
    %2112 = vector.shape_cast %2111 : vector<1x2x16xf32> to vector<2x16xf32>
    %cst_155 = arith.constant -1.000000e+00 : f32
    %cst_156 = arith.constant 1.000000e+00 : f32
    %2113 = vector.broadcast %cst_155 : f32 to vector<2x16xf32>
    %2114 = arith.maximumf %2113, %2108 : vector<2x16xf32>
    %2115 = vector.broadcast %cst_156 : f32 to vector<2x16xf32>
    %2116 = arith.minimumf %2115, %2114 : vector<2x16xf32>
    %2117 = vector.extract_strided_slice %2116 {offsets = [0, 0], sizes = [2, 1], strides = [1, 1]} : vector<2x16xf32> to vector<2x1xf32>
    %2118 = vector.extract_strided_slice %0 {offsets = [0, 0], sizes = [1, 16], strides = [1, 1]} : vector<16x16xf32> to vector<1x16xf32>
    %2119 = vector.broadcast %2117 : vector<2x1xf32> to vector<2x16xf32>
    %2120 = vector.broadcast %2118 : vector<1x16xf32> to vector<2x16xf32>
    %2121 = arith.mulf %2119, %2120 : vector<2x16xf32>
    %2122 = vector.extract_strided_slice %2116 {offsets = [0, 1], sizes = [2, 1], strides = [1, 1]} : vector<2x16xf32> to vector<2x1xf32>
    %2123 = vector.extract_strided_slice %0 {offsets = [1, 0], sizes = [1, 16], strides = [1, 1]} : vector<16x16xf32> to vector<1x16xf32>
    %2124 = vector.broadcast %2122 : vector<2x1xf32> to vector<2x16xf32>
    %2125 = vector.broadcast %2123 : vector<1x16xf32> to vector<2x16xf32>
    %2126 = arith.mulf %2124, %2125 : vector<2x16xf32>
    %2127 = vector.extract_strided_slice %2116 {offsets = [0, 2], sizes = [2, 1], strides = [1, 1]} : vector<2x16xf32> to vector<2x1xf32>
    %2128 = vector.extract_strided_slice %0 {offsets = [2, 0], sizes = [1, 16], strides = [1, 1]} : vector<16x16xf32> to vector<1x16xf32>
    %2129 = vector.broadcast %2127 : vector<2x1xf32> to vector<2x16xf32>
    %2130 = vector.broadcast %2128 : vector<1x16xf32> to vector<2x16xf32>
    %2131 = arith.mulf %2129, %2130 : vector<2x16xf32>
    %2132 = vector.extract_strided_slice %2116 {offsets = [0, 3], sizes = [2, 1], strides = [1, 1]} : vector<2x16xf32> to vector<2x1xf32>
    %2133 = vector.extract_strided_slice %0 {offsets = [3, 0], sizes = [1, 16], strides = [1, 1]} : vector<16x16xf32> to vector<1x16xf32>
    %2134 = vector.broadcast %2132 : vector<2x1xf32> to vector<2x16xf32>
    %2135 = vector.broadcast %2133 : vector<1x16xf32> to vector<2x16xf32>
    %2136 = arith.mulf %2134, %2135 : vector<2x16xf32>
    %2137 = vector.extract_strided_slice %2116 {offsets = [0, 4], sizes = [2, 1], strides = [1, 1]} : vector<2x16xf32> to vector<2x1xf32>
    %2138 = vector.extract_strided_slice %0 {offsets = [4, 0], sizes = [1, 16], strides = [1, 1]} : vector<16x16xf32> to vector<1x16xf32>
    %2139 = vector.broadcast %2137 : vector<2x1xf32> to vector<2x16xf32>
    %2140 = vector.broadcast %2138 : vector<1x16xf32> to vector<2x16xf32>
    %2141 = arith.mulf %2139, %2140 : vector<2x16xf32>
    %2142 = vector.extract_strided_slice %2116 {offsets = [0, 5], sizes = [2, 1], strides = [1, 1]} : vector<2x16xf32> to vector<2x1xf32>
    %2143 = vector.extract_strided_slice %0 {offsets = [5, 0], sizes = [1, 16], strides = [1, 1]} : vector<16x16xf32> to vector<1x16xf32>
    %2144 = vector.broadcast %2142 : vector<2x1xf32> to vector<2x16xf32>
    %2145 = vector.broadcast %2143 : vector<1x16xf32> to vector<2x16xf32>
    %2146 = arith.mulf %2144, %2145 : vector<2x16xf32>
    %2147 = vector.extract_strided_slice %2116 {offsets = [0, 6], sizes = [2, 1], strides = [1, 1]} : vector<2x16xf32> to vector<2x1xf32>
    %2148 = vector.extract_strided_slice %0 {offsets = [6, 0], sizes = [1, 16], strides = [1, 1]} : vector<16x16xf32> to vector<1x16xf32>
    %2149 = vector.broadcast %2147 : vector<2x1xf32> to vector<2x16xf32>
    %2150 = vector.broadcast %2148 : vector<1x16xf32> to vector<2x16xf32>
    %2151 = arith.mulf %2149, %2150 : vector<2x16xf32>
    %2152 = vector.extract_strided_slice %2116 {offsets = [0, 7], sizes = [2, 1], strides = [1, 1]} : vector<2x16xf32> to vector<2x1xf32>
    %2153 = vector.extract_strided_slice %0 {offsets = [7, 0], sizes = [1, 16], strides = [1, 1]} : vector<16x16xf32> to vector<1x16xf32>
    %2154 = vector.broadcast %2152 : vector<2x1xf32> to vector<2x16xf32>
    %2155 = vector.broadcast %2153 : vector<1x16xf32> to vector<2x16xf32>
    %2156 = arith.mulf %2154, %2155 : vector<2x16xf32>
    %2157 = vector.extract_strided_slice %2116 {offsets = [0, 8], sizes = [2, 1], strides = [1, 1]} : vector<2x16xf32> to vector<2x1xf32>
    %2158 = vector.extract_strided_slice %0 {offsets = [8, 0], sizes = [1, 16], strides = [1, 1]} : vector<16x16xf32> to vector<1x16xf32>
    %2159 = vector.broadcast %2157 : vector<2x1xf32> to vector<2x16xf32>
    %2160 = vector.broadcast %2158 : vector<1x16xf32> to vector<2x16xf32>
    %2161 = arith.mulf %2159, %2160 : vector<2x16xf32>
    %2162 = vector.extract_strided_slice %2116 {offsets = [0, 9], sizes = [2, 1], strides = [1, 1]} : vector<2x16xf32> to vector<2x1xf32>
    %2163 = vector.extract_strided_slice %0 {offsets = [9, 0], sizes = [1, 16], strides = [1, 1]} : vector<16x16xf32> to vector<1x16xf32>
    %2164 = vector.broadcast %2162 : vector<2x1xf32> to vector<2x16xf32>
    %2165 = vector.broadcast %2163 : vector<1x16xf32> to vector<2x16xf32>
    %2166 = arith.mulf %2164, %2165 : vector<2x16xf32>
    %2167 = vector.extract_strided_slice %2116 {offsets = [0, 10], sizes = [2, 1], strides = [1, 1]} : vector<2x16xf32> to vector<2x1xf32>
    %2168 = vector.extract_strided_slice %0 {offsets = [10, 0], sizes = [1, 16], strides = [1, 1]} : vector<16x16xf32> to vector<1x16xf32>
    %2169 = vector.broadcast %2167 : vector<2x1xf32> to vector<2x16xf32>
    %2170 = vector.broadcast %2168 : vector<1x16xf32> to vector<2x16xf32>
    %2171 = arith.mulf %2169, %2170 : vector<2x16xf32>
    %2172 = vector.extract_strided_slice %2116 {offsets = [0, 11], sizes = [2, 1], strides = [1, 1]} : vector<2x16xf32> to vector<2x1xf32>
    %2173 = vector.extract_strided_slice %0 {offsets = [11, 0], sizes = [1, 16], strides = [1, 1]} : vector<16x16xf32> to vector<1x16xf32>
    %2174 = vector.broadcast %2172 : vector<2x1xf32> to vector<2x16xf32>
    %2175 = vector.broadcast %2173 : vector<1x16xf32> to vector<2x16xf32>
    %2176 = arith.mulf %2174, %2175 : vector<2x16xf32>
    %2177 = vector.extract_strided_slice %2116 {offsets = [0, 12], sizes = [2, 1], strides = [1, 1]} : vector<2x16xf32> to vector<2x1xf32>
    %2178 = vector.extract_strided_slice %0 {offsets = [12, 0], sizes = [1, 16], strides = [1, 1]} : vector<16x16xf32> to vector<1x16xf32>
    %2179 = vector.broadcast %2177 : vector<2x1xf32> to vector<2x16xf32>
    %2180 = vector.broadcast %2178 : vector<1x16xf32> to vector<2x16xf32>
    %2181 = arith.mulf %2179, %2180 : vector<2x16xf32>
    %2182 = vector.extract_strided_slice %2116 {offsets = [0, 13], sizes = [2, 1], strides = [1, 1]} : vector<2x16xf32> to vector<2x1xf32>
    %2183 = vector.extract_strided_slice %0 {offsets = [13, 0], sizes = [1, 16], strides = [1, 1]} : vector<16x16xf32> to vector<1x16xf32>
    %2184 = vector.broadcast %2182 : vector<2x1xf32> to vector<2x16xf32>
    %2185 = vector.broadcast %2183 : vector<1x16xf32> to vector<2x16xf32>
    %2186 = arith.mulf %2184, %2185 : vector<2x16xf32>
    %2187 = vector.extract_strided_slice %2116 {offsets = [0, 14], sizes = [2, 1], strides = [1, 1]} : vector<2x16xf32> to vector<2x1xf32>
    %2188 = vector.extract_strided_slice %0 {offsets = [14, 0], sizes = [1, 16], strides = [1, 1]} : vector<16x16xf32> to vector<1x16xf32>
    %2189 = vector.broadcast %2187 : vector<2x1xf32> to vector<2x16xf32>
    %2190 = vector.broadcast %2188 : vector<1x16xf32> to vector<2x16xf32>
    %2191 = arith.mulf %2189, %2190 : vector<2x16xf32>
    %2192 = vector.extract_strided_slice %2116 {offsets = [0, 15], sizes = [2, 1], strides = [1, 1]} : vector<2x16xf32> to vector<2x1xf32>
    %2193 = vector.extract_strided_slice %0 {offsets = [15, 0], sizes = [1, 16], strides = [1, 1]} : vector<16x16xf32> to vector<1x16xf32>
    %2194 = vector.broadcast %2192 : vector<2x1xf32> to vector<2x16xf32>
    %2195 = vector.broadcast %2193 : vector<1x16xf32> to vector<2x16xf32>
    %2196 = arith.mulf %2194, %2195 : vector<2x16xf32>
    %2197 = arith.addf %2121, %2126 : vector<2x16xf32>
    %2198 = arith.addf %2131, %2136 : vector<2x16xf32>
    %2199 = arith.addf %2141, %2146 : vector<2x16xf32>
    %2200 = arith.addf %2151, %2156 : vector<2x16xf32>
    %2201 = arith.addf %2161, %2166 : vector<2x16xf32>
    %2202 = arith.addf %2171, %2176 : vector<2x16xf32>
    %2203 = arith.addf %2181, %2186 : vector<2x16xf32>
    %2204 = arith.addf %2191, %2196 : vector<2x16xf32>
    %2205 = arith.addf %2197, %2198 : vector<2x16xf32>
    %2206 = arith.addf %2199, %2200 : vector<2x16xf32>
    %2207 = arith.addf %2201, %2202 : vector<2x16xf32>
    %2208 = arith.addf %2203, %2204 : vector<2x16xf32>
    %2209 = arith.addf %2205, %2206 : vector<2x16xf32>
    %2210 = arith.addf %2207, %2208 : vector<2x16xf32>
    %2211 = arith.addf %2209, %2210 : vector<2x16xf32>
    %2212 = arith.addf %2211, %2110 : vector<2x16xf32>
    %2213 = math.tanh %2212 : vector<2x16xf32>
    %2214 = arith.mulf %2213, %2112 : vector<2x16xf32>
    %2215 = arith.addf %1995, %2105 : vector<2x16xf32>
    %cst_157 = arith.constant 3.000000e+00 : f32
    %2216 = vector.broadcast %cst_157 : f32 to vector<2x16xf32>
    %2217 = arith.mulf %2216, %2215 : vector<2x16xf32>
    %2218 = arith.addf %1886, %2217 : vector<2x16xf32>
    %2219 = arith.addf %2218, %2214 : vector<2x16xf32>
    %cst_158 = arith.constant 1.250000e-01 : f32
    %2220 = vector.broadcast %cst_158 : f32 to vector<2x16xf32>
    %2221 = arith.mulf %2219, %2220 : vector<2x16xf32>
    %2222 = arith.addf %1778, %2221 : vector<2x16xf32>
    %2223 = vector.shape_cast %2222 : vector<2x16xf32> to vector<2x1x16xf32>
    %c0_159 = arith.constant 0 : index
    %c5_160 = arith.constant 5 : index
    %c0_161 = arith.constant 0 : index
    %2224 = vector.load %arg6[%c0_159, %c5_160, %c0_161] : memref<2x8x16xf32, #tpu.memory_space<vmem>>, vector<2x1x16xf32>
    tpu.vector_store %arg6[%c0_159, %c5_160, %c0_161], %2223 {strides = array<i32>} : memref<2x8x16xf32, #tpu.memory_space<vmem>>, vector<2x1x16xf32>,
    %c40 = arith.constant 40 : index
    %c0_162 = arith.constant 0 : index
    %c0_163 = arith.constant 0 : index
    %2225 = vector.load %arg1[%c40, %c0_162, %c0_163] : memref<56x2x16xf32, #tpu.memory_space<vmem>>, vector<1x2x16xf32>
    %2226 = vector.shape_cast %2225 : vector<1x2x16xf32> to vector<2x16xf32>
    %c41 = arith.constant 41 : index
    %c0_164 = arith.constant 0 : index
    %c0_165 = arith.constant 0 : index
    %2227 = vector.load %arg1[%c41, %c0_164, %c0_165] : memref<56x2x16xf32, #tpu.memory_space<vmem>>, vector<1x2x16xf32>
    %2228 = vector.shape_cast %2227 : vector<1x2x16xf32> to vector<2x16xf32>
    %cst_166 = arith.constant -1.000000e+00 : f32
    %cst_167 = arith.constant 1.000000e+00 : f32
    %2229 = vector.broadcast %cst_166 : f32 to vector<2x16xf32>
    %2230 = arith.maximumf %2229, %2222 : vector<2x16xf32>
    %2231 = vector.broadcast %cst_167 : f32 to vector<2x16xf32>
    %2232 = arith.minimumf %2231, %2230 : vector<2x16xf32>
    %2233 = vector.extract_strided_slice %2232 {offsets = [0, 0], sizes = [2, 1], strides = [1, 1]} : vector<2x16xf32> to vector<2x1xf32>
    %2234 = vector.extract_strided_slice %0 {offsets = [0, 0], sizes = [1, 16], strides = [1, 1]} : vector<16x16xf32> to vector<1x16xf32>
    %2235 = vector.broadcast %2233 : vector<2x1xf32> to vector<2x16xf32>
    %2236 = vector.broadcast %2234 : vector<1x16xf32> to vector<2x16xf32>
    %2237 = arith.mulf %2235, %2236 : vector<2x16xf32>
    %2238 = vector.extract_strided_slice %2232 {offsets = [0, 1], sizes = [2, 1], strides = [1, 1]} : vector<2x16xf32> to vector<2x1xf32>
    %2239 = vector.extract_strided_slice %0 {offsets = [1, 0], sizes = [1, 16], strides = [1, 1]} : vector<16x16xf32> to vector<1x16xf32>
    %2240 = vector.broadcast %2238 : vector<2x1xf32> to vector<2x16xf32>
    %2241 = vector.broadcast %2239 : vector<1x16xf32> to vector<2x16xf32>
    %2242 = arith.mulf %2240, %2241 : vector<2x16xf32>
    %2243 = vector.extract_strided_slice %2232 {offsets = [0, 2], sizes = [2, 1], strides = [1, 1]} : vector<2x16xf32> to vector<2x1xf32>
    %2244 = vector.extract_strided_slice %0 {offsets = [2, 0], sizes = [1, 16], strides = [1, 1]} : vector<16x16xf32> to vector<1x16xf32>
    %2245 = vector.broadcast %2243 : vector<2x1xf32> to vector<2x16xf32>
    %2246 = vector.broadcast %2244 : vector<1x16xf32> to vector<2x16xf32>
    %2247 = arith.mulf %2245, %2246 : vector<2x16xf32>
    %2248 = vector.extract_strided_slice %2232 {offsets = [0, 3], sizes = [2, 1], strides = [1, 1]} : vector<2x16xf32> to vector<2x1xf32>
    %2249 = vector.extract_strided_slice %0 {offsets = [3, 0], sizes = [1, 16], strides = [1, 1]} : vector<16x16xf32> to vector<1x16xf32>
    %2250 = vector.broadcast %2248 : vector<2x1xf32> to vector<2x16xf32>
    %2251 = vector.broadcast %2249 : vector<1x16xf32> to vector<2x16xf32>
    %2252 = arith.mulf %2250, %2251 : vector<2x16xf32>
    %2253 = vector.extract_strided_slice %2232 {offsets = [0, 4], sizes = [2, 1], strides = [1, 1]} : vector<2x16xf32> to vector<2x1xf32>
    %2254 = vector.extract_strided_slice %0 {offsets = [4, 0], sizes = [1, 16], strides = [1, 1]} : vector<16x16xf32> to vector<1x16xf32>
    %2255 = vector.broadcast %2253 : vector<2x1xf32> to vector<2x16xf32>
    %2256 = vector.broadcast %2254 : vector<1x16xf32> to vector<2x16xf32>
    %2257 = arith.mulf %2255, %2256 : vector<2x16xf32>
    %2258 = vector.extract_strided_slice %2232 {offsets = [0, 5], sizes = [2, 1], strides = [1, 1]} : vector<2x16xf32> to vector<2x1xf32>
    %2259 = vector.extract_strided_slice %0 {offsets = [5, 0], sizes = [1, 16], strides = [1, 1]} : vector<16x16xf32> to vector<1x16xf32>
    %2260 = vector.broadcast %2258 : vector<2x1xf32> to vector<2x16xf32>
    %2261 = vector.broadcast %2259 : vector<1x16xf32> to vector<2x16xf32>
    %2262 = arith.mulf %2260, %2261 : vector<2x16xf32>
    %2263 = vector.extract_strided_slice %2232 {offsets = [0, 6], sizes = [2, 1], strides = [1, 1]} : vector<2x16xf32> to vector<2x1xf32>
    %2264 = vector.extract_strided_slice %0 {offsets = [6, 0], sizes = [1, 16], strides = [1, 1]} : vector<16x16xf32> to vector<1x16xf32>
    %2265 = vector.broadcast %2263 : vector<2x1xf32> to vector<2x16xf32>
    %2266 = vector.broadcast %2264 : vector<1x16xf32> to vector<2x16xf32>
    %2267 = arith.mulf %2265, %2266 : vector<2x16xf32>
    %2268 = vector.extract_strided_slice %2232 {offsets = [0, 7], sizes = [2, 1], strides = [1, 1]} : vector<2x16xf32> to vector<2x1xf32>
    %2269 = vector.extract_strided_slice %0 {offsets = [7, 0], sizes = [1, 16], strides = [1, 1]} : vector<16x16xf32> to vector<1x16xf32>
    %2270 = vector.broadcast %2268 : vector<2x1xf32> to vector<2x16xf32>
    %2271 = vector.broadcast %2269 : vector<1x16xf32> to vector<2x16xf32>
    %2272 = arith.mulf %2270, %2271 : vector<2x16xf32>
    %2273 = vector.extract_strided_slice %2232 {offsets = [0, 8], sizes = [2, 1], strides = [1, 1]} : vector<2x16xf32> to vector<2x1xf32>
    %2274 = vector.extract_strided_slice %0 {offsets = [8, 0], sizes = [1, 16], strides = [1, 1]} : vector<16x16xf32> to vector<1x16xf32>
    %2275 = vector.broadcast %2273 : vector<2x1xf32> to vector<2x16xf32>
    %2276 = vector.broadcast %2274 : vector<1x16xf32> to vector<2x16xf32>
    %2277 = arith.mulf %2275, %2276 : vector<2x16xf32>
    %2278 = vector.extract_strided_slice %2232 {offsets = [0, 9], sizes = [2, 1], strides = [1, 1]} : vector<2x16xf32> to vector<2x1xf32>
    %2279 = vector.extract_strided_slice %0 {offsets = [9, 0], sizes = [1, 16], strides = [1, 1]} : vector<16x16xf32> to vector<1x16xf32>
    %2280 = vector.broadcast %2278 : vector<2x1xf32> to vector<2x16xf32>
    %2281 = vector.broadcast %2279 : vector<1x16xf32> to vector<2x16xf32>
    %2282 = arith.mulf %2280, %2281 : vector<2x16xf32>
    %2283 = vector.extract_strided_slice %2232 {offsets = [0, 10], sizes = [2, 1], strides = [1, 1]} : vector<2x16xf32> to vector<2x1xf32>
    %2284 = vector.extract_strided_slice %0 {offsets = [10, 0], sizes = [1, 16], strides = [1, 1]} : vector<16x16xf32> to vector<1x16xf32>
    %2285 = vector.broadcast %2283 : vector<2x1xf32> to vector<2x16xf32>
    %2286 = vector.broadcast %2284 : vector<1x16xf32> to vector<2x16xf32>
    %2287 = arith.mulf %2285, %2286 : vector<2x16xf32>
    %2288 = vector.extract_strided_slice %2232 {offsets = [0, 11], sizes = [2, 1], strides = [1, 1]} : vector<2x16xf32> to vector<2x1xf32>
    %2289 = vector.extract_strided_slice %0 {offsets = [11, 0], sizes = [1, 16], strides = [1, 1]} : vector<16x16xf32> to vector<1x16xf32>
    %2290 = vector.broadcast %2288 : vector<2x1xf32> to vector<2x16xf32>
    %2291 = vector.broadcast %2289 : vector<1x16xf32> to vector<2x16xf32>
    %2292 = arith.mulf %2290, %2291 : vector<2x16xf32>
    %2293 = vector.extract_strided_slice %2232 {offsets = [0, 12], sizes = [2, 1], strides = [1, 1]} : vector<2x16xf32> to vector<2x1xf32>
    %2294 = vector.extract_strided_slice %0 {offsets = [12, 0], sizes = [1, 16], strides = [1, 1]} : vector<16x16xf32> to vector<1x16xf32>
    %2295 = vector.broadcast %2293 : vector<2x1xf32> to vector<2x16xf32>
    %2296 = vector.broadcast %2294 : vector<1x16xf32> to vector<2x16xf32>
    %2297 = arith.mulf %2295, %2296 : vector<2x16xf32>
    %2298 = vector.extract_strided_slice %2232 {offsets = [0, 13], sizes = [2, 1], strides = [1, 1]} : vector<2x16xf32> to vector<2x1xf32>
    %2299 = vector.extract_strided_slice %0 {offsets = [13, 0], sizes = [1, 16], strides = [1, 1]} : vector<16x16xf32> to vector<1x16xf32>
    %2300 = vector.broadcast %2298 : vector<2x1xf32> to vector<2x16xf32>
    %2301 = vector.broadcast %2299 : vector<1x16xf32> to vector<2x16xf32>
    %2302 = arith.mulf %2300, %2301 : vector<2x16xf32>
    %2303 = vector.extract_strided_slice %2232 {offsets = [0, 14], sizes = [2, 1], strides = [1, 1]} : vector<2x16xf32> to vector<2x1xf32>
    %2304 = vector.extract_strided_slice %0 {offsets = [14, 0], sizes = [1, 16], strides = [1, 1]} : vector<16x16xf32> to vector<1x16xf32>
    %2305 = vector.broadcast %2303 : vector<2x1xf32> to vector<2x16xf32>
    %2306 = vector.broadcast %2304 : vector<1x16xf32> to vector<2x16xf32>
    %2307 = arith.mulf %2305, %2306 : vector<2x16xf32>
    %2308 = vector.extract_strided_slice %2232 {offsets = [0, 15], sizes = [2, 1], strides = [1, 1]} : vector<2x16xf32> to vector<2x1xf32>
    %2309 = vector.extract_strided_slice %0 {offsets = [15, 0], sizes = [1, 16], strides = [1, 1]} : vector<16x16xf32> to vector<1x16xf32>
    %2310 = vector.broadcast %2308 : vector<2x1xf32> to vector<2x16xf32>
    %2311 = vector.broadcast %2309 : vector<1x16xf32> to vector<2x16xf32>
    %2312 = arith.mulf %2310, %2311 : vector<2x16xf32>
    %2313 = arith.addf %2237, %2242 : vector<2x16xf32>
    %2314 = arith.addf %2247, %2252 : vector<2x16xf32>
    %2315 = arith.addf %2257, %2262 : vector<2x16xf32>
    %2316 = arith.addf %2267, %2272 : vector<2x16xf32>
    %2317 = arith.addf %2277, %2282 : vector<2x16xf32>
    %2318 = arith.addf %2287, %2292 : vector<2x16xf32>
    %2319 = arith.addf %2297, %2302 : vector<2x16xf32>
    %2320 = arith.addf %2307, %2312 : vector<2x16xf32>
    %2321 = arith.addf %2313, %2314 : vector<2x16xf32>
    %2322 = arith.addf %2315, %2316 : vector<2x16xf32>
    %2323 = arith.addf %2317, %2318 : vector<2x16xf32>
    %2324 = arith.addf %2319, %2320 : vector<2x16xf32>
    %2325 = arith.addf %2321, %2322 : vector<2x16xf32>
    %2326 = arith.addf %2323, %2324 : vector<2x16xf32>
    %2327 = arith.addf %2325, %2326 : vector<2x16xf32>
    %2328 = arith.addf %2327, %2226 : vector<2x16xf32>
    %2329 = math.tanh %2328 : vector<2x16xf32>
    %2330 = arith.mulf %2329, %2228 : vector<2x16xf32>
    %cst_168 = arith.constant 0.333333343 : f32
    %2331 = vector.broadcast %cst_168 : f32 to vector<2x16xf32>
    %2332 = arith.mulf %2330, %2331 : vector<2x16xf32>
    %2333 = arith.addf %2222, %2332 : vector<2x16xf32>
    %c42 = arith.constant 42 : index
    %c0_169 = arith.constant 0 : index
    %c0_170 = arith.constant 0 : index
    %2334 = vector.load %arg1[%c42, %c0_169, %c0_170] : memref<56x2x16xf32, #tpu.memory_space<vmem>>, vector<1x2x16xf32>
    %2335 = vector.shape_cast %2334 : vector<1x2x16xf32> to vector<2x16xf32>
    %c43 = arith.constant 43 : index
    %c0_171 = arith.constant 0 : index
    %c0_172 = arith.constant 0 : index
    %2336 = vector.load %arg1[%c43, %c0_171, %c0_172] : memref<56x2x16xf32, #tpu.memory_space<vmem>>, vector<1x2x16xf32>
    %2337 = vector.shape_cast %2336 : vector<1x2x16xf32> to vector<2x16xf32>
    %cst_173 = arith.constant -1.000000e+00 : f32
    %cst_174 = arith.constant 1.000000e+00 : f32
    %2338 = vector.broadcast %cst_173 : f32 to vector<2x16xf32>
    %2339 = arith.maximumf %2338, %2333 : vector<2x16xf32>
    %2340 = vector.broadcast %cst_174 : f32 to vector<2x16xf32>
    %2341 = arith.minimumf %2340, %2339 : vector<2x16xf32>
    %2342 = vector.extract_strided_slice %2341 {offsets = [0, 0], sizes = [2, 1], strides = [1, 1]} : vector<2x16xf32> to vector<2x1xf32>
    %2343 = vector.extract_strided_slice %0 {offsets = [0, 0], sizes = [1, 16], strides = [1, 1]} : vector<16x16xf32> to vector<1x16xf32>
    %2344 = vector.broadcast %2342 : vector<2x1xf32> to vector<2x16xf32>
    %2345 = vector.broadcast %2343 : vector<1x16xf32> to vector<2x16xf32>
    %2346 = arith.mulf %2344, %2345 : vector<2x16xf32>
    %2347 = vector.extract_strided_slice %2341 {offsets = [0, 1], sizes = [2, 1], strides = [1, 1]} : vector<2x16xf32> to vector<2x1xf32>
    %2348 = vector.extract_strided_slice %0 {offsets = [1, 0], sizes = [1, 16], strides = [1, 1]} : vector<16x16xf32> to vector<1x16xf32>
    %2349 = vector.broadcast %2347 : vector<2x1xf32> to vector<2x16xf32>
    %2350 = vector.broadcast %2348 : vector<1x16xf32> to vector<2x16xf32>
    %2351 = arith.mulf %2349, %2350 : vector<2x16xf32>
    %2352 = vector.extract_strided_slice %2341 {offsets = [0, 2], sizes = [2, 1], strides = [1, 1]} : vector<2x16xf32> to vector<2x1xf32>
    %2353 = vector.extract_strided_slice %0 {offsets = [2, 0], sizes = [1, 16], strides = [1, 1]} : vector<16x16xf32> to vector<1x16xf32>
    %2354 = vector.broadcast %2352 : vector<2x1xf32> to vector<2x16xf32>
    %2355 = vector.broadcast %2353 : vector<1x16xf32> to vector<2x16xf32>
    %2356 = arith.mulf %2354, %2355 : vector<2x16xf32>
    %2357 = vector.extract_strided_slice %2341 {offsets = [0, 3], sizes = [2, 1], strides = [1, 1]} : vector<2x16xf32> to vector<2x1xf32>
    %2358 = vector.extract_strided_slice %0 {offsets = [3, 0], sizes = [1, 16], strides = [1, 1]} : vector<16x16xf32> to vector<1x16xf32>
    %2359 = vector.broadcast %2357 : vector<2x1xf32> to vector<2x16xf32>
    %2360 = vector.broadcast %2358 : vector<1x16xf32> to vector<2x16xf32>
    %2361 = arith.mulf %2359, %2360 : vector<2x16xf32>
    %2362 = vector.extract_strided_slice %2341 {offsets = [0, 4], sizes = [2, 1], strides = [1, 1]} : vector<2x16xf32> to vector<2x1xf32>
    %2363 = vector.extract_strided_slice %0 {offsets = [4, 0], sizes = [1, 16], strides = [1, 1]} : vector<16x16xf32> to vector<1x16xf32>
    %2364 = vector.broadcast %2362 : vector<2x1xf32> to vector<2x16xf32>
    %2365 = vector.broadcast %2363 : vector<1x16xf32> to vector<2x16xf32>
    %2366 = arith.mulf %2364, %2365 : vector<2x16xf32>
    %2367 = vector.extract_strided_slice %2341 {offsets = [0, 5], sizes = [2, 1], strides = [1, 1]} : vector<2x16xf32> to vector<2x1xf32>
    %2368 = vector.extract_strided_slice %0 {offsets = [5, 0], sizes = [1, 16], strides = [1, 1]} : vector<16x16xf32> to vector<1x16xf32>
    %2369 = vector.broadcast %2367 : vector<2x1xf32> to vector<2x16xf32>
    %2370 = vector.broadcast %2368 : vector<1x16xf32> to vector<2x16xf32>
    %2371 = arith.mulf %2369, %2370 : vector<2x16xf32>
    %2372 = vector.extract_strided_slice %2341 {offsets = [0, 6], sizes = [2, 1], strides = [1, 1]} : vector<2x16xf32> to vector<2x1xf32>
    %2373 = vector.extract_strided_slice %0 {offsets = [6, 0], sizes = [1, 16], strides = [1, 1]} : vector<16x16xf32> to vector<1x16xf32>
    %2374 = vector.broadcast %2372 : vector<2x1xf32> to vector<2x16xf32>
    %2375 = vector.broadcast %2373 : vector<1x16xf32> to vector<2x16xf32>
    %2376 = arith.mulf %2374, %2375 : vector<2x16xf32>
    %2377 = vector.extract_strided_slice %2341 {offsets = [0, 7], sizes = [2, 1], strides = [1, 1]} : vector<2x16xf32> to vector<2x1xf32>
    %2378 = vector.extract_strided_slice %0 {offsets = [7, 0], sizes = [1, 16], strides = [1, 1]} : vector<16x16xf32> to vector<1x16xf32>
    %2379 = vector.broadcast %2377 : vector<2x1xf32> to vector<2x16xf32>
    %2380 = vector.broadcast %2378 : vector<1x16xf32> to vector<2x16xf32>
    %2381 = arith.mulf %2379, %2380 : vector<2x16xf32>
    %2382 = vector.extract_strided_slice %2341 {offsets = [0, 8], sizes = [2, 1], strides = [1, 1]} : vector<2x16xf32> to vector<2x1xf32>
    %2383 = vector.extract_strided_slice %0 {offsets = [8, 0], sizes = [1, 16], strides = [1, 1]} : vector<16x16xf32> to vector<1x16xf32>
    %2384 = vector.broadcast %2382 : vector<2x1xf32> to vector<2x16xf32>
    %2385 = vector.broadcast %2383 : vector<1x16xf32> to vector<2x16xf32>
    %2386 = arith.mulf %2384, %2385 : vector<2x16xf32>
    %2387 = vector.extract_strided_slice %2341 {offsets = [0, 9], sizes = [2, 1], strides = [1, 1]} : vector<2x16xf32> to vector<2x1xf32>
    %2388 = vector.extract_strided_slice %0 {offsets = [9, 0], sizes = [1, 16], strides = [1, 1]} : vector<16x16xf32> to vector<1x16xf32>
    %2389 = vector.broadcast %2387 : vector<2x1xf32> to vector<2x16xf32>
    %2390 = vector.broadcast %2388 : vector<1x16xf32> to vector<2x16xf32>
    %2391 = arith.mulf %2389, %2390 : vector<2x16xf32>
    %2392 = vector.extract_strided_slice %2341 {offsets = [0, 10], sizes = [2, 1], strides = [1, 1]} : vector<2x16xf32> to vector<2x1xf32>
    %2393 = vector.extract_strided_slice %0 {offsets = [10, 0], sizes = [1, 16], strides = [1, 1]} : vector<16x16xf32> to vector<1x16xf32>
    %2394 = vector.broadcast %2392 : vector<2x1xf32> to vector<2x16xf32>
    %2395 = vector.broadcast %2393 : vector<1x16xf32> to vector<2x16xf32>
    %2396 = arith.mulf %2394, %2395 : vector<2x16xf32>
    %2397 = vector.extract_strided_slice %2341 {offsets = [0, 11], sizes = [2, 1], strides = [1, 1]} : vector<2x16xf32> to vector<2x1xf32>
    %2398 = vector.extract_strided_slice %0 {offsets = [11, 0], sizes = [1, 16], strides = [1, 1]} : vector<16x16xf32> to vector<1x16xf32>
    %2399 = vector.broadcast %2397 : vector<2x1xf32> to vector<2x16xf32>
    %2400 = vector.broadcast %2398 : vector<1x16xf32> to vector<2x16xf32>
    %2401 = arith.mulf %2399, %2400 : vector<2x16xf32>
    %2402 = vector.extract_strided_slice %2341 {offsets = [0, 12], sizes = [2, 1], strides = [1, 1]} : vector<2x16xf32> to vector<2x1xf32>
    %2403 = vector.extract_strided_slice %0 {offsets = [12, 0], sizes = [1, 16], strides = [1, 1]} : vector<16x16xf32> to vector<1x16xf32>
    %2404 = vector.broadcast %2402 : vector<2x1xf32> to vector<2x16xf32>
    %2405 = vector.broadcast %2403 : vector<1x16xf32> to vector<2x16xf32>
    %2406 = arith.mulf %2404, %2405 : vector<2x16xf32>
    %2407 = vector.extract_strided_slice %2341 {offsets = [0, 13], sizes = [2, 1], strides = [1, 1]} : vector<2x16xf32> to vector<2x1xf32>
    %2408 = vector.extract_strided_slice %0 {offsets = [13, 0], sizes = [1, 16], strides = [1, 1]} : vector<16x16xf32> to vector<1x16xf32>
    %2409 = vector.broadcast %2407 : vector<2x1xf32> to vector<2x16xf32>
    %2410 = vector.broadcast %2408 : vector<1x16xf32> to vector<2x16xf32>
    %2411 = arith.mulf %2409, %2410 : vector<2x16xf32>
    %2412 = vector.extract_strided_slice %2341 {offsets = [0, 14], sizes = [2, 1], strides = [1, 1]} : vector<2x16xf32> to vector<2x1xf32>
    %2413 = vector.extract_strided_slice %0 {offsets = [14, 0], sizes = [1, 16], strides = [1, 1]} : vector<16x16xf32> to vector<1x16xf32>
    %2414 = vector.broadcast %2412 : vector<2x1xf32> to vector<2x16xf32>
    %2415 = vector.broadcast %2413 : vector<1x16xf32> to vector<2x16xf32>
    %2416 = arith.mulf %2414, %2415 : vector<2x16xf32>
    %2417 = vector.extract_strided_slice %2341 {offsets = [0, 15], sizes = [2, 1], strides = [1, 1]} : vector<2x16xf32> to vector<2x1xf32>
    %2418 = vector.extract_strided_slice %0 {offsets = [15, 0], sizes = [1, 16], strides = [1, 1]} : vector<16x16xf32> to vector<1x16xf32>
    %2419 = vector.broadcast %2417 : vector<2x1xf32> to vector<2x16xf32>
    %2420 = vector.broadcast %2418 : vector<1x16xf32> to vector<2x16xf32>
    %2421 = arith.mulf %2419, %2420 : vector<2x16xf32>
    %2422 = arith.addf %2346, %2351 : vector<2x16xf32>
    %2423 = arith.addf %2356, %2361 : vector<2x16xf32>
    %2424 = arith.addf %2366, %2371 : vector<2x16xf32>
    %2425 = arith.addf %2376, %2381 : vector<2x16xf32>
    %2426 = arith.addf %2386, %2391 : vector<2x16xf32>
    %2427 = arith.addf %2396, %2401 : vector<2x16xf32>
    %2428 = arith.addf %2406, %2411 : vector<2x16xf32>
    %2429 = arith.addf %2416, %2421 : vector<2x16xf32>
    %2430 = arith.addf %2422, %2423 : vector<2x16xf32>
    %2431 = arith.addf %2424, %2425 : vector<2x16xf32>
    %2432 = arith.addf %2426, %2427 : vector<2x16xf32>
    %2433 = arith.addf %2428, %2429 : vector<2x16xf32>
    %2434 = arith.addf %2430, %2431 : vector<2x16xf32>
    %2435 = arith.addf %2432, %2433 : vector<2x16xf32>
    %2436 = arith.addf %2434, %2435 : vector<2x16xf32>
    %2437 = arith.addf %2436, %2335 : vector<2x16xf32>
    %2438 = math.tanh %2437 : vector<2x16xf32>
    %2439 = arith.mulf %2438, %2337 : vector<2x16xf32>
    %cst_175 = arith.constant 0.333333343 : f32
    %2440 = vector.broadcast %cst_175 : f32 to vector<2x16xf32>
    %2441 = arith.mulf %2330, %2440 : vector<2x16xf32>
    %2442 = arith.subf %2439, %2441 : vector<2x16xf32>
    %2443 = arith.addf %2222, %2442 : vector<2x16xf32>
    %c44 = arith.constant 44 : index
    %c0_176 = arith.constant 0 : index
    %c0_177 = arith.constant 0 : index
    %2444 = vector.load %arg1[%c44, %c0_176, %c0_177] : memref<56x2x16xf32, #tpu.memory_space<vmem>>, vector<1x2x16xf32>
    %2445 = vector.shape_cast %2444 : vector<1x2x16xf32> to vector<2x16xf32>
    %c45 = arith.constant 45 : index
    %c0_178 = arith.constant 0 : index
    %c0_179 = arith.constant 0 : index
    %2446 = vector.load %arg1[%c45, %c0_178, %c0_179] : memref<56x2x16xf32, #tpu.memory_space<vmem>>, vector<1x2x16xf32>
    %2447 = vector.shape_cast %2446 : vector<1x2x16xf32> to vector<2x16xf32>
    %cst_180 = arith.constant -1.000000e+00 : f32
    %cst_181 = arith.constant 1.000000e+00 : f32
    %2448 = vector.broadcast %cst_180 : f32 to vector<2x16xf32>
    %2449 = arith.maximumf %2448, %2443 : vector<2x16xf32>
    %2450 = vector.broadcast %cst_181 : f32 to vector<2x16xf32>
    %2451 = arith.minimumf %2450, %2449 : vector<2x16xf32>
    %2452 = vector.extract_strided_slice %2451 {offsets = [0, 0], sizes = [2, 1], strides = [1, 1]} : vector<2x16xf32> to vector<2x1xf32>
    %2453 = vector.extract_strided_slice %0 {offsets = [0, 0], sizes = [1, 16], strides = [1, 1]} : vector<16x16xf32> to vector<1x16xf32>
    %2454 = vector.broadcast %2452 : vector<2x1xf32> to vector<2x16xf32>
    %2455 = vector.broadcast %2453 : vector<1x16xf32> to vector<2x16xf32>
    %2456 = arith.mulf %2454, %2455 : vector<2x16xf32>
    %2457 = vector.extract_strided_slice %2451 {offsets = [0, 1], sizes = [2, 1], strides = [1, 1]} : vector<2x16xf32> to vector<2x1xf32>
    %2458 = vector.extract_strided_slice %0 {offsets = [1, 0], sizes = [1, 16], strides = [1, 1]} : vector<16x16xf32> to vector<1x16xf32>
    %2459 = vector.broadcast %2457 : vector<2x1xf32> to vector<2x16xf32>
    %2460 = vector.broadcast %2458 : vector<1x16xf32> to vector<2x16xf32>
    %2461 = arith.mulf %2459, %2460 : vector<2x16xf32>
    %2462 = vector.extract_strided_slice %2451 {offsets = [0, 2], sizes = [2, 1], strides = [1, 1]} : vector<2x16xf32> to vector<2x1xf32>
    %2463 = vector.extract_strided_slice %0 {offsets = [2, 0], sizes = [1, 16], strides = [1, 1]} : vector<16x16xf32> to vector<1x16xf32>
    %2464 = vector.broadcast %2462 : vector<2x1xf32> to vector<2x16xf32>
    %2465 = vector.broadcast %2463 : vector<1x16xf32> to vector<2x16xf32>
    %2466 = arith.mulf %2464, %2465 : vector<2x16xf32>
    %2467 = vector.extract_strided_slice %2451 {offsets = [0, 3], sizes = [2, 1], strides = [1, 1]} : vector<2x16xf32> to vector<2x1xf32>
    %2468 = vector.extract_strided_slice %0 {offsets = [3, 0], sizes = [1, 16], strides = [1, 1]} : vector<16x16xf32> to vector<1x16xf32>
    %2469 = vector.broadcast %2467 : vector<2x1xf32> to vector<2x16xf32>
    %2470 = vector.broadcast %2468 : vector<1x16xf32> to vector<2x16xf32>
    %2471 = arith.mulf %2469, %2470 : vector<2x16xf32>
    %2472 = vector.extract_strided_slice %2451 {offsets = [0, 4], sizes = [2, 1], strides = [1, 1]} : vector<2x16xf32> to vector<2x1xf32>
    %2473 = vector.extract_strided_slice %0 {offsets = [4, 0], sizes = [1, 16], strides = [1, 1]} : vector<16x16xf32> to vector<1x16xf32>
    %2474 = vector.broadcast %2472 : vector<2x1xf32> to vector<2x16xf32>
    %2475 = vector.broadcast %2473 : vector<1x16xf32> to vector<2x16xf32>
    %2476 = arith.mulf %2474, %2475 : vector<2x16xf32>
    %2477 = vector.extract_strided_slice %2451 {offsets = [0, 5], sizes = [2, 1], strides = [1, 1]} : vector<2x16xf32> to vector<2x1xf32>
    %2478 = vector.extract_strided_slice %0 {offsets = [5, 0], sizes = [1, 16], strides = [1, 1]} : vector<16x16xf32> to vector<1x16xf32>
    %2479 = vector.broadcast %2477 : vector<2x1xf32> to vector<2x16xf32>
    %2480 = vector.broadcast %2478 : vector<1x16xf32> to vector<2x16xf32>
    %2481 = arith.mulf %2479, %2480 : vector<2x16xf32>
    %2482 = vector.extract_strided_slice %2451 {offsets = [0, 6], sizes = [2, 1], strides = [1, 1]} : vector<2x16xf32> to vector<2x1xf32>
    %2483 = vector.extract_strided_slice %0 {offsets = [6, 0], sizes = [1, 16], strides = [1, 1]} : vector<16x16xf32> to vector<1x16xf32>
    %2484 = vector.broadcast %2482 : vector<2x1xf32> to vector<2x16xf32>
    %2485 = vector.broadcast %2483 : vector<1x16xf32> to vector<2x16xf32>
    %2486 = arith.mulf %2484, %2485 : vector<2x16xf32>
    %2487 = vector.extract_strided_slice %2451 {offsets = [0, 7], sizes = [2, 1], strides = [1, 1]} : vector<2x16xf32> to vector<2x1xf32>
    %2488 = vector.extract_strided_slice %0 {offsets = [7, 0], sizes = [1, 16], strides = [1, 1]} : vector<16x16xf32> to vector<1x16xf32>
    %2489 = vector.broadcast %2487 : vector<2x1xf32> to vector<2x16xf32>
    %2490 = vector.broadcast %2488 : vector<1x16xf32> to vector<2x16xf32>
    %2491 = arith.mulf %2489, %2490 : vector<2x16xf32>
    %2492 = vector.extract_strided_slice %2451 {offsets = [0, 8], sizes = [2, 1], strides = [1, 1]} : vector<2x16xf32> to vector<2x1xf32>
    %2493 = vector.extract_strided_slice %0 {offsets = [8, 0], sizes = [1, 16], strides = [1, 1]} : vector<16x16xf32> to vector<1x16xf32>
    %2494 = vector.broadcast %2492 : vector<2x1xf32> to vector<2x16xf32>
    %2495 = vector.broadcast %2493 : vector<1x16xf32> to vector<2x16xf32>
    %2496 = arith.mulf %2494, %2495 : vector<2x16xf32>
    %2497 = vector.extract_strided_slice %2451 {offsets = [0, 9], sizes = [2, 1], strides = [1, 1]} : vector<2x16xf32> to vector<2x1xf32>
    %2498 = vector.extract_strided_slice %0 {offsets = [9, 0], sizes = [1, 16], strides = [1, 1]} : vector<16x16xf32> to vector<1x16xf32>
    %2499 = vector.broadcast %2497 : vector<2x1xf32> to vector<2x16xf32>
    %2500 = vector.broadcast %2498 : vector<1x16xf32> to vector<2x16xf32>
    %2501 = arith.mulf %2499, %2500 : vector<2x16xf32>
    %2502 = vector.extract_strided_slice %2451 {offsets = [0, 10], sizes = [2, 1], strides = [1, 1]} : vector<2x16xf32> to vector<2x1xf32>
    %2503 = vector.extract_strided_slice %0 {offsets = [10, 0], sizes = [1, 16], strides = [1, 1]} : vector<16x16xf32> to vector<1x16xf32>
    %2504 = vector.broadcast %2502 : vector<2x1xf32> to vector<2x16xf32>
    %2505 = vector.broadcast %2503 : vector<1x16xf32> to vector<2x16xf32>
    %2506 = arith.mulf %2504, %2505 : vector<2x16xf32>
    %2507 = vector.extract_strided_slice %2451 {offsets = [0, 11], sizes = [2, 1], strides = [1, 1]} : vector<2x16xf32> to vector<2x1xf32>
    %2508 = vector.extract_strided_slice %0 {offsets = [11, 0], sizes = [1, 16], strides = [1, 1]} : vector<16x16xf32> to vector<1x16xf32>
    %2509 = vector.broadcast %2507 : vector<2x1xf32> to vector<2x16xf32>
    %2510 = vector.broadcast %2508 : vector<1x16xf32> to vector<2x16xf32>
    %2511 = arith.mulf %2509, %2510 : vector<2x16xf32>
    %2512 = vector.extract_strided_slice %2451 {offsets = [0, 12], sizes = [2, 1], strides = [1, 1]} : vector<2x16xf32> to vector<2x1xf32>
    %2513 = vector.extract_strided_slice %0 {offsets = [12, 0], sizes = [1, 16], strides = [1, 1]} : vector<16x16xf32> to vector<1x16xf32>
    %2514 = vector.broadcast %2512 : vector<2x1xf32> to vector<2x16xf32>
    %2515 = vector.broadcast %2513 : vector<1x16xf32> to vector<2x16xf32>
    %2516 = arith.mulf %2514, %2515 : vector<2x16xf32>
    %2517 = vector.extract_strided_slice %2451 {offsets = [0, 13], sizes = [2, 1], strides = [1, 1]} : vector<2x16xf32> to vector<2x1xf32>
    %2518 = vector.extract_strided_slice %0 {offsets = [13, 0], sizes = [1, 16], strides = [1, 1]} : vector<16x16xf32> to vector<1x16xf32>
    %2519 = vector.broadcast %2517 : vector<2x1xf32> to vector<2x16xf32>
    %2520 = vector.broadcast %2518 : vector<1x16xf32> to vector<2x16xf32>
    %2521 = arith.mulf %2519, %2520 : vector<2x16xf32>
    %2522 = vector.extract_strided_slice %2451 {offsets = [0, 14], sizes = [2, 1], strides = [1, 1]} : vector<2x16xf32> to vector<2x1xf32>
    %2523 = vector.extract_strided_slice %0 {offsets = [14, 0], sizes = [1, 16], strides = [1, 1]} : vector<16x16xf32> to vector<1x16xf32>
    %2524 = vector.broadcast %2522 : vector<2x1xf32> to vector<2x16xf32>
    %2525 = vector.broadcast %2523 : vector<1x16xf32> to vector<2x16xf32>
    %2526 = arith.mulf %2524, %2525 : vector<2x16xf32>
    %2527 = vector.extract_strided_slice %2451 {offsets = [0, 15], sizes = [2, 1], strides = [1, 1]} : vector<2x16xf32> to vector<2x1xf32>
    %2528 = vector.extract_strided_slice %0 {offsets = [15, 0], sizes = [1, 16], strides = [1, 1]} : vector<16x16xf32> to vector<1x16xf32>
    %2529 = vector.broadcast %2527 : vector<2x1xf32> to vector<2x16xf32>
    %2530 = vector.broadcast %2528 : vector<1x16xf32> to vector<2x16xf32>
    %2531 = arith.mulf %2529, %2530 : vector<2x16xf32>
    %2532 = arith.addf %2456, %2461 : vector<2x16xf32>
    %2533 = arith.addf %2466, %2471 : vector<2x16xf32>
    %2534 = arith.addf %2476, %2481 : vector<2x16xf32>
    %2535 = arith.addf %2486, %2491 : vector<2x16xf32>
    %2536 = arith.addf %2496, %2501 : vector<2x16xf32>
    %2537 = arith.addf %2506, %2511 : vector<2x16xf32>
    %2538 = arith.addf %2516, %2521 : vector<2x16xf32>
    %2539 = arith.addf %2526, %2531 : vector<2x16xf32>
    %2540 = arith.addf %2532, %2533 : vector<2x16xf32>
    %2541 = arith.addf %2534, %2535 : vector<2x16xf32>
    %2542 = arith.addf %2536, %2537 : vector<2x16xf32>
    %2543 = arith.addf %2538, %2539 : vector<2x16xf32>
    %2544 = arith.addf %2540, %2541 : vector<2x16xf32>
    %2545 = arith.addf %2542, %2543 : vector<2x16xf32>
    %2546 = arith.addf %2544, %2545 : vector<2x16xf32>
    %2547 = arith.addf %2546, %2445 : vector<2x16xf32>
    %2548 = math.tanh %2547 : vector<2x16xf32>
    %2549 = arith.mulf %2548, %2447 : vector<2x16xf32>
    %2550 = arith.subf %2330, %2439 : vector<2x16xf32>
    %2551 = arith.addf %2550, %2549 : vector<2x16xf32>
    %2552 = arith.addf %2222, %2551 : vector<2x16xf32>
    %c46 = arith.constant 46 : index
    %c0_182 = arith.constant 0 : index
    %c0_183 = arith.constant 0 : index
    %2553 = vector.load %arg1[%c46, %c0_182, %c0_183] : memref<56x2x16xf32, #tpu.memory_space<vmem>>, vector<1x2x16xf32>
    %2554 = vector.shape_cast %2553 : vector<1x2x16xf32> to vector<2x16xf32>
    %c47 = arith.constant 47 : index
    %c0_184 = arith.constant 0 : index
    %c0_185 = arith.constant 0 : index
    %2555 = vector.load %arg1[%c47, %c0_184, %c0_185] : memref<56x2x16xf32, #tpu.memory_space<vmem>>, vector<1x2x16xf32>
    %2556 = vector.shape_cast %2555 : vector<1x2x16xf32> to vector<2x16xf32>
    %cst_186 = arith.constant -1.000000e+00 : f32
    %cst_187 = arith.constant 1.000000e+00 : f32
    %2557 = vector.broadcast %cst_186 : f32 to vector<2x16xf32>
    %2558 = arith.maximumf %2557, %2552 : vector<2x16xf32>
    %2559 = vector.broadcast %cst_187 : f32 to vector<2x16xf32>
    %2560 = arith.minimumf %2559, %2558 : vector<2x16xf32>
    %2561 = vector.extract_strided_slice %2560 {offsets = [0, 0], sizes = [2, 1], strides = [1, 1]} : vector<2x16xf32> to vector<2x1xf32>
    %2562 = vector.extract_strided_slice %0 {offsets = [0, 0], sizes = [1, 16], strides = [1, 1]} : vector<16x16xf32> to vector<1x16xf32>
    %2563 = vector.broadcast %2561 : vector<2x1xf32> to vector<2x16xf32>
    %2564 = vector.broadcast %2562 : vector<1x16xf32> to vector<2x16xf32>
    %2565 = arith.mulf %2563, %2564 : vector<2x16xf32>
    %2566 = vector.extract_strided_slice %2560 {offsets = [0, 1], sizes = [2, 1], strides = [1, 1]} : vector<2x16xf32> to vector<2x1xf32>
    %2567 = vector.extract_strided_slice %0 {offsets = [1, 0], sizes = [1, 16], strides = [1, 1]} : vector<16x16xf32> to vector<1x16xf32>
    %2568 = vector.broadcast %2566 : vector<2x1xf32> to vector<2x16xf32>
    %2569 = vector.broadcast %2567 : vector<1x16xf32> to vector<2x16xf32>
    %2570 = arith.mulf %2568, %2569 : vector<2x16xf32>
    %2571 = vector.extract_strided_slice %2560 {offsets = [0, 2], sizes = [2, 1], strides = [1, 1]} : vector<2x16xf32> to vector<2x1xf32>
    %2572 = vector.extract_strided_slice %0 {offsets = [2, 0], sizes = [1, 16], strides = [1, 1]} : vector<16x16xf32> to vector<1x16xf32>
    %2573 = vector.broadcast %2571 : vector<2x1xf32> to vector<2x16xf32>
    %2574 = vector.broadcast %2572 : vector<1x16xf32> to vector<2x16xf32>
    %2575 = arith.mulf %2573, %2574 : vector<2x16xf32>
    %2576 = vector.extract_strided_slice %2560 {offsets = [0, 3], sizes = [2, 1], strides = [1, 1]} : vector<2x16xf32> to vector<2x1xf32>
    %2577 = vector.extract_strided_slice %0 {offsets = [3, 0], sizes = [1, 16], strides = [1, 1]} : vector<16x16xf32> to vector<1x16xf32>
    %2578 = vector.broadcast %2576 : vector<2x1xf32> to vector<2x16xf32>
    %2579 = vector.broadcast %2577 : vector<1x16xf32> to vector<2x16xf32>
    %2580 = arith.mulf %2578, %2579 : vector<2x16xf32>
    %2581 = vector.extract_strided_slice %2560 {offsets = [0, 4], sizes = [2, 1], strides = [1, 1]} : vector<2x16xf32> to vector<2x1xf32>
    %2582 = vector.extract_strided_slice %0 {offsets = [4, 0], sizes = [1, 16], strides = [1, 1]} : vector<16x16xf32> to vector<1x16xf32>
    %2583 = vector.broadcast %2581 : vector<2x1xf32> to vector<2x16xf32>
    %2584 = vector.broadcast %2582 : vector<1x16xf32> to vector<2x16xf32>
    %2585 = arith.mulf %2583, %2584 : vector<2x16xf32>
    %2586 = vector.extract_strided_slice %2560 {offsets = [0, 5], sizes = [2, 1], strides = [1, 1]} : vector<2x16xf32> to vector<2x1xf32>
    %2587 = vector.extract_strided_slice %0 {offsets = [5, 0], sizes = [1, 16], strides = [1, 1]} : vector<16x16xf32> to vector<1x16xf32>
    %2588 = vector.broadcast %2586 : vector<2x1xf32> to vector<2x16xf32>
    %2589 = vector.broadcast %2587 : vector<1x16xf32> to vector<2x16xf32>
    %2590 = arith.mulf %2588, %2589 : vector<2x16xf32>
    %2591 = vector.extract_strided_slice %2560 {offsets = [0, 6], sizes = [2, 1], strides = [1, 1]} : vector<2x16xf32> to vector<2x1xf32>
    %2592 = vector.extract_strided_slice %0 {offsets = [6, 0], sizes = [1, 16], strides = [1, 1]} : vector<16x16xf32> to vector<1x16xf32>
    %2593 = vector.broadcast %2591 : vector<2x1xf32> to vector<2x16xf32>
    %2594 = vector.broadcast %2592 : vector<1x16xf32> to vector<2x16xf32>
    %2595 = arith.mulf %2593, %2594 : vector<2x16xf32>
    %2596 = vector.extract_strided_slice %2560 {offsets = [0, 7], sizes = [2, 1], strides = [1, 1]} : vector<2x16xf32> to vector<2x1xf32>
    %2597 = vector.extract_strided_slice %0 {offsets = [7, 0], sizes = [1, 16], strides = [1, 1]} : vector<16x16xf32> to vector<1x16xf32>
    %2598 = vector.broadcast %2596 : vector<2x1xf32> to vector<2x16xf32>
    %2599 = vector.broadcast %2597 : vector<1x16xf32> to vector<2x16xf32>
    %2600 = arith.mulf %2598, %2599 : vector<2x16xf32>
    %2601 = vector.extract_strided_slice %2560 {offsets = [0, 8], sizes = [2, 1], strides = [1, 1]} : vector<2x16xf32> to vector<2x1xf32>
    %2602 = vector.extract_strided_slice %0 {offsets = [8, 0], sizes = [1, 16], strides = [1, 1]} : vector<16x16xf32> to vector<1x16xf32>
    %2603 = vector.broadcast %2601 : vector<2x1xf32> to vector<2x16xf32>
    %2604 = vector.broadcast %2602 : vector<1x16xf32> to vector<2x16xf32>
    %2605 = arith.mulf %2603, %2604 : vector<2x16xf32>
    %2606 = vector.extract_strided_slice %2560 {offsets = [0, 9], sizes = [2, 1], strides = [1, 1]} : vector<2x16xf32> to vector<2x1xf32>
    %2607 = vector.extract_strided_slice %0 {offsets = [9, 0], sizes = [1, 16], strides = [1, 1]} : vector<16x16xf32> to vector<1x16xf32>
    %2608 = vector.broadcast %2606 : vector<2x1xf32> to vector<2x16xf32>
    %2609 = vector.broadcast %2607 : vector<1x16xf32> to vector<2x16xf32>
    %2610 = arith.mulf %2608, %2609 : vector<2x16xf32>
    %2611 = vector.extract_strided_slice %2560 {offsets = [0, 10], sizes = [2, 1], strides = [1, 1]} : vector<2x16xf32> to vector<2x1xf32>
    %2612 = vector.extract_strided_slice %0 {offsets = [10, 0], sizes = [1, 16], strides = [1, 1]} : vector<16x16xf32> to vector<1x16xf32>
    %2613 = vector.broadcast %2611 : vector<2x1xf32> to vector<2x16xf32>
    %2614 = vector.broadcast %2612 : vector<1x16xf32> to vector<2x16xf32>
    %2615 = arith.mulf %2613, %2614 : vector<2x16xf32>
    %2616 = vector.extract_strided_slice %2560 {offsets = [0, 11], sizes = [2, 1], strides = [1, 1]} : vector<2x16xf32> to vector<2x1xf32>
    %2617 = vector.extract_strided_slice %0 {offsets = [11, 0], sizes = [1, 16], strides = [1, 1]} : vector<16x16xf32> to vector<1x16xf32>
    %2618 = vector.broadcast %2616 : vector<2x1xf32> to vector<2x16xf32>
    %2619 = vector.broadcast %2617 : vector<1x16xf32> to vector<2x16xf32>
    %2620 = arith.mulf %2618, %2619 : vector<2x16xf32>
    %2621 = vector.extract_strided_slice %2560 {offsets = [0, 12], sizes = [2, 1], strides = [1, 1]} : vector<2x16xf32> to vector<2x1xf32>
    %2622 = vector.extract_strided_slice %0 {offsets = [12, 0], sizes = [1, 16], strides = [1, 1]} : vector<16x16xf32> to vector<1x16xf32>
    %2623 = vector.broadcast %2621 : vector<2x1xf32> to vector<2x16xf32>
    %2624 = vector.broadcast %2622 : vector<1x16xf32> to vector<2x16xf32>
    %2625 = arith.mulf %2623, %2624 : vector<2x16xf32>
    %2626 = vector.extract_strided_slice %2560 {offsets = [0, 13], sizes = [2, 1], strides = [1, 1]} : vector<2x16xf32> to vector<2x1xf32>
    %2627 = vector.extract_strided_slice %0 {offsets = [13, 0], sizes = [1, 16], strides = [1, 1]} : vector<16x16xf32> to vector<1x16xf32>
    %2628 = vector.broadcast %2626 : vector<2x1xf32> to vector<2x16xf32>
    %2629 = vector.broadcast %2627 : vector<1x16xf32> to vector<2x16xf32>
    %2630 = arith.mulf %2628, %2629 : vector<2x16xf32>
    %2631 = vector.extract_strided_slice %2560 {offsets = [0, 14], sizes = [2, 1], strides = [1, 1]} : vector<2x16xf32> to vector<2x1xf32>
    %2632 = vector.extract_strided_slice %0 {offsets = [14, 0], sizes = [1, 16], strides = [1, 1]} : vector<16x16xf32> to vector<1x16xf32>
    %2633 = vector.broadcast %2631 : vector<2x1xf32> to vector<2x16xf32>
    %2634 = vector.broadcast %2632 : vector<1x16xf32> to vector<2x16xf32>
    %2635 = arith.mulf %2633, %2634 : vector<2x16xf32>
    %2636 = vector.extract_strided_slice %2560 {offsets = [0, 15], sizes = [2, 1], strides = [1, 1]} : vector<2x16xf32> to vector<2x1xf32>
    %2637 = vector.extract_strided_slice %0 {offsets = [15, 0], sizes = [1, 16], strides = [1, 1]} : vector<16x16xf32> to vector<1x16xf32>
    %2638 = vector.broadcast %2636 : vector<2x1xf32> to vector<2x16xf32>
    %2639 = vector.broadcast %2637 : vector<1x16xf32> to vector<2x16xf32>
    %2640 = arith.mulf %2638, %2639 : vector<2x16xf32>
    %2641 = arith.addf %2565, %2570 : vector<2x16xf32>
    %2642 = arith.addf %2575, %2580 : vector<2x16xf32>
    %2643 = arith.addf %2585, %2590 : vector<2x16xf32>
    %2644 = arith.addf %2595, %2600 : vector<2x16xf32>
    %2645 = arith.addf %2605, %2610 : vector<2x16xf32>
    %2646 = arith.addf %2615, %2620 : vector<2x16xf32>
    %2647 = arith.addf %2625, %2630 : vector<2x16xf32>
    %2648 = arith.addf %2635, %2640 : vector<2x16xf32>
    %2649 = arith.addf %2641, %2642 : vector<2x16xf32>
    %2650 = arith.addf %2643, %2644 : vector<2x16xf32>
    %2651 = arith.addf %2645, %2646 : vector<2x16xf32>
    %2652 = arith.addf %2647, %2648 : vector<2x16xf32>
    %2653 = arith.addf %2649, %2650 : vector<2x16xf32>
    %2654 = arith.addf %2651, %2652 : vector<2x16xf32>
    %2655 = arith.addf %2653, %2654 : vector<2x16xf32>
    %2656 = arith.addf %2655, %2554 : vector<2x16xf32>
    %2657 = math.tanh %2656 : vector<2x16xf32>
    %2658 = arith.mulf %2657, %2556 : vector<2x16xf32>
    %2659 = arith.addf %2439, %2549 : vector<2x16xf32>
    %cst_188 = arith.constant 3.000000e+00 : f32
    %2660 = vector.broadcast %cst_188 : f32 to vector<2x16xf32>
    %2661 = arith.mulf %2660, %2659 : vector<2x16xf32>
    %2662 = arith.addf %2330, %2661 : vector<2x16xf32>
    %2663 = arith.addf %2662, %2658 : vector<2x16xf32>
    %cst_189 = arith.constant 1.250000e-01 : f32
    %2664 = vector.broadcast %cst_189 : f32 to vector<2x16xf32>
    %2665 = arith.mulf %2663, %2664 : vector<2x16xf32>
    %2666 = arith.addf %2222, %2665 : vector<2x16xf32>
    %2667 = vector.shape_cast %2666 : vector<2x16xf32> to vector<2x1x16xf32>
    %c0_190 = arith.constant 0 : index
    %c6_191 = arith.constant 6 : index
    %c0_192 = arith.constant 0 : index
    %2668 = vector.load %arg6[%c0_190, %c6_191, %c0_192] : memref<2x8x16xf32, #tpu.memory_space<vmem>>, vector<2x1x16xf32>
    tpu.vector_store %arg6[%c0_190, %c6_191, %c0_192], %2667 {strides = array<i32>} : memref<2x8x16xf32, #tpu.memory_space<vmem>>, vector<2x1x16xf32>,
    %c48 = arith.constant 48 : index
    %c0_193 = arith.constant 0 : index
    %c0_194 = arith.constant 0 : index
    %2669 = vector.load %arg1[%c48, %c0_193, %c0_194] : memref<56x2x16xf32, #tpu.memory_space<vmem>>, vector<1x2x16xf32>
    %2670 = vector.shape_cast %2669 : vector<1x2x16xf32> to vector<2x16xf32>
    %c49 = arith.constant 49 : index
    %c0_195 = arith.constant 0 : index
    %c0_196 = arith.constant 0 : index
    %2671 = vector.load %arg1[%c49, %c0_195, %c0_196] : memref<56x2x16xf32, #tpu.memory_space<vmem>>, vector<1x2x16xf32>
    %2672 = vector.shape_cast %2671 : vector<1x2x16xf32> to vector<2x16xf32>
    %cst_197 = arith.constant -1.000000e+00 : f32
    %cst_198 = arith.constant 1.000000e+00 : f32
    %2673 = vector.broadcast %cst_197 : f32 to vector<2x16xf32>
    %2674 = arith.maximumf %2673, %2666 : vector<2x16xf32>
    %2675 = vector.broadcast %cst_198 : f32 to vector<2x16xf32>
    %2676 = arith.minimumf %2675, %2674 : vector<2x16xf32>
    %2677 = vector.extract_strided_slice %2676 {offsets = [0, 0], sizes = [2, 1], strides = [1, 1]} : vector<2x16xf32> to vector<2x1xf32>
    %2678 = vector.extract_strided_slice %0 {offsets = [0, 0], sizes = [1, 16], strides = [1, 1]} : vector<16x16xf32> to vector<1x16xf32>
    %2679 = vector.broadcast %2677 : vector<2x1xf32> to vector<2x16xf32>
    %2680 = vector.broadcast %2678 : vector<1x16xf32> to vector<2x16xf32>
    %2681 = arith.mulf %2679, %2680 : vector<2x16xf32>
    %2682 = vector.extract_strided_slice %2676 {offsets = [0, 1], sizes = [2, 1], strides = [1, 1]} : vector<2x16xf32> to vector<2x1xf32>
    %2683 = vector.extract_strided_slice %0 {offsets = [1, 0], sizes = [1, 16], strides = [1, 1]} : vector<16x16xf32> to vector<1x16xf32>
    %2684 = vector.broadcast %2682 : vector<2x1xf32> to vector<2x16xf32>
    %2685 = vector.broadcast %2683 : vector<1x16xf32> to vector<2x16xf32>
    %2686 = arith.mulf %2684, %2685 : vector<2x16xf32>
    %2687 = vector.extract_strided_slice %2676 {offsets = [0, 2], sizes = [2, 1], strides = [1, 1]} : vector<2x16xf32> to vector<2x1xf32>
    %2688 = vector.extract_strided_slice %0 {offsets = [2, 0], sizes = [1, 16], strides = [1, 1]} : vector<16x16xf32> to vector<1x16xf32>
    %2689 = vector.broadcast %2687 : vector<2x1xf32> to vector<2x16xf32>
    %2690 = vector.broadcast %2688 : vector<1x16xf32> to vector<2x16xf32>
    %2691 = arith.mulf %2689, %2690 : vector<2x16xf32>
    %2692 = vector.extract_strided_slice %2676 {offsets = [0, 3], sizes = [2, 1], strides = [1, 1]} : vector<2x16xf32> to vector<2x1xf32>
    %2693 = vector.extract_strided_slice %0 {offsets = [3, 0], sizes = [1, 16], strides = [1, 1]} : vector<16x16xf32> to vector<1x16xf32>
    %2694 = vector.broadcast %2692 : vector<2x1xf32> to vector<2x16xf32>
    %2695 = vector.broadcast %2693 : vector<1x16xf32> to vector<2x16xf32>
    %2696 = arith.mulf %2694, %2695 : vector<2x16xf32>
    %2697 = vector.extract_strided_slice %2676 {offsets = [0, 4], sizes = [2, 1], strides = [1, 1]} : vector<2x16xf32> to vector<2x1xf32>
    %2698 = vector.extract_strided_slice %0 {offsets = [4, 0], sizes = [1, 16], strides = [1, 1]} : vector<16x16xf32> to vector<1x16xf32>
    %2699 = vector.broadcast %2697 : vector<2x1xf32> to vector<2x16xf32>
    %2700 = vector.broadcast %2698 : vector<1x16xf32> to vector<2x16xf32>
    %2701 = arith.mulf %2699, %2700 : vector<2x16xf32>
    %2702 = vector.extract_strided_slice %2676 {offsets = [0, 5], sizes = [2, 1], strides = [1, 1]} : vector<2x16xf32> to vector<2x1xf32>
    %2703 = vector.extract_strided_slice %0 {offsets = [5, 0], sizes = [1, 16], strides = [1, 1]} : vector<16x16xf32> to vector<1x16xf32>
    %2704 = vector.broadcast %2702 : vector<2x1xf32> to vector<2x16xf32>
    %2705 = vector.broadcast %2703 : vector<1x16xf32> to vector<2x16xf32>
    %2706 = arith.mulf %2704, %2705 : vector<2x16xf32>
    %2707 = vector.extract_strided_slice %2676 {offsets = [0, 6], sizes = [2, 1], strides = [1, 1]} : vector<2x16xf32> to vector<2x1xf32>
    %2708 = vector.extract_strided_slice %0 {offsets = [6, 0], sizes = [1, 16], strides = [1, 1]} : vector<16x16xf32> to vector<1x16xf32>
    %2709 = vector.broadcast %2707 : vector<2x1xf32> to vector<2x16xf32>
    %2710 = vector.broadcast %2708 : vector<1x16xf32> to vector<2x16xf32>
    %2711 = arith.mulf %2709, %2710 : vector<2x16xf32>
    %2712 = vector.extract_strided_slice %2676 {offsets = [0, 7], sizes = [2, 1], strides = [1, 1]} : vector<2x16xf32> to vector<2x1xf32>
    %2713 = vector.extract_strided_slice %0 {offsets = [7, 0], sizes = [1, 16], strides = [1, 1]} : vector<16x16xf32> to vector<1x16xf32>
    %2714 = vector.broadcast %2712 : vector<2x1xf32> to vector<2x16xf32>
    %2715 = vector.broadcast %2713 : vector<1x16xf32> to vector<2x16xf32>
    %2716 = arith.mulf %2714, %2715 : vector<2x16xf32>
    %2717 = vector.extract_strided_slice %2676 {offsets = [0, 8], sizes = [2, 1], strides = [1, 1]} : vector<2x16xf32> to vector<2x1xf32>
    %2718 = vector.extract_strided_slice %0 {offsets = [8, 0], sizes = [1, 16], strides = [1, 1]} : vector<16x16xf32> to vector<1x16xf32>
    %2719 = vector.broadcast %2717 : vector<2x1xf32> to vector<2x16xf32>
    %2720 = vector.broadcast %2718 : vector<1x16xf32> to vector<2x16xf32>
    %2721 = arith.mulf %2719, %2720 : vector<2x16xf32>
    %2722 = vector.extract_strided_slice %2676 {offsets = [0, 9], sizes = [2, 1], strides = [1, 1]} : vector<2x16xf32> to vector<2x1xf32>
    %2723 = vector.extract_strided_slice %0 {offsets = [9, 0], sizes = [1, 16], strides = [1, 1]} : vector<16x16xf32> to vector<1x16xf32>
    %2724 = vector.broadcast %2722 : vector<2x1xf32> to vector<2x16xf32>
    %2725 = vector.broadcast %2723 : vector<1x16xf32> to vector<2x16xf32>
    %2726 = arith.mulf %2724, %2725 : vector<2x16xf32>
    %2727 = vector.extract_strided_slice %2676 {offsets = [0, 10], sizes = [2, 1], strides = [1, 1]} : vector<2x16xf32> to vector<2x1xf32>
    %2728 = vector.extract_strided_slice %0 {offsets = [10, 0], sizes = [1, 16], strides = [1, 1]} : vector<16x16xf32> to vector<1x16xf32>
    %2729 = vector.broadcast %2727 : vector<2x1xf32> to vector<2x16xf32>
    %2730 = vector.broadcast %2728 : vector<1x16xf32> to vector<2x16xf32>
    %2731 = arith.mulf %2729, %2730 : vector<2x16xf32>
    %2732 = vector.extract_strided_slice %2676 {offsets = [0, 11], sizes = [2, 1], strides = [1, 1]} : vector<2x16xf32> to vector<2x1xf32>
    %2733 = vector.extract_strided_slice %0 {offsets = [11, 0], sizes = [1, 16], strides = [1, 1]} : vector<16x16xf32> to vector<1x16xf32>
    %2734 = vector.broadcast %2732 : vector<2x1xf32> to vector<2x16xf32>
    %2735 = vector.broadcast %2733 : vector<1x16xf32> to vector<2x16xf32>
    %2736 = arith.mulf %2734, %2735 : vector<2x16xf32>
    %2737 = vector.extract_strided_slice %2676 {offsets = [0, 12], sizes = [2, 1], strides = [1, 1]} : vector<2x16xf32> to vector<2x1xf32>
    %2738 = vector.extract_strided_slice %0 {offsets = [12, 0], sizes = [1, 16], strides = [1, 1]} : vector<16x16xf32> to vector<1x16xf32>
    %2739 = vector.broadcast %2737 : vector<2x1xf32> to vector<2x16xf32>
    %2740 = vector.broadcast %2738 : vector<1x16xf32> to vector<2x16xf32>
    %2741 = arith.mulf %2739, %2740 : vector<2x16xf32>
    %2742 = vector.extract_strided_slice %2676 {offsets = [0, 13], sizes = [2, 1], strides = [1, 1]} : vector<2x16xf32> to vector<2x1xf32>
    %2743 = vector.extract_strided_slice %0 {offsets = [13, 0], sizes = [1, 16], strides = [1, 1]} : vector<16x16xf32> to vector<1x16xf32>
    %2744 = vector.broadcast %2742 : vector<2x1xf32> to vector<2x16xf32>
    %2745 = vector.broadcast %2743 : vector<1x16xf32> to vector<2x16xf32>
    %2746 = arith.mulf %2744, %2745 : vector<2x16xf32>
    %2747 = vector.extract_strided_slice %2676 {offsets = [0, 14], sizes = [2, 1], strides = [1, 1]} : vector<2x16xf32> to vector<2x1xf32>
    %2748 = vector.extract_strided_slice %0 {offsets = [14, 0], sizes = [1, 16], strides = [1, 1]} : vector<16x16xf32> to vector<1x16xf32>
    %2749 = vector.broadcast %2747 : vector<2x1xf32> to vector<2x16xf32>
    %2750 = vector.broadcast %2748 : vector<1x16xf32> to vector<2x16xf32>
    %2751 = arith.mulf %2749, %2750 : vector<2x16xf32>
    %2752 = vector.extract_strided_slice %2676 {offsets = [0, 15], sizes = [2, 1], strides = [1, 1]} : vector<2x16xf32> to vector<2x1xf32>
    %2753 = vector.extract_strided_slice %0 {offsets = [15, 0], sizes = [1, 16], strides = [1, 1]} : vector<16x16xf32> to vector<1x16xf32>
    %2754 = vector.broadcast %2752 : vector<2x1xf32> to vector<2x16xf32>
    %2755 = vector.broadcast %2753 : vector<1x16xf32> to vector<2x16xf32>
    %2756 = arith.mulf %2754, %2755 : vector<2x16xf32>
    %2757 = arith.addf %2681, %2686 : vector<2x16xf32>
    %2758 = arith.addf %2691, %2696 : vector<2x16xf32>
    %2759 = arith.addf %2701, %2706 : vector<2x16xf32>
    %2760 = arith.addf %2711, %2716 : vector<2x16xf32>
    %2761 = arith.addf %2721, %2726 : vector<2x16xf32>
    %2762 = arith.addf %2731, %2736 : vector<2x16xf32>
    %2763 = arith.addf %2741, %2746 : vector<2x16xf32>
    %2764 = arith.addf %2751, %2756 : vector<2x16xf32>
    %2765 = arith.addf %2757, %2758 : vector<2x16xf32>
    %2766 = arith.addf %2759, %2760 : vector<2x16xf32>
    %2767 = arith.addf %2761, %2762 : vector<2x16xf32>
    %2768 = arith.addf %2763, %2764 : vector<2x16xf32>
    %2769 = arith.addf %2765, %2766 : vector<2x16xf32>
    %2770 = arith.addf %2767, %2768 : vector<2x16xf32>
    %2771 = arith.addf %2769, %2770 : vector<2x16xf32>
    %2772 = arith.addf %2771, %2670 : vector<2x16xf32>
    %2773 = math.tanh %2772 : vector<2x16xf32>
    %2774 = arith.mulf %2773, %2672 : vector<2x16xf32>
    %cst_199 = arith.constant 0.333333343 : f32
    %2775 = vector.broadcast %cst_199 : f32 to vector<2x16xf32>
    %2776 = arith.mulf %2774, %2775 : vector<2x16xf32>
    %2777 = arith.addf %2666, %2776 : vector<2x16xf32>
    %c50 = arith.constant 50 : index
    %c0_200 = arith.constant 0 : index
    %c0_201 = arith.constant 0 : index
    %2778 = vector.load %arg1[%c50, %c0_200, %c0_201] : memref<56x2x16xf32, #tpu.memory_space<vmem>>, vector<1x2x16xf32>
    %2779 = vector.shape_cast %2778 : vector<1x2x16xf32> to vector<2x16xf32>
    %c51 = arith.constant 51 : index
    %c0_202 = arith.constant 0 : index
    %c0_203 = arith.constant 0 : index
    %2780 = vector.load %arg1[%c51, %c0_202, %c0_203] : memref<56x2x16xf32, #tpu.memory_space<vmem>>, vector<1x2x16xf32>
    %2781 = vector.shape_cast %2780 : vector<1x2x16xf32> to vector<2x16xf32>
    %cst_204 = arith.constant -1.000000e+00 : f32
    %cst_205 = arith.constant 1.000000e+00 : f32
    %2782 = vector.broadcast %cst_204 : f32 to vector<2x16xf32>
    %2783 = arith.maximumf %2782, %2777 : vector<2x16xf32>
    %2784 = vector.broadcast %cst_205 : f32 to vector<2x16xf32>
    %2785 = arith.minimumf %2784, %2783 : vector<2x16xf32>
    %2786 = vector.extract_strided_slice %2785 {offsets = [0, 0], sizes = [2, 1], strides = [1, 1]} : vector<2x16xf32> to vector<2x1xf32>
    %2787 = vector.extract_strided_slice %0 {offsets = [0, 0], sizes = [1, 16], strides = [1, 1]} : vector<16x16xf32> to vector<1x16xf32>
    %2788 = vector.broadcast %2786 : vector<2x1xf32> to vector<2x16xf32>
    %2789 = vector.broadcast %2787 : vector<1x16xf32> to vector<2x16xf32>
    %2790 = arith.mulf %2788, %2789 : vector<2x16xf32>
    %2791 = vector.extract_strided_slice %2785 {offsets = [0, 1], sizes = [2, 1], strides = [1, 1]} : vector<2x16xf32> to vector<2x1xf32>
    %2792 = vector.extract_strided_slice %0 {offsets = [1, 0], sizes = [1, 16], strides = [1, 1]} : vector<16x16xf32> to vector<1x16xf32>
    %2793 = vector.broadcast %2791 : vector<2x1xf32> to vector<2x16xf32>
    %2794 = vector.broadcast %2792 : vector<1x16xf32> to vector<2x16xf32>
    %2795 = arith.mulf %2793, %2794 : vector<2x16xf32>
    %2796 = vector.extract_strided_slice %2785 {offsets = [0, 2], sizes = [2, 1], strides = [1, 1]} : vector<2x16xf32> to vector<2x1xf32>
    %2797 = vector.extract_strided_slice %0 {offsets = [2, 0], sizes = [1, 16], strides = [1, 1]} : vector<16x16xf32> to vector<1x16xf32>
    %2798 = vector.broadcast %2796 : vector<2x1xf32> to vector<2x16xf32>
    %2799 = vector.broadcast %2797 : vector<1x16xf32> to vector<2x16xf32>
    %2800 = arith.mulf %2798, %2799 : vector<2x16xf32>
    %2801 = vector.extract_strided_slice %2785 {offsets = [0, 3], sizes = [2, 1], strides = [1, 1]} : vector<2x16xf32> to vector<2x1xf32>
    %2802 = vector.extract_strided_slice %0 {offsets = [3, 0], sizes = [1, 16], strides = [1, 1]} : vector<16x16xf32> to vector<1x16xf32>
    %2803 = vector.broadcast %2801 : vector<2x1xf32> to vector<2x16xf32>
    %2804 = vector.broadcast %2802 : vector<1x16xf32> to vector<2x16xf32>
    %2805 = arith.mulf %2803, %2804 : vector<2x16xf32>
    %2806 = vector.extract_strided_slice %2785 {offsets = [0, 4], sizes = [2, 1], strides = [1, 1]} : vector<2x16xf32> to vector<2x1xf32>
    %2807 = vector.extract_strided_slice %0 {offsets = [4, 0], sizes = [1, 16], strides = [1, 1]} : vector<16x16xf32> to vector<1x16xf32>
    %2808 = vector.broadcast %2806 : vector<2x1xf32> to vector<2x16xf32>
    %2809 = vector.broadcast %2807 : vector<1x16xf32> to vector<2x16xf32>
    %2810 = arith.mulf %2808, %2809 : vector<2x16xf32>
    %2811 = vector.extract_strided_slice %2785 {offsets = [0, 5], sizes = [2, 1], strides = [1, 1]} : vector<2x16xf32> to vector<2x1xf32>
    %2812 = vector.extract_strided_slice %0 {offsets = [5, 0], sizes = [1, 16], strides = [1, 1]} : vector<16x16xf32> to vector<1x16xf32>
    %2813 = vector.broadcast %2811 : vector<2x1xf32> to vector<2x16xf32>
    %2814 = vector.broadcast %2812 : vector<1x16xf32> to vector<2x16xf32>
    %2815 = arith.mulf %2813, %2814 : vector<2x16xf32>
    %2816 = vector.extract_strided_slice %2785 {offsets = [0, 6], sizes = [2, 1], strides = [1, 1]} : vector<2x16xf32> to vector<2x1xf32>
    %2817 = vector.extract_strided_slice %0 {offsets = [6, 0], sizes = [1, 16], strides = [1, 1]} : vector<16x16xf32> to vector<1x16xf32>
    %2818 = vector.broadcast %2816 : vector<2x1xf32> to vector<2x16xf32>
    %2819 = vector.broadcast %2817 : vector<1x16xf32> to vector<2x16xf32>
    %2820 = arith.mulf %2818, %2819 : vector<2x16xf32>
    %2821 = vector.extract_strided_slice %2785 {offsets = [0, 7], sizes = [2, 1], strides = [1, 1]} : vector<2x16xf32> to vector<2x1xf32>
    %2822 = vector.extract_strided_slice %0 {offsets = [7, 0], sizes = [1, 16], strides = [1, 1]} : vector<16x16xf32> to vector<1x16xf32>
    %2823 = vector.broadcast %2821 : vector<2x1xf32> to vector<2x16xf32>
    %2824 = vector.broadcast %2822 : vector<1x16xf32> to vector<2x16xf32>
    %2825 = arith.mulf %2823, %2824 : vector<2x16xf32>
    %2826 = vector.extract_strided_slice %2785 {offsets = [0, 8], sizes = [2, 1], strides = [1, 1]} : vector<2x16xf32> to vector<2x1xf32>
    %2827 = vector.extract_strided_slice %0 {offsets = [8, 0], sizes = [1, 16], strides = [1, 1]} : vector<16x16xf32> to vector<1x16xf32>
    %2828 = vector.broadcast %2826 : vector<2x1xf32> to vector<2x16xf32>
    %2829 = vector.broadcast %2827 : vector<1x16xf32> to vector<2x16xf32>
    %2830 = arith.mulf %2828, %2829 : vector<2x16xf32>
    %2831 = vector.extract_strided_slice %2785 {offsets = [0, 9], sizes = [2, 1], strides = [1, 1]} : vector<2x16xf32> to vector<2x1xf32>
    %2832 = vector.extract_strided_slice %0 {offsets = [9, 0], sizes = [1, 16], strides = [1, 1]} : vector<16x16xf32> to vector<1x16xf32>
    %2833 = vector.broadcast %2831 : vector<2x1xf32> to vector<2x16xf32>
    %2834 = vector.broadcast %2832 : vector<1x16xf32> to vector<2x16xf32>
    %2835 = arith.mulf %2833, %2834 : vector<2x16xf32>
    %2836 = vector.extract_strided_slice %2785 {offsets = [0, 10], sizes = [2, 1], strides = [1, 1]} : vector<2x16xf32> to vector<2x1xf32>
    %2837 = vector.extract_strided_slice %0 {offsets = [10, 0], sizes = [1, 16], strides = [1, 1]} : vector<16x16xf32> to vector<1x16xf32>
    %2838 = vector.broadcast %2836 : vector<2x1xf32> to vector<2x16xf32>
    %2839 = vector.broadcast %2837 : vector<1x16xf32> to vector<2x16xf32>
    %2840 = arith.mulf %2838, %2839 : vector<2x16xf32>
    %2841 = vector.extract_strided_slice %2785 {offsets = [0, 11], sizes = [2, 1], strides = [1, 1]} : vector<2x16xf32> to vector<2x1xf32>
    %2842 = vector.extract_strided_slice %0 {offsets = [11, 0], sizes = [1, 16], strides = [1, 1]} : vector<16x16xf32> to vector<1x16xf32>
    %2843 = vector.broadcast %2841 : vector<2x1xf32> to vector<2x16xf32>
    %2844 = vector.broadcast %2842 : vector<1x16xf32> to vector<2x16xf32>
    %2845 = arith.mulf %2843, %2844 : vector<2x16xf32>
    %2846 = vector.extract_strided_slice %2785 {offsets = [0, 12], sizes = [2, 1], strides = [1, 1]} : vector<2x16xf32> to vector<2x1xf32>
    %2847 = vector.extract_strided_slice %0 {offsets = [12, 0], sizes = [1, 16], strides = [1, 1]} : vector<16x16xf32> to vector<1x16xf32>
    %2848 = vector.broadcast %2846 : vector<2x1xf32> to vector<2x16xf32>
    %2849 = vector.broadcast %2847 : vector<1x16xf32> to vector<2x16xf32>
    %2850 = arith.mulf %2848, %2849 : vector<2x16xf32>
    %2851 = vector.extract_strided_slice %2785 {offsets = [0, 13], sizes = [2, 1], strides = [1, 1]} : vector<2x16xf32> to vector<2x1xf32>
    %2852 = vector.extract_strided_slice %0 {offsets = [13, 0], sizes = [1, 16], strides = [1, 1]} : vector<16x16xf32> to vector<1x16xf32>
    %2853 = vector.broadcast %2851 : vector<2x1xf32> to vector<2x16xf32>
    %2854 = vector.broadcast %2852 : vector<1x16xf32> to vector<2x16xf32>
    %2855 = arith.mulf %2853, %2854 : vector<2x16xf32>
    %2856 = vector.extract_strided_slice %2785 {offsets = [0, 14], sizes = [2, 1], strides = [1, 1]} : vector<2x16xf32> to vector<2x1xf32>
    %2857 = vector.extract_strided_slice %0 {offsets = [14, 0], sizes = [1, 16], strides = [1, 1]} : vector<16x16xf32> to vector<1x16xf32>
    %2858 = vector.broadcast %2856 : vector<2x1xf32> to vector<2x16xf32>
    %2859 = vector.broadcast %2857 : vector<1x16xf32> to vector<2x16xf32>
    %2860 = arith.mulf %2858, %2859 : vector<2x16xf32>
    %2861 = vector.extract_strided_slice %2785 {offsets = [0, 15], sizes = [2, 1], strides = [1, 1]} : vector<2x16xf32> to vector<2x1xf32>
    %2862 = vector.extract_strided_slice %0 {offsets = [15, 0], sizes = [1, 16], strides = [1, 1]} : vector<16x16xf32> to vector<1x16xf32>
    %2863 = vector.broadcast %2861 : vector<2x1xf32> to vector<2x16xf32>
    %2864 = vector.broadcast %2862 : vector<1x16xf32> to vector<2x16xf32>
    %2865 = arith.mulf %2863, %2864 : vector<2x16xf32>
    %2866 = arith.addf %2790, %2795 : vector<2x16xf32>
    %2867 = arith.addf %2800, %2805 : vector<2x16xf32>
    %2868 = arith.addf %2810, %2815 : vector<2x16xf32>
    %2869 = arith.addf %2820, %2825 : vector<2x16xf32>
    %2870 = arith.addf %2830, %2835 : vector<2x16xf32>
    %2871 = arith.addf %2840, %2845 : vector<2x16xf32>
    %2872 = arith.addf %2850, %2855 : vector<2x16xf32>
    %2873 = arith.addf %2860, %2865 : vector<2x16xf32>
    %2874 = arith.addf %2866, %2867 : vector<2x16xf32>
    %2875 = arith.addf %2868, %2869 : vector<2x16xf32>
    %2876 = arith.addf %2870, %2871 : vector<2x16xf32>
    %2877 = arith.addf %2872, %2873 : vector<2x16xf32>
    %2878 = arith.addf %2874, %2875 : vector<2x16xf32>
    %2879 = arith.addf %2876, %2877 : vector<2x16xf32>
    %2880 = arith.addf %2878, %2879 : vector<2x16xf32>
    %2881 = arith.addf %2880, %2779 : vector<2x16xf32>
    %2882 = math.tanh %2881 : vector<2x16xf32>
    %2883 = arith.mulf %2882, %2781 : vector<2x16xf32>
    %cst_206 = arith.constant 0.333333343 : f32
    %2884 = vector.broadcast %cst_206 : f32 to vector<2x16xf32>
    %2885 = arith.mulf %2774, %2884 : vector<2x16xf32>
    %2886 = arith.subf %2883, %2885 : vector<2x16xf32>
    %2887 = arith.addf %2666, %2886 : vector<2x16xf32>
    %c52 = arith.constant 52 : index
    %c0_207 = arith.constant 0 : index
    %c0_208 = arith.constant 0 : index
    %2888 = vector.load %arg1[%c52, %c0_207, %c0_208] : memref<56x2x16xf32, #tpu.memory_space<vmem>>, vector<1x2x16xf32>
    %2889 = vector.shape_cast %2888 : vector<1x2x16xf32> to vector<2x16xf32>
    %c53 = arith.constant 53 : index
    %c0_209 = arith.constant 0 : index
    %c0_210 = arith.constant 0 : index
    %2890 = vector.load %arg1[%c53, %c0_209, %c0_210] : memref<56x2x16xf32, #tpu.memory_space<vmem>>, vector<1x2x16xf32>
    %2891 = vector.shape_cast %2890 : vector<1x2x16xf32> to vector<2x16xf32>
    %cst_211 = arith.constant -1.000000e+00 : f32
    %cst_212 = arith.constant 1.000000e+00 : f32
    %2892 = vector.broadcast %cst_211 : f32 to vector<2x16xf32>
    %2893 = arith.maximumf %2892, %2887 : vector<2x16xf32>
    %2894 = vector.broadcast %cst_212 : f32 to vector<2x16xf32>
    %2895 = arith.minimumf %2894, %2893 : vector<2x16xf32>
    %2896 = vector.extract_strided_slice %2895 {offsets = [0, 0], sizes = [2, 1], strides = [1, 1]} : vector<2x16xf32> to vector<2x1xf32>
    %2897 = vector.extract_strided_slice %0 {offsets = [0, 0], sizes = [1, 16], strides = [1, 1]} : vector<16x16xf32> to vector<1x16xf32>
    %2898 = vector.broadcast %2896 : vector<2x1xf32> to vector<2x16xf32>
    %2899 = vector.broadcast %2897 : vector<1x16xf32> to vector<2x16xf32>
    %2900 = arith.mulf %2898, %2899 : vector<2x16xf32>
    %2901 = vector.extract_strided_slice %2895 {offsets = [0, 1], sizes = [2, 1], strides = [1, 1]} : vector<2x16xf32> to vector<2x1xf32>
    %2902 = vector.extract_strided_slice %0 {offsets = [1, 0], sizes = [1, 16], strides = [1, 1]} : vector<16x16xf32> to vector<1x16xf32>
    %2903 = vector.broadcast %2901 : vector<2x1xf32> to vector<2x16xf32>
    %2904 = vector.broadcast %2902 : vector<1x16xf32> to vector<2x16xf32>
    %2905 = arith.mulf %2903, %2904 : vector<2x16xf32>
    %2906 = vector.extract_strided_slice %2895 {offsets = [0, 2], sizes = [2, 1], strides = [1, 1]} : vector<2x16xf32> to vector<2x1xf32>
    %2907 = vector.extract_strided_slice %0 {offsets = [2, 0], sizes = [1, 16], strides = [1, 1]} : vector<16x16xf32> to vector<1x16xf32>
    %2908 = vector.broadcast %2906 : vector<2x1xf32> to vector<2x16xf32>
    %2909 = vector.broadcast %2907 : vector<1x16xf32> to vector<2x16xf32>
    %2910 = arith.mulf %2908, %2909 : vector<2x16xf32>
    %2911 = vector.extract_strided_slice %2895 {offsets = [0, 3], sizes = [2, 1], strides = [1, 1]} : vector<2x16xf32> to vector<2x1xf32>
    %2912 = vector.extract_strided_slice %0 {offsets = [3, 0], sizes = [1, 16], strides = [1, 1]} : vector<16x16xf32> to vector<1x16xf32>
    %2913 = vector.broadcast %2911 : vector<2x1xf32> to vector<2x16xf32>
    %2914 = vector.broadcast %2912 : vector<1x16xf32> to vector<2x16xf32>
    %2915 = arith.mulf %2913, %2914 : vector<2x16xf32>
    %2916 = vector.extract_strided_slice %2895 {offsets = [0, 4], sizes = [2, 1], strides = [1, 1]} : vector<2x16xf32> to vector<2x1xf32>
    %2917 = vector.extract_strided_slice %0 {offsets = [4, 0], sizes = [1, 16], strides = [1, 1]} : vector<16x16xf32> to vector<1x16xf32>
    %2918 = vector.broadcast %2916 : vector<2x1xf32> to vector<2x16xf32>
    %2919 = vector.broadcast %2917 : vector<1x16xf32> to vector<2x16xf32>
    %2920 = arith.mulf %2918, %2919 : vector<2x16xf32>
    %2921 = vector.extract_strided_slice %2895 {offsets = [0, 5], sizes = [2, 1], strides = [1, 1]} : vector<2x16xf32> to vector<2x1xf32>
    %2922 = vector.extract_strided_slice %0 {offsets = [5, 0], sizes = [1, 16], strides = [1, 1]} : vector<16x16xf32> to vector<1x16xf32>
    %2923 = vector.broadcast %2921 : vector<2x1xf32> to vector<2x16xf32>
    %2924 = vector.broadcast %2922 : vector<1x16xf32> to vector<2x16xf32>
    %2925 = arith.mulf %2923, %2924 : vector<2x16xf32>
    %2926 = vector.extract_strided_slice %2895 {offsets = [0, 6], sizes = [2, 1], strides = [1, 1]} : vector<2x16xf32> to vector<2x1xf32>
    %2927 = vector.extract_strided_slice %0 {offsets = [6, 0], sizes = [1, 16], strides = [1, 1]} : vector<16x16xf32> to vector<1x16xf32>
    %2928 = vector.broadcast %2926 : vector<2x1xf32> to vector<2x16xf32>
    %2929 = vector.broadcast %2927 : vector<1x16xf32> to vector<2x16xf32>
    %2930 = arith.mulf %2928, %2929 : vector<2x16xf32>
    %2931 = vector.extract_strided_slice %2895 {offsets = [0, 7], sizes = [2, 1], strides = [1, 1]} : vector<2x16xf32> to vector<2x1xf32>
    %2932 = vector.extract_strided_slice %0 {offsets = [7, 0], sizes = [1, 16], strides = [1, 1]} : vector<16x16xf32> to vector<1x16xf32>
    %2933 = vector.broadcast %2931 : vector<2x1xf32> to vector<2x16xf32>
    %2934 = vector.broadcast %2932 : vector<1x16xf32> to vector<2x16xf32>
    %2935 = arith.mulf %2933, %2934 : vector<2x16xf32>
    %2936 = vector.extract_strided_slice %2895 {offsets = [0, 8], sizes = [2, 1], strides = [1, 1]} : vector<2x16xf32> to vector<2x1xf32>
    %2937 = vector.extract_strided_slice %0 {offsets = [8, 0], sizes = [1, 16], strides = [1, 1]} : vector<16x16xf32> to vector<1x16xf32>
    %2938 = vector.broadcast %2936 : vector<2x1xf32> to vector<2x16xf32>
    %2939 = vector.broadcast %2937 : vector<1x16xf32> to vector<2x16xf32>
    %2940 = arith.mulf %2938, %2939 : vector<2x16xf32>
    %2941 = vector.extract_strided_slice %2895 {offsets = [0, 9], sizes = [2, 1], strides = [1, 1]} : vector<2x16xf32> to vector<2x1xf32>
    %2942 = vector.extract_strided_slice %0 {offsets = [9, 0], sizes = [1, 16], strides = [1, 1]} : vector<16x16xf32> to vector<1x16xf32>
    %2943 = vector.broadcast %2941 : vector<2x1xf32> to vector<2x16xf32>
    %2944 = vector.broadcast %2942 : vector<1x16xf32> to vector<2x16xf32>
    %2945 = arith.mulf %2943, %2944 : vector<2x16xf32>
    %2946 = vector.extract_strided_slice %2895 {offsets = [0, 10], sizes = [2, 1], strides = [1, 1]} : vector<2x16xf32> to vector<2x1xf32>
    %2947 = vector.extract_strided_slice %0 {offsets = [10, 0], sizes = [1, 16], strides = [1, 1]} : vector<16x16xf32> to vector<1x16xf32>
    %2948 = vector.broadcast %2946 : vector<2x1xf32> to vector<2x16xf32>
    %2949 = vector.broadcast %2947 : vector<1x16xf32> to vector<2x16xf32>
    %2950 = arith.mulf %2948, %2949 : vector<2x16xf32>
    %2951 = vector.extract_strided_slice %2895 {offsets = [0, 11], sizes = [2, 1], strides = [1, 1]} : vector<2x16xf32> to vector<2x1xf32>
    %2952 = vector.extract_strided_slice %0 {offsets = [11, 0], sizes = [1, 16], strides = [1, 1]} : vector<16x16xf32> to vector<1x16xf32>
    %2953 = vector.broadcast %2951 : vector<2x1xf32> to vector<2x16xf32>
    %2954 = vector.broadcast %2952 : vector<1x16xf32> to vector<2x16xf32>
    %2955 = arith.mulf %2953, %2954 : vector<2x16xf32>
    %2956 = vector.extract_strided_slice %2895 {offsets = [0, 12], sizes = [2, 1], strides = [1, 1]} : vector<2x16xf32> to vector<2x1xf32>
    %2957 = vector.extract_strided_slice %0 {offsets = [12, 0], sizes = [1, 16], strides = [1, 1]} : vector<16x16xf32> to vector<1x16xf32>
    %2958 = vector.broadcast %2956 : vector<2x1xf32> to vector<2x16xf32>
    %2959 = vector.broadcast %2957 : vector<1x16xf32> to vector<2x16xf32>
    %2960 = arith.mulf %2958, %2959 : vector<2x16xf32>
    %2961 = vector.extract_strided_slice %2895 {offsets = [0, 13], sizes = [2, 1], strides = [1, 1]} : vector<2x16xf32> to vector<2x1xf32>
    %2962 = vector.extract_strided_slice %0 {offsets = [13, 0], sizes = [1, 16], strides = [1, 1]} : vector<16x16xf32> to vector<1x16xf32>
    %2963 = vector.broadcast %2961 : vector<2x1xf32> to vector<2x16xf32>
    %2964 = vector.broadcast %2962 : vector<1x16xf32> to vector<2x16xf32>
    %2965 = arith.mulf %2963, %2964 : vector<2x16xf32>
    %2966 = vector.extract_strided_slice %2895 {offsets = [0, 14], sizes = [2, 1], strides = [1, 1]} : vector<2x16xf32> to vector<2x1xf32>
    %2967 = vector.extract_strided_slice %0 {offsets = [14, 0], sizes = [1, 16], strides = [1, 1]} : vector<16x16xf32> to vector<1x16xf32>
    %2968 = vector.broadcast %2966 : vector<2x1xf32> to vector<2x16xf32>
    %2969 = vector.broadcast %2967 : vector<1x16xf32> to vector<2x16xf32>
    %2970 = arith.mulf %2968, %2969 : vector<2x16xf32>
    %2971 = vector.extract_strided_slice %2895 {offsets = [0, 15], sizes = [2, 1], strides = [1, 1]} : vector<2x16xf32> to vector<2x1xf32>
    %2972 = vector.extract_strided_slice %0 {offsets = [15, 0], sizes = [1, 16], strides = [1, 1]} : vector<16x16xf32> to vector<1x16xf32>
    %2973 = vector.broadcast %2971 : vector<2x1xf32> to vector<2x16xf32>
    %2974 = vector.broadcast %2972 : vector<1x16xf32> to vector<2x16xf32>
    %2975 = arith.mulf %2973, %2974 : vector<2x16xf32>
    %2976 = arith.addf %2900, %2905 : vector<2x16xf32>
    %2977 = arith.addf %2910, %2915 : vector<2x16xf32>
    %2978 = arith.addf %2920, %2925 : vector<2x16xf32>
    %2979 = arith.addf %2930, %2935 : vector<2x16xf32>
    %2980 = arith.addf %2940, %2945 : vector<2x16xf32>
    %2981 = arith.addf %2950, %2955 : vector<2x16xf32>
    %2982 = arith.addf %2960, %2965 : vector<2x16xf32>
    %2983 = arith.addf %2970, %2975 : vector<2x16xf32>
    %2984 = arith.addf %2976, %2977 : vector<2x16xf32>
    %2985 = arith.addf %2978, %2979 : vector<2x16xf32>
    %2986 = arith.addf %2980, %2981 : vector<2x16xf32>
    %2987 = arith.addf %2982, %2983 : vector<2x16xf32>
    %2988 = arith.addf %2984, %2985 : vector<2x16xf32>
    %2989 = arith.addf %2986, %2987 : vector<2x16xf32>
    %2990 = arith.addf %2988, %2989 : vector<2x16xf32>
    %2991 = arith.addf %2990, %2889 : vector<2x16xf32>
    %2992 = math.tanh %2991 : vector<2x16xf32>
    %2993 = arith.mulf %2992, %2891 : vector<2x16xf32>
    %2994 = arith.subf %2774, %2883 : vector<2x16xf32>
    %2995 = arith.addf %2994, %2993 : vector<2x16xf32>
    %2996 = arith.addf %2666, %2995 : vector<2x16xf32>
    %c54 = arith.constant 54 : index
    %c0_213 = arith.constant 0 : index
    %c0_214 = arith.constant 0 : index
    %2997 = vector.load %arg1[%c54, %c0_213, %c0_214] : memref<56x2x16xf32, #tpu.memory_space<vmem>>, vector<1x2x16xf32>
    %2998 = vector.shape_cast %2997 : vector<1x2x16xf32> to vector<2x16xf32>
    %c55 = arith.constant 55 : index
    %c0_215 = arith.constant 0 : index
    %c0_216 = arith.constant 0 : index
    %2999 = vector.load %arg1[%c55, %c0_215, %c0_216] : memref<56x2x16xf32, #tpu.memory_space<vmem>>, vector<1x2x16xf32>
    %3000 = vector.shape_cast %2999 : vector<1x2x16xf32> to vector<2x16xf32>
    %cst_217 = arith.constant -1.000000e+00 : f32
    %cst_218 = arith.constant 1.000000e+00 : f32
    %3001 = vector.broadcast %cst_217 : f32 to vector<2x16xf32>
    %3002 = arith.maximumf %3001, %2996 : vector<2x16xf32>
    %3003 = vector.broadcast %cst_218 : f32 to vector<2x16xf32>
    %3004 = arith.minimumf %3003, %3002 : vector<2x16xf32>
    %3005 = vector.extract_strided_slice %3004 {offsets = [0, 0], sizes = [2, 1], strides = [1, 1]} : vector<2x16xf32> to vector<2x1xf32>
    %3006 = vector.extract_strided_slice %0 {offsets = [0, 0], sizes = [1, 16], strides = [1, 1]} : vector<16x16xf32> to vector<1x16xf32>
    %3007 = vector.broadcast %3005 : vector<2x1xf32> to vector<2x16xf32>
    %3008 = vector.broadcast %3006 : vector<1x16xf32> to vector<2x16xf32>
    %3009 = arith.mulf %3007, %3008 : vector<2x16xf32>
    %3010 = vector.extract_strided_slice %3004 {offsets = [0, 1], sizes = [2, 1], strides = [1, 1]} : vector<2x16xf32> to vector<2x1xf32>
    %3011 = vector.extract_strided_slice %0 {offsets = [1, 0], sizes = [1, 16], strides = [1, 1]} : vector<16x16xf32> to vector<1x16xf32>
    %3012 = vector.broadcast %3010 : vector<2x1xf32> to vector<2x16xf32>
    %3013 = vector.broadcast %3011 : vector<1x16xf32> to vector<2x16xf32>
    %3014 = arith.mulf %3012, %3013 : vector<2x16xf32>
    %3015 = vector.extract_strided_slice %3004 {offsets = [0, 2], sizes = [2, 1], strides = [1, 1]} : vector<2x16xf32> to vector<2x1xf32>
    %3016 = vector.extract_strided_slice %0 {offsets = [2, 0], sizes = [1, 16], strides = [1, 1]} : vector<16x16xf32> to vector<1x16xf32>
    %3017 = vector.broadcast %3015 : vector<2x1xf32> to vector<2x16xf32>
    %3018 = vector.broadcast %3016 : vector<1x16xf32> to vector<2x16xf32>
    %3019 = arith.mulf %3017, %3018 : vector<2x16xf32>
    %3020 = vector.extract_strided_slice %3004 {offsets = [0, 3], sizes = [2, 1], strides = [1, 1]} : vector<2x16xf32> to vector<2x1xf32>
    %3021 = vector.extract_strided_slice %0 {offsets = [3, 0], sizes = [1, 16], strides = [1, 1]} : vector<16x16xf32> to vector<1x16xf32>
    %3022 = vector.broadcast %3020 : vector<2x1xf32> to vector<2x16xf32>
    %3023 = vector.broadcast %3021 : vector<1x16xf32> to vector<2x16xf32>
    %3024 = arith.mulf %3022, %3023 : vector<2x16xf32>
    %3025 = vector.extract_strided_slice %3004 {offsets = [0, 4], sizes = [2, 1], strides = [1, 1]} : vector<2x16xf32> to vector<2x1xf32>
    %3026 = vector.extract_strided_slice %0 {offsets = [4, 0], sizes = [1, 16], strides = [1, 1]} : vector<16x16xf32> to vector<1x16xf32>
    %3027 = vector.broadcast %3025 : vector<2x1xf32> to vector<2x16xf32>
    %3028 = vector.broadcast %3026 : vector<1x16xf32> to vector<2x16xf32>
    %3029 = arith.mulf %3027, %3028 : vector<2x16xf32>
    %3030 = vector.extract_strided_slice %3004 {offsets = [0, 5], sizes = [2, 1], strides = [1, 1]} : vector<2x16xf32> to vector<2x1xf32>
    %3031 = vector.extract_strided_slice %0 {offsets = [5, 0], sizes = [1, 16], strides = [1, 1]} : vector<16x16xf32> to vector<1x16xf32>
    %3032 = vector.broadcast %3030 : vector<2x1xf32> to vector<2x16xf32>
    %3033 = vector.broadcast %3031 : vector<1x16xf32> to vector<2x16xf32>
    %3034 = arith.mulf %3032, %3033 : vector<2x16xf32>
    %3035 = vector.extract_strided_slice %3004 {offsets = [0, 6], sizes = [2, 1], strides = [1, 1]} : vector<2x16xf32> to vector<2x1xf32>
    %3036 = vector.extract_strided_slice %0 {offsets = [6, 0], sizes = [1, 16], strides = [1, 1]} : vector<16x16xf32> to vector<1x16xf32>
    %3037 = vector.broadcast %3035 : vector<2x1xf32> to vector<2x16xf32>
    %3038 = vector.broadcast %3036 : vector<1x16xf32> to vector<2x16xf32>
    %3039 = arith.mulf %3037, %3038 : vector<2x16xf32>
    %3040 = vector.extract_strided_slice %3004 {offsets = [0, 7], sizes = [2, 1], strides = [1, 1]} : vector<2x16xf32> to vector<2x1xf32>
    %3041 = vector.extract_strided_slice %0 {offsets = [7, 0], sizes = [1, 16], strides = [1, 1]} : vector<16x16xf32> to vector<1x16xf32>
    %3042 = vector.broadcast %3040 : vector<2x1xf32> to vector<2x16xf32>
    %3043 = vector.broadcast %3041 : vector<1x16xf32> to vector<2x16xf32>
    %3044 = arith.mulf %3042, %3043 : vector<2x16xf32>
    %3045 = vector.extract_strided_slice %3004 {offsets = [0, 8], sizes = [2, 1], strides = [1, 1]} : vector<2x16xf32> to vector<2x1xf32>
    %3046 = vector.extract_strided_slice %0 {offsets = [8, 0], sizes = [1, 16], strides = [1, 1]} : vector<16x16xf32> to vector<1x16xf32>
    %3047 = vector.broadcast %3045 : vector<2x1xf32> to vector<2x16xf32>
    %3048 = vector.broadcast %3046 : vector<1x16xf32> to vector<2x16xf32>
    %3049 = arith.mulf %3047, %3048 : vector<2x16xf32>
    %3050 = vector.extract_strided_slice %3004 {offsets = [0, 9], sizes = [2, 1], strides = [1, 1]} : vector<2x16xf32> to vector<2x1xf32>
    %3051 = vector.extract_strided_slice %0 {offsets = [9, 0], sizes = [1, 16], strides = [1, 1]} : vector<16x16xf32> to vector<1x16xf32>
    %3052 = vector.broadcast %3050 : vector<2x1xf32> to vector<2x16xf32>
    %3053 = vector.broadcast %3051 : vector<1x16xf32> to vector<2x16xf32>
    %3054 = arith.mulf %3052, %3053 : vector<2x16xf32>
    %3055 = vector.extract_strided_slice %3004 {offsets = [0, 10], sizes = [2, 1], strides = [1, 1]} : vector<2x16xf32> to vector<2x1xf32>
    %3056 = vector.extract_strided_slice %0 {offsets = [10, 0], sizes = [1, 16], strides = [1, 1]} : vector<16x16xf32> to vector<1x16xf32>
    %3057 = vector.broadcast %3055 : vector<2x1xf32> to vector<2x16xf32>
    %3058 = vector.broadcast %3056 : vector<1x16xf32> to vector<2x16xf32>
    %3059 = arith.mulf %3057, %3058 : vector<2x16xf32>
    %3060 = vector.extract_strided_slice %3004 {offsets = [0, 11], sizes = [2, 1], strides = [1, 1]} : vector<2x16xf32> to vector<2x1xf32>
    %3061 = vector.extract_strided_slice %0 {offsets = [11, 0], sizes = [1, 16], strides = [1, 1]} : vector<16x16xf32> to vector<1x16xf32>
    %3062 = vector.broadcast %3060 : vector<2x1xf32> to vector<2x16xf32>
    %3063 = vector.broadcast %3061 : vector<1x16xf32> to vector<2x16xf32>
    %3064 = arith.mulf %3062, %3063 : vector<2x16xf32>
    %3065 = vector.extract_strided_slice %3004 {offsets = [0, 12], sizes = [2, 1], strides = [1, 1]} : vector<2x16xf32> to vector<2x1xf32>
    %3066 = vector.extract_strided_slice %0 {offsets = [12, 0], sizes = [1, 16], strides = [1, 1]} : vector<16x16xf32> to vector<1x16xf32>
    %3067 = vector.broadcast %3065 : vector<2x1xf32> to vector<2x16xf32>
    %3068 = vector.broadcast %3066 : vector<1x16xf32> to vector<2x16xf32>
    %3069 = arith.mulf %3067, %3068 : vector<2x16xf32>
    %3070 = vector.extract_strided_slice %3004 {offsets = [0, 13], sizes = [2, 1], strides = [1, 1]} : vector<2x16xf32> to vector<2x1xf32>
    %3071 = vector.extract_strided_slice %0 {offsets = [13, 0], sizes = [1, 16], strides = [1, 1]} : vector<16x16xf32> to vector<1x16xf32>
    %3072 = vector.broadcast %3070 : vector<2x1xf32> to vector<2x16xf32>
    %3073 = vector.broadcast %3071 : vector<1x16xf32> to vector<2x16xf32>
    %3074 = arith.mulf %3072, %3073 : vector<2x16xf32>
    %3075 = vector.extract_strided_slice %3004 {offsets = [0, 14], sizes = [2, 1], strides = [1, 1]} : vector<2x16xf32> to vector<2x1xf32>
    %3076 = vector.extract_strided_slice %0 {offsets = [14, 0], sizes = [1, 16], strides = [1, 1]} : vector<16x16xf32> to vector<1x16xf32>
    %3077 = vector.broadcast %3075 : vector<2x1xf32> to vector<2x16xf32>
    %3078 = vector.broadcast %3076 : vector<1x16xf32> to vector<2x16xf32>
    %3079 = arith.mulf %3077, %3078 : vector<2x16xf32>
    %3080 = vector.extract_strided_slice %3004 {offsets = [0, 15], sizes = [2, 1], strides = [1, 1]} : vector<2x16xf32> to vector<2x1xf32>
    %3081 = vector.extract_strided_slice %0 {offsets = [15, 0], sizes = [1, 16], strides = [1, 1]} : vector<16x16xf32> to vector<1x16xf32>
    %3082 = vector.broadcast %3080 : vector<2x1xf32> to vector<2x16xf32>
    %3083 = vector.broadcast %3081 : vector<1x16xf32> to vector<2x16xf32>
    %3084 = arith.mulf %3082, %3083 : vector<2x16xf32>
    %3085 = arith.addf %3009, %3014 : vector<2x16xf32>
    %3086 = arith.addf %3019, %3024 : vector<2x16xf32>
    %3087 = arith.addf %3029, %3034 : vector<2x16xf32>
    %3088 = arith.addf %3039, %3044 : vector<2x16xf32>
    %3089 = arith.addf %3049, %3054 : vector<2x16xf32>
    %3090 = arith.addf %3059, %3064 : vector<2x16xf32>
    %3091 = arith.addf %3069, %3074 : vector<2x16xf32>
    %3092 = arith.addf %3079, %3084 : vector<2x16xf32>
    %3093 = arith.addf %3085, %3086 : vector<2x16xf32>
    %3094 = arith.addf %3087, %3088 : vector<2x16xf32>
    %3095 = arith.addf %3089, %3090 : vector<2x16xf32>
    %3096 = arith.addf %3091, %3092 : vector<2x16xf32>
    %3097 = arith.addf %3093, %3094 : vector<2x16xf32>
    %3098 = arith.addf %3095, %3096 : vector<2x16xf32>
    %3099 = arith.addf %3097, %3098 : vector<2x16xf32>
    %3100 = arith.addf %3099, %2998 : vector<2x16xf32>
    %3101 = math.tanh %3100 : vector<2x16xf32>
    %3102 = arith.mulf %3101, %3000 : vector<2x16xf32>
    %3103 = arith.addf %2883, %2993 : vector<2x16xf32>
    %cst_219 = arith.constant 3.000000e+00 : f32
    %3104 = vector.broadcast %cst_219 : f32 to vector<2x16xf32>
    %3105 = arith.mulf %3104, %3103 : vector<2x16xf32>
    %3106 = arith.addf %2774, %3105 : vector<2x16xf32>
    %3107 = arith.addf %3106, %3102 : vector<2x16xf32>
    %cst_220 = arith.constant 1.250000e-01 : f32
    %3108 = vector.broadcast %cst_220 : f32 to vector<2x16xf32>
    %3109 = arith.mulf %3107, %3108 : vector<2x16xf32>
    %3110 = arith.addf %2666, %3109 : vector<2x16xf32>
    %3111 = vector.shape_cast %3110 : vector<2x16xf32> to vector<2x1x16xf32>
    %c0_221 = arith.constant 0 : index
    %c7_222 = arith.constant 7 : index
    %c0_223 = arith.constant 0 : index
    %3112 = vector.load %arg6[%c0_221, %c7_222, %c0_223] : memref<2x8x16xf32, #tpu.memory_space<vmem>>, vector<2x1x16xf32>
    tpu.vector_store %arg6[%c0_221, %c7_222, %c0_223], %3111 {strides = array<i32>} : memref<2x8x16xf32, #tpu.memory_space<vmem>>, vector<2x1x16xf32>,
    %c0_224 = arith.constant 0 : index
    %c0_225 = arith.constant 0 : index
    %c0_226 = arith.constant 0 : index
    %3113 = vector.load %arg6[%c0_224, %c0_225, %c0_226] : memref<2x8x16xf32, #tpu.memory_space<vmem>>, vector<2x8x16xf32>
    %3114 = vector.extract_strided_slice %3113 {offsets = [0, 0, 0], sizes = [2, 8, 1], strides = [1, 1, 1]} : vector<2x8x16xf32> to vector<2x8x1xf32>
    %3115 = vector.extract_strided_slice %1 {offsets = [0, 0], sizes = [1, 3], strides = [1, 1]} : vector<16x3xf32> to vector<1x3xf32>
    %3116 = vector.shape_cast %3115 : vector<1x3xf32> to vector<1x1x3xf32>
    %3117 = vector.broadcast %3114 : vector<2x8x1xf32> to vector<2x8x3xf32>
    %3118 = vector.broadcast %3116 : vector<1x1x3xf32> to vector<2x8x3xf32>
    %3119 = arith.mulf %3117, %3118 : vector<2x8x3xf32>
    %3120 = vector.extract_strided_slice %3113 {offsets = [0, 0, 1], sizes = [2, 8, 1], strides = [1, 1, 1]} : vector<2x8x16xf32> to vector<2x8x1xf32>
    %3121 = vector.extract_strided_slice %1 {offsets = [1, 0], sizes = [1, 3], strides = [1, 1]} : vector<16x3xf32> to vector<1x3xf32>
    %3122 = vector.shape_cast %3121 : vector<1x3xf32> to vector<1x1x3xf32>
    %3123 = vector.broadcast %3120 : vector<2x8x1xf32> to vector<2x8x3xf32>
    %3124 = vector.broadcast %3122 : vector<1x1x3xf32> to vector<2x8x3xf32>
    %3125 = arith.mulf %3123, %3124 : vector<2x8x3xf32>
    %3126 = vector.extract_strided_slice %3113 {offsets = [0, 0, 2], sizes = [2, 8, 1], strides = [1, 1, 1]} : vector<2x8x16xf32> to vector<2x8x1xf32>
    %3127 = vector.extract_strided_slice %1 {offsets = [2, 0], sizes = [1, 3], strides = [1, 1]} : vector<16x3xf32> to vector<1x3xf32>
    %3128 = vector.shape_cast %3127 : vector<1x3xf32> to vector<1x1x3xf32>
    %3129 = vector.broadcast %3126 : vector<2x8x1xf32> to vector<2x8x3xf32>
    %3130 = vector.broadcast %3128 : vector<1x1x3xf32> to vector<2x8x3xf32>
    %3131 = arith.mulf %3129, %3130 : vector<2x8x3xf32>
    %3132 = vector.extract_strided_slice %3113 {offsets = [0, 0, 3], sizes = [2, 8, 1], strides = [1, 1, 1]} : vector<2x8x16xf32> to vector<2x8x1xf32>
    %3133 = vector.extract_strided_slice %1 {offsets = [3, 0], sizes = [1, 3], strides = [1, 1]} : vector<16x3xf32> to vector<1x3xf32>
    %3134 = vector.shape_cast %3133 : vector<1x3xf32> to vector<1x1x3xf32>
    %3135 = vector.broadcast %3132 : vector<2x8x1xf32> to vector<2x8x3xf32>
    %3136 = vector.broadcast %3134 : vector<1x1x3xf32> to vector<2x8x3xf32>
    %3137 = arith.mulf %3135, %3136 : vector<2x8x3xf32>
    %3138 = vector.extract_strided_slice %3113 {offsets = [0, 0, 4], sizes = [2, 8, 1], strides = [1, 1, 1]} : vector<2x8x16xf32> to vector<2x8x1xf32>
    %3139 = vector.extract_strided_slice %1 {offsets = [4, 0], sizes = [1, 3], strides = [1, 1]} : vector<16x3xf32> to vector<1x3xf32>
    %3140 = vector.shape_cast %3139 : vector<1x3xf32> to vector<1x1x3xf32>
    %3141 = vector.broadcast %3138 : vector<2x8x1xf32> to vector<2x8x3xf32>
    %3142 = vector.broadcast %3140 : vector<1x1x3xf32> to vector<2x8x3xf32>
    %3143 = arith.mulf %3141, %3142 : vector<2x8x3xf32>
    %3144 = vector.extract_strided_slice %3113 {offsets = [0, 0, 5], sizes = [2, 8, 1], strides = [1, 1, 1]} : vector<2x8x16xf32> to vector<2x8x1xf32>
    %3145 = vector.extract_strided_slice %1 {offsets = [5, 0], sizes = [1, 3], strides = [1, 1]} : vector<16x3xf32> to vector<1x3xf32>
    %3146 = vector.shape_cast %3145 : vector<1x3xf32> to vector<1x1x3xf32>
    %3147 = vector.broadcast %3144 : vector<2x8x1xf32> to vector<2x8x3xf32>
    %3148 = vector.broadcast %3146 : vector<1x1x3xf32> to vector<2x8x3xf32>
    %3149 = arith.mulf %3147, %3148 : vector<2x8x3xf32>
    %3150 = vector.extract_strided_slice %3113 {offsets = [0, 0, 6], sizes = [2, 8, 1], strides = [1, 1, 1]} : vector<2x8x16xf32> to vector<2x8x1xf32>
    %3151 = vector.extract_strided_slice %1 {offsets = [6, 0], sizes = [1, 3], strides = [1, 1]} : vector<16x3xf32> to vector<1x3xf32>
    %3152 = vector.shape_cast %3151 : vector<1x3xf32> to vector<1x1x3xf32>
    %3153 = vector.broadcast %3150 : vector<2x8x1xf32> to vector<2x8x3xf32>
    %3154 = vector.broadcast %3152 : vector<1x1x3xf32> to vector<2x8x3xf32>
    %3155 = arith.mulf %3153, %3154 : vector<2x8x3xf32>
    %3156 = vector.extract_strided_slice %3113 {offsets = [0, 0, 7], sizes = [2, 8, 1], strides = [1, 1, 1]} : vector<2x8x16xf32> to vector<2x8x1xf32>
    %3157 = vector.extract_strided_slice %1 {offsets = [7, 0], sizes = [1, 3], strides = [1, 1]} : vector<16x3xf32> to vector<1x3xf32>
    %3158 = vector.shape_cast %3157 : vector<1x3xf32> to vector<1x1x3xf32>
    %3159 = vector.broadcast %3156 : vector<2x8x1xf32> to vector<2x8x3xf32>
    %3160 = vector.broadcast %3158 : vector<1x1x3xf32> to vector<2x8x3xf32>
    %3161 = arith.mulf %3159, %3160 : vector<2x8x3xf32>
    %3162 = vector.extract_strided_slice %3113 {offsets = [0, 0, 8], sizes = [2, 8, 1], strides = [1, 1, 1]} : vector<2x8x16xf32> to vector<2x8x1xf32>
    %3163 = vector.extract_strided_slice %1 {offsets = [8, 0], sizes = [1, 3], strides = [1, 1]} : vector<16x3xf32> to vector<1x3xf32>
    %3164 = vector.shape_cast %3163 : vector<1x3xf32> to vector<1x1x3xf32>
    %3165 = vector.broadcast %3162 : vector<2x8x1xf32> to vector<2x8x3xf32>
    %3166 = vector.broadcast %3164 : vector<1x1x3xf32> to vector<2x8x3xf32>
    %3167 = arith.mulf %3165, %3166 : vector<2x8x3xf32>
    %3168 = vector.extract_strided_slice %3113 {offsets = [0, 0, 9], sizes = [2, 8, 1], strides = [1, 1, 1]} : vector<2x8x16xf32> to vector<2x8x1xf32>
    %3169 = vector.extract_strided_slice %1 {offsets = [9, 0], sizes = [1, 3], strides = [1, 1]} : vector<16x3xf32> to vector<1x3xf32>
    %3170 = vector.shape_cast %3169 : vector<1x3xf32> to vector<1x1x3xf32>
    %3171 = vector.broadcast %3168 : vector<2x8x1xf32> to vector<2x8x3xf32>
    %3172 = vector.broadcast %3170 : vector<1x1x3xf32> to vector<2x8x3xf32>
    %3173 = arith.mulf %3171, %3172 : vector<2x8x3xf32>
    %3174 = vector.extract_strided_slice %3113 {offsets = [0, 0, 10], sizes = [2, 8, 1], strides = [1, 1, 1]} : vector<2x8x16xf32> to vector<2x8x1xf32>
    %3175 = vector.extract_strided_slice %1 {offsets = [10, 0], sizes = [1, 3], strides = [1, 1]} : vector<16x3xf32> to vector<1x3xf32>
    %3176 = vector.shape_cast %3175 : vector<1x3xf32> to vector<1x1x3xf32>
    %3177 = vector.broadcast %3174 : vector<2x8x1xf32> to vector<2x8x3xf32>
    %3178 = vector.broadcast %3176 : vector<1x1x3xf32> to vector<2x8x3xf32>
    %3179 = arith.mulf %3177, %3178 : vector<2x8x3xf32>
    %3180 = vector.extract_strided_slice %3113 {offsets = [0, 0, 11], sizes = [2, 8, 1], strides = [1, 1, 1]} : vector<2x8x16xf32> to vector<2x8x1xf32>
    %3181 = vector.extract_strided_slice %1 {offsets = [11, 0], sizes = [1, 3], strides = [1, 1]} : vector<16x3xf32> to vector<1x3xf32>
    %3182 = vector.shape_cast %3181 : vector<1x3xf32> to vector<1x1x3xf32>
    %3183 = vector.broadcast %3180 : vector<2x8x1xf32> to vector<2x8x3xf32>
    %3184 = vector.broadcast %3182 : vector<1x1x3xf32> to vector<2x8x3xf32>
    %3185 = arith.mulf %3183, %3184 : vector<2x8x3xf32>
    %3186 = vector.extract_strided_slice %3113 {offsets = [0, 0, 12], sizes = [2, 8, 1], strides = [1, 1, 1]} : vector<2x8x16xf32> to vector<2x8x1xf32>
    %3187 = vector.extract_strided_slice %1 {offsets = [12, 0], sizes = [1, 3], strides = [1, 1]} : vector<16x3xf32> to vector<1x3xf32>
    %3188 = vector.shape_cast %3187 : vector<1x3xf32> to vector<1x1x3xf32>
    %3189 = vector.broadcast %3186 : vector<2x8x1xf32> to vector<2x8x3xf32>
    %3190 = vector.broadcast %3188 : vector<1x1x3xf32> to vector<2x8x3xf32>
    %3191 = arith.mulf %3189, %3190 : vector<2x8x3xf32>
    %3192 = vector.extract_strided_slice %3113 {offsets = [0, 0, 13], sizes = [2, 8, 1], strides = [1, 1, 1]} : vector<2x8x16xf32> to vector<2x8x1xf32>
    %3193 = vector.extract_strided_slice %1 {offsets = [13, 0], sizes = [1, 3], strides = [1, 1]} : vector<16x3xf32> to vector<1x3xf32>
    %3194 = vector.shape_cast %3193 : vector<1x3xf32> to vector<1x1x3xf32>
    %3195 = vector.broadcast %3192 : vector<2x8x1xf32> to vector<2x8x3xf32>
    %3196 = vector.broadcast %3194 : vector<1x1x3xf32> to vector<2x8x3xf32>
    %3197 = arith.mulf %3195, %3196 : vector<2x8x3xf32>
    %3198 = vector.extract_strided_slice %3113 {offsets = [0, 0, 14], sizes = [2, 8, 1], strides = [1, 1, 1]} : vector<2x8x16xf32> to vector<2x8x1xf32>
    %3199 = vector.extract_strided_slice %1 {offsets = [14, 0], sizes = [1, 3], strides = [1, 1]} : vector<16x3xf32> to vector<1x3xf32>
    %3200 = vector.shape_cast %3199 : vector<1x3xf32> to vector<1x1x3xf32>
    %3201 = vector.broadcast %3198 : vector<2x8x1xf32> to vector<2x8x3xf32>
    %3202 = vector.broadcast %3200 : vector<1x1x3xf32> to vector<2x8x3xf32>
    %3203 = arith.mulf %3201, %3202 : vector<2x8x3xf32>
    %3204 = vector.extract_strided_slice %3113 {offsets = [0, 0, 15], sizes = [2, 8, 1], strides = [1, 1, 1]} : vector<2x8x16xf32> to vector<2x8x1xf32>
    %3205 = vector.extract_strided_slice %1 {offsets = [15, 0], sizes = [1, 3], strides = [1, 1]} : vector<16x3xf32> to vector<1x3xf32>
    %3206 = vector.shape_cast %3205 : vector<1x3xf32> to vector<1x1x3xf32>
    %3207 = vector.broadcast %3204 : vector<2x8x1xf32> to vector<2x8x3xf32>
    %3208 = vector.broadcast %3206 : vector<1x1x3xf32> to vector<2x8x3xf32>
    %3209 = arith.mulf %3207, %3208 : vector<2x8x3xf32>
    %c0_227 = arith.constant 0 : index
    %c0_228 = arith.constant 0 : index
    %c0_229 = arith.constant 0 : index
    %3210 = vector.load %arg2[%c0_227, %c0_228, %c0_229] : memref<2x8x3xf32, #tpu.memory_space<vmem>>, vector<2x8x3xf32>
    %3211 = arith.addf %3119, %3125 : vector<2x8x3xf32>
    %3212 = arith.addf %3131, %3137 : vector<2x8x3xf32>
    %3213 = arith.addf %3143, %3149 : vector<2x8x3xf32>
    %3214 = arith.addf %3155, %3161 : vector<2x8x3xf32>
    %3215 = arith.addf %3167, %3173 : vector<2x8x3xf32>
    %3216 = arith.addf %3179, %3185 : vector<2x8x3xf32>
    %3217 = arith.addf %3191, %3197 : vector<2x8x3xf32>
    %3218 = arith.addf %3203, %3209 : vector<2x8x3xf32>
    %3219 = arith.addf %3211, %3212 : vector<2x8x3xf32>
    %3220 = arith.addf %3213, %3214 : vector<2x8x3xf32>
    %3221 = arith.addf %3215, %3216 : vector<2x8x3xf32>
    %3222 = arith.addf %3217, %3218 : vector<2x8x3xf32>
    %3223 = arith.addf %3219, %3220 : vector<2x8x3xf32>
    %3224 = arith.addf %3221, %3222 : vector<2x8x3xf32>
    %3225 = arith.addf %3223, %3224 : vector<2x8x3xf32>
    %3226 = arith.addf %3210, %3225 : vector<2x8x3xf32>
    %3227 = arith.negf %3226 : vector<2x8x3xf32>
    %3228 = math.exp %3227 : vector<2x8x3xf32>
    %cst_230 = arith.constant 1.000000e+00 : f32
    %3229 = vector.broadcast %cst_230 : f32 to vector<2x8x3xf32>
    %3230 = arith.addf %3229, %3228 : vector<2x8x3xf32>
    %3231 = arith.divf %3229, %3230 : vector<2x8x3xf32>
    %c0_231 = arith.constant 0 : index
    %c0_232 = arith.constant 0 : index
    %c0_233 = arith.constant 0 : index
    %3232 = vector.load %arg5[%c0_231, %c0_232, %c0_233] : memref<2x8x3xf32, #tpu.memory_space<vmem>>, vector<2x8x3xf32>
    tpu.vector_store %arg5[%c0_231, %c0_232, %c0_233], %3231 {strides = array<i32>} : memref<2x8x3xf32, #tpu.memory_space<vmem>>, vector<2x8x3xf32>,
    return
  }
  func.func @transform_0(%arg0: i32) -> (i32, i32, i32) {
    %c0_i32 = arith.constant 0 : i32
    %c0_i32_0 = arith.constant 0 : i32
    %c0_i32_1 = arith.constant 0 : i32
    %c0_i32_2 = arith.constant 0 : i32
    return %c0_i32, %c0_i32_0, %c0_i32_1 : i32, i32, i32
  }
  func.func @transform_1(%arg0: i32) -> (i32, i32, i32) {
    %c0_i32 = arith.constant 0 : i32
    %c0_i32_0 = arith.constant 0 : i32
    %c0_i32_1 = arith.constant 0 : i32
    %c0_i32_2 = arith.constant 0 : i32
    return %c0_i32, %c0_i32_0, %c0_i32_1 : i32, i32, i32
  }
  func.func @transform_2(%arg0: i32) -> (i32, i32) {
    %c0_i32 = arith.constant 0 : i32
    %c0_i32_0 = arith.constant 0 : i32
    %c0_i32_1 = arith.constant 0 : i32
    return %c0_i32, %c0_i32_0 : i32, i32
  }
  func.func @transform_3(%arg0: i32) -> (i32, i32) {
    %c0_i32 = arith.constant 0 : i32
    %c0_i32_0 = arith.constant 0 : i32
    %c0_i32_1 = arith.constant 0 : i32
    return %c0_i32, %c0_i32_0 : i32, i32
  }
  func.func @transform_4(%arg0: i32) -> (i32, i32, i32) {
    %c0_i32 = arith.constant 0 : i32
    %c0_i32_0 = arith.constant 0 : i32
    %c0_i32_1 = arith.constant 0 : i32
    %c0_i32_2 = arith.constant 0 : i32
    return %c0_i32, %c0_i32_0, %c0_i32_1 : i32, i32, i32
  }
}

</mosaic_0001>

<llo_original>
// kernel: neural_cde_forward.1
$region0: #{neural_cde_forward.1}
  #allocation0 [shape = 'u32[]', space=smem, size = 0x4, offset = 0x4, fixed_abs, tag = 'smem constant byte address 0x4 - core index']
  #allocation1 [shape = 'u32[72,128]{1,0:T(1,128)}', space=vmem, size = 0x9000, scoped, tag = 'internal scratch']
  #allocation2 [shape = 'f32[2,8,16]{2,1,0:T(8,128)}', space=vmem, size = 0x2000, scoped, tag = 'scratch operand']
  %s0 = inlined_call_operand.vmem [shape: f32[56,2,16], index: 0, kind: input, shape index: {}]
  %s1 = inlined_call_operand.vmem [shape: f32[2,8,3], index: 1, kind: input, shape index: {}]
  %s2 = inlined_call_operand.vmem [shape: f32[16,16], index: 2, kind: input, shape index: {}]
  %s3 = inlined_call_operand.vmem [shape: f32[16,3], index: 3, kind: input, shape index: {}]
  %s4 = inlined_call_operand.vmem [shape: f32[2,8,3], index: 4, kind: output, shape index: {}]
  %s5 = sld [smem:[#allocation0]]
  $region26: #{neural_cde_forward.1} parent=0
    _
  %s7 = ssub.s32 1, %s5
  %s8 = scalar_select 0, %s7, %s5
  // Predicated region
  $region2: #{neural_cde_forward.1} parent=0 // pred_check
    _
  $region3: #{neural_cde_forward.1} parent=0 // pred_check_branch
    %10 = sbr.rel (0) target = $region5
  $region4: #{neural_cde_forward.1} parent=0 // pred_region
    _
  $region5: #{neural_cde_forward.1} parent=0 // pred_fallthru
    _
  // Predicated region
  $region6: #{neural_cde_forward.1} parent=0 // pred_check
    _
  $region7: #{neural_cde_forward.1} parent=0 // pred_check_branch
    %12 = sbr.rel (0) target = $region9
  $region8: #{neural_cde_forward.1} parent=0 // pred_region
    _
  $region9: #{neural_cde_forward.1} parent=0 // pred_fallthru
    _
  // Predicated region
  $region10: #{neural_cde_forward.1} parent=0 // pred_check
    _
  $region11: #{neural_cde_forward.1} parent=0 // pred_check_branch
    %14 = sbr.rel (0) target = $region13
  $region12: #{neural_cde_forward.1} parent=0 // pred_region
    _
  $region13: #{neural_cde_forward.1} parent=0 // pred_fallthru
    _
  // Predicated region
  $region14: #{neural_cde_forward.1} parent=0 // pred_check
    _
  $region15: #{neural_cde_forward.1} parent=0 // pred_check_branch
    %16 = sbr.rel (0) target = $region17
  $region16: #{neural_cde_forward.1} parent=0 // pred_region
    _
  $region17: #{neural_cde_forward.1} parent=0 // pred_fallthru
    _
  %v17 = vld [vmem:[%s2] sm:$0xff]
  %v18 = vld [vmem:[%s2 + $0x8] sm:$0xff]
  %v19 = vld [vmem:[%s3] sm:$0xff]
  %v20 = vld [vmem:[%s3 + $0x8] sm:$0xff]
  %vm21 = vcmask 122880
  %22 = vst.msk [vmem:[#allocation2] sm:$0x1] %vm21, 0.0
  %23 = vst.msk [vmem:[#allocation2 + $0x8] sm:$0x1] %vm21, 0.0
  %v24 = vld [vmem:[%s0] sm:$0x3]
  %s25 = scalar_lea.vmem %s0, 2
  %v26 = vld [vmem:[%s25] sm:$0x3]
  %v27 = vperm.slane %v17, 0
  %v28 = vmul.f32 %v27, 0.0
  %v29 = vperm.slane %v17, 1
  %v30 = vmul.f32 %v29, 0.0
  %v31 = vperm.slane %v17, 2
  %v32 = vmul.f32 %v31, 0.0
  %v33 = vperm.slane %v17, 3
  %v34 = vmul.f32 %v33, 0.0
  %v35 = vperm.slane %v17, 4
  %v36 = vmul.f32 %v35, 0.0
  %v37 = vperm.slane %v17, 5
  %v38 = vmul.f32 %v37, 0.0
  %v39 = vperm.slane %v17, 6
  %v40 = vmul.f32 %v39, 0.0
  %v41 = vperm.slane %v17, 7
  %v42 = vmul.f32 %v41, 0.0
  %v43 = vperm.slane %v18, 0
  %v44 = vmul.f32 %v43, 0.0
  %v45 = vperm.slane %v18, 1
  %v46 = vmul.f32 %v45, 0.0
  %v47 = vperm.slane %v18, 2
  %v48 = vmul.f32 %v47, 0.0
  %v49 = vperm.slane %v18, 3
  %v50 = vmul.f32 %v49, 0.0
  %v51 = vperm.slane %v18, 4
  %v52 = vmul.f32 %v51, 0.0
  %v53 = vperm.slane %v18, 5
  %v54 = vmul.f32 %v53, 0.0
  %v55 = vperm.slane %v18, 6
  %v56 = vmul.f32 %v55, 0.0
  %v57 = vperm.slane %v18, 7
  %v58 = vmul.f32 %v57, 0.0
  %v59 = vadd.f32 %v28, %v30
  %v60 = vadd.f32 %v32, %v34
  %v61 = vadd.f32 %v36, %v38
  %v62 = vadd.f32 %v40, %v42
  %v63 = vadd.f32 %v44, %v46
  %v64 = vadd.f32 %v48, %v50
  %v65 = vadd.f32 %v52, %v54
  %v66 = vadd.f32 %v56, %v58
  %v67 = vadd.f32 %v59, %v60
  %v68 = vadd.f32 %v61, %v62
  %v69 = vadd.f32 %v63, %v64
  %v70 = vadd.f32 %v65, %v66
  %v71 = vadd.f32 %v67, %v68
  %v72 = vadd.f32 %v69, %v70
  %v73 = vadd.f32 %v71, %v72
  %v74 = vadd.f32 %v73, %v24
  %v75 = vtanh.pop %v74
  %v76 = vmul.f32 %v75, %v26
  %v77 = vmul.f32 %v76, 0.33333334
  %v78 = vadd.f32 %v77, 0.0
  %s79 = scalar_lea.vmem %s0, 4
  %v80 = vld [vmem:[%s79] sm:$0x3]
  %s81 = scalar_lea.vmem %s0, 6
  %v82 = vld [vmem:[%s81] sm:$0x3]
  %v83 = vmax.f32 %v78, -1.0
  %v84 = vmin.f32 %v83, 1.0
  %86 = vset.pattern.permute.xlu0 0
  %87 = vperm.xlu0 %86, %v84
  %v88 = vpop.permute.xlu0 %87
  %v90 = vmul.f32 %v88, %v27
  %91 = vset.pattern.permute.xlu0 1
  %92 = vperm.xlu0 %91, %v84
  %v93 = vpop.permute.xlu0 %92
  %v95 = vmul.f32 %v93, %v29
  %96 = vset.pattern.permute.xlu0 2
  %97 = vperm.xlu0 %96, %v84
  %v98 = vpop.permute.xlu0 %97
  %v100 = vmul.f32 %v98, %v31
  %101 = vset.pattern.permute.xlu0 3
  %102 = vperm.xlu0 %101, %v84
  %v103 = vpop.permute.xlu0 %102
  %v105 = vmul.f32 %v103, %v33
  %106 = vset.pattern.permute.xlu0 4
  %107 = vperm.xlu0 %106, %v84
  %v108 = vpop.permute.xlu0 %107
  %v110 = vmul.f32 %v108, %v35
  %111 = vset.pattern.permute.xlu0 5
  %112 = vperm.xlu0 %111, %v84
  %v113 = vpop.permute.xlu0 %112
  %v115 = vmul.f32 %v113, %v37
  %116 = vset.pattern.permute.xlu0 6
  %117 = vperm.xlu0 %116, %v84
  %v118 = vpop.permute.xlu0 %117
  %v120 = vmul.f32 %v118, %v39
  %121 = vset.pattern.permute.xlu0 7
  %122 = vperm.xlu0 %121, %v84
  %v123 = vpop.permute.xlu0 %122
  %v125 = vmul.f32 %v123, %v41
  %126 = vset.pattern.permute.xlu0 8
  %127 = vperm.xlu0 %126, %v84
  %v128 = vpop.permute.xlu0 %127
  %v130 = vmul.f32 %v128, %v43
  %131 = vset.pattern.permute.xlu0 9
  %132 = vperm.xlu0 %131, %v84
  %v133 = vpop.permute.xlu0 %132
  %v135 = vmul.f32 %v133, %v45
  %136 = vset.pattern.permute.xlu0 10
  %137 = vperm.xlu0 %136, %v84
  %v138 = vpop.permute.xlu0 %137
  %v140 = vmul.f32 %v138, %v47
  %141 = vset.pattern.permute.xlu0 11
  %142 = vperm.xlu0 %141, %v84
  %v143 = vpop.permute.xlu0 %142
  %v145 = vmul.f32 %v143, %v49
  %146 = vset.pattern.permute.xlu0 12
  %147 = vperm.xlu0 %146, %v84
  %v148 = vpop.permute.xlu0 %147
  %v150 = vmul.f32 %v148, %v51
  %151 = vset.pattern.permute.xlu0 13
  %152 = vperm.xlu0 %151, %v84
  %v153 = vpop.permute.xlu0 %152
  %v155 = vmul.f32 %v153, %v53
  %156 = vset.pattern.permute.xlu0 14
  %157 = vperm.xlu0 %156, %v84
  %v158 = vpop.permute.xlu0 %157
  %v160 = vmul.f32 %v158, %v55
  %161 = vset.pattern.permute.xlu0 15
  %162 = vperm.xlu0 %161, %v84
  %v163 = vpop.permute.xlu0 %162
  %v165 = vmul.f32 %v163, %v57
  %v166 = vadd.f32 %v90, %v95
  %v167 = vadd.f32 %v100, %v105
  %v168 = vadd.f32 %v110, %v115
  %v169 = vadd.f32 %v120, %v125
  %v170 = vadd.f32 %v130, %v135
  %v171 = vadd.f32 %v140, %v145
  %v172 = vadd.f32 %v150, %v155
  %v173 = vadd.f32 %v160, %v165
  %v174 = vadd.f32 %v166, %v167
  %v175 = vadd.f32 %v168, %v169
  %v176 = vadd.f32 %v170, %v171
  %v177 = vadd.f32 %v172, %v173
  %v178 = vadd.f32 %v174, %v175
  %v179 = vadd.f32 %v176, %v177
  %v180 = vadd.f32 %v178, %v179
  %v181 = vadd.f32 %v180, %v80
  %v182 = vtanh.pop %v181
  %v183 = vmul.f32 %v182, %v82
  %v184 = vsub.f32 %v183, %v77
  %v185 = vadd.f32 %v184, 0.0
  %s186 = scalar_lea.vmem %s0, 8
  %v187 = vld [vmem:[%s186] sm:$0x3]
  %s188 = scalar_lea.vmem %s0, 10
  %v189 = vld [vmem:[%s188] sm:$0x3]
  %v190 = vmax.f32 %v185, -1.0
  %v191 = vmin.f32 %v190, 1.0
  %193 = vset.pattern.permute.xlu0 0
  %194 = vperm.xlu0 %193, %v191
  %v195 = vpop.permute.xlu0 %194
  %v197 = vmul.f32 %v195, %v27
  %198 = vset.pattern.permute.xlu0 1
  %199 = vperm.xlu0 %198, %v191
  %v200 = vpop.permute.xlu0 %199
  %v202 = vmul.f32 %v200, %v29
  %203 = vset.pattern.permute.xlu0 2
  %204 = vperm.xlu0 %203, %v191
  %v205 = vpop.permute.xlu0 %204
  %v207 = vmul.f32 %v205, %v31
  %208 = vset.pattern.permute.xlu0 3
  %209 = vperm.xlu0 %208, %v191
  %v210 = vpop.permute.xlu0 %209
  %v212 = vmul.f32 %v210, %v33
  %213 = vset.pattern.permute.xlu0 4
  %214 = vperm.xlu0 %213, %v191
  %v215 = vpop.permute.xlu0 %214
  %v217 = vmul.f32 %v215, %v35
  %218 = vset.pattern.permute.xlu0 5
  %219 = vperm.xlu0 %218, %v191
  %v220 = vpop.permute.xlu0 %219
  %v222 = vmul.f32 %v220, %v37
  %223 = vset.pattern.permute.xlu0 6
  %224 = vperm.xlu0 %223, %v191
  %v225 = vpop.permute.xlu0 %224
  %v227 = vmul.f32 %v225, %v39
  %228 = vset.pattern.permute.xlu0 7
  %229 = vperm.xlu0 %228, %v191
  %v230 = vpop.permute.xlu0 %229
  %v232 = vmul.f32 %v230, %v41
  %233 = vset.pattern.permute.xlu0 8
  %234 = vperm.xlu0 %233, %v191
  %v235 = vpop.permute.xlu0 %234
  %v237 = vmul.f32 %v235, %v43
  %238 = vset.pattern.permute.xlu0 9
  %239 = vperm.xlu0 %238, %v191
  %v240 = vpop.permute.xlu0 %239
  %v242 = vmul.f32 %v240, %v45
  %243 = vset.pattern.permute.xlu0 10
  %244 = vperm.xlu0 %243, %v191
  %v245 = vpop.permute.xlu0 %244
  %v247 = vmul.f32 %v245, %v47
  %248 = vset.pattern.permute.xlu0 11
  %249 = vperm.xlu0 %248, %v191
  %v250 = vpop.permute.xlu0 %249
  %v252 = vmul.f32 %v250, %v49
  %253 = vset.pattern.permute.xlu0 12
  %254 = vperm.xlu0 %253, %v191
  %v255 = vpop.permute.xlu0 %254
  %v257 = vmul.f32 %v255, %v51
  %258 = vset.pattern.permute.xlu0 13
  %259 = vperm.xlu0 %258, %v191
  %v260 = vpop.permute.xlu0 %259
  %v262 = vmul.f32 %v260, %v53
  %263 = vset.pattern.permute.xlu0 14
  %264 = vperm.xlu0 %263, %v191
  %v265 = vpop.permute.xlu0 %264
  %v267 = vmul.f32 %v265, %v55
  %268 = vset.pattern.permute.xlu0 15
  %269 = vperm.xlu0 %268, %v191
  %v270 = vpop.permute.xlu0 %269
  %v272 = vmul.f32 %v270, %v57
  %v273 = vadd.f32 %v197, %v202
  %v274 = vadd.f32 %v207, %v212
  %v275 = vadd.f32 %v217, %v222
  %v276 = vadd.f32 %v227, %v232
  %v277 = vadd.f32 %v237, %v242
  %v278 = vadd.f32 %v247, %v252
  %v279 = vadd.f32 %v257, %v262
  %v280 = vadd.f32 %v267, %v272
  %v281 = vadd.f32 %v273, %v274
  %v282 = vadd.f32 %v275, %v276
  %v283 = vadd.f32 %v277, %v278
  %v284 = vadd.f32 %v279, %v280
  %v285 = vadd.f32 %v281, %v282
  %v286 = vadd.f32 %v283, %v284
  %v287 = vadd.f32 %v285, %v286
  %v288 = vadd.f32 %v287, %v187
  %v289 = vtanh.pop %v288
  %v290 = vmul.f32 %v289, %v189
  %v291 = vsub.f32 %v76, %v183
  %v292 = vadd.f32 %v291, %v290
  %v293 = vadd.f32 %v292, 0.0
  %s294 = scalar_lea.vmem %s0, 12
  %v295 = vld [vmem:[%s294] sm:$0x3]
  %s296 = scalar_lea.vmem %s0, 14
  %v297 = vld [vmem:[%s296] sm:$0x3]
  %v298 = vmax.f32 %v293, -1.0
  %v299 = vmin.f32 %v298, 1.0
  %301 = vset.pattern.permute.xlu0 0
  %302 = vperm.xlu0 %301, %v299
  %v303 = vpop.permute.xlu0 %302
  %v305 = vmul.f32 %v303, %v27
  %306 = vset.pattern.permute.xlu0 1
  %307 = vperm.xlu0 %306, %v299
  %v308 = vpop.permute.xlu0 %307
  %v310 = vmul.f32 %v308, %v29
  %311 = vset.pattern.permute.xlu0 2
  %312 = vperm.xlu0 %311, %v299
  %v313 = vpop.permute.xlu0 %312
  %v315 = vmul.f32 %v313, %v31
  %316 = vset.pattern.permute.xlu0 3
  %317 = vperm.xlu0 %316, %v299
  %v318 = vpop.permute.xlu0 %317
  %v320 = vmul.f32 %v318, %v33
  %321 = vset.pattern.permute.xlu0 4
  %322 = vperm.xlu0 %321, %v299
  %v323 = vpop.permute.xlu0 %322
  %v325 = vmul.f32 %v323, %v35
  %326 = vset.pattern.permute.xlu0 5
  %327 = vperm.xlu0 %326, %v299
  %v328 = vpop.permute.xlu0 %327
  %v330 = vmul.f32 %v328, %v37
  %331 = vset.pattern.permute.xlu0 6
  %332 = vperm.xlu0 %331, %v299
  %v333 = vpop.permute.xlu0 %332
  %v335 = vmul.f32 %v333, %v39
  %336 = vset.pattern.permute.xlu0 7
  %337 = vperm.xlu0 %336, %v299
  %v338 = vpop.permute.xlu0 %337
  %v340 = vmul.f32 %v338, %v41
  %341 = vset.pattern.permute.xlu0 8
  %342 = vperm.xlu0 %341, %v299
  %v343 = vpop.permute.xlu0 %342
  %v345 = vmul.f32 %v343, %v43
  %346 = vset.pattern.permute.xlu0 9
  %347 = vperm.xlu0 %346, %v299
  %v348 = vpop.permute.xlu0 %347
  %v350 = vmul.f32 %v348, %v45
  %351 = vset.pattern.permute.xlu0 10
  %352 = vperm.xlu0 %351, %v299
  %v353 = vpop.permute.xlu0 %352
  %v355 = vmul.f32 %v353, %v47
  %356 = vset.pattern.permute.xlu0 11
  %357 = vperm.xlu0 %356, %v299
  %v358 = vpop.permute.xlu0 %357
  %v360 = vmul.f32 %v358, %v49
  %361 = vset.pattern.permute.xlu0 12
  %362 = vperm.xlu0 %361, %v299
  %v363 = vpop.permute.xlu0 %362
  %v365 = vmul.f32 %v363, %v51
  %366 = vset.pattern.permute.xlu0 13
  %367 = vperm.xlu0 %366, %v299
  %v368 = vpop.permute.xlu0 %367
  %v370 = vmul.f32 %v368, %v53
  %371 = vset.pattern.permute.xlu0 14
  %372 = vperm.xlu0 %371, %v299
  %v373 = vpop.permute.xlu0 %372
  %v375 = vmul.f32 %v373, %v55
  %376 = vset.pattern.permute.xlu0 15
  %377 = vperm.xlu0 %376, %v299
  %v378 = vpop.permute.xlu0 %377
  %v380 = vmul.f32 %v378, %v57
  %v381 = vadd.f32 %v305, %v310
  %v382 = vadd.f32 %v315, %v320
  %v383 = vadd.f32 %v325, %v330
  %v384 = vadd.f32 %v335, %v340
  %v385 = vadd.f32 %v345, %v350
  %v386 = vadd.f32 %v355, %v360
  %v387 = vadd.f32 %v365, %v370
  %v388 = vadd.f32 %v375, %v380
  %v389 = vadd.f32 %v381, %v382
  %v390 = vadd.f32 %v383, %v384
  %v391 = vadd.f32 %v385, %v386
  %v392 = vadd.f32 %v387, %v388
  %v393 = vadd.f32 %v389, %v390
  %v394 = vadd.f32 %v391, %v392
  %v395 = vadd.f32 %v393, %v394
  %v396 = vadd.f32 %v395, %v295
  %v397 = vtanh.pop %v396
  %v398 = vmul.f32 %v397, %v297
  %v399 = vadd.f32 %v183, %v290
  %v400 = vmul.f32 %v399, 3.0
  %v401 = vadd.f32 %v76, %v400
  %v402 = vadd.f32 %v401, %v398
  %v403 = vmul.f32 %v402, 0.125
  %v404 = vadd.f32 %v403, 0.0
  %v406 = vrot.slane %v404, 1
  %408 = vst.msk [vmem:[#allocation2 + $0x1] sm:$0x1] %vm21, %v404
  %409 = vst.msk [vmem:[#allocation2 + $0x9] sm:$0x1] %vm21, %v406
  %s410 = scalar_lea.vmem %s0, 16
  %v411 = vld [vmem:[%s410] sm:$0x3]
  %s412 = scalar_lea.vmem %s0, 18
  %v413 = vld [vmem:[%s412] sm:$0x3]
  %v414 = vmax.f32 %v404, -1.0
  %v415 = vmin.f32 %v414, 1.0
  %417 = vset.pattern.permute.xlu0 0
  %418 = vperm.xlu0 %417, %v415
  %v419 = vpop.permute.xlu0 %418
  %v421 = vmul.f32 %v419, %v27
  %422 = vset.pattern.permute.xlu0 1
  %423 = vperm.xlu0 %422, %v415
  %v424 = vpop.permute.xlu0 %423
  %v426 = vmul.f32 %v424, %v29
  %427 = vset.pattern.permute.xlu0 2
  %428 = vperm.xlu0 %427, %v415
  %v429 = vpop.permute.xlu0 %428
  %v431 = vmul.f32 %v429, %v31
  %432 = vset.pattern.permute.xlu0 3
  %433 = vperm.xlu0 %432, %v415
  %v434 = vpop.permute.xlu0 %433
  %v436 = vmul.f32 %v434, %v33
  %437 = vset.pattern.permute.xlu0 4
  %438 = vperm.xlu0 %437, %v415
  %v439 = vpop.permute.xlu0 %438
  %v441 = vmul.f32 %v439, %v35
  %442 = vset.pattern.permute.xlu0 5
  %443 = vperm.xlu0 %442, %v415
  %v444 = vpop.permute.xlu0 %443
  %v446 = vmul.f32 %v444, %v37
  %447 = vset.pattern.permute.xlu0 6
  %448 = vperm.xlu0 %447, %v415
  %v449 = vpop.permute.xlu0 %448
  %v451 = vmul.f32 %v449, %v39
  %452 = vset.pattern.permute.xlu0 7
  %453 = vperm.xlu0 %452, %v415
  %v454 = vpop.permute.xlu0 %453
  %v456 = vmul.f32 %v454, %v41
  %457 = vset.pattern.permute.xlu0 8
  %458 = vperm.xlu0 %457, %v415
  %v459 = vpop.permute.xlu0 %458
  %v461 = vmul.f32 %v459, %v43
  %462 = vset.pattern.permute.xlu0 9
  %463 = vperm.xlu0 %462, %v415
  %v464 = vpop.permute.xlu0 %463
  %v466 = vmul.f32 %v464, %v45
  %467 = vset.pattern.permute.xlu0 10
  %468 = vperm.xlu0 %467, %v415
  %v469 = vpop.permute.xlu0 %468
  %v471 = vmul.f32 %v469, %v47
  %472 = vset.pattern.permute.xlu0 11
  %473 = vperm.xlu0 %472, %v415
  %v474 = vpop.permute.xlu0 %473
  %v476 = vmul.f32 %v474, %v49
  %477 = vset.pattern.permute.xlu0 12
  %478 = vperm.xlu0 %477, %v415
  %v479 = vpop.permute.xlu0 %478
  %v481 = vmul.f32 %v479, %v51
  %482 = vset.pattern.permute.xlu0 13
  %483 = vperm.xlu0 %482, %v415
  %v484 = vpop.permute.xlu0 %483
  %v486 = vmul.f32 %v484, %v53
  %487 = vset.pattern.permute.xlu0 14
  %488 = vperm.xlu0 %487, %v415
  %v489 = vpop.permute.xlu0 %488
  %v491 = vmul.f32 %v489, %v55
  %492 = vset.pattern.permute.xlu0 15
  %493 = vperm.xlu0 %492, %v415
  %v494 = vpop.permute.xlu0 %493
  %v496 = vmul.f32 %v494, %v57
  %v497 = vadd.f32 %v421, %v426
  %v498 = vadd.f32 %v431, %v436
  %v499 = vadd.f32 %v441, %v446
  %v500 = vadd.f32 %v451, %v456
  %v501 = vadd.f32 %v461, %v466
  %v502 = vadd.f32 %v471, %v476
  %v503 = vadd.f32 %v481, %v486
  %v504 = vadd.f32 %v491, %v496
  %v505 = vadd.f32 %v497, %v498
  %v506 = vadd.f32 %v499, %v500
  %v507 = vadd.f32 %v501, %v502
  %v508 = vadd.f32 %v503, %v504
  %v509 = vadd.f32 %v505, %v506
  %v510 = vadd.f32 %v507, %v508
  %v511 = vadd.f32 %v509, %v510
  %v512 = vadd.f32 %v511, %v411
  %v513 = vtanh.pop %v512
  %v514 = vmul.f32 %v513, %v413
  %v515 = vmul.f32 %v514, 0.33333334
  %v516 = vadd.f32 %v404, %v515
  %s517 = scalar_lea.vmem %s0, 20
  %v518 = vld [vmem:[%s517] sm:$0x3]
  %s519 = scalar_lea.vmem %s0, 22
  %v520 = vld [vmem:[%s519] sm:$0x3]
  %v521 = vmax.f32 %v516, -1.0
  %v522 = vmin.f32 %v521, 1.0
  %524 = vset.pattern.permute.xlu0 0
  %525 = vperm.xlu0 %524, %v522
  %v526 = vpop.permute.xlu0 %525
  %v528 = vmul.f32 %v526, %v27
  %529 = vset.pattern.permute.xlu0 1
  %530 = vperm.xlu0 %529, %v522
  %v531 = vpop.permute.xlu0 %530
  %v533 = vmul.f32 %v531, %v29
  %534 = vset.pattern.permute.xlu0 2
  %535 = vperm.xlu0 %534, %v522
  %v536 = vpop.permute.xlu0 %535
  %v538 = vmul.f32 %v536, %v31
  %539 = vset.pattern.permute.xlu0 3
  %540 = vperm.xlu0 %539, %v522
  %v541 = vpop.permute.xlu0 %540
  %v543 = vmul.f32 %v541, %v33
  %544 = vset.pattern.permute.xlu0 4
  %545 = vperm.xlu0 %544, %v522
  %v546 = vpop.permute.xlu0 %545
  %v548 = vmul.f32 %v546, %v35
  %549 = vset.pattern.permute.xlu0 5
  %550 = vperm.xlu0 %549, %v522
  %v551 = vpop.permute.xlu0 %550
  %v553 = vmul.f32 %v551, %v37
  %554 = vset.pattern.permute.xlu0 6
  %555 = vperm.xlu0 %554, %v522
  %v556 = vpop.permute.xlu0 %555
  %v558 = vmul.f32 %v556, %v39
  %559 = vset.pattern.permute.xlu0 7
  %560 = vperm.xlu0 %559, %v522
  %v561 = vpop.permute.xlu0 %560
  %v563 = vmul.f32 %v561, %v41
  %564 = vset.pattern.permute.xlu0 8
  %565 = vperm.xlu0 %564, %v522
  %v566 = vpop.permute.xlu0 %565
  %v568 = vmul.f32 %v566, %v43
  %569 = vset.pattern.permute.xlu0 9
  %570 = vperm.xlu0 %569, %v522
  %v571 = vpop.permute.xlu0 %570
  %v573 = vmul.f32 %v571, %v45
  %574 = vset.pattern.permute.xlu0 10
  %575 = vperm.xlu0 %574, %v522
  %v576 = vpop.permute.xlu0 %575
  %v578 = vmul.f32 %v576, %v47
  %579 = vset.pattern.permute.xlu0 11
  %580 = vperm.xlu0 %579, %v522
  %v581 = vpop.permute.xlu0 %580
  %v583 = vmul.f32 %v581, %v49
  %584 = vset.pattern.permute.xlu0 12
  %585 = vperm.xlu0 %584, %v522
  %v586 = vpop.permute.xlu0 %585
  %v588 = vmul.f32 %v586, %v51
  %589 = vset.pattern.permute.xlu0 13
  %590 = vperm.xlu0 %589, %v522
  %v591 = vpop.permute.xlu0 %590
  %v593 = vmul.f32 %v591, %v53
  %594 = vset.pattern.permute.xlu0 14
  %595 = vperm.xlu0 %594, %v522
  %v596 = vpop.permute.xlu0 %595
  %v598 = vmul.f32 %v596, %v55
  %599 = vset.pattern.permute.xlu0 15
  %600 = vperm.xlu0 %599, %v522
  %v601 = vpop.permute.xlu0 %600
  %v603 = vmul.f32 %v601, %v57
  %v604 = vadd.f32 %v528, %v533
  %v605 = vadd.f32 %v538, %v543
  %v606 = vadd.f32 %v548, %v553
  %v607 = vadd.f32 %v558, %v563
  %v608 = vadd.f32 %v568, %v573
  %v609 = vadd.f32 %v578, %v583
  %v610 = vadd.f32 %v588, %v593
  %v611 = vadd.f32 %v598, %v603
  %v612 = vadd.f32 %v604, %v605
  %v613 = vadd.f32 %v606, %v607
  %v614 = vadd.f32 %v608, %v609
  %v615 = vadd.f32 %v610, %v611
  %v616 = vadd.f32 %v612, %v613
  %v617 = vadd.f32 %v614, %v615
  %v618 = vadd.f32 %v616, %v617
  %v619 = vadd.f32 %v618, %v518
  %v620 = vtanh.pop %v619
  %v621 = vmul.f32 %v620, %v520
  %v622 = vsub.f32 %v621, %v515
  %v623 = vadd.f32 %v404, %v622
  %s624 = scalar_lea.vmem %s0, 24
  %v625 = vld [vmem:[%s624] sm:$0x3]
  %s626 = scalar_lea.vmem %s0, 26
  %v627 = vld [vmem:[%s626] sm:$0x3]
  %v628 = vmax.f32 %v623, -1.0
  %v629 = vmin.f32 %v628, 1.0
  %631 = vset.pattern.permute.xlu0 0
  %632 = vperm.xlu0 %631, %v629
  %v633 = vpop.permute.xlu0 %632
  %v635 = vmul.f32 %v633, %v27
  %636 = vset.pattern.permute.xlu0 1
  %637 = vperm.xlu0 %636, %v629
  %v638 = vpop.permute.xlu0 %637
  %v640 = vmul.f32 %v638, %v29
  %641 = vset.pattern.permute.xlu0 2
  %642 = vperm.xlu0 %641, %v629
  %v643 = vpop.permute.xlu0 %642
  %v645 = vmul.f32 %v643, %v31
  %646 = vset.pattern.permute.xlu0 3
  %647 = vperm.xlu0 %646, %v629
  %v648 = vpop.permute.xlu0 %647
  %v650 = vmul.f32 %v648, %v33
  %651 = vset.pattern.permute.xlu0 4
  %652 = vperm.xlu0 %651, %v629
  %v653 = vpop.permute.xlu0 %652
  %v655 = vmul.f32 %v653, %v35
  %656 = vset.pattern.permute.xlu0 5
  %657 = vperm.xlu0 %656, %v629
  %v658 = vpop.permute.xlu0 %657
  %v660 = vmul.f32 %v658, %v37
  %661 = vset.pattern.permute.xlu0 6
  %662 = vperm.xlu0 %661, %v629
  %v663 = vpop.permute.xlu0 %662
  %v665 = vmul.f32 %v663, %v39
  %666 = vset.pattern.permute.xlu0 7
  %667 = vperm.xlu0 %666, %v629
  %v668 = vpop.permute.xlu0 %667
  %v670 = vmul.f32 %v668, %v41
  %671 = vset.pattern.permute.xlu0 8
  %672 = vperm.xlu0 %671, %v629
  %v673 = vpop.permute.xlu0 %672
  %v675 = vmul.f32 %v673, %v43
  %676 = vset.pattern.permute.xlu0 9
  %677 = vperm.xlu0 %676, %v629
  %v678 = vpop.permute.xlu0 %677
  %v680 = vmul.f32 %v678, %v45
  %681 = vset.pattern.permute.xlu0 10
  %682 = vperm.xlu0 %681, %v629
  %v683 = vpop.permute.xlu0 %682
  %v685 = vmul.f32 %v683, %v47
  %686 = vset.pattern.permute.xlu0 11
  %687 = vperm.xlu0 %686, %v629
  %v688 = vpop.permute.xlu0 %687
  %v690 = vmul.f32 %v688, %v49
  %691 = vset.pattern.permute.xlu0 12
  %692 = vperm.xlu0 %691, %v629
  %v693 = vpop.permute.xlu0 %692
  %v695 = vmul.f32 %v693, %v51
  %696 = vset.pattern.permute.xlu0 13
  %697 = vperm.xlu0 %696, %v629
  %v698 = vpop.permute.xlu0 %697
  %v700 = vmul.f32 %v698, %v53
  %701 = vset.pattern.permute.xlu0 14
  %702 = vperm.xlu0 %701, %v629
  %v703 = vpop.permute.xlu0 %702
  %v705 = vmul.f32 %v703, %v55
  %706 = vset.pattern.permute.xlu0 15
  %707 = vperm.xlu0 %706, %v629
  %v708 = vpop.permute.xlu0 %707
  %v710 = vmul.f32 %v708, %v57
  %v711 = vadd.f32 %v635, %v640
  %v712 = vadd.f32 %v645, %v650
  %v713 = vadd.f32 %v655, %v660
  %v714 = vadd.f32 %v665, %v670
  %v715 = vadd.f32 %v675, %v680
  %v716 = vadd.f32 %v685, %v690
  %v717 = vadd.f32 %v695, %v700
  %v718 = vadd.f32 %v705, %v710
  %v719 = vadd.f32 %v711, %v712
  %v720 = vadd.f32 %v713, %v714
  %v721 = vadd.f32 %v715, %v716
  %v722 = vadd.f32 %v717, %v718
  %v723 = vadd.f32 %v719, %v720
  %v724 = vadd.f32 %v721, %v722
  %v725 = vadd.f32 %v723, %v724
  %v726 = vadd.f32 %v725, %v625
  %v727 = vtanh.pop %v726
  %v728 = vmul.f32 %v727, %v627
  %v729 = vsub.f32 %v514, %v621
  %v730 = vadd.f32 %v729, %v728
  %v731 = vadd.f32 %v404, %v730
  %s732 = scalar_lea.vmem %s0, 28
  %v733 = vld [vmem:[%s732] sm:$0x3]
  %s734 = scalar_lea.vmem %s0, 30
  %v735 = vld [vmem:[%s734] sm:$0x3]
  %v736 = vmax.f32 %v731, -1.0
  %v737 = vmin.f32 %v736, 1.0
  %739 = vset.pattern.permute.xlu0 0
  %740 = vperm.xlu0 %739, %v737
  %v741 = vpop.permute.xlu0 %740
  %v743 = vmul.f32 %v741, %v27
  %744 = vset.pattern.permute.xlu0 1
  %745 = vperm.xlu0 %744, %v737
  %v746 = vpop.permute.xlu0 %745
  %v748 = vmul.f32 %v746, %v29
  %749 = vset.pattern.permute.xlu0 2
  %750 = vperm.xlu0 %749, %v737
  %v751 = vpop.permute.xlu0 %750
  %v753 = vmul.f32 %v751, %v31
  %754 = vset.pattern.permute.xlu0 3
  %755 = vperm.xlu0 %754, %v737
  %v756 = vpop.permute.xlu0 %755
  %v758 = vmul.f32 %v756, %v33
  %759 = vset.pattern.permute.xlu0 4
  %760 = vperm.xlu0 %759, %v737
  %v761 = vpop.permute.xlu0 %760
  %v763 = vmul.f32 %v761, %v35
  %764 = vset.pattern.permute.xlu0 5
  %765 = vperm.xlu0 %764, %v737
  %v766 = vpop.permute.xlu0 %765
  %v768 = vmul.f32 %v766, %v37
  %769 = vset.pattern.permute.xlu0 6
  %770 = vperm.xlu0 %769, %v737
  %v771 = vpop.permute.xlu0 %770
  %v773 = vmul.f32 %v771, %v39
  %774 = vset.pattern.permute.xlu0 7
  %775 = vperm.xlu0 %774, %v737
  %v776 = vpop.permute.xlu0 %775
  %v778 = vmul.f32 %v776, %v41
  %779 = vset.pattern.permute.xlu0 8
  %780 = vperm.xlu0 %779, %v737
  %v781 = vpop.permute.xlu0 %780
  %v783 = vmul.f32 %v781, %v43
  %784 = vset.pattern.permute.xlu0 9
  %785 = vperm.xlu0 %784, %v737
  %v786 = vpop.permute.xlu0 %785
  %v788 = vmul.f32 %v786, %v45
  %789 = vset.pattern.permute.xlu0 10
  %790 = vperm.xlu0 %789, %v737
  %v791 = vpop.permute.xlu0 %790
  %v793 = vmul.f32 %v791, %v47
  %794 = vset.pattern.permute.xlu0 11
  %795 = vperm.xlu0 %794, %v737
  %v796 = vpop.permute.xlu0 %795
  %v798 = vmul.f32 %v796, %v49
  %799 = vset.pattern.permute.xlu0 12
  %800 = vperm.xlu0 %799, %v737
  %v801 = vpop.permute.xlu0 %800
  %v803 = vmul.f32 %v801, %v51
  %804 = vset.pattern.permute.xlu0 13
  %805 = vperm.xlu0 %804, %v737
  %v806 = vpop.permute.xlu0 %805
  %v808 = vmul.f32 %v806, %v53
  %809 = vset.pattern.permute.xlu0 14
  %810 = vperm.xlu0 %809, %v737
  %v811 = vpop.permute.xlu0 %810
  %v813 = vmul.f32 %v811, %v55
  %814 = vset.pattern.permute.xlu0 15
  %815 = vperm.xlu0 %814, %v737
  %v816 = vpop.permute.xlu0 %815
  %v818 = vmul.f32 %v816, %v57
  %v819 = vadd.f32 %v743, %v748
  %v820 = vadd.f32 %v753, %v758
  %v821 = vadd.f32 %v763, %v768
  %v822 = vadd.f32 %v773, %v778
  %v823 = vadd.f32 %v783, %v788
  %v824 = vadd.f32 %v793, %v798
  %v825 = vadd.f32 %v803, %v808
  %v826 = vadd.f32 %v813, %v818
  %v827 = vadd.f32 %v819, %v820
  %v828 = vadd.f32 %v821, %v822
  %v829 = vadd.f32 %v823, %v824
  %v830 = vadd.f32 %v825, %v826
  %v831 = vadd.f32 %v827, %v828
  %v832 = vadd.f32 %v829, %v830
  %v833 = vadd.f32 %v831, %v832
  %v834 = vadd.f32 %v833, %v733
  %v835 = vtanh.pop %v834
  %v836 = vmul.f32 %v835, %v735
  %v837 = vadd.f32 %v621, %v728
  %v838 = vmul.f32 %v837, 3.0
  %v839 = vadd.f32 %v514, %v838
  %v840 = vadd.f32 %v839, %v836
  %v841 = vmul.f32 %v840, 0.125
  %v842 = vadd.f32 %v404, %v841
  %v844 = vrot.slane %v842, 1
  %846 = vst.msk [vmem:[#allocation2 + $0x2] sm:$0x1] %vm21, %v842
  %847 = vst.msk [vmem:[#allocation2 + $0xa] sm:$0x1] %vm21, %v844
  %s848 = scalar_lea.vmem %s0, 32
  %v849 = vld [vmem:[%s848] sm:$0x3]
  %s850 = scalar_lea.vmem %s0, 34
  %v851 = vld [vmem:[%s850] sm:$0x3]
  %v852 = vmax.f32 %v842, -1.0
  %v853 = vmin.f32 %v852, 1.0
  %855 = vset.pattern.permute.xlu0 0
  %856 = vperm.xlu0 %855, %v853
  %v857 = vpop.permute.xlu0 %856
  %v859 = vmul.f32 %v857, %v27
  %860 = vset.pattern.permute.xlu0 1
  %861 = vperm.xlu0 %860, %v853
  %v862 = vpop.permute.xlu0 %861
  %v864 = vmul.f32 %v862, %v29
  %865 = vset.pattern.permute.xlu0 2
  %866 = vperm.xlu0 %865, %v853
  %v867 = vpop.permute.xlu0 %866
  %v869 = vmul.f32 %v867, %v31
  %870 = vset.pattern.permute.xlu0 3
  %871 = vperm.xlu0 %870, %v853
  %v872 = vpop.permute.xlu0 %871
  %v874 = vmul.f32 %v872, %v33
  %875 = vset.pattern.permute.xlu0 4
  %876 = vperm.xlu0 %875, %v853
  %v877 = vpop.permute.xlu0 %876
  %v879 = vmul.f32 %v877, %v35
  %880 = vset.pattern.permute.xlu0 5
  %881 = vperm.xlu0 %880, %v853
  %v882 = vpop.permute.xlu0 %881
  %v884 = vmul.f32 %v882, %v37
  %885 = vset.pattern.permute.xlu0 6
  %886 = vperm.xlu0 %885, %v853
  %v887 = vpop.permute.xlu0 %886
  %v889 = vmul.f32 %v887, %v39
  %890 = vset.pattern.permute.xlu0 7
  %891 = vperm.xlu0 %890, %v853
  %v892 = vpop.permute.xlu0 %891
  %v894 = vmul.f32 %v892, %v41
  %895 = vset.pattern.permute.xlu0 8
  %896 = vperm.xlu0 %895, %v853
  %v897 = vpop.permute.xlu0 %896
  %v899 = vmul.f32 %v897, %v43
  %900 = vset.pattern.permute.xlu0 9
  %901 = vperm.xlu0 %900, %v853
  %v902 = vpop.permute.xlu0 %901
  %v904 = vmul.f32 %v902, %v45
  %905 = vset.pattern.permute.xlu0 10
  %906 = vperm.xlu0 %905, %v853
  %v907 = vpop.permute.xlu0 %906
  %v909 = vmul.f32 %v907, %v47
  %910 = vset.pattern.permute.xlu0 11
  %911 = vperm.xlu0 %910, %v853
  %v912 = vpop.permute.xlu0 %911
  %v914 = vmul.f32 %v912, %v49
  %915 = vset.pattern.permute.xlu0 12
  %916 = vperm.xlu0 %915, %v853
  %v917 = vpop.permute.xlu0 %916
  %v919 = vmul.f32 %v917, %v51
  %920 = vset.pattern.permute.xlu0 13
  %921 = vperm.xlu0 %920, %v853
  %v922 = vpop.permute.xlu0 %921
  %v924 = vmul.f32 %v922, %v53
  %925 = vset.pattern.permute.xlu0 14
  %926 = vperm.xlu0 %925, %v853
  %v927 = vpop.permute.xlu0 %926
  %v929 = vmul.f32 %v927, %v55
  %930 = vset.pattern.permute.xlu0 15
  %931 = vperm.xlu0 %930, %v853
  %v932 = vpop.permute.xlu0 %931
  %v934 = vmul.f32 %v932, %v57
  %v935 = vadd.f32 %v859, %v864
  %v936 = vadd.f32 %v869, %v874
  %v937 = vadd.f32 %v879, %v884
  %v938 = vadd.f32 %v889, %v894
  %v939 = vadd.f32 %v899, %v904
  %v940 = vadd.f32 %v909, %v914
  %v941 = vadd.f32 %v919, %v924
  %v942 = vadd.f32 %v929, %v934
  %v943 = vadd.f32 %v935, %v936
  %v944 = vadd.f32 %v937, %v938
  %v945 = vadd.f32 %v939, %v940
  %v946 = vadd.f32 %v941, %v942
  %v947 = vadd.f32 %v943, %v944
  %v948 = vadd.f32 %v945, %v946
  %v949 = vadd.f32 %v947, %v948
  %v950 = vadd.f32 %v949, %v849
  %v951 = vtanh.pop %v950
  %v952 = vmul.f32 %v951, %v851
  %v953 = vmul.f32 %v952, 0.33333334
  %v954 = vadd.f32 %v842, %v953
  %s955 = scalar_lea.vmem %s0, 36
  %v956 = vld [vmem:[%s955] sm:$0x3]
  %s957 = scalar_lea.vmem %s0, 38
  %v958 = vld [vmem:[%s957] sm:$0x3]
  %v959 = vmax.f32 %v954, -1.0
  %v960 = vmin.f32 %v959, 1.0
  %962 = vset.pattern.permute.xlu0 0
  %963 = vperm.xlu0 %962, %v960
  %v964 = vpop.permute.xlu0 %963
  %v966 = vmul.f32 %v964, %v27
  %967 = vset.pattern.permute.xlu0 1
  %968 = vperm.xlu0 %967, %v960
  %v969 = vpop.permute.xlu0 %968
  %v971 = vmul.f32 %v969, %v29
  %972 = vset.pattern.permute.xlu0 2
  %973 = vperm.xlu0 %972, %v960
  %v974 = vpop.permute.xlu0 %973
  %v976 = vmul.f32 %v974, %v31
  %977 = vset.pattern.permute.xlu0 3
  %978 = vperm.xlu0 %977, %v960
  %v979 = vpop.permute.xlu0 %978
  %v981 = vmul.f32 %v979, %v33
  %982 = vset.pattern.permute.xlu0 4
  %983 = vperm.xlu0 %982, %v960
  %v984 = vpop.permute.xlu0 %983
  %v986 = vmul.f32 %v984, %v35
  %987 = vset.pattern.permute.xlu0 5
  %988 = vperm.xlu0 %987, %v960
  %v989 = vpop.permute.xlu0 %988
  %v991 = vmul.f32 %v989, %v37
  %992 = vset.pattern.permute.xlu0 6
  %993 = vperm.xlu0 %992, %v960
  %v994 = vpop.permute.xlu0 %993
  %v996 = vmul.f32 %v994, %v39
  %997 = vset.pattern.permute.xlu0 7
  %998 = vperm.xlu0 %997, %v960
  %v999 = vpop.permute.xlu0 %998
  %v1001 = vmul.f32 %v999, %v41
  %1002 = vset.pattern.permute.xlu0 8
  %1003 = vperm.xlu0 %1002, %v960
  %v1004 = vpop.permute.xlu0 %1003
  %v1006 = vmul.f32 %v1004, %v43
  %1007 = vset.pattern.permute.xlu0 9
  %1008 = vperm.xlu0 %1007, %v960
  %v1009 = vpop.permute.xlu0 %1008
  %v1011 = vmul.f32 %v1009, %v45
  %1012 = vset.pattern.permute.xlu0 10
  %1013 = vperm.xlu0 %1012, %v960
  %v1014 = vpop.permute.xlu0 %1013
  %v1016 = vmul.f32 %v1014, %v47
  %1017 = vset.pattern.permute.xlu0 11
  %1018 = vperm.xlu0 %1017, %v960
  %v1019 = vpop.permute.xlu0 %1018
  %v1021 = vmul.f32 %v1019, %v49
  %1022 = vset.pattern.permute.xlu0 12
  %1023 = vperm.xlu0 %1022, %v960
  %v1024 = vpop.permute.xlu0 %1023
  %v1026 = vmul.f32 %v1024, %v51
  %1027 = vset.pattern.permute.xlu0 13
  %1028 = vperm.xlu0 %1027, %v960
  %v1029 = vpop.permute.xlu0 %1028
  %v1031 = vmul.f32 %v1029, %v53
  %1032 = vset.pattern.permute.xlu0 14
  %1033 = vperm.xlu0 %1032, %v960
  %v1034 = vpop.permute.xlu0 %1033
  %v1036 = vmul.f32 %v1034, %v55
  %1037 = vset.pattern.permute.xlu0 15
  %1038 = vperm.xlu0 %1037, %v960
  %v1039 = vpop.permute.xlu0 %1038
  %v1041 = vmul.f32 %v1039, %v57
  %v1042 = vadd.f32 %v966, %v971
  %v1043 = vadd.f32 %v976, %v981
  %v1044 = vadd.f32 %v986, %v991
  %v1045 = vadd.f32 %v996, %v1001
  %v1046 = vadd.f32 %v1006, %v1011
  %v1047 = vadd.f32 %v1016, %v1021
  %v1048 = vadd.f32 %v1026, %v1031
  %v1049 = vadd.f32 %v1036, %v1041
  %v1050 = vadd.f32 %v1042, %v1043
  %v1051 = vadd.f32 %v1044, %v1045
  %v1052 = vadd.f32 %v1046, %v1047
  %v1053 = vadd.f32 %v1048, %v1049
  %v1054 = vadd.f32 %v1050, %v1051
  %v1055 = vadd.f32 %v1052, %v1053
  %v1056 = vadd.f32 %v1054, %v1055
  %v1057 = vadd.f32 %v1056, %v956
  %v1058 = vtanh.pop %v1057
  %v1059 = vmul.f32 %v1058, %v958
  %v1060 = vsub.f32 %v1059, %v953
  %v1061 = vadd.f32 %v842, %v1060
  %s1062 = scalar_lea.vmem %s0, 40
  %v1063 = vld [vmem:[%s1062] sm:$0x3]
  %s1064 = scalar_lea.vmem %s0, 42
  %v1065 = vld [vmem:[%s1064] sm:$0x3]
  %v1066 = vmax.f32 %v1061, -1.0
  %v1067 = vmin.f32 %v1066, 1.0
  %1069 = vset.pattern.permute.xlu0 0
  %1070 = vperm.xlu0 %1069, %v1067
  %v1071 = vpop.permute.xlu0 %1070
  %v1073 = vmul.f32 %v1071, %v27
  %1074 = vset.pattern.permute.xlu0 1
  %1075 = vperm.xlu0 %1074, %v1067
  %v1076 = vpop.permute.xlu0 %1075
  %v1078 = vmul.f32 %v1076, %v29
  %1079 = vset.pattern.permute.xlu0 2
  %1080 = vperm.xlu0 %1079, %v1067
  %v1081 = vpop.permute.xlu0 %1080
  %v1083 = vmul.f32 %v1081, %v31
  %1084 = vset.pattern.permute.xlu0 3
  %1085 = vperm.xlu0 %1084, %v1067
  %v1086 = vpop.permute.xlu0 %1085
  %v1088 = vmul.f32 %v1086, %v33
  %1089 = vset.pattern.permute.xlu0 4
  %1090 = vperm.xlu0 %1089, %v1067
  %v1091 = vpop.permute.xlu0 %1090
  %v1093 = vmul.f32 %v1091, %v35
  %1094 = vset.pattern.permute.xlu0 5
  %1095 = vperm.xlu0 %1094, %v1067
  %v1096 = vpop.permute.xlu0 %1095
  %v1098 = vmul.f32 %v1096, %v37
  %1099 = vset.pattern.permute.xlu0 6
  %1100 = vperm.xlu0 %1099, %v1067
  %v1101 = vpop.permute.xlu0 %1100
  %v1103 = vmul.f32 %v1101, %v39
  %1104 = vset.pattern.permute.xlu0 7
  %1105 = vperm.xlu0 %1104, %v1067
  %v1106 = vpop.permute.xlu0 %1105
  %v1108 = vmul.f32 %v1106, %v41
  %1109 = vset.pattern.permute.xlu0 8
  %1110 = vperm.xlu0 %1109, %v1067
  %v1111 = vpop.permute.xlu0 %1110
  %v1113 = vmul.f32 %v1111, %v43
  %1114 = vset.pattern.permute.xlu0 9
  %1115 = vperm.xlu0 %1114, %v1067
  %v1116 = vpop.permute.xlu0 %1115
  %v1118 = vmul.f32 %v1116, %v45
  %1119 = vset.pattern.permute.xlu0 10
  %1120 = vperm.xlu0 %1119, %v1067
  %v1121 = vpop.permute.xlu0 %1120
  %v1123 = vmul.f32 %v1121, %v47
  %1124 = vset.pattern.permute.xlu0 11
  %1125 = vperm.xlu0 %1124, %v1067
  %v1126 = vpop.permute.xlu0 %1125
  %v1128 = vmul.f32 %v1126, %v49
  %1129 = vset.pattern.permute.xlu0 12
  %1130 = vperm.xlu0 %1129, %v1067
  %v1131 = vpop.permute.xlu0 %1130
  %v1133 = vmul.f32 %v1131, %v51
  %1134 = vset.pattern.permute.xlu0 13
  %1135 = vperm.xlu0 %1134, %v1067
  %v1136 = vpop.permute.xlu0 %1135
  %v1138 = vmul.f32 %v1136, %v53
  %1139 = vset.pattern.permute.xlu0 14
  %1140 = vperm.xlu0 %1139, %v1067
  %v1141 = vpop.permute.xlu0 %1140
  %v1143 = vmul.f32 %v1141, %v55
  %1144 = vset.pattern.permute.xlu0 15
  %1145 = vperm.xlu0 %1144, %v1067
  %v1146 = vpop.permute.xlu0 %1145
  %v1148 = vmul.f32 %v1146, %v57
  %v1149 = vadd.f32 %v1073, %v1078
  %v1150 = vadd.f32 %v1083, %v1088
  %v1151 = vadd.f32 %v1093, %v1098
  %v1152 = vadd.f32 %v1103, %v1108
  %v1153 = vadd.f32 %v1113, %v1118
  %v1154 = vadd.f32 %v1123, %v1128
  %v1155 = vadd.f32 %v1133, %v1138
  %v1156 = vadd.f32 %v1143, %v1148
  %v1157 = vadd.f32 %v1149, %v1150
  %v1158 = vadd.f32 %v1151, %v1152
  %v1159 = vadd.f32 %v1153, %v1154
  %v1160 = vadd.f32 %v1155, %v1156
  %v1161 = vadd.f32 %v1157, %v1158
  %v1162 = vadd.f32 %v1159, %v1160
  %v1163 = vadd.f32 %v1161, %v1162
  %v1164 = vadd.f32 %v1163, %v1063
  %v1165 = vtanh.pop %v1164
  %v1166 = vmul.f32 %v1165, %v1065
  %v1167 = vsub.f32 %v952, %v1059
  %v1168 = vadd.f32 %v1167, %v1166
  %v1169 = vadd.f32 %v842, %v1168
  %s1170 = scalar_lea.vmem %s0, 44
  %v1171 = vld [vmem:[%s1170] sm:$0x3]
  %s1172 = scalar_lea.vmem %s0, 46
  %v1173 = vld [vmem:[%s1172] sm:$0x3]
  %v1174 = vmax.f32 %v1169, -1.0
  %v1175 = vmin.f32 %v1174, 1.0
  %1177 = vset.pattern.permute.xlu0 0
  %1178 = vperm.xlu0 %1177, %v1175
  %v1179 = vpop.permute.xlu0 %1178
  %v1181 = vmul.f32 %v1179, %v27
  %1182 = vset.pattern.permute.xlu0 1
  %1183 = vperm.xlu0 %1182, %v1175
  %v1184 = vpop.permute.xlu0 %1183
  %v1186 = vmul.f32 %v1184, %v29
  %1187 = vset.pattern.permute.xlu0 2
  %1188 = vperm.xlu0 %1187, %v1175
  %v1189 = vpop.permute.xlu0 %1188
  %v1191 = vmul.f32 %v1189, %v31
  %1192 = vset.pattern.permute.xlu0 3
  %1193 = vperm.xlu0 %1192, %v1175
  %v1194 = vpop.permute.xlu0 %1193
  %v1196 = vmul.f32 %v1194, %v33
  %1197 = vset.pattern.permute.xlu0 4
  %1198 = vperm.xlu0 %1197, %v1175
  %v1199 = vpop.permute.xlu0 %1198
  %v1201 = vmul.f32 %v1199, %v35
  %1202 = vset.pattern.permute.xlu0 5
  %1203 = vperm.xlu0 %1202, %v1175
  %v1204 = vpop.permute.xlu0 %1203
  %v1206 = vmul.f32 %v1204, %v37
  %1207 = vset.pattern.permute.xlu0 6
  %1208 = vperm.xlu0 %1207, %v1175
  %v1209 = vpop.permute.xlu0 %1208
  %v1211 = vmul.f32 %v1209, %v39
  %1212 = vset.pattern.permute.xlu0 7
  %1213 = vperm.xlu0 %1212, %v1175
  %v1214 = vpop.permute.xlu0 %1213
  %v1216 = vmul.f32 %v1214, %v41
  %1217 = vset.pattern.permute.xlu0 8
  %1218 = vperm.xlu0 %1217, %v1175
  %v1219 = vpop.permute.xlu0 %1218
  %v1221 = vmul.f32 %v1219, %v43
  %1222 = vset.pattern.permute.xlu0 9
  %1223 = vperm.xlu0 %1222, %v1175
  %v1224 = vpop.permute.xlu0 %1223
  %v1226 = vmul.f32 %v1224, %v45
  %1227 = vset.pattern.permute.xlu0 10
  %1228 = vperm.xlu0 %1227, %v1175
  %v1229 = vpop.permute.xlu0 %1228
  %v1231 = vmul.f32 %v1229, %v47
  %1232 = vset.pattern.permute.xlu0 11
  %1233 = vperm.xlu0 %1232, %v1175
  %v1234 = vpop.permute.xlu0 %1233
  %v1236 = vmul.f32 %v1234, %v49
  %1237 = vset.pattern.permute.xlu0 12
  %1238 = vperm.xlu0 %1237, %v1175
  %v1239 = vpop.permute.xlu0 %1238
  %v1241 = vmul.f32 %v1239, %v51
  %1242 = vset.pattern.permute.xlu0 13
  %1243 = vperm.xlu0 %1242, %v1175
  %v1244 = vpop.permute.xlu0 %1243
  %v1246 = vmul.f32 %v1244, %v53
  %1247 = vset.pattern.permute.xlu0 14
  %1248 = vperm.xlu0 %1247, %v1175
  %v1249 = vpop.permute.xlu0 %1248
  %v1251 = vmul.f32 %v1249, %v55
  %1252 = vset.pattern.permute.xlu0 15
  %1253 = vperm.xlu0 %1252, %v1175
  %v1254 = vpop.permute.xlu0 %1253
  %v1256 = vmul.f32 %v1254, %v57
  %v1257 = vadd.f32 %v1181, %v1186
  %v1258 = vadd.f32 %v1191, %v1196
  %v1259 = vadd.f32 %v1201, %v1206
  %v1260 = vadd.f32 %v1211, %v1216
  %v1261 = vadd.f32 %v1221, %v1226
  %v1262 = vadd.f32 %v1231, %v1236
  %v1263 = vadd.f32 %v1241, %v1246
  %v1264 = vadd.f32 %v1251, %v1256
  %v1265 = vadd.f32 %v1257, %v1258
  %v1266 = vadd.f32 %v1259, %v1260
  %v1267 = vadd.f32 %v1261, %v1262
  %v1268 = vadd.f32 %v1263, %v1264
  %v1269 = vadd.f32 %v1265, %v1266
  %v1270 = vadd.f32 %v1267, %v1268
  %v1271 = vadd.f32 %v1269, %v1270
  %v1272 = vadd.f32 %v1271, %v1171
  %v1273 = vtanh.pop %v1272
  %v1274 = vmul.f32 %v1273, %v1173
  %v1275 = vadd.f32 %v1059, %v1166
  %v1276 = vmul.f32 %v1275, 3.0
  %v1277 = vadd.f32 %v952, %v1276
  %v1278 = vadd.f32 %v1277, %v1274
  %v1279 = vmul.f32 %v1278, 0.125
  %v1280 = vadd.f32 %v842, %v1279
  %v1282 = vrot.slane %v1280, 1
  %1284 = vst.msk [vmem:[#allocation2 + $0x3] sm:$0x1] %vm21, %v1280
  %1285 = vst.msk [vmem:[#allocation2 + $0xb] sm:$0x1] %vm21, %v1282
  %s1286 = scalar_lea.vmem %s0, 48
  %v1287 = vld [vmem:[%s1286] sm:$0x3]
  %s1288 = scalar_lea.vmem %s0, 50
  %v1289 = vld [vmem:[%s1288] sm:$0x3]
  %v1290 = vmax.f32 %v1280, -1.0
  %v1291 = vmin.f32 %v1290, 1.0
  %1293 = vset.pattern.permute.xlu0 0
  %1294 = vperm.xlu0 %1293, %v1291
  %v1295 = vpop.permute.xlu0 %1294
  %v1297 = vmul.f32 %v1295, %v27
  %1298 = vset.pattern.permute.xlu0 1
  %1299 = vperm.xlu0 %1298, %v1291
  %v1300 = vpop.permute.xlu0 %1299
  %v1302 = vmul.f32 %v1300, %v29
  %1303 = vset.pattern.permute.xlu0 2
  %1304 = vperm.xlu0 %1303, %v1291
  %v1305 = vpop.permute.xlu0 %1304
  %v1307 = vmul.f32 %v1305, %v31
  %1308 = vset.pattern.permute.xlu0 3
  %1309 = vperm.xlu0 %1308, %v1291
  %v1310 = vpop.permute.xlu0 %1309
  %v1312 = vmul.f32 %v1310, %v33
  %1313 = vset.pattern.permute.xlu0 4
  %1314 = vperm.xlu0 %1313, %v1291
  %v1315 = vpop.permute.xlu0 %1314
  %v1317 = vmul.f32 %v1315, %v35
  %1318 = vset.pattern.permute.xlu0 5
  %1319 = vperm.xlu0 %1318, %v1291
  %v1320 = vpop.permute.xlu0 %1319
  %v1322 = vmul.f32 %v1320, %v37
  %1323 = vset.pattern.permute.xlu0 6
  %1324 = vperm.xlu0 %1323, %v1291
  %v1325 = vpop.permute.xlu0 %1324
  %v1327 = vmul.f32 %v1325, %v39
  %1328 = vset.pattern.permute.xlu0 7
  %1329 = vperm.xlu0 %1328, %v1291
  %v1330 = vpop.permute.xlu0 %1329
  %v1332 = vmul.f32 %v1330, %v41
  %1333 = vset.pattern.permute.xlu0 8
  %1334 = vperm.xlu0 %1333, %v1291
  %v1335 = vpop.permute.xlu0 %1334
  %v1337 = vmul.f32 %v1335, %v43
  %1338 = vset.pattern.permute.xlu0 9
  %1339 = vperm.xlu0 %1338, %v1291
  %v1340 = vpop.permute.xlu0 %1339
  %v1342 = vmul.f32 %v1340, %v45
  %1343 = vset.pattern.permute.xlu0 10
  %1344 = vperm.xlu0 %1343, %v1291
  %v1345 = vpop.permute.xlu0 %1344
  %v1347 = vmul.f32 %v1345, %v47
  %1348 = vset.pattern.permute.xlu0 11
  %1349 = vperm.xlu0 %1348, %v1291
  %v1350 = vpop.permute.xlu0 %1349
  %v1352 = vmul.f32 %v1350, %v49
  %1353 = vset.pattern.permute.xlu0 12
  %1354 = vperm.xlu0 %1353, %v1291
  %v1355 = vpop.permute.xlu0 %1354
  %v1357 = vmul.f32 %v1355, %v51
  %1358 = vset.pattern.permute.xlu0 13
  %1359 = vperm.xlu0 %1358, %v1291
  %v1360 = vpop.permute.xlu0 %1359
  %v1362 = vmul.f32 %v1360, %v53
  %1363 = vset.pattern.permute.xlu0 14
  %1364 = vperm.xlu0 %1363, %v1291
  %v1365 = vpop.permute.xlu0 %1364
  %v1367 = vmul.f32 %v1365, %v55
  %1368 = vset.pattern.permute.xlu0 15
  %1369 = vperm.xlu0 %1368, %v1291
  %v1370 = vpop.permute.xlu0 %1369
  %v1372 = vmul.f32 %v1370, %v57
  %v1373 = vadd.f32 %v1297, %v1302
  %v1374 = vadd.f32 %v1307, %v1312
  %v1375 = vadd.f32 %v1317, %v1322
  %v1376 = vadd.f32 %v1327, %v1332
  %v1377 = vadd.f32 %v1337, %v1342
  %v1378 = vadd.f32 %v1347, %v1352
  %v1379 = vadd.f32 %v1357, %v1362
  %v1380 = vadd.f32 %v1367, %v1372
  %v1381 = vadd.f32 %v1373, %v1374
  %v1382 = vadd.f32 %v1375, %v1376
  %v1383 = vadd.f32 %v1377, %v1378
  %v1384 = vadd.f32 %v1379, %v1380
  %v1385 = vadd.f32 %v1381, %v1382
  %v1386 = vadd.f32 %v1383, %v1384
  %v1387 = vadd.f32 %v1385, %v1386
  %v1388 = vadd.f32 %v1387, %v1287
  %v1389 = vtanh.pop %v1388
  %v1390 = vmul.f32 %v1389, %v1289
  %v1391 = vmul.f32 %v1390, 0.33333334
  %v1392 = vadd.f32 %v1280, %v1391
  %s1393 = scalar_lea.vmem %s0, 52
  %v1394 = vld [vmem:[%s1393] sm:$0x3]
  %s1395 = scalar_lea.vmem %s0, 54
  %v1396 = vld [vmem:[%s1395] sm:$0x3]
  %v1397 = vmax.f32 %v1392, -1.0
  %v1398 = vmin.f32 %v1397, 1.0
  %1400 = vset.pattern.permute.xlu0 0
  %1401 = vperm.xlu0 %1400, %v1398
  %v1402 = vpop.permute.xlu0 %1401
  %v1404 = vmul.f32 %v1402, %v27
  %1405 = vset.pattern.permute.xlu0 1
  %1406 = vperm.xlu0 %1405, %v1398
  %v1407 = vpop.permute.xlu0 %1406
  %v1409 = vmul.f32 %v1407, %v29
  %1410 = vset.pattern.permute.xlu0 2
  %1411 = vperm.xlu0 %1410, %v1398
  %v1412 = vpop.permute.xlu0 %1411
  %v1414 = vmul.f32 %v1412, %v31
  %1415 = vset.pattern.permute.xlu0 3
  %1416 = vperm.xlu0 %1415, %v1398
  %v1417 = vpop.permute.xlu0 %1416
  %v1419 = vmul.f32 %v1417, %v33
  %1420 = vset.pattern.permute.xlu0 4
  %1421 = vperm.xlu0 %1420, %v1398
  %v1422 = vpop.permute.xlu0 %1421
  %v1424 = vmul.f32 %v1422, %v35
  %1425 = vset.pattern.permute.xlu0 5
  %1426 = vperm.xlu0 %1425, %v1398
  %v1427 = vpop.permute.xlu0 %1426
  %v1429 = vmul.f32 %v1427, %v37
  %1430 = vset.pattern.permute.xlu0 6
  %1431 = vperm.xlu0 %1430, %v1398
  %v1432 = vpop.permute.xlu0 %1431
  %v1434 = vmul.f32 %v1432, %v39
  %1435 = vset.pattern.permute.xlu0 7
  %1436 = vperm.xlu0 %1435, %v1398
  %v1437 = vpop.permute.xlu0 %1436
  %v1439 = vmul.f32 %v1437, %v41
  %1440 = vset.pattern.permute.xlu0 8
  %1441 = vperm.xlu0 %1440, %v1398
  %v1442 = vpop.permute.xlu0 %1441
  %v1444 = vmul.f32 %v1442, %v43
  %1445 = vset.pattern.permute.xlu0 9
  %1446 = vperm.xlu0 %1445, %v1398
  %v1447 = vpop.permute.xlu0 %1446
  %v1449 = vmul.f32 %v1447, %v45
  %1450 = vset.pattern.permute.xlu0 10
  %1451 = vperm.xlu0 %1450, %v1398
  %v1452 = vpop.permute.xlu0 %1451
  %v1454 = vmul.f32 %v1452, %v47
  %1455 = vset.pattern.permute.xlu0 11
  %1456 = vperm.xlu0 %1455, %v1398
  %v1457 = vpop.permute.xlu0 %1456
  %v1459 = vmul.f32 %v1457, %v49
  %1460 = vset.pattern.permute.xlu0 12
  %1461 = vperm.xlu0 %1460, %v1398
  %v1462 = vpop.permute.xlu0 %1461
  %v1464 = vmul.f32 %v1462, %v51
  %1465 = vset.pattern.permute.xlu0 13
  %1466 = vperm.xlu0 %1465, %v1398
  %v1467 = vpop.permute.xlu0 %1466
  %v1469 = vmul.f32 %v1467, %v53
  %1470 = vset.pattern.permute.xlu0 14
  %1471 = vperm.xlu0 %1470, %v1398
  %v1472 = vpop.permute.xlu0 %1471
  %v1474 = vmul.f32 %v1472, %v55
  %1475 = vset.pattern.permute.xlu0 15
  %1476 = vperm.xlu0 %1475, %v1398
  %v1477 = vpop.permute.xlu0 %1476
  %v1479 = vmul.f32 %v1477, %v57
  %v1480 = vadd.f32 %v1404, %v1409
  %v1481 = vadd.f32 %v1414, %v1419
  %v1482 = vadd.f32 %v1424, %v1429
  %v1483 = vadd.f32 %v1434, %v1439
  %v1484 = vadd.f32 %v1444, %v1449
  %v1485 = vadd.f32 %v1454, %v1459
  %v1486 = vadd.f32 %v1464, %v1469
  %v1487 = vadd.f32 %v1474, %v1479
  %v1488 = vadd.f32 %v1480, %v1481
  %v1489 = vadd.f32 %v1482, %v1483
  %v1490 = vadd.f32 %v1484, %v1485
  %v1491 = vadd.f32 %v1486, %v1487
  %v1492 = vadd.f32 %v1488, %v1489
  %v1493 = vadd.f32 %v1490, %v1491
  %v1494 = vadd.f32 %v1492, %v1493
  %v1495 = vadd.f32 %v1494, %v1394
  %v1496 = vtanh.pop %v1495
  %v1497 = vmul.f32 %v1496, %v1396
  %v1498 = vsub.f32 %v1497, %v1391
  %v1499 = vadd.f32 %v1280, %v1498
  %s1500 = scalar_lea.vmem %s0, 56
  %v1501 = vld [vmem:[%s1500] sm:$0x3]
  %s1502 = scalar_lea.vmem %s0, 58
  %v1503 = vld [vmem:[%s1502] sm:$0x3]
  %v1504 = vmax.f32 %v1499, -1.0
  %v1505 = vmin.f32 %v1504, 1.0
  %1507 = vset.pattern.permute.xlu0 0
  %1508 = vperm.xlu0 %1507, %v1505
  %v1509 = vpop.permute.xlu0 %1508
  %v1511 = vmul.f32 %v1509, %v27
  %1512 = vset.pattern.permute.xlu0 1
  %1513 = vperm.xlu0 %1512, %v1505
  %v1514 = vpop.permute.xlu0 %1513
  %v1516 = vmul.f32 %v1514, %v29
  %1517 = vset.pattern.permute.xlu0 2
  %1518 = vperm.xlu0 %1517, %v1505
  %v1519 = vpop.permute.xlu0 %1518
  %v1521 = vmul.f32 %v1519, %v31
  %1522 = vset.pattern.permute.xlu0 3
  %1523 = vperm.xlu0 %1522, %v1505
  %v1524 = vpop.permute.xlu0 %1523
  %v1526 = vmul.f32 %v1524, %v33
  %1527 = vset.pattern.permute.xlu0 4
  %1528 = vperm.xlu0 %1527, %v1505
  %v1529 = vpop.permute.xlu0 %1528
  %v1531 = vmul.f32 %v1529, %v35
  %1532 = vset.pattern.permute.xlu0 5
  %1533 = vperm.xlu0 %1532, %v1505
  %v1534 = vpop.permute.xlu0 %1533
  %v1536 = vmul.f32 %v1534, %v37
  %1537 = vset.pattern.permute.xlu0 6
  %1538 = vperm.xlu0 %1537, %v1505
  %v1539 = vpop.permute.xlu0 %1538
  %v1541 = vmul.f32 %v1539, %v39
  %1542 = vset.pattern.permute.xlu0 7
  %1543 = vperm.xlu0 %1542, %v1505
  %v1544 = vpop.permute.xlu0 %1543
  %v1546 = vmul.f32 %v1544, %v41
  %1547 = vset.pattern.permute.xlu0 8
  %1548 = vperm.xlu0 %1547, %v1505
  %v1549 = vpop.permute.xlu0 %1548
  %v1551 = vmul.f32 %v1549, %v43
  %1552 = vset.pattern.permute.xlu0 9
  %1553 = vperm.xlu0 %1552, %v1505
  %v1554 = vpop.permute.xlu0 %1553
  %v1556 = vmul.f32 %v1554, %v45
  %1557 = vset.pattern.permute.xlu0 10
  %1558 = vperm.xlu0 %1557, %v1505
  %v1559 = vpop.permute.xlu0 %1558
  %v1561 = vmul.f32 %v1559, %v47
  %1562 = vset.pattern.permute.xlu0 11
  %1563 = vperm.xlu0 %1562, %v1505
  %v1564 = vpop.permute.xlu0 %1563
  %v1566 = vmul.f32 %v1564, %v49
  %1567 = vset.pattern.permute.xlu0 12
  %1568 = vperm.xlu0 %1567, %v1505
  %v1569 = vpop.permute.xlu0 %1568
  %v1571 = vmul.f32 %v1569, %v51
  %1572 = vset.pattern.permute.xlu0 13
  %1573 = vperm.xlu0 %1572, %v1505
  %v1574 = vpop.permute.xlu0 %1573
  %v1576 = vmul.f32 %v1574, %v53
  %1577 = vset.pattern.permute.xlu0 14
  %1578 = vperm.xlu0 %1577, %v1505
  %v1579 = vpop.permute.xlu0 %1578
  %v1581 = vmul.f32 %v1579, %v55
  %1582 = vset.pattern.permute.xlu0 15
  %1583 = vperm.xlu0 %1582, %v1505
  %v1584 = vpop.permute.xlu0 %1583
  %v1586 = vmul.f32 %v1584, %v57
  %v1587 = vadd.f32 %v1511, %v1516
  %v1588 = vadd.f32 %v1521, %v1526
  %v1589 = vadd.f32 %v1531, %v1536
  %v1590 = vadd.f32 %v1541, %v1546
  %v1591 = vadd.f32 %v1551, %v1556
  %v1592 = vadd.f32 %v1561, %v1566
  %v1593 = vadd.f32 %v1571, %v1576
  %v1594 = vadd.f32 %v1581, %v1586
  %v1595 = vadd.f32 %v1587, %v1588
  %v1596 = vadd.f32 %v1589, %v1590
  %v1597 = vadd.f32 %v1591, %v1592
  %v1598 = vadd.f32 %v1593, %v1594
  %v1599 = vadd.f32 %v1595, %v1596
  %v1600 = vadd.f32 %v1597, %v1598
  %v1601 = vadd.f32 %v1599, %v1600
  %v1602 = vadd.f32 %v1601, %v1501
  %v1603 = vtanh.pop %v1602
  %v1604 = vmul.f32 %v1603, %v1503
  %v1605 = vsub.f32 %v1390, %v1497
  %v1606 = vadd.f32 %v1605, %v1604
  %v1607 = vadd.f32 %v1280, %v1606
  %s1608 = scalar_lea.vmem %s0, 60
  %v1609 = vld [vmem:[%s1608] sm:$0x3]
  %s1610 = scalar_lea.vmem %s0, 62
  %v1611 = vld [vmem:[%s1610] sm:$0x3]
  %v1612 = vmax.f32 %v1607, -1.0
  %v1613 = vmin.f32 %v1612, 1.0
  %1615 = vset.pattern.permute.xlu0 0
  %1616 = vperm.xlu0 %1615, %v1613
  %v1617 = vpop.permute.xlu0 %1616
  %v1619 = vmul.f32 %v1617, %v27
  %1620 = vset.pattern.permute.xlu0 1
  %1621 = vperm.xlu0 %1620, %v1613
  %v1622 = vpop.permute.xlu0 %1621
  %v1624 = vmul.f32 %v1622, %v29
  %1625 = vset.pattern.permute.xlu0 2
  %1626 = vperm.xlu0 %1625, %v1613
  %v1627 = vpop.permute.xlu0 %1626
  %v1629 = vmul.f32 %v1627, %v31
  %1630 = vset.pattern.permute.xlu0 3
  %1631 = vperm.xlu0 %1630, %v1613
  %v1632 = vpop.permute.xlu0 %1631
  %v1634 = vmul.f32 %v1632, %v33
  %1635 = vset.pattern.permute.xlu0 4
  %1636 = vperm.xlu0 %1635, %v1613
  %v1637 = vpop.permute.xlu0 %1636
  %v1639 = vmul.f32 %v1637, %v35
  %1640 = vset.pattern.permute.xlu0 5
  %1641 = vperm.xlu0 %1640, %v1613
  %v1642 = vpop.permute.xlu0 %1641
  %v1644 = vmul.f32 %v1642, %v37
  %1645 = vset.pattern.permute.xlu0 6
  %1646 = vperm.xlu0 %1645, %v1613
  %v1647 = vpop.permute.xlu0 %1646
  %v1649 = vmul.f32 %v1647, %v39
  %1650 = vset.pattern.permute.xlu0 7
  %1651 = vperm.xlu0 %1650, %v1613
  %v1652 = vpop.permute.xlu0 %1651
  %v1654 = vmul.f32 %v1652, %v41
  %1655 = vset.pattern.permute.xlu0 8
  %1656 = vperm.xlu0 %1655, %v1613
  %v1657 = vpop.permute.xlu0 %1656
  %v1659 = vmul.f32 %v1657, %v43
  %1660 = vset.pattern.permute.xlu0 9
  %1661 = vperm.xlu0 %1660, %v1613
  %v1662 = vpop.permute.xlu0 %1661
  %v1664 = vmul.f32 %v1662, %v45
  %1665 = vset.pattern.permute.xlu0 10
  %1666 = vperm.xlu0 %1665, %v1613
  %v1667 = vpop.permute.xlu0 %1666
  %v1669 = vmul.f32 %v1667, %v47
  %1670 = vset.pattern.permute.xlu0 11
  %1671 = vperm.xlu0 %1670, %v1613
  %v1672 = vpop.permute.xlu0 %1671
  %v1674 = vmul.f32 %v1672, %v49
  %1675 = vset.pattern.permute.xlu0 12
  %1676 = vperm.xlu0 %1675, %v1613
  %v1677 = vpop.permute.xlu0 %1676
  %v1679 = vmul.f32 %v1677, %v51
  %1680 = vset.pattern.permute.xlu0 13
  %1681 = vperm.xlu0 %1680, %v1613
  %v1682 = vpop.permute.xlu0 %1681
  %v1684 = vmul.f32 %v1682, %v53
  %1685 = vset.pattern.permute.xlu0 14
  %1686 = vperm.xlu0 %1685, %v1613
  %v1687 = vpop.permute.xlu0 %1686
  %v1689 = vmul.f32 %v1687, %v55
  %1690 = vset.pattern.permute.xlu0 15
  %1691 = vperm.xlu0 %1690, %v1613
  %v1692 = vpop.permute.xlu0 %1691
  %v1694 = vmul.f32 %v1692, %v57
  %v1695 = vadd.f32 %v1619, %v1624
  %v1696 = vadd.f32 %v1629, %v1634
  %v1697 = vadd.f32 %v1639, %v1644
  %v1698 = vadd.f32 %v1649, %v1654
  %v1699 = vadd.f32 %v1659, %v1664
  %v1700 = vadd.f32 %v1669, %v1674
  %v1701 = vadd.f32 %v1679, %v1684
  %v1702 = vadd.f32 %v1689, %v1694
  %v1703 = vadd.f32 %v1695, %v1696
  %v1704 = vadd.f32 %v1697, %v1698
  %v1705 = vadd.f32 %v1699, %v1700
  %v1706 = vadd.f32 %v1701, %v1702
  %v1707 = vadd.f32 %v1703, %v1704
  %v1708 = vadd.f32 %v1705, %v1706
  %v1709 = vadd.f32 %v1707, %v1708
  %v1710 = vadd.f32 %v1709, %v1609
  %v1711 = vtanh.pop %v1710
  %v1712 = vmul.f32 %v1711, %v1611
  %v1713 = vadd.f32 %v1497, %v1604
  %v1714 = vmul.f32 %v1713, 3.0
  %v1715 = vadd.f32 %v1390, %v1714
  %v1716 = vadd.f32 %v1715, %v1712
  %v1717 = vmul.f32 %v1716, 0.125
  %v1718 = vadd.f32 %v1280, %v1717
  %v1720 = vrot.slane %v1718, 1
  %1722 = vst.msk [vmem:[#allocation2 + $0x4] sm:$0x1] %vm21, %v1718
  %1723 = vst.msk [vmem:[#allocation2 + $0xc] sm:$0x1] %vm21, %v1720
  %s1724 = scalar_lea.vmem %s0, 64
  %v1725 = vld [vmem:[%s1724] sm:$0x3]
  %s1726 = scalar_lea.vmem %s0, 66
  %v1727 = vld [vmem:[%s1726] sm:$0x3]
  %v1728 = vmax.f32 %v1718, -1.0
  %v1729 = vmin.f32 %v1728, 1.0
  %1731 = vset.pattern.permute.xlu0 0
  %1732 = vperm.xlu0 %1731, %v1729
  %v1733 = vpop.permute.xlu0 %1732
  %v1735 = vmul.f32 %v1733, %v27
  %1736 = vset.pattern.permute.xlu0 1
  %1737 = vperm.xlu0 %1736, %v1729
  %v1738 = vpop.permute.xlu0 %1737
  %v1740 = vmul.f32 %v1738, %v29
  %1741 = vset.pattern.permute.xlu0 2
  %1742 = vperm.xlu0 %1741, %v1729
  %v1743 = vpop.permute.xlu0 %1742
  %v1745 = vmul.f32 %v1743, %v31
  %1746 = vset.pattern.permute.xlu0 3
  %1747 = vperm.xlu0 %1746, %v1729
  %v1748 = vpop.permute.xlu0 %1747
  %v1750 = vmul.f32 %v1748, %v33
  %1751 = vset.pattern.permute.xlu0 4
  %1752 = vperm.xlu0 %1751, %v1729
  %v1753 = vpop.permute.xlu0 %1752
  %v1755 = vmul.f32 %v1753, %v35
  %1756 = vset.pattern.permute.xlu0 5
  %1757 = vperm.xlu0 %1756, %v1729
  %v1758 = vpop.permute.xlu0 %1757
  %v1760 = vmul.f32 %v1758, %v37
  %1761 = vset.pattern.permute.xlu0 6
  %1762 = vperm.xlu0 %1761, %v1729
  %v1763 = vpop.permute.xlu0 %1762
  %v1765 = vmul.f32 %v1763, %v39
  %1766 = vset.pattern.permute.xlu0 7
  %1767 = vperm.xlu0 %1766, %v1729
  %v1768 = vpop.permute.xlu0 %1767
  %v1770 = vmul.f32 %v1768, %v41
  %1771 = vset.pattern.permute.xlu0 8
  %1772 = vperm.xlu0 %1771, %v1729
  %v1773 = vpop.permute.xlu0 %1772
  %v1775 = vmul.f32 %v1773, %v43
  %1776 = vset.pattern.permute.xlu0 9
  %1777 = vperm.xlu0 %1776, %v1729
  %v1778 = vpop.permute.xlu0 %1777
  %v1780 = vmul.f32 %v1778, %v45
  %1781 = vset.pattern.permute.xlu0 10
  %1782 = vperm.xlu0 %1781, %v1729
  %v1783 = vpop.permute.xlu0 %1782
  %v1785 = vmul.f32 %v1783, %v47
  %1786 = vset.pattern.permute.xlu0 11
  %1787 = vperm.xlu0 %1786, %v1729
  %v1788 = vpop.permute.xlu0 %1787
  %v1790 = vmul.f32 %v1788, %v49
  %1791 = vset.pattern.permute.xlu0 12
  %1792 = vperm.xlu0 %1791, %v1729
  %v1793 = vpop.permute.xlu0 %1792
  %v1795 = vmul.f32 %v1793, %v51
  %1796 = vset.pattern.permute.xlu0 13
  %1797 = vperm.xlu0 %1796, %v1729
  %v1798 = vpop.permute.xlu0 %1797
  %v1800 = vmul.f32 %v1798, %v53
  %1801 = vset.pattern.permute.xlu0 14
  %1802 = vperm.xlu0 %1801, %v1729
  %v1803 = vpop.permute.xlu0 %1802
  %v1805 = vmul.f32 %v1803, %v55
  %1806 = vset.pattern.permute.xlu0 15
  %1807 = vperm.xlu0 %1806, %v1729
  %v1808 = vpop.permute.xlu0 %1807
  %v1810 = vmul.f32 %v1808, %v57
  %v1811 = vadd.f32 %v1735, %v1740
  %v1812 = vadd.f32 %v1745, %v1750
  %v1813 = vadd.f32 %v1755, %v1760
  %v1814 = vadd.f32 %v1765, %v1770
  %v1815 = vadd.f32 %v1775, %v1780
  %v1816 = vadd.f32 %v1785, %v1790
  %v1817 = vadd.f32 %v1795, %v1800
  %v1818 = vadd.f32 %v1805, %v1810
  %v1819 = vadd.f32 %v1811, %v1812
  %v1820 = vadd.f32 %v1813, %v1814
  %v1821 = vadd.f32 %v1815, %v1816
  %v1822 = vadd.f32 %v1817, %v1818
  %v1823 = vadd.f32 %v1819, %v1820
  %v1824 = vadd.f32 %v1821, %v1822
  %v1825 = vadd.f32 %v1823, %v1824
  %v1826 = vadd.f32 %v1825, %v1725
  %v1827 = vtanh.pop %v1826
  %v1828 = vmul.f32 %v1827, %v1727
  %v1829 = vmul.f32 %v1828, 0.33333334
  %v1830 = vadd.f32 %v1718, %v1829
  %s1831 = scalar_lea.vmem %s0, 68
  %v1832 = vld [vmem:[%s1831] sm:$0x3]
  %s1833 = scalar_lea.vmem %s0, 70
  %v1834 = vld [vmem:[%s1833] sm:$0x3]
  %v1835 = vmax.f32 %v1830, -1.0
  %v1836 = vmin.f32 %v1835, 1.0
  %1838 = vset.pattern.permute.xlu0 0
  %1839 = vperm.xlu0 %1838, %v1836
  %v1840 = vpop.permute.xlu0 %1839
  %v1842 = vmul.f32 %v1840, %v27
  %1843 = vset.pattern.permute.xlu0 1
  %1844 = vperm.xlu0 %1843, %v1836
  %v1845 = vpop.permute.xlu0 %1844
  %v1847 = vmul.f32 %v1845, %v29
  %1848 = vset.pattern.permute.xlu0 2
  %1849 = vperm.xlu0 %1848, %v1836
  %v1850 = vpop.permute.xlu0 %1849
  %v1852 = vmul.f32 %v1850, %v31
  %1853 = vset.pattern.permute.xlu0 3
  %1854 = vperm.xlu0 %1853, %v1836
  %v1855 = vpop.permute.xlu0 %1854
  %v1857 = vmul.f32 %v1855, %v33
  %1858 = vset.pattern.permute.xlu0 4
  %1859 = vperm.xlu0 %1858, %v1836
  %v1860 = vpop.permute.xlu0 %1859
  %v1862 = vmul.f32 %v1860, %v35
  %1863 = vset.pattern.permute.xlu0 5
  %1864 = vperm.xlu0 %1863, %v1836
  %v1865 = vpop.permute.xlu0 %1864
  %v1867 = vmul.f32 %v1865, %v37
  %1868 = vset.pattern.permute.xlu0 6
  %1869 = vperm.xlu0 %1868, %v1836
  %v1870 = vpop.permute.xlu0 %1869
  %v1872 = vmul.f32 %v1870, %v39
  %1873 = vset.pattern.permute.xlu0 7
  %1874 = vperm.xlu0 %1873, %v1836
  %v1875 = vpop.permute.xlu0 %1874
  %v1877 = vmul.f32 %v1875, %v41
  %1878 = vset.pattern.permute.xlu0 8
  %1879 = vperm.xlu0 %1878, %v1836
  %v1880 = vpop.permute.xlu0 %1879
  %v1882 = vmul.f32 %v1880, %v43
  %1883 = vset.pattern.permute.xlu0 9
  %1884 = vperm.xlu0 %1883, %v1836
  %v1885 = vpop.permute.xlu0 %1884
  %v1887 = vmul.f32 %v1885, %v45
  %1888 = vset.pattern.permute.xlu0 10
  %1889 = vperm.xlu0 %1888, %v1836
  %v1890 = vpop.permute.xlu0 %1889
  %v1892 = vmul.f32 %v1890, %v47
  %1893 = vset.pattern.permute.xlu0 11
  %1894 = vperm.xlu0 %1893, %v1836
  %v1895 = vpop.permute.xlu0 %1894
  %v1897 = vmul.f32 %v1895, %v49
  %1898 = vset.pattern.permute.xlu0 12
  %1899 = vperm.xlu0 %1898, %v1836
  %v1900 = vpop.permute.xlu0 %1899
  %v1902 = vmul.f32 %v1900, %v51
  %1903 = vset.pattern.permute.xlu0 13
  %1904 = vperm.xlu0 %1903, %v1836
  %v1905 = vpop.permute.xlu0 %1904
  %v1907 = vmul.f32 %v1905, %v53
  %1908 = vset.pattern.permute.xlu0 14
  %1909 = vperm.xlu0 %1908, %v1836
  %v1910 = vpop.permute.xlu0 %1909
  %v1912 = vmul.f32 %v1910, %v55
  %1913 = vset.pattern.permute.xlu0 15
  %1914 = vperm.xlu0 %1913, %v1836
  %v1915 = vpop.permute.xlu0 %1914
  %v1917 = vmul.f32 %v1915, %v57
  %v1918 = vadd.f32 %v1842, %v1847
  %v1919 = vadd.f32 %v1852, %v1857
  %v1920 = vadd.f32 %v1862, %v1867
  %v1921 = vadd.f32 %v1872, %v1877
  %v1922 = vadd.f32 %v1882, %v1887
  %v1923 = vadd.f32 %v1892, %v1897
  %v1924 = vadd.f32 %v1902, %v1907
  %v1925 = vadd.f32 %v1912, %v1917
  %v1926 = vadd.f32 %v1918, %v1919
  %v1927 = vadd.f32 %v1920, %v1921
  %v1928 = vadd.f32 %v1922, %v1923
  %v1929 = vadd.f32 %v1924, %v1925
  %v1930 = vadd.f32 %v1926, %v1927
  %v1931 = vadd.f32 %v1928, %v1929
  %v1932 = vadd.f32 %v1930, %v1931
  %v1933 = vadd.f32 %v1932, %v1832
  %v1934 = vtanh.pop %v1933
  %v1935 = vmul.f32 %v1934, %v1834
  %v1936 = vsub.f32 %v1935, %v1829
  %v1937 = vadd.f32 %v1718, %v1936
  %s1938 = scalar_lea.vmem %s0, 72
  %v1939 = vld [vmem:[%s1938] sm:$0x3]
  %s1940 = scalar_lea.vmem %s0, 74
  %v1941 = vld [vmem:[%s1940] sm:$0x3]
  %v1942 = vmax.f32 %v1937, -1.0
  %v1943 = vmin.f32 %v1942, 1.0
  %1945 = vset.pattern.permute.xlu0 0
  %1946 = vperm.xlu0 %1945, %v1943
  %v1947 = vpop.permute.xlu0 %1946
  %v1949 = vmul.f32 %v1947, %v27
  %1950 = vset.pattern.permute.xlu0 1
  %1951 = vperm.xlu0 %1950, %v1943
  %v1952 = vpop.permute.xlu0 %1951
  %v1954 = vmul.f32 %v1952, %v29
  %1955 = vset.pattern.permute.xlu0 2
  %1956 = vperm.xlu0 %1955, %v1943
  %v1957 = vpop.permute.xlu0 %1956
  %v1959 = vmul.f32 %v1957, %v31
  %1960 = vset.pattern.permute.xlu0 3
  %1961 = vperm.xlu0 %1960, %v1943
  %v1962 = vpop.permute.xlu0 %1961
  %v1964 = vmul.f32 %v1962, %v33
  %1965 = vset.pattern.permute.xlu0 4
  %1966 = vperm.xlu0 %1965, %v1943
  %v1967 = vpop.permute.xlu0 %1966
  %v1969 = vmul.f32 %v1967, %v35
  %1970 = vset.pattern.permute.xlu0 5
  %1971 = vperm.xlu0 %1970, %v1943
  %v1972 = vpop.permute.xlu0 %1971
  %v1974 = vmul.f32 %v1972, %v37
  %1975 = vset.pattern.permute.xlu0 6
  %1976 = vperm.xlu0 %1975, %v1943
  %v1977 = vpop.permute.xlu0 %1976
  %v1979 = vmul.f32 %v1977, %v39
  %1980 = vset.pattern.permute.xlu0 7
  %1981 = vperm.xlu0 %1980, %v1943
  %v1982 = vpop.permute.xlu0 %1981
  %v1984 = vmul.f32 %v1982, %v41
  %1985 = vset.pattern.permute.xlu0 8
  %1986 = vperm.xlu0 %1985, %v1943
  %v1987 = vpop.permute.xlu0 %1986
  %v1989 = vmul.f32 %v1987, %v43
  %1990 = vset.pattern.permute.xlu0 9
  %1991 = vperm.xlu0 %1990, %v1943
  %v1992 = vpop.permute.xlu0 %1991
  %v1994 = vmul.f32 %v1992, %v45
  %1995 = vset.pattern.permute.xlu0 10
  %1996 = vperm.xlu0 %1995, %v1943
  %v1997 = vpop.permute.xlu0 %1996
  %v1999 = vmul.f32 %v1997, %v47
  %2000 = vset.pattern.permute.xlu0 11
  %2001 = vperm.xlu0 %2000, %v1943
  %v2002 = vpop.permute.xlu0 %2001
  %v2004 = vmul.f32 %v2002, %v49
  %2005 = vset.pattern.permute.xlu0 12
  %2006 = vperm.xlu0 %2005, %v1943
  %v2007 = vpop.permute.xlu0 %2006
  %v2009 = vmul.f32 %v2007, %v51
  %2010 = vset.pattern.permute.xlu0 13
  %2011 = vperm.xlu0 %2010, %v1943
  %v2012 = vpop.permute.xlu0 %2011
  %v2014 = vmul.f32 %v2012, %v53
  %2015 = vset.pattern.permute.xlu0 14
  %2016 = vperm.xlu0 %2015, %v1943
  %v2017 = vpop.permute.xlu0 %2016
  %v2019 = vmul.f32 %v2017, %v55
  %2020 = vset.pattern.permute.xlu0 15
  %2021 = vperm.xlu0 %2020, %v1943
  %v2022 = vpop.permute.xlu0 %2021
  %v2024 = vmul.f32 %v2022, %v57
  %v2025 = vadd.f32 %v1949, %v1954
  %v2026 = vadd.f32 %v1959, %v1964
  %v2027 = vadd.f32 %v1969, %v1974
  %v2028 = vadd.f32 %v1979, %v1984
  %v2029 = vadd.f32 %v1989, %v1994
  %v2030 = vadd.f32 %v1999, %v2004
  %v2031 = vadd.f32 %v2009, %v2014
  %v2032 = vadd.f32 %v2019, %v2024
  %v2033 = vadd.f32 %v2025, %v2026
  %v2034 = vadd.f32 %v2027, %v2028
  %v2035 = vadd.f32 %v2029, %v2030
  %v2036 = vadd.f32 %v2031, %v2032
  %v2037 = vadd.f32 %v2033, %v2034
  %v2038 = vadd.f32 %v2035, %v2036
  %v2039 = vadd.f32 %v2037, %v2038
  %v2040 = vadd.f32 %v2039, %v1939
  %v2041 = vtanh.pop %v2040
  %v2042 = vmul.f32 %v2041, %v1941
  %v2043 = vsub.f32 %v1828, %v1935
  %v2044 = vadd.f32 %v2043, %v2042
  %v2045 = vadd.f32 %v1718, %v2044
  %s2046 = scalar_lea.vmem %s0, 76
  %v2047 = vld [vmem:[%s2046] sm:$0x3]
  %s2048 = scalar_lea.vmem %s0, 78
  %v2049 = vld [vmem:[%s2048] sm:$0x3]
  %v2050 = vmax.f32 %v2045, -1.0
  %v2051 = vmin.f32 %v2050, 1.0
  %2053 = vset.pattern.permute.xlu0 0
  %2054 = vperm.xlu0 %2053, %v2051
  %v2055 = vpop.permute.xlu0 %2054
  %v2057 = vmul.f32 %v2055, %v27
  %2058 = vset.pattern.permute.xlu0 1
  %2059 = vperm.xlu0 %2058, %v2051
  %v2060 = vpop.permute.xlu0 %2059
  %v2062 = vmul.f32 %v2060, %v29
  %2063 = vset.pattern.permute.xlu0 2
  %2064 = vperm.xlu0 %2063, %v2051
  %v2065 = vpop.permute.xlu0 %2064
  %v2067 = vmul.f32 %v2065, %v31
  %2068 = vset.pattern.permute.xlu0 3
  %2069 = vperm.xlu0 %2068, %v2051
  %v2070 = vpop.permute.xlu0 %2069
  %v2072 = vmul.f32 %v2070, %v33
  %2073 = vset.pattern.permute.xlu0 4
  %2074 = vperm.xlu0 %2073, %v2051
  %v2075 = vpop.permute.xlu0 %2074
  %v2077 = vmul.f32 %v2075, %v35
  %2078 = vset.pattern.permute.xlu0 5
  %2079 = vperm.xlu0 %2078, %v2051
  %v2080 = vpop.permute.xlu0 %2079
  %v2082 = vmul.f32 %v2080, %v37
  %2083 = vset.pattern.permute.xlu0 6
  %2084 = vperm.xlu0 %2083, %v2051
  %v2085 = vpop.permute.xlu0 %2084
  %v2087 = vmul.f32 %v2085, %v39
  %2088 = vset.pattern.permute.xlu0 7
  %2089 = vperm.xlu0 %2088, %v2051
  %v2090 = vpop.permute.xlu0 %2089
  %v2092 = vmul.f32 %v2090, %v41
  %2093 = vset.pattern.permute.xlu0 8
  %2094 = vperm.xlu0 %2093, %v2051
  %v2095 = vpop.permute.xlu0 %2094
  %v2097 = vmul.f32 %v2095, %v43
  %2098 = vset.pattern.permute.xlu0 9
  %2099 = vperm.xlu0 %2098, %v2051
  %v2100 = vpop.permute.xlu0 %2099
  %v2102 = vmul.f32 %v2100, %v45
  %2103 = vset.pattern.permute.xlu0 10
  %2104 = vperm.xlu0 %2103, %v2051
  %v2105 = vpop.permute.xlu0 %2104
  %v2107 = vmul.f32 %v2105, %v47
  %2108 = vset.pattern.permute.xlu0 11
  %2109 = vperm.xlu0 %2108, %v2051
  %v2110 = vpop.permute.xlu0 %2109
  %v2112 = vmul.f32 %v2110, %v49
  %2113 = vset.pattern.permute.xlu0 12
  %2114 = vperm.xlu0 %2113, %v2051
  %v2115 = vpop.permute.xlu0 %2114
  %v2117 = vmul.f32 %v2115, %v51
  %2118 = vset.pattern.permute.xlu0 13
  %2119 = vperm.xlu0 %2118, %v2051
  %v2120 = vpop.permute.xlu0 %2119
  %v2122 = vmul.f32 %v2120, %v53
  %2123 = vset.pattern.permute.xlu0 14
  %2124 = vperm.xlu0 %2123, %v2051
  %v2125 = vpop.permute.xlu0 %2124
  %v2127 = vmul.f32 %v2125, %v55
  %2128 = vset.pattern.permute.xlu0 15
  %2129 = vperm.xlu0 %2128, %v2051
  %v2130 = vpop.permute.xlu0 %2129
  %v2132 = vmul.f32 %v2130, %v57
  %v2133 = vadd.f32 %v2057, %v2062
  %v2134 = vadd.f32 %v2067, %v2072
  %v2135 = vadd.f32 %v2077, %v2082
  %v2136 = vadd.f32 %v2087, %v2092
  %v2137 = vadd.f32 %v2097, %v2102
  %v2138 = vadd.f32 %v2107, %v2112
  %v2139 = vadd.f32 %v2117, %v2122
  %v2140 = vadd.f32 %v2127, %v2132
  %v2141 = vadd.f32 %v2133, %v2134
  %v2142 = vadd.f32 %v2135, %v2136
  %v2143 = vadd.f32 %v2137, %v2138
  %v2144 = vadd.f32 %v2139, %v2140
  %v2145 = vadd.f32 %v2141, %v2142
  %v2146 = vadd.f32 %v2143, %v2144
  %v2147 = vadd.f32 %v2145, %v2146
  %v2148 = vadd.f32 %v2147, %v2047
  %v2149 = vtanh.pop %v2148
  %v2150 = vmul.f32 %v2149, %v2049
  %v2151 = vadd.f32 %v1935, %v2042
  %v2152 = vmul.f32 %v2151, 3.0
  %v2153 = vadd.f32 %v1828, %v2152
  %v2154 = vadd.f32 %v2153, %v2150
  %v2155 = vmul.f32 %v2154, 0.125
  %v2156 = vadd.f32 %v1718, %v2155
  %v2158 = vrot.slane %v2156, 1
  %2160 = vst.msk [vmem:[#allocation2 + $0x5] sm:$0x1] %vm21, %v2156
  %2161 = vst.msk [vmem:[#allocation2 + $0xd] sm:$0x1] %vm21, %v2158
  %s2162 = scalar_lea.vmem %s0, 80
  %v2163 = vld [vmem:[%s2162] sm:$0x3]
  %s2164 = scalar_lea.vmem %s0, 82
  %v2165 = vld [vmem:[%s2164] sm:$0x3]
  %v2166 = vmax.f32 %v2156, -1.0
  %v2167 = vmin.f32 %v2166, 1.0
  %2169 = vset.pattern.permute.xlu0 0
  %2170 = vperm.xlu0 %2169, %v2167
  %v2171 = vpop.permute.xlu0 %2170
  %v2173 = vmul.f32 %v2171, %v27
  %2174 = vset.pattern.permute.xlu0 1
  %2175 = vperm.xlu0 %2174, %v2167
  %v2176 = vpop.permute.xlu0 %2175
  %v2178 = vmul.f32 %v2176, %v29
  %2179 = vset.pattern.permute.xlu0 2
  %2180 = vperm.xlu0 %2179, %v2167
  %v2181 = vpop.permute.xlu0 %2180
  %v2183 = vmul.f32 %v2181, %v31
  %2184 = vset.pattern.permute.xlu0 3
  %2185 = vperm.xlu0 %2184, %v2167
  %v2186 = vpop.permute.xlu0 %2185
  %v2188 = vmul.f32 %v2186, %v33
  %2189 = vset.pattern.permute.xlu0 4
  %2190 = vperm.xlu0 %2189, %v2167
  %v2191 = vpop.permute.xlu0 %2190
  %v2193 = vmul.f32 %v2191, %v35
  %2194 = vset.pattern.permute.xlu0 5
  %2195 = vperm.xlu0 %2194, %v2167
  %v2196 = vpop.permute.xlu0 %2195
  %v2198 = vmul.f32 %v2196, %v37
  %2199 = vset.pattern.permute.xlu0 6
  %2200 = vperm.xlu0 %2199, %v2167
  %v2201 = vpop.permute.xlu0 %2200
  %v2203 = vmul.f32 %v2201, %v39
  %2204 = vset.pattern.permute.xlu0 7
  %2205 = vperm.xlu0 %2204, %v2167
  %v2206 = vpop.permute.xlu0 %2205
  %v2208 = vmul.f32 %v2206, %v41
  %2209 = vset.pattern.permute.xlu0 8
  %2210 = vperm.xlu0 %2209, %v2167
  %v2211 = vpop.permute.xlu0 %2210
  %v2213 = vmul.f32 %v2211, %v43
  %2214 = vset.pattern.permute.xlu0 9
  %2215 = vperm.xlu0 %2214, %v2167
  %v2216 = vpop.permute.xlu0 %2215
  %v2218 = vmul.f32 %v2216, %v45
  %2219 = vset.pattern.permute.xlu0 10
  %2220 = vperm.xlu0 %2219, %v2167
  %v2221 = vpop.permute.xlu0 %2220
  %v2223 = vmul.f32 %v2221, %v47
  %2224 = vset.pattern.permute.xlu0 11
  %2225 = vperm.xlu0 %2224, %v2167
  %v2226 = vpop.permute.xlu0 %2225
  %v2228 = vmul.f32 %v2226, %v49
  %2229 = vset.pattern.permute.xlu0 12
  %2230 = vperm.xlu0 %2229, %v2167
  %v2231 = vpop.permute.xlu0 %2230
  %v2233 = vmul.f32 %v2231, %v51
  %2234 = vset.pattern.permute.xlu0 13
  %2235 = vperm.xlu0 %2234, %v2167
  %v2236 = vpop.permute.xlu0 %2235
  %v2238 = vmul.f32 %v2236, %v53
  %2239 = vset.pattern.permute.xlu0 14
  %2240 = vperm.xlu0 %2239, %v2167
  %v2241 = vpop.permute.xlu0 %2240
  %v2243 = vmul.f32 %v2241, %v55
  %2244 = vset.pattern.permute.xlu0 15
  %2245 = vperm.xlu0 %2244, %v2167
  %v2246 = vpop.permute.xlu0 %2245
  %v2248 = vmul.f32 %v2246, %v57
  %v2249 = vadd.f32 %v2173, %v2178
  %v2250 = vadd.f32 %v2183, %v2188
  %v2251 = vadd.f32 %v2193, %v2198
  %v2252 = vadd.f32 %v2203, %v2208
  %v2253 = vadd.f32 %v2213, %v2218
  %v2254 = vadd.f32 %v2223, %v2228
  %v2255 = vadd.f32 %v2233, %v2238
  %v2256 = vadd.f32 %v2243, %v2248
  %v2257 = vadd.f32 %v2249, %v2250
  %v2258 = vadd.f32 %v2251, %v2252
  %v2259 = vadd.f32 %v2253, %v2254
  %v2260 = vadd.f32 %v2255, %v2256
  %v2261 = vadd.f32 %v2257, %v2258
  %v2262 = vadd.f32 %v2259, %v2260
  %v2263 = vadd.f32 %v2261, %v2262
  %v2264 = vadd.f32 %v2263, %v2163
  %v2265 = vtanh.pop %v2264
  %v2266 = vmul.f32 %v2265, %v2165
  %v2267 = vmul.f32 %v2266, 0.33333334
  %v2268 = vadd.f32 %v2156, %v2267
  %s2269 = scalar_lea.vmem %s0, 84
  %v2270 = vld [vmem:[%s2269] sm:$0x3]
  %s2271 = scalar_lea.vmem %s0, 86
  %v2272 = vld [vmem:[%s2271] sm:$0x3]
  %v2273 = vmax.f32 %v2268, -1.0
  %v2274 = vmin.f32 %v2273, 1.0
  %2276 = vset.pattern.permute.xlu0 0
  %2277 = vperm.xlu0 %2276, %v2274
  %v2278 = vpop.permute.xlu0 %2277
  %v2280 = vmul.f32 %v2278, %v27
  %2281 = vset.pattern.permute.xlu0 1
  %2282 = vperm.xlu0 %2281, %v2274
  %v2283 = vpop.permute.xlu0 %2282
  %v2285 = vmul.f32 %v2283, %v29
  %2286 = vset.pattern.permute.xlu0 2
  %2287 = vperm.xlu0 %2286, %v2274
  %v2288 = vpop.permute.xlu0 %2287
  %v2290 = vmul.f32 %v2288, %v31
  %2291 = vset.pattern.permute.xlu0 3
  %2292 = vperm.xlu0 %2291, %v2274
  %v2293 = vpop.permute.xlu0 %2292
  %v2295 = vmul.f32 %v2293, %v33
  %2296 = vset.pattern.permute.xlu0 4
  %2297 = vperm.xlu0 %2296, %v2274
  %v2298 = vpop.permute.xlu0 %2297
  %v2300 = vmul.f32 %v2298, %v35
  %2301 = vset.pattern.permute.xlu0 5
  %2302 = vperm.xlu0 %2301, %v2274
  %v2303 = vpop.permute.xlu0 %2302
  %v2305 = vmul.f32 %v2303, %v37
  %2306 = vset.pattern.permute.xlu0 6
  %2307 = vperm.xlu0 %2306, %v2274
  %v2308 = vpop.permute.xlu0 %2307
  %v2310 = vmul.f32 %v2308, %v39
  %2311 = vset.pattern.permute.xlu0 7
  %2312 = vperm.xlu0 %2311, %v2274
  %v2313 = vpop.permute.xlu0 %2312
  %v2315 = vmul.f32 %v2313, %v41
  %2316 = vset.pattern.permute.xlu0 8
  %2317 = vperm.xlu0 %2316, %v2274
  %v2318 = vpop.permute.xlu0 %2317
  %v2320 = vmul.f32 %v2318, %v43
  %2321 = vset.pattern.permute.xlu0 9
  %2322 = vperm.xlu0 %2321, %v2274
  %v2323 = vpop.permute.xlu0 %2322
  %v2325 = vmul.f32 %v2323, %v45
  %2326 = vset.pattern.permute.xlu0 10
  %2327 = vperm.xlu0 %2326, %v2274
  %v2328 = vpop.permute.xlu0 %2327
  %v2330 = vmul.f32 %v2328, %v47
  %2331 = vset.pattern.permute.xlu0 11
  %2332 = vperm.xlu0 %2331, %v2274
  %v2333 = vpop.permute.xlu0 %2332
  %v2335 = vmul.f32 %v2333, %v49
  %2336 = vset.pattern.permute.xlu0 12
  %2337 = vperm.xlu0 %2336, %v2274
  %v2338 = vpop.permute.xlu0 %2337
  %v2340 = vmul.f32 %v2338, %v51
  %2341 = vset.pattern.permute.xlu0 13
  %2342 = vperm.xlu0 %2341, %v2274
  %v2343 = vpop.permute.xlu0 %2342
  %v2345 = vmul.f32 %v2343, %v53
  %2346 = vset.pattern.permute.xlu0 14
  %2347 = vperm.xlu0 %2346, %v2274
  %v2348 = vpop.permute.xlu0 %2347
  %v2350 = vmul.f32 %v2348, %v55
  %2351 = vset.pattern.permute.xlu0 15
  %2352 = vperm.xlu0 %2351, %v2274
  %v2353 = vpop.permute.xlu0 %2352
  %v2355 = vmul.f32 %v2353, %v57
  %v2356 = vadd.f32 %v2280, %v2285
  %v2357 = vadd.f32 %v2290, %v2295
  %v2358 = vadd.f32 %v2300, %v2305
  %v2359 = vadd.f32 %v2310, %v2315
  %v2360 = vadd.f32 %v2320, %v2325
  %v2361 = vadd.f32 %v2330, %v2335
  %v2362 = vadd.f32 %v2340, %v2345
  %v2363 = vadd.f32 %v2350, %v2355
  %v2364 = vadd.f32 %v2356, %v2357
  %v2365 = vadd.f32 %v2358, %v2359
  %v2366 = vadd.f32 %v2360, %v2361
  %v2367 = vadd.f32 %v2362, %v2363
  %v2368 = vadd.f32 %v2364, %v2365
  %v2369 = vadd.f32 %v2366, %v2367
  %v2370 = vadd.f32 %v2368, %v2369
  %v2371 = vadd.f32 %v2370, %v2270
  %v2372 = vtanh.pop %v2371
  %v2373 = vmul.f32 %v2372, %v2272
  %v2374 = vsub.f32 %v2373, %v2267
  %v2375 = vadd.f32 %v2156, %v2374
  %s2376 = scalar_lea.vmem %s0, 88
  %v2377 = vld [vmem:[%s2376] sm:$0x3]
  %s2378 = scalar_lea.vmem %s0, 90
  %v2379 = vld [vmem:[%s2378] sm:$0x3]
  %v2380 = vmax.f32 %v2375, -1.0
  %v2381 = vmin.f32 %v2380, 1.0
  %2383 = vset.pattern.permute.xlu0 0
  %2384 = vperm.xlu0 %2383, %v2381
  %v2385 = vpop.permute.xlu0 %2384
  %v2387 = vmul.f32 %v2385, %v27
  %2388 = vset.pattern.permute.xlu0 1
  %2389 = vperm.xlu0 %2388, %v2381
  %v2390 = vpop.permute.xlu0 %2389
  %v2392 = vmul.f32 %v2390, %v29
  %2393 = vset.pattern.permute.xlu0 2
  %2394 = vperm.xlu0 %2393, %v2381
  %v2395 = vpop.permute.xlu0 %2394
  %v2397 = vmul.f32 %v2395, %v31
  %2398 = vset.pattern.permute.xlu0 3
  %2399 = vperm.xlu0 %2398, %v2381
  %v2400 = vpop.permute.xlu0 %2399
  %v2402 = vmul.f32 %v2400, %v33
  %2403 = vset.pattern.permute.xlu0 4
  %2404 = vperm.xlu0 %2403, %v2381
  %v2405 = vpop.permute.xlu0 %2404
  %v2407 = vmul.f32 %v2405, %v35
  %2408 = vset.pattern.permute.xlu0 5
  %2409 = vperm.xlu0 %2408, %v2381
  %v2410 = vpop.permute.xlu0 %2409
  %v2412 = vmul.f32 %v2410, %v37
  %2413 = vset.pattern.permute.xlu0 6
  %2414 = vperm.xlu0 %2413, %v2381
  %v2415 = vpop.permute.xlu0 %2414
  %v2417 = vmul.f32 %v2415, %v39
  %2418 = vset.pattern.permute.xlu0 7
  %2419 = vperm.xlu0 %2418, %v2381
  %v2420 = vpop.permute.xlu0 %2419
  %v2422 = vmul.f32 %v2420, %v41
  %2423 = vset.pattern.permute.xlu0 8
  %2424 = vperm.xlu0 %2423, %v2381
  %v2425 = vpop.permute.xlu0 %2424
  %v2427 = vmul.f32 %v2425, %v43
  %2428 = vset.pattern.permute.xlu0 9
  %2429 = vperm.xlu0 %2428, %v2381
  %v2430 = vpop.permute.xlu0 %2429
  %v2432 = vmul.f32 %v2430, %v45
  %2433 = vset.pattern.permute.xlu0 10
  %2434 = vperm.xlu0 %2433, %v2381
  %v2435 = vpop.permute.xlu0 %2434
  %v2437 = vmul.f32 %v2435, %v47
  %2438 = vset.pattern.permute.xlu0 11
  %2439 = vperm.xlu0 %2438, %v2381
  %v2440 = vpop.permute.xlu0 %2439
  %v2442 = vmul.f32 %v2440, %v49
  %2443 = vset.pattern.permute.xlu0 12
  %2444 = vperm.xlu0 %2443, %v2381
  %v2445 = vpop.permute.xlu0 %2444
  %v2447 = vmul.f32 %v2445, %v51
  %2448 = vset.pattern.permute.xlu0 13
  %2449 = vperm.xlu0 %2448, %v2381
  %v2450 = vpop.permute.xlu0 %2449
  %v2452 = vmul.f32 %v2450, %v53
  %2453 = vset.pattern.permute.xlu0 14
  %2454 = vperm.xlu0 %2453, %v2381
  %v2455 = vpop.permute.xlu0 %2454
  %v2457 = vmul.f32 %v2455, %v55
  %2458 = vset.pattern.permute.xlu0 15
  %2459 = vperm.xlu0 %2458, %v2381
  %v2460 = vpop.permute.xlu0 %2459
  %v2462 = vmul.f32 %v2460, %v57
  %v2463 = vadd.f32 %v2387, %v2392
  %v2464 = vadd.f32 %v2397, %v2402
  %v2465 = vadd.f32 %v2407, %v2412
  %v2466 = vadd.f32 %v2417, %v2422
  %v2467 = vadd.f32 %v2427, %v2432
  %v2468 = vadd.f32 %v2437, %v2442
  %v2469 = vadd.f32 %v2447, %v2452
  %v2470 = vadd.f32 %v2457, %v2462
  %v2471 = vadd.f32 %v2463, %v2464
  %v2472 = vadd.f32 %v2465, %v2466
  %v2473 = vadd.f32 %v2467, %v2468
  %v2474 = vadd.f32 %v2469, %v2470
  %v2475 = vadd.f32 %v2471, %v2472
  %v2476 = vadd.f32 %v2473, %v2474
  %v2477 = vadd.f32 %v2475, %v2476
  %v2478 = vadd.f32 %v2477, %v2377
  %v2479 = vtanh.pop %v2478
  %v2480 = vmul.f32 %v2479, %v2379
  %v2481 = vsub.f32 %v2266, %v2373
  %v2482 = vadd.f32 %v2481, %v2480
  %v2483 = vadd.f32 %v2156, %v2482
  %s2484 = scalar_lea.vmem %s0, 92
  %v2485 = vld [vmem:[%s2484] sm:$0x3]
  %s2486 = scalar_lea.vmem %s0, 94
  %v2487 = vld [vmem:[%s2486] sm:$0x3]
  %v2488 = vmax.f32 %v2483, -1.0
  %v2489 = vmin.f32 %v2488, 1.0
  %2491 = vset.pattern.permute.xlu0 0
  %2492 = vperm.xlu0 %2491, %v2489
  %v2493 = vpop.permute.xlu0 %2492
  %v2495 = vmul.f32 %v2493, %v27
  %2496 = vset.pattern.permute.xlu0 1
  %2497 = vperm.xlu0 %2496, %v2489
  %v2498 = vpop.permute.xlu0 %2497
  %v2500 = vmul.f32 %v2498, %v29
  %2501 = vset.pattern.permute.xlu0 2
  %2502 = vperm.xlu0 %2501, %v2489
  %v2503 = vpop.permute.xlu0 %2502
  %v2505 = vmul.f32 %v2503, %v31
  %2506 = vset.pattern.permute.xlu0 3
  %2507 = vperm.xlu0 %2506, %v2489
  %v2508 = vpop.permute.xlu0 %2507
  %v2510 = vmul.f32 %v2508, %v33
  %2511 = vset.pattern.permute.xlu0 4
  %2512 = vperm.xlu0 %2511, %v2489
  %v2513 = vpop.permute.xlu0 %2512
  %v2515 = vmul.f32 %v2513, %v35
  %2516 = vset.pattern.permute.xlu0 5
  %2517 = vperm.xlu0 %2516, %v2489
  %v2518 = vpop.permute.xlu0 %2517
  %v2520 = vmul.f32 %v2518, %v37
  %2521 = vset.pattern.permute.xlu0 6
  %2522 = vperm.xlu0 %2521, %v2489
  %v2523 = vpop.permute.xlu0 %2522
  %v2525 = vmul.f32 %v2523, %v39
  %2526 = vset.pattern.permute.xlu0 7
  %2527 = vperm.xlu0 %2526, %v2489
  %v2528 = vpop.permute.xlu0 %2527
  %v2530 = vmul.f32 %v2528, %v41
  %2531 = vset.pattern.permute.xlu0 8
  %2532 = vperm.xlu0 %2531, %v2489
  %v2533 = vpop.permute.xlu0 %2532
  %v2535 = vmul.f32 %v2533, %v43
  %2536 = vset.pattern.permute.xlu0 9
  %2537 = vperm.xlu0 %2536, %v2489
  %v2538 = vpop.permute.xlu0 %2537
  %v2540 = vmul.f32 %v2538, %v45
  %2541 = vset.pattern.permute.xlu0 10
  %2542 = vperm.xlu0 %2541, %v2489
  %v2543 = vpop.permute.xlu0 %2542
  %v2545 = vmul.f32 %v2543, %v47
  %2546 = vset.pattern.permute.xlu0 11
  %2547 = vperm.xlu0 %2546, %v2489
  %v2548 = vpop.permute.xlu0 %2547
  %v2550 = vmul.f32 %v2548, %v49
  %2551 = vset.pattern.permute.xlu0 12
  %2552 = vperm.xlu0 %2551, %v2489
  %v2553 = vpop.permute.xlu0 %2552
  %v2555 = vmul.f32 %v2553, %v51
  %2556 = vset.pattern.permute.xlu0 13
  %2557 = vperm.xlu0 %2556, %v2489
  %v2558 = vpop.permute.xlu0 %2557
  %v2560 = vmul.f32 %v2558, %v53
  %2561 = vset.pattern.permute.xlu0 14
  %2562 = vperm.xlu0 %2561, %v2489
  %v2563 = vpop.permute.xlu0 %2562
  %v2565 = vmul.f32 %v2563, %v55
  %2566 = vset.pattern.permute.xlu0 15
  %2567 = vperm.xlu0 %2566, %v2489
  %v2568 = vpop.permute.xlu0 %2567
  %v2570 = vmul.f32 %v2568, %v57
  %v2571 = vadd.f32 %v2495, %v2500
  %v2572 = vadd.f32 %v2505, %v2510
  %v2573 = vadd.f32 %v2515, %v2520
  %v2574 = vadd.f32 %v2525, %v2530
  %v2575 = vadd.f32 %v2535, %v2540
  %v2576 = vadd.f32 %v2545, %v2550
  %v2577 = vadd.f32 %v2555, %v2560
  %v2578 = vadd.f32 %v2565, %v2570
  %v2579 = vadd.f32 %v2571, %v2572
  %v2580 = vadd.f32 %v2573, %v2574
  %v2581 = vadd.f32 %v2575, %v2576
  %v2582 = vadd.f32 %v2577, %v2578
  %v2583 = vadd.f32 %v2579, %v2580
  %v2584 = vadd.f32 %v2581, %v2582
  %v2585 = vadd.f32 %v2583, %v2584
  %v2586 = vadd.f32 %v2585, %v2485
  %v2587 = vtanh.pop %v2586
  %v2588 = vmul.f32 %v2587, %v2487
  %v2589 = vadd.f32 %v2373, %v2480
  %v2590 = vmul.f32 %v2589, 3.0
  %v2591 = vadd.f32 %v2266, %v2590
  %v2592 = vadd.f32 %v2591, %v2588
  %v2593 = vmul.f32 %v2592, 0.125
  %v2594 = vadd.f32 %v2156, %v2593
  %v2596 = vrot.slane %v2594, 1
  %2598 = vst.msk [vmem:[#allocation2 + $0x6] sm:$0x1] %vm21, %v2594
  %2599 = vst.msk [vmem:[#allocation2 + $0xe] sm:$0x1] %vm21, %v2596
  %s2600 = scalar_lea.vmem %s0, 96
  %v2601 = vld [vmem:[%s2600] sm:$0x3]
  %s2602 = scalar_lea.vmem %s0, 98
  %v2603 = vld [vmem:[%s2602] sm:$0x3]
  %v2604 = vmax.f32 %v2594, -1.0
  %v2605 = vmin.f32 %v2604, 1.0
  %2607 = vset.pattern.permute.xlu0 0
  %2608 = vperm.xlu0 %2607, %v2605
  %v2609 = vpop.permute.xlu0 %2608
  %v2611 = vmul.f32 %v2609, %v27
  %2612 = vset.pattern.permute.xlu0 1
  %2613 = vperm.xlu0 %2612, %v2605
  %v2614 = vpop.permute.xlu0 %2613
  %v2616 = vmul.f32 %v2614, %v29
  %2617 = vset.pattern.permute.xlu0 2
  %2618 = vperm.xlu0 %2617, %v2605
  %v2619 = vpop.permute.xlu0 %2618
  %v2621 = vmul.f32 %v2619, %v31
  %2622 = vset.pattern.permute.xlu0 3
  %2623 = vperm.xlu0 %2622, %v2605
  %v2624 = vpop.permute.xlu0 %2623
  %v2626 = vmul.f32 %v2624, %v33
  %2627 = vset.pattern.permute.xlu0 4
  %2628 = vperm.xlu0 %2627, %v2605
  %v2629 = vpop.permute.xlu0 %2628
  %v2631 = vmul.f32 %v2629, %v35
  %2632 = vset.pattern.permute.xlu0 5
  %2633 = vperm.xlu0 %2632, %v2605
  %v2634 = vpop.permute.xlu0 %2633
  %v2636 = vmul.f32 %v2634, %v37
  %2637 = vset.pattern.permute.xlu0 6
  %2638 = vperm.xlu0 %2637, %v2605
  %v2639 = vpop.permute.xlu0 %2638
  %v2641 = vmul.f32 %v2639, %v39
  %2642 = vset.pattern.permute.xlu0 7
  %2643 = vperm.xlu0 %2642, %v2605
  %v2644 = vpop.permute.xlu0 %2643
  %v2646 = vmul.f32 %v2644, %v41
  %2647 = vset.pattern.permute.xlu0 8
  %2648 = vperm.xlu0 %2647, %v2605
  %v2649 = vpop.permute.xlu0 %2648
  %v2651 = vmul.f32 %v2649, %v43
  %2652 = vset.pattern.permute.xlu0 9
  %2653 = vperm.xlu0 %2652, %v2605
  %v2654 = vpop.permute.xlu0 %2653
  %v2656 = vmul.f32 %v2654, %v45
  %2657 = vset.pattern.permute.xlu0 10
  %2658 = vperm.xlu0 %2657, %v2605
  %v2659 = vpop.permute.xlu0 %2658
  %v2661 = vmul.f32 %v2659, %v47
  %2662 = vset.pattern.permute.xlu0 11
  %2663 = vperm.xlu0 %2662, %v2605
  %v2664 = vpop.permute.xlu0 %2663
  %v2666 = vmul.f32 %v2664, %v49
  %2667 = vset.pattern.permute.xlu0 12
  %2668 = vperm.xlu0 %2667, %v2605
  %v2669 = vpop.permute.xlu0 %2668
  %v2671 = vmul.f32 %v2669, %v51
  %2672 = vset.pattern.permute.xlu0 13
  %2673 = vperm.xlu0 %2672, %v2605
  %v2674 = vpop.permute.xlu0 %2673
  %v2676 = vmul.f32 %v2674, %v53
  %2677 = vset.pattern.permute.xlu0 14
  %2678 = vperm.xlu0 %2677, %v2605
  %v2679 = vpop.permute.xlu0 %2678
  %v2681 = vmul.f32 %v2679, %v55
  %2682 = vset.pattern.permute.xlu0 15
  %2683 = vperm.xlu0 %2682, %v2605
  %v2684 = vpop.permute.xlu0 %2683
  %v2686 = vmul.f32 %v2684, %v57
  %v2687 = vadd.f32 %v2611, %v2616
  %v2688 = vadd.f32 %v2621, %v2626
  %v2689 = vadd.f32 %v2631, %v2636
  %v2690 = vadd.f32 %v2641, %v2646
  %v2691 = vadd.f32 %v2651, %v2656
  %v2692 = vadd.f32 %v2661, %v2666
  %v2693 = vadd.f32 %v2671, %v2676
  %v2694 = vadd.f32 %v2681, %v2686
  %v2695 = vadd.f32 %v2687, %v2688
  %v2696 = vadd.f32 %v2689, %v2690
  %v2697 = vadd.f32 %v2691, %v2692
  %v2698 = vadd.f32 %v2693, %v2694
  %v2699 = vadd.f32 %v2695, %v2696
  %v2700 = vadd.f32 %v2697, %v2698
  %v2701 = vadd.f32 %v2699, %v2700
  %v2702 = vadd.f32 %v2701, %v2601
  %v2703 = vtanh.pop %v2702
  %v2704 = vmul.f32 %v2703, %v2603
  %v2705 = vmul.f32 %v2704, 0.33333334
  %v2706 = vadd.f32 %v2594, %v2705
  %s2707 = scalar_lea.vmem %s0, 100
  %v2708 = vld [vmem:[%s2707] sm:$0x3]
  %s2709 = scalar_lea.vmem %s0, 102
  %v2710 = vld [vmem:[%s2709] sm:$0x3]
  %v2711 = vmax.f32 %v2706, -1.0
  %v2712 = vmin.f32 %v2711, 1.0
  %2714 = vset.pattern.permute.xlu0 0
  %2715 = vperm.xlu0 %2714, %v2712
  %v2716 = vpop.permute.xlu0 %2715
  %v2718 = vmul.f32 %v2716, %v27
  %2719 = vset.pattern.permute.xlu0 1
  %2720 = vperm.xlu0 %2719, %v2712
  %v2721 = vpop.permute.xlu0 %2720
  %v2723 = vmul.f32 %v2721, %v29
  %2724 = vset.pattern.permute.xlu0 2
  %2725 = vperm.xlu0 %2724, %v2712
  %v2726 = vpop.permute.xlu0 %2725
  %v2728 = vmul.f32 %v2726, %v31
  %2729 = vset.pattern.permute.xlu0 3
  %2730 = vperm.xlu0 %2729, %v2712
  %v2731 = vpop.permute.xlu0 %2730
  %v2733 = vmul.f32 %v2731, %v33
  %2734 = vset.pattern.permute.xlu0 4
  %2735 = vperm.xlu0 %2734, %v2712
  %v2736 = vpop.permute.xlu0 %2735
  %v2738 = vmul.f32 %v2736, %v35
  %2739 = vset.pattern.permute.xlu0 5
  %2740 = vperm.xlu0 %2739, %v2712
  %v2741 = vpop.permute.xlu0 %2740
  %v2743 = vmul.f32 %v2741, %v37
  %2744 = vset.pattern.permute.xlu0 6
  %2745 = vperm.xlu0 %2744, %v2712
  %v2746 = vpop.permute.xlu0 %2745
  %v2748 = vmul.f32 %v2746, %v39
  %2749 = vset.pattern.permute.xlu0 7
  %2750 = vperm.xlu0 %2749, %v2712
  %v2751 = vpop.permute.xlu0 %2750
  %v2753 = vmul.f32 %v2751, %v41
  %2754 = vset.pattern.permute.xlu0 8
  %2755 = vperm.xlu0 %2754, %v2712
  %v2756 = vpop.permute.xlu0 %2755
  %v2758 = vmul.f32 %v2756, %v43
  %2759 = vset.pattern.permute.xlu0 9
  %2760 = vperm.xlu0 %2759, %v2712
  %v2761 = vpop.permute.xlu0 %2760
  %v2763 = vmul.f32 %v2761, %v45
  %2764 = vset.pattern.permute.xlu0 10
  %2765 = vperm.xlu0 %2764, %v2712
  %v2766 = vpop.permute.xlu0 %2765
  %v2768 = vmul.f32 %v2766, %v47
  %2769 = vset.pattern.permute.xlu0 11
  %2770 = vperm.xlu0 %2769, %v2712
  %v2771 = vpop.permute.xlu0 %2770
  %v2773 = vmul.f32 %v2771, %v49
  %2774 = vset.pattern.permute.xlu0 12
  %2775 = vperm.xlu0 %2774, %v2712
  %v2776 = vpop.permute.xlu0 %2775
  %v2778 = vmul.f32 %v2776, %v51
  %2779 = vset.pattern.permute.xlu0 13
  %2780 = vperm.xlu0 %2779, %v2712
  %v2781 = vpop.permute.xlu0 %2780
  %v2783 = vmul.f32 %v2781, %v53
  %2784 = vset.pattern.permute.xlu0 14
  %2785 = vperm.xlu0 %2784, %v2712
  %v2786 = vpop.permute.xlu0 %2785
  %v2788 = vmul.f32 %v2786, %v55
  %2789 = vset.pattern.permute.xlu0 15
  %2790 = vperm.xlu0 %2789, %v2712
  %v2791 = vpop.permute.xlu0 %2790
  %v2793 = vmul.f32 %v2791, %v57
  %v2794 = vadd.f32 %v2718, %v2723
  %v2795 = vadd.f32 %v2728, %v2733
  %v2796 = vadd.f32 %v2738, %v2743
  %v2797 = vadd.f32 %v2748, %v2753
  %v2798 = vadd.f32 %v2758, %v2763
  %v2799 = vadd.f32 %v2768, %v2773
  %v2800 = vadd.f32 %v2778, %v2783
  %v2801 = vadd.f32 %v2788, %v2793
  %v2802 = vadd.f32 %v2794, %v2795
  %v2803 = vadd.f32 %v2796, %v2797
  %v2804 = vadd.f32 %v2798, %v2799
  %v2805 = vadd.f32 %v2800, %v2801
  %v2806 = vadd.f32 %v2802, %v2803
  %v2807 = vadd.f32 %v2804, %v2805
  %v2808 = vadd.f32 %v2806, %v2807
  %v2809 = vadd.f32 %v2808, %v2708
  %v2810 = vtanh.pop %v2809
  %v2811 = vmul.f32 %v2810, %v2710
  %v2812 = vsub.f32 %v2811, %v2705
  %v2813 = vadd.f32 %v2594, %v2812
  %s2814 = scalar_lea.vmem %s0, 104
  %v2815 = vld [vmem:[%s2814] sm:$0x3]
  %s2816 = scalar_lea.vmem %s0, 106
  %v2817 = vld [vmem:[%s2816] sm:$0x3]
  %v2818 = vmax.f32 %v2813, -1.0
  %v2819 = vmin.f32 %v2818, 1.0
  %2821 = vset.pattern.permute.xlu0 0
  %2822 = vperm.xlu0 %2821, %v2819
  %v2823 = vpop.permute.xlu0 %2822
  %v2825 = vmul.f32 %v2823, %v27
  %2826 = vset.pattern.permute.xlu0 1
  %2827 = vperm.xlu0 %2826, %v2819
  %v2828 = vpop.permute.xlu0 %2827
  %v2830 = vmul.f32 %v2828, %v29
  %2831 = vset.pattern.permute.xlu0 2
  %2832 = vperm.xlu0 %2831, %v2819
  %v2833 = vpop.permute.xlu0 %2832
  %v2835 = vmul.f32 %v2833, %v31
  %2836 = vset.pattern.permute.xlu0 3
  %2837 = vperm.xlu0 %2836, %v2819
  %v2838 = vpop.permute.xlu0 %2837
  %v2840 = vmul.f32 %v2838, %v33
  %2841 = vset.pattern.permute.xlu0 4
  %2842 = vperm.xlu0 %2841, %v2819
  %v2843 = vpop.permute.xlu0 %2842
  %v2845 = vmul.f32 %v2843, %v35
  %2846 = vset.pattern.permute.xlu0 5
  %2847 = vperm.xlu0 %2846, %v2819
  %v2848 = vpop.permute.xlu0 %2847
  %v2850 = vmul.f32 %v2848, %v37
  %2851 = vset.pattern.permute.xlu0 6
  %2852 = vperm.xlu0 %2851, %v2819
  %v2853 = vpop.permute.xlu0 %2852
  %v2855 = vmul.f32 %v2853, %v39
  %2856 = vset.pattern.permute.xlu0 7
  %2857 = vperm.xlu0 %2856, %v2819
  %v2858 = vpop.permute.xlu0 %2857
  %v2860 = vmul.f32 %v2858, %v41
  %2861 = vset.pattern.permute.xlu0 8
  %2862 = vperm.xlu0 %2861, %v2819
  %v2863 = vpop.permute.xlu0 %2862
  %v2865 = vmul.f32 %v2863, %v43
  %2866 = vset.pattern.permute.xlu0 9
  %2867 = vperm.xlu0 %2866, %v2819
  %v2868 = vpop.permute.xlu0 %2867
  %v2870 = vmul.f32 %v2868, %v45
  %2871 = vset.pattern.permute.xlu0 10
  %2872 = vperm.xlu0 %2871, %v2819
  %v2873 = vpop.permute.xlu0 %2872
  %v2875 = vmul.f32 %v2873, %v47
  %2876 = vset.pattern.permute.xlu0 11
  %2877 = vperm.xlu0 %2876, %v2819
  %v2878 = vpop.permute.xlu0 %2877
  %v2880 = vmul.f32 %v2878, %v49
  %2881 = vset.pattern.permute.xlu0 12
  %2882 = vperm.xlu0 %2881, %v2819
  %v2883 = vpop.permute.xlu0 %2882
  %v2885 = vmul.f32 %v2883, %v51
  %2886 = vset.pattern.permute.xlu0 13
  %2887 = vperm.xlu0 %2886, %v2819
  %v2888 = vpop.permute.xlu0 %2887
  %v2890 = vmul.f32 %v2888, %v53
  %2891 = vset.pattern.permute.xlu0 14
  %2892 = vperm.xlu0 %2891, %v2819
  %v2893 = vpop.permute.xlu0 %2892
  %v2895 = vmul.f32 %v2893, %v55
  %2896 = vset.pattern.permute.xlu0 15
  %2897 = vperm.xlu0 %2896, %v2819
  %v2898 = vpop.permute.xlu0 %2897
  %v2900 = vmul.f32 %v2898, %v57
  %v2901 = vadd.f32 %v2825, %v2830
  %v2902 = vadd.f32 %v2835, %v2840
  %v2903 = vadd.f32 %v2845, %v2850
  %v2904 = vadd.f32 %v2855, %v2860
  %v2905 = vadd.f32 %v2865, %v2870
  %v2906 = vadd.f32 %v2875, %v2880
  %v2907 = vadd.f32 %v2885, %v2890
  %v2908 = vadd.f32 %v2895, %v2900
  %v2909 = vadd.f32 %v2901, %v2902
  %v2910 = vadd.f32 %v2903, %v2904
  %v2911 = vadd.f32 %v2905, %v2906
  %v2912 = vadd.f32 %v2907, %v2908
  %v2913 = vadd.f32 %v2909, %v2910
  %v2914 = vadd.f32 %v2911, %v2912
  %v2915 = vadd.f32 %v2913, %v2914
  %v2916 = vadd.f32 %v2915, %v2815
  %v2917 = vtanh.pop %v2916
  %v2918 = vmul.f32 %v2917, %v2817
  %v2919 = vsub.f32 %v2704, %v2811
  %v2920 = vadd.f32 %v2919, %v2918
  %v2921 = vadd.f32 %v2594, %v2920
  %s2922 = scalar_lea.vmem %s0, 108
  %v2923 = vld [vmem:[%s2922] sm:$0x3]
  %s2924 = scalar_lea.vmem %s0, 110
  %v2925 = vld [vmem:[%s2924] sm:$0x3]
  %v2926 = vmax.f32 %v2921, -1.0
  %v2927 = vmin.f32 %v2926, 1.0
  %2929 = vset.pattern.permute.xlu0 0
  %2930 = vperm.xlu0 %2929, %v2927
  %v2931 = vpop.permute.xlu0 %2930
  %v2933 = vmul.f32 %v2931, %v27
  %2934 = vset.pattern.permute.xlu0 1
  %2935 = vperm.xlu0 %2934, %v2927
  %v2936 = vpop.permute.xlu0 %2935
  %v2938 = vmul.f32 %v2936, %v29
  %2939 = vset.pattern.permute.xlu0 2
  %2940 = vperm.xlu0 %2939, %v2927
  %v2941 = vpop.permute.xlu0 %2940
  %v2943 = vmul.f32 %v2941, %v31
  %2944 = vset.pattern.permute.xlu0 3
  %2945 = vperm.xlu0 %2944, %v2927
  %v2946 = vpop.permute.xlu0 %2945
  %v2948 = vmul.f32 %v2946, %v33
  %2949 = vset.pattern.permute.xlu0 4
  %2950 = vperm.xlu0 %2949, %v2927
  %v2951 = vpop.permute.xlu0 %2950
  %v2953 = vmul.f32 %v2951, %v35
  %2954 = vset.pattern.permute.xlu0 5
  %2955 = vperm.xlu0 %2954, %v2927
  %v2956 = vpop.permute.xlu0 %2955
  %v2958 = vmul.f32 %v2956, %v37
  %2959 = vset.pattern.permute.xlu0 6
  %2960 = vperm.xlu0 %2959, %v2927
  %v2961 = vpop.permute.xlu0 %2960
  %v2963 = vmul.f32 %v2961, %v39
  %2964 = vset.pattern.permute.xlu0 7
  %2965 = vperm.xlu0 %2964, %v2927
  %v2966 = vpop.permute.xlu0 %2965
  %v2968 = vmul.f32 %v2966, %v41
  %2969 = vset.pattern.permute.xlu0 8
  %2970 = vperm.xlu0 %2969, %v2927
  %v2971 = vpop.permute.xlu0 %2970
  %v2973 = vmul.f32 %v2971, %v43
  %2974 = vset.pattern.permute.xlu0 9
  %2975 = vperm.xlu0 %2974, %v2927
  %v2976 = vpop.permute.xlu0 %2975
  %v2978 = vmul.f32 %v2976, %v45
  %2979 = vset.pattern.permute.xlu0 10
  %2980 = vperm.xlu0 %2979, %v2927
  %v2981 = vpop.permute.xlu0 %2980
  %v2983 = vmul.f32 %v2981, %v47
  %2984 = vset.pattern.permute.xlu0 11
  %2985 = vperm.xlu0 %2984, %v2927
  %v2986 = vpop.permute.xlu0 %2985
  %v2988 = vmul.f32 %v2986, %v49
  %2989 = vset.pattern.permute.xlu0 12
  %2990 = vperm.xlu0 %2989, %v2927
  %v2991 = vpop.permute.xlu0 %2990
  %v2993 = vmul.f32 %v2991, %v51
  %2994 = vset.pattern.permute.xlu0 13
  %2995 = vperm.xlu0 %2994, %v2927
  %v2996 = vpop.permute.xlu0 %2995
  %v2998 = vmul.f32 %v2996, %v53
  %2999 = vset.pattern.permute.xlu0 14
  %3000 = vperm.xlu0 %2999, %v2927
  %v3001 = vpop.permute.xlu0 %3000
  %v3003 = vmul.f32 %v3001, %v55
  %3004 = vset.pattern.permute.xlu0 15
  %3005 = vperm.xlu0 %3004, %v2927
  %v3006 = vpop.permute.xlu0 %3005
  %v3008 = vmul.f32 %v3006, %v57
  %v3009 = vadd.f32 %v2933, %v2938
  %v3010 = vadd.f32 %v2943, %v2948
  %v3011 = vadd.f32 %v2953, %v2958
  %v3012 = vadd.f32 %v2963, %v2968
  %v3013 = vadd.f32 %v2973, %v2978
  %v3014 = vadd.f32 %v2983, %v2988
  %v3015 = vadd.f32 %v2993, %v2998
  %v3016 = vadd.f32 %v3003, %v3008
  %v3017 = vadd.f32 %v3009, %v3010
  %v3018 = vadd.f32 %v3011, %v3012
  %v3019 = vadd.f32 %v3013, %v3014
  %v3020 = vadd.f32 %v3015, %v3016
  %v3021 = vadd.f32 %v3017, %v3018
  %v3022 = vadd.f32 %v3019, %v3020
  %v3023 = vadd.f32 %v3021, %v3022
  %v3024 = vadd.f32 %v3023, %v2923
  %v3025 = vtanh.pop %v3024
  %v3026 = vmul.f32 %v3025, %v2925
  %v3027 = vadd.f32 %v2811, %v2918
  %v3028 = vmul.f32 %v3027, 3.0
  %v3029 = vadd.f32 %v2704, %v3028
  %v3030 = vadd.f32 %v3029, %v3026
  %v3031 = vmul.f32 %v3030, 0.125
  %v3032 = vadd.f32 %v2594, %v3031
  %v3034 = vrot.slane %v3032, 1
  %3036 = vst.msk [vmem:[#allocation2 + $0x7] sm:$0x1] %vm21, %v3032
  %3037 = vst.msk [vmem:[#allocation2 + $0xf] sm:$0x1] %vm21, %v3034
  %v3038 = vld [vmem:[#allocation2] sm:$0xff]
  %v3039 = vld [vmem:[#allocation2 + $0x8] sm:$0xff]
  %3041 = vset.pattern.permute.xlu0 0
  %3042 = vperm.xlu0 %3041, %v3038
  %v3043 = vpop.permute.xlu0 %3042
  %3046 = vset.pattern.permute.xlu0 0
  %3047 = vperm.xlu0 %3046, %v3039
  %v3048 = vpop.permute.xlu0 %3047
  %v3050 = vperm.slane %v19, 0
  %v3051 = vmul.f32 %v3043, %v3050
  %v3052 = vmul.f32 %v3048, %v3050
  %3053 = vset.pattern.permute.xlu0 1
  %3054 = vperm.xlu0 %3053, %v3038
  %v3055 = vpop.permute.xlu0 %3054
  %3057 = vset.pattern.permute.xlu0 1
  %3058 = vperm.xlu0 %3057, %v3039
  %v3059 = vpop.permute.xlu0 %3058
  %v3061 = vperm.slane %v19, 1
  %v3062 = vmul.f32 %v3055, %v3061
  %v3063 = vmul.f32 %v3059, %v3061
  %3064 = vset.pattern.permute.xlu0 2
  %3065 = vperm.xlu0 %3064, %v3038
  %v3066 = vpop.permute.xlu0 %3065
  %3068 = vset.pattern.permute.xlu0 2
  %3069 = vperm.xlu0 %3068, %v3039
  %v3070 = vpop.permute.xlu0 %3069
  %v3072 = vperm.slane %v19, 2
  %v3073 = vmul.f32 %v3066, %v3072
  %v3074 = vmul.f32 %v3070, %v3072
  %3075 = vset.pattern.permute.xlu0 3
  %3076 = vperm.xlu0 %3075, %v3038
  %v3077 = vpop.permute.xlu0 %3076
  %3079 = vset.pattern.permute.xlu0 3
  %3080 = vperm.xlu0 %3079, %v3039
  %v3081 = vpop.permute.xlu0 %3080
  %v3083 = vperm.slane %v19, 3
  %v3084 = vmul.f32 %v3077, %v3083
  %v3085 = vmul.f32 %v3081, %v3083
  %3086 = vset.pattern.permute.xlu0 4
  %3087 = vperm.xlu0 %3086, %v3038
  %v3088 = vpop.permute.xlu0 %3087
  %3090 = vset.pattern.permute.xlu0 4
  %3091 = vperm.xlu0 %3090, %v3039
  %v3092 = vpop.permute.xlu0 %3091
  %v3094 = vperm.slane %v19, 4
  %v3095 = vmul.f32 %v3088, %v3094
  %v3096 = vmul.f32 %v3092, %v3094
  %3097 = vset.pattern.permute.xlu0 5
  %3098 = vperm.xlu0 %3097, %v3038
  %v3099 = vpop.permute.xlu0 %3098
  %3101 = vset.pattern.permute.xlu0 5
  %3102 = vperm.xlu0 %3101, %v3039
  %v3103 = vpop.permute.xlu0 %3102
  %v3105 = vperm.slane %v19, 5
  %v3106 = vmul.f32 %v3099, %v3105
  %v3107 = vmul.f32 %v3103, %v3105
  %3108 = vset.pattern.permute.xlu0 6
  %3109 = vperm.xlu0 %3108, %v3038
  %v3110 = vpop.permute.xlu0 %3109
  %3112 = vset.pattern.permute.xlu0 6
  %3113 = vperm.xlu0 %3112, %v3039
  %v3114 = vpop.permute.xlu0 %3113
  %v3116 = vperm.slane %v19, 6
  %v3117 = vmul.f32 %v3110, %v3116
  %v3118 = vmul.f32 %v3114, %v3116
  %3119 = vset.pattern.permute.xlu0 7
  %3120 = vperm.xlu0 %3119, %v3038
  %v3121 = vpop.permute.xlu0 %3120
  %3123 = vset.pattern.permute.xlu0 7
  %3124 = vperm.xlu0 %3123, %v3039
  %v3125 = vpop.permute.xlu0 %3124
  %v3127 = vperm.slane %v19, 7
  %v3128 = vmul.f32 %v3121, %v3127
  %v3129 = vmul.f32 %v3125, %v3127
  %3130 = vset.pattern.permute.xlu0 8
  %3131 = vperm.xlu0 %3130, %v3038
  %v3132 = vpop.permute.xlu0 %3131
  %3134 = vset.pattern.permute.xlu0 8
  %3135 = vperm.xlu0 %3134, %v3039
  %v3136 = vpop.permute.xlu0 %3135
  %v3138 = vperm.slane %v20, 0
  %v3139 = vmul.f32 %v3132, %v3138
  %v3140 = vmul.f32 %v3136, %v3138
  %3141 = vset.pattern.permute.xlu0 9
  %3142 = vperm.xlu0 %3141, %v3038
  %v3143 = vpop.permute.xlu0 %3142
  %3145 = vset.pattern.permute.xlu0 9
  %3146 = vperm.xlu0 %3145, %v3039
  %v3147 = vpop.permute.xlu0 %3146
  %v3149 = vperm.slane %v20, 1
  %v3150 = vmul.f32 %v3143, %v3149
  %v3151 = vmul.f32 %v3147, %v3149
  %3152 = vset.pattern.permute.xlu0 10
  %3153 = vperm.xlu0 %3152, %v3038
  %v3154 = vpop.permute.xlu0 %3153
  %3156 = vset.pattern.permute.xlu0 10
  %3157 = vperm.xlu0 %3156, %v3039
  %v3158 = vpop.permute.xlu0 %3157
  %v3160 = vperm.slane %v20, 2
  %v3161 = vmul.f32 %v3154, %v3160
  %v3162 = vmul.f32 %v3158, %v3160
  %3163 = vset.pattern.permute.xlu0 11
  %3164 = vperm.xlu0 %3163, %v3038
  %v3165 = vpop.permute.xlu0 %3164
  %3167 = vset.pattern.permute.xlu0 11
  %3168 = vperm.xlu0 %3167, %v3039
  %v3169 = vpop.permute.xlu0 %3168
  %v3171 = vperm.slane %v20, 3
  %v3172 = vmul.f32 %v3165, %v3171
  %v3173 = vmul.f32 %v3169, %v3171
  %3174 = vset.pattern.permute.xlu0 12
  %3175 = vperm.xlu0 %3174, %v3038
  %v3176 = vpop.permute.xlu0 %3175
  %3178 = vset.pattern.permute.xlu0 12
  %3179 = vperm.xlu0 %3178, %v3039
  %v3180 = vpop.permute.xlu0 %3179
  %v3182 = vperm.slane %v20, 4
  %v3183 = vmul.f32 %v3176, %v3182
  %v3184 = vmul.f32 %v3180, %v3182
  %3185 = vset.pattern.permute.xlu0 13
  %3186 = vperm.xlu0 %3185, %v3038
  %v3187 = vpop.permute.xlu0 %3186
  %3189 = vset.pattern.permute.xlu0 13
  %3190 = vperm.xlu0 %3189, %v3039
  %v3191 = vpop.permute.xlu0 %3190
  %v3193 = vperm.slane %v20, 5
  %v3194 = vmul.f32 %v3187, %v3193
  %v3195 = vmul.f32 %v3191, %v3193
  %3196 = vset.pattern.permute.xlu0 14
  %3197 = vperm.xlu0 %3196, %v3038
  %v3198 = vpop.permute.xlu0 %3197
  %3200 = vset.pattern.permute.xlu0 14
  %3201 = vperm.xlu0 %3200, %v3039
  %v3202 = vpop.permute.xlu0 %3201
  %v3204 = vperm.slane %v20, 6
  %v3205 = vmul.f32 %v3198, %v3204
  %v3206 = vmul.f32 %v3202, %v3204
  %3207 = vset.pattern.permute.xlu0 15
  %3208 = vperm.xlu0 %3207, %v3038
  %v3209 = vpop.permute.xlu0 %3208
  %3211 = vset.pattern.permute.xlu0 15
  %3212 = vperm.xlu0 %3211, %v3039
  %v3213 = vpop.permute.xlu0 %3212
  %v3215 = vperm.slane %v20, 7
  %v3216 = vmul.f32 %v3209, %v3215
  %v3217 = vmul.f32 %v3213, %v3215
  %v3218 = vld [vmem:[%s1] sm:$0xff]
  %v3219 = vld [vmem:[%s1 + $0x8] sm:$0xff]
  %v3220 = vadd.f32 %v3051, %v3062
  %v3221 = vadd.f32 %v3052, %v3063
  %v3222 = vadd.f32 %v3073, %v3084
  %v3223 = vadd.f32 %v3074, %v3085
  %v3224 = vadd.f32 %v3095, %v3106
  %v3225 = vadd.f32 %v3096, %v3107
  %v3226 = vadd.f32 %v3117, %v3128
  %v3227 = vadd.f32 %v3118, %v3129
  %v3228 = vadd.f32 %v3139, %v3150
  %v3229 = vadd.f32 %v3140, %v3151
  %v3230 = vadd.f32 %v3161, %v3172
  %v3231 = vadd.f32 %v3162, %v3173
  %v3232 = vadd.f32 %v3183, %v3194
  %v3233 = vadd.f32 %v3184, %v3195
  %v3234 = vadd.f32 %v3205, %v3216
  %v3235 = vadd.f32 %v3206, %v3217
  %v3236 = vadd.f32 %v3220, %v3222
  %v3237 = vadd.f32 %v3221, %v3223
  %v3238 = vadd.f32 %v3224, %v3226
  %v3239 = vadd.f32 %v3225, %v3227
  %v3240 = vadd.f32 %v3228, %v3230
  %v3241 = vadd.f32 %v3229, %v3231
  %v3242 = vadd.f32 %v3232, %v3234
  %v3243 = vadd.f32 %v3233, %v3235
  %v3244 = vadd.f32 %v3236, %v3238
  %v3245 = vadd.f32 %v3237, %v3239
  %v3246 = vadd.f32 %v3240, %v3242
  %v3247 = vadd.f32 %v3241, %v3243
  %v3248 = vadd.f32 %v3244, %v3246
  %v3249 = vadd.f32 %v3245, %v3247
  %v3250 = vadd.f32 %v3218, %v3248
  %v3251 = vadd.f32 %v3219, %v3249
  %v3252 = vxor.u32 %v3250, 2147483648
  %v3253 = vxor.u32 %v3251, 2147483648
  %v3254 = vmul.f32 %v3252, 1.442695
  %v3255 = vpow.pop %v3254
  %v3256 = vmul.f32 %v3253, 1.442695
  %v3257 = vpow.pop %v3256
  %v3258 = vadd.f32 %v3255, 1.0
  %v3259 = vadd.f32 %v3257, 1.0
  %v3260 = vrcp.pop %v3258
  %v3261 = vmul.f32 %v3258, %v3260
  %v3262 = vsub.f32 1.0, %v3261
  %v3263 = vmul.f32 %v3260, %v3262
  %v3264 = vadd.f32 %v3260, %v3263
  %vm3265 = vweird.f32 %v3258
  %vm3266 = vweird.f32 %v3260
  %vm3267 = vmor %vm3265, %vm3266
  %v3268 = vsel %vm3267, %v3260, %v3264
  %v3269 = vand.u32 2147483647, %v3258
  %vm3270 = vcmp.eq.f32.partialorder %v3269, 8.507059e+37
  %v3271 = vand.u32 %v3258, 2147483648
  %v3272 = vor.u32 1.1754944e-38, %v3271
  %v3273 = vsel %vm3270, %v3272, %v3268
  %v3274 = vmul.f32 1.0, %v3273
  %v3275 = vrcp.pop %v3259
  %v3276 = vmul.f32 %v3259, %v3275
  %v3277 = vsub.f32 1.0, %v3276
  %v3278 = vmul.f32 %v3275, %v3277
  %v3279 = vadd.f32 %v3275, %v3278
  %vm3280 = vweird.f32 %v3259
  %vm3281 = vweird.f32 %v3275
  %vm3282 = vmor %vm3280, %vm3281
  %v3283 = vsel %vm3282, %v3275, %v3279
  %v3284 = vand.u32 2147483647, %v3259
  %vm3285 = vcmp.eq.f32.partialorder %v3284, 8.507059e+37
  %v3286 = vand.u32 %v3259, 2147483648
  %v3287 = vor.u32 1.1754944e-38, %v3286
  %v3288 = vsel %vm3285, %v3287, %v3283
  %v3289 = vmul.f32 1.0, %v3288
  %vm3290 = vcmask 23552
  %3291 = vst.msk [vmem:[%s4] sm:$0xff] %vm3290, %v3274
  %3292 = vst.msk [vmem:[%s4 + $0x8] sm:$0xff] %vm3290, %v3289
  // Predicated region
  $region18: #{neural_cde_forward.1} parent=0 // pred_check
    _
  $region19: #{neural_cde_forward.1} parent=0 // pred_check_branch
    %3294 = sbr.rel (0) target = $region21
  $region20: #{neural_cde_forward.1} parent=0 // pred_region
    _
  $region21: #{neural_cde_forward.1} parent=0 // pred_fallthru
    _
  // Predicated region
  $region22: #{neural_cde_forward.1} parent=0 // pred_check
    _
  $region23: #{neural_cde_forward.1} parent=0 // pred_check_branch
    %3296 = sbr.rel (0) target = $region25
  $region24: #{neural_cde_forward.1} parent=0 // pred_region
    _
  $region25: #{neural_cde_forward.1} parent=0 // pred_fallthru
    _

</llo_original>
